<compile_context>
chip_gen: v7x
topology: tpu7x:2x2x1
jax: 0.10.0
libtpu: 0.0.40
codegen_flags: <defaults>
</compile_context>

<pallas_src>
import functools

import numpy as np
import jax
import jax.numpy as jnp
from jax.experimental import pallas as pl
from jax.experimental.pallas import tpu as pltpu

# ---- module configuration (PyTorch defaults of DirectTemporalNeRF) --------
D = 8                   # number of MLP layers in the time net
W = 256                 # hidden width
NUM_FREQS = 10          # positional-encoding frequencies (multires)
X_DIM = 3 + 3 * 2 * NUM_FREQS       # 63  (embedded xyz)
T_DIM = 1 + 1 * 2 * NUM_FREQS       # 21  (embedded time)
SKIPS = (4,)            # skip (cat embedded pts back in) after layer index 4
HEAD_DIM = 3 + 3 + 4 + 48           # 58  (dx | dx_scale | dx_rot | mlp_shs)
HEAD_PAD = 64           # lane-friendly padded head width (extra cols are zero)
TILE_N_MAX = 1024       # default sweep point (raise to 2048 for very large N)


# ------------------------------ embedding ----------------------------------
def positional_encode(v, num_freqs=NUM_FREQS):
    """NeRF positional encoding: [v, sin(v*2^0), cos(v*2^0), ..., sin/cos(v*2^9)]."""
    parts = [v]
    for k in range(num_freqs):
        f = jnp.asarray(2.0 ** k, v.dtype)
        parts.append(jnp.sin(v * f))
        parts.append(jnp.cos(v * f))
    return jnp.concatenate(parts, axis=-1)


# ------------------------------ tiling helpers ------------------------------
def _choose_tile(n, tile_max=TILE_N_MAX):
    """Largest tile <= tile_max that still gives a grid of >= 2 steps (so both
    v7x TensorCores get work via dimension_semantics=("parallel",)), rounded
    to a multiple of 64 rows (bf16 sublane packing / MXU friendliness)."""
    half = -(-n // 2)                    # cdiv(n, 2)
    tile = -(-half // 64) * 64           # round up to multiple of 64
    return max(64, min(tile_max, tile))


def _derive_vmem_limit(tile_n):
    """Conservative VMEM budget from tile sizes (re-derived so a tile that is
    fine on v5e/v6e does not overshoot v7x's 64 MiB-per-TC physical VMEM)."""
    # double-buffered weight blocks (bf16) + biases (f32)
    weight = 2 * (2 * (2 * X_DIM * W + (D - 1) * W * W + W * HEAD_PAD)
                  + 4 * (D * W + HEAD_PAD))
    # double-buffered x (bf16) / out (f32) streaming blocks
    stream = 2 * tile_n * (X_DIM * 2 + HEAD_PAD * 4)
    # live per-step activations: z/skip f32 + h bf16 + epilogue copies
    live = tile_n * W * 12
    est = weight + stream + live
    return int(min(64 * 1024 * 1024, max(2 * est, 16 * 1024 * 1024)))


# ------------------------------ Pallas kernel ------------------------------
def _time_net_kernel(x_ref, w0_ref, wmid_ref, wskip_ref, b_ref,
                     whead_ref, bhead_ref, out_ref):
    # x_ref: (TILE_N, 63) bf16 embedded points.  Weights bf16; biases f32.
    xb = x_ref[...]                                           # bf16
    b_all = b_ref[...]                                        # (D, W) f32

    # Layer 0: the (constant) time embedding is folded into b_all[0] on host.
    z = jnp.dot(xb, w0_ref[...],
                preferred_element_type=jnp.float32) + b_all[0:1, :]
    h = jnp.maximum(z, 0.0).astype(jnp.bfloat16)              # keep h in bf16

    # Layers 1 .. D-1 (layer 5 receives the skip connection = pts @ W_skip).
    for i in range(D - 1):
        layer = i + 1
        z = jnp.dot(h, wmid_ref[i],
                    preferred_element_type=jnp.float32) + b_all[layer:layer + 1, :]
        if (layer - 1) in SKIPS:      # torch.cat([pts, h]) feeding this layer
            z = z + jnp.dot(xb, wskip_ref[...],
                            preferred_element_type=jnp.float32)
        h = jnp.maximum(z, 0.0).astype(jnp.bfloat16)

    # Packed heads: [dx(3)|dx_scale(3)|dx_rot(4)|mlp_shs(48)|zeros(6)] -> (TILE_N, 64)
    out_ref[...] = jnp.dot(h, whead_ref[...],
                           preferred_element_type=jnp.float32) + bhead_ref[...]


def _pallas_time_net(x_emb, w0x, wmid, wskip, b_eff, whead, bhead, *, tile_n):
    n = x_emb.shape[0]
    grid = (n // tile_n,)

    weight_bytes = (w0x.size + wmid.size + wskip.size + whead.size) * 2 \
        + (b_eff.size + bhead.size) * 4
    flops = 2 * n * (X_DIM * W + (D - 1) * W * W + X_DIM * W + W * HEAD_PAD)
    bytes_accessed = weight_bytes + n * (X_DIM * 2 + HEAD_PAD * 4)

    return pl.pallas_call(
        _time_net_kernel,
        out_shape=jax.ShapeDtypeStruct((n, HEAD_PAD), jnp.float32),
        grid_spec=pltpu.PrefetchScalarGridSpec(
            num_scalar_prefetch=0,
            grid=grid,
            in_specs=[
                pl.BlockSpec((tile_n, X_DIM), lambda i: (i, 0)),      # x_emb (bf16)
                pl.BlockSpec((X_DIM, W), lambda i: (0, 0)),           # w0x (bf16)
                pl.BlockSpec((D - 1, W, W), lambda i: (0, 0, 0)),     # wmid (bf16)
                pl.BlockSpec((X_DIM, W), lambda i: (0, 0)),           # wskip (bf16)
                pl.BlockSpec((D, W), lambda i: (0, 0)),               # biases (f32)
                pl.BlockSpec((W, HEAD_PAD), lambda i: (0, 0)),        # whead (bf16)
                pl.BlockSpec((1, HEAD_PAD), lambda i: (0, 0)),        # bhead (f32)
            ],
            out_specs=pl.BlockSpec((tile_n, HEAD_PAD), lambda i: (i, 0)),
        ),
        compiler_params=pltpu.CompilerParams(
            dimension_semantics=("parallel",),
            vmem_limit_bytes=_derive_vmem_limit(tile_n)),
        cost_estimate=pl.CostEstimate(
            flops=int(flops), transcendentals=0, bytes_accessed=int(bytes_accessed)),
    )(x_emb, w0x, wmid, wskip, b_eff, whead, bhead)


# ------------------------------ jitted forward ------------------------------
@functools.partial(jax.jit, static_argnames=("tile_max",))
def _forward_main(params, x, ts, tile_max=TILE_N_MAX):
    n = x.shape[0]
    tile_n = _choose_tile(n, tile_max)

    x_emb = positional_encode(x).astype(jnp.bfloat16)         # (N, 63) bf16 stream

    # Single unique time per call (optionally asserted host-side): fold the
    # time part of layer 0 into its bias:  b0' = b0 + embed(t) @ W0[63:, :]
    t_row = positional_encode(ts[:1])                         # (1, 21)
    b0_eff = params["b"][0:1] + jnp.dot(
        t_row.astype(jnp.bfloat16), params["w0t"],
        preferred_element_type=jnp.float32)
    b_eff = jnp.concatenate([b0_eff, params["b"][1:]], axis=0)   # (D, W)

    n_pad = -(-n // tile_n) * tile_n
    if n_pad != n:
        x_emb = jnp.concatenate(
            [x_emb, jnp.zeros((n_pad - n, X_DIM), x_emb.dtype)], axis=0)

    heads = _pallas_time_net(x_emb, params["w0x"], params["wmid"],
                             params["wskip"], b_eff, params["whead"],
                             params["bhead"], tile_n=tile_n)
    heads = heads[:n]
    return (heads[:, 0:3], heads[:, 3:6], heads[:, 6:10], heads[:, 10:HEAD_DIM])


def direct_temporal_nerf_forward(params, x, ts, iteration,
                                 tile_max=TILE_N_MAX, check_time=False):
    if check_time:
        # Mirrors torch: assert len(torch.unique(ts[:, :1])) == 1.
        # Forces a device->host sync; keep disabled in hot loops (the kernel
        # always uses ts[0] for all points, matching the module contract).
        assert np.unique(np.asarray(ts[:, :1])).size == 1, \
            "Only accepts all points from same time"
    n = x.shape[0]
    if iteration < 3000:
        z3 = jnp.zeros((n, 3), x.dtype)
        return (z3, z3, jnp.zeros((n, 4), x.dtype), jnp.zeros((n, 48), x.dtype))
    return _forward_main(params, x, ts, tile_max=tile_max)


# ------------------------------ parameters ---------------------------------
def init_params(key):
    """Deterministic PyTorch-Linear-style init; matmul weights stored (in,out) bf16."""
    ks = list(jax.random.split(key, 24))

    def unif(k, shape, fan_in):
        bound = 1.0 / np.sqrt(fan_in)
        return jax.random.uniform(k, shape, jnp.float32, -bound, bound)

    it = iter(ks)
    fan0 = X_DIM + T_DIM                                     # 84
    w0 = unif(next(it), (fan0, W), fan0)
    biases = [unif(next(it), (W,), fan0)]

    wmid, wskip = [], None
    for i in range(D - 1):
        layer = i + 1
        fan_in = W + (X_DIM if (layer - 1) in SKIPS else 0)
        w_full = unif(next(it), (fan_in, W), fan_in)
        if (layer - 1) in SKIPS:
            wskip = w_full[:X_DIM]          # multiplies the re-injected pts
            wmid.append(w_full[X_DIM:])     # multiplies h
        else:
            wmid.append(w_full)
        biases.append(unif(next(it), (W,), fan_in))

    head_w, head_b = [], []
    for out_dim in (3, 3, 4, 48):           # dx, dx_scale, dx_rot, mlp_shs
        head_w.append(unif(next(it), (W, out_dim), W))
        head_b.append(unif(next(it), (out_dim,), W))

    whead = jnp.concatenate(head_w, axis=-1)                  # (256, 58)
    whead = jnp.pad(whead, ((0, 0), (0, HEAD_PAD - HEAD_DIM)))  # -> (256, 64)
    bhead = jnp.concatenate(head_b)                            # (58,)
    bhead = jnp.pad(bhead, (0, HEAD_PAD - HEAD_DIM))[None, :]  # -> (1, 64)

    return {
        "w0x": w0[:X_DIM].astype(jnp.bfloat16),               # (63, 256)
        "w0t": w0[X_DIM:].astype(jnp.bfloat16),               # (21, 256)
        "wmid": jnp.stack(wmid).astype(jnp.bfloat16),          # (7, 256, 256)
        "wskip": wskip.astype(jnp.bfloat16),                   # (63, 256)
        "b": jnp.stack(biases),                                # (8, 256) f32
        "whead": whead.astype(jnp.bfloat16),                   # (256, 64) zero-padded
        "bhead": bhead,                                        # (1, 64) f32 zero-padded
    }


# ------------------------------ pure-JAX reference --------------------------
def forward_reference(params, x, ts, iteration):
    n = x.shape[0]
    if iteration < 3000:
        z3 = jnp.zeros((n, 3), x.dtype)
        return (z3, z3, jnp.zeros((n, 4), x.dtype), jnp.zeros((n, 48), x.dtype))

    def mm(a, w):   # same numerics as the kernel: bf16 inputs, f32 accumulation
        return jnp.dot(a.astype(jnp.bfloat16), w, preferred_element_type=jnp.float32)

    x_emb = positional_encode(x)
    t_emb = positional_encode(ts)
    w0 = jnp.concatenate([params["w0x"], params["w0t"]], axis=0)   # (84, 256)
    h = jax.nn.relu(mm(jnp.concatenate([x_emb, t_emb], -1), w0) + params["b"][0])
    for i in range(D - 1):
        layer = i + 1
        z = mm(h, params["wmid"][i]) + params["b"][layer]
        if (layer - 1) in SKIPS:
            z = z + mm(x_emb, params["wskip"])
        h = jax.nn.relu(z)
    heads = mm(h, params["whead"]) + params["bhead"][0]
    return (heads[:, 0:3], heads[:, 3:6], heads[:, 6:10], heads[:, 10:HEAD_DIM])


# ------------------------------------ main -----------------------------------
if __name__ == "__main__":
    key = jax.random.PRNGKey(0)
    pkey, xkey = jax.random.split(key)
    params = init_params(pkey)

    N = 1000          # tile chooser picks 512 -> pads to 1024 -> grid of 2 steps
    x = jax.random.normal(xkey, (N, 3), jnp.float32)
    ts = jnp.full((N, 1), 0.35, jnp.float32)

    # iteration < 3000: all outputs are zeros (shapes (N,3),(N,3),(N,4),(N,48))
    early = jax.block_until_ready(
        direct_temporal_nerf_forward(params, x, ts, iteration=100))
    assert early[0].shape == (N, 3) and early[1].shape == (N, 3)
    assert early[2].shape == (N, 4) and early[3].shape == (N, 48)
    assert all(float(jnp.max(jnp.abs(e))) == 0.0 for e in early)

    # main branch: full 8-layer time MLP + 4 heads inside the Pallas kernel
    out = jax.block_until_ready(
        direct_temporal_nerf_forward(params, x, ts, iteration=5000, check_time=True))
    ref = jax.block_until_ready(forward_reference(params, x, ts, 5000))

    for name, o, r in zip(("dx", "dx_scale", "dx_rot", "mlp_shs"), out, ref):
        o_np, r_np = np.asarray(o), np.asarray(r)
        assert o_np.shape == r_np.shape, (name, o_np.shape, r_np.shape)
        max_diff = float(np.max(np.abs(o_np - r_np)))
        assert np.allclose(o_np, r_np, rtol=1e-2, atol=1e-3), (name, max_diff)

    print("KERNEL_OK")
</pallas_src>

<mosaic_0001>
module attributes {stable_mosaic.version = 11 : i64} {
  func.func @_time_net_kernel(%arg0: i32, %arg1: memref<512x63xbf16, #tpu.memory_space<vmem>>, %arg2: memref<63x256xbf16, #tpu.memory_space<vmem>>, %arg3: memref<7x256x256xbf16, #tpu.memory_space<vmem>>, %arg4: memref<63x256xbf16, #tpu.memory_space<vmem>>, %arg5: memref<8x256xf32, #tpu.memory_space<vmem>>, %arg6: memref<256x64xbf16, #tpu.memory_space<vmem>>, %arg7: memref<1x64xf32, #tpu.memory_space<vmem>>, %arg8: memref<512x64xf32, #tpu.memory_space<vmem>>) attributes {dimension_semantics = [#tpu.dimension_semantics<parallel>], iteration_bounds = array<i64: 2>, scalar_prefetch = 0 : i64, scratch_operands = 0 : i64, tpu.core_type = #tpu.core_type<tc>, window_params = [{transform_indices = @transform_0, window_bounds = array<i64: 512, 63>}, {pipeline_mode = #tpu.pipeline_mode<synchronous>, transform_indices = @transform_1, window_bounds = array<i64: 63, 256>}, {pipeline_mode = #tpu.pipeline_mode<synchronous>, transform_indices = @transform_2, window_bounds = array<i64: 7, 256, 256>}, {pipeline_mode = #tpu.pipeline_mode<synchronous>, transform_indices = @transform_3, window_bounds = array<i64: 63, 256>}, {pipeline_mode = #tpu.pipeline_mode<synchronous>, transform_indices = @transform_4, window_bounds = array<i64: 8, 256>}, {pipeline_mode = #tpu.pipeline_mode<synchronous>, transform_indices = @transform_5, window_bounds = array<i64: 256, 64>}, {pipeline_mode = #tpu.pipeline_mode<synchronous>, transform_indices = @transform_6, window_bounds = array<i64: 1, 64>}, {transform_indices = @transform_7, window_bounds = array<i64: 512, 64>}]} {
    %c0 = arith.constant 0 : index
    %c0_0 = arith.constant 0 : index
    %0 = vector.load %arg1[%c0, %c0_0] : memref<512x63xbf16, #tpu.memory_space<vmem>>, vector<512x63xbf16>
    %c0_1 = arith.constant 0 : index
    %c0_2 = arith.constant 0 : index
    %1 = vector.load %arg5[%c0_1, %c0_2] : memref<8x256xf32, #tpu.memory_space<vmem>>, vector<8x256xf32>
    %c0_3 = arith.constant 0 : index
    %c0_4 = arith.constant 0 : index
    %2 = vector.load %arg2[%c0_3, %c0_4] : memref<63x256xbf16, #tpu.memory_space<vmem>>, vector<63x256xbf16>
    %cst = arith.constant dense<0.000000e+00> : vector<512x256xf32>
    %3 = tpu.matmul %0, %2, %cst {dimension_numbers = #tpu.dot_dimension_numbers<[1], [0], [0], [1], [0, 0, 1, 1], [], []>} : vector<512x63xbf16>, vector<63x256xbf16>, vector<512x256xf32> -> vector<512x256xf32>
    %4 = vector.extract_strided_slice %1 {offsets = [0, 0], sizes = [1, 256], strides = [1, 1]} : vector<8x256xf32> to vector<1x256xf32>
    %5 = vector.broadcast %4 : vector<1x256xf32> to vector<512x256xf32>
    %6 = arith.addf %3, %5 : vector<512x256xf32>
    %cst_5 = arith.constant 0.000000e+00 : f32
    %7 = vector.broadcast %cst_5 : f32 to vector<512x256xf32>
    %8 = arith.maximumf %6, %7 : vector<512x256xf32>
    %9 = arith.truncf %8 : vector<512x256xf32> to vector<512x256xbf16>
    %c0_6 = arith.constant 0 : index
    %c0_7 = arith.constant 0 : index
    %c0_8 = arith.constant 0 : index
    %10 = vector.load %arg3[%c0_6, %c0_7, %c0_8] : memref<7x256x256xbf16, #tpu.memory_space<vmem>>, vector<1x256x256xbf16>
    %11 = vector.shape_cast %10 : vector<1x256x256xbf16> to vector<256x256xbf16>
    %cst_9 = arith.constant dense<0.000000e+00> : vector<512x256xf32>
    %12 = tpu.matmul %9, %11, %cst_9 {dimension_numbers = #tpu.dot_dimension_numbers<[1], [0], [0], [1], [0, 0, 1, 1], [], []>} : vector<512x256xbf16>, vector<256x256xbf16>, vector<512x256xf32> -> vector<512x256xf32>
    %13 = vector.extract_strided_slice %1 {offsets = [1, 0], sizes = [1, 256], strides = [1, 1]} : vector<8x256xf32> to vector<1x256xf32>
    %14 = vector.broadcast %13 : vector<1x256xf32> to vector<512x256xf32>
    %15 = arith.addf %12, %14 : vector<512x256xf32>
    %cst_10 = arith.constant 0.000000e+00 : f32
    %16 = vector.broadcast %cst_10 : f32 to vector<512x256xf32>
    %17 = arith.maximumf %15, %16 : vector<512x256xf32>
    %18 = arith.truncf %17 : vector<512x256xf32> to vector<512x256xbf16>
    %c1 = arith.constant 1 : index
    %c0_11 = arith.constant 0 : index
    %c0_12 = arith.constant 0 : index
    %19 = vector.load %arg3[%c1, %c0_11, %c0_12] : memref<7x256x256xbf16, #tpu.memory_space<vmem>>, vector<1x256x256xbf16>
    %20 = vector.shape_cast %19 : vector<1x256x256xbf16> to vector<256x256xbf16>
    %cst_13 = arith.constant dense<0.000000e+00> : vector<512x256xf32>
    %21 = tpu.matmul %18, %20, %cst_13 {dimension_numbers = #tpu.dot_dimension_numbers<[1], [0], [0], [1], [0, 0, 1, 1], [], []>} : vector<512x256xbf16>, vector<256x256xbf16>, vector<512x256xf32> -> vector<512x256xf32>
    %22 = vector.extract_strided_slice %1 {offsets = [2, 0], sizes = [1, 256], strides = [1, 1]} : vector<8x256xf32> to vector<1x256xf32>
    %23 = vector.broadcast %22 : vector<1x256xf32> to vector<512x256xf32>
    %24 = arith.addf %21, %23 : vector<512x256xf32>
    %cst_14 = arith.constant 0.000000e+00 : f32
    %25 = vector.broadcast %cst_14 : f32 to vector<512x256xf32>
    %26 = arith.maximumf %24, %25 : vector<512x256xf32>
    %27 = arith.truncf %26 : vector<512x256xf32> to vector<512x256xbf16>
    %c2 = arith.constant 2 : index
    %c0_15 = arith.constant 0 : index
    %c0_16 = arith.constant 0 : index
    %28 = vector.load %arg3[%c2, %c0_15, %c0_16] : memref<7x256x256xbf16, #tpu.memory_space<vmem>>, vector<1x256x256xbf16>
    %29 = vector.shape_cast %28 : vector<1x256x256xbf16> to vector<256x256xbf16>
    %cst_17 = arith.constant dense<0.000000e+00> : vector<512x256xf32>
    %30 = tpu.matmul %27, %29, %cst_17 {dimension_numbers = #tpu.dot_dimension_numbers<[1], [0], [0], [1], [0, 0, 1, 1], [], []>} : vector<512x256xbf16>, vector<256x256xbf16>, vector<512x256xf32> -> vector<512x256xf32>
    %31 = vector.extract_strided_slice %1 {offsets = [3, 0], sizes = [1, 256], strides = [1, 1]} : vector<8x256xf32> to vector<1x256xf32>
    %32 = vector.broadcast %31 : vector<1x256xf32> to vector<512x256xf32>
    %33 = arith.addf %30, %32 : vector<512x256xf32>
    %cst_18 = arith.constant 0.000000e+00 : f32
    %34 = vector.broadcast %cst_18 : f32 to vector<512x256xf32>
    %35 = arith.maximumf %33, %34 : vector<512x256xf32>
    %36 = arith.truncf %35 : vector<512x256xf32> to vector<512x256xbf16>
    %c3 = arith.constant 3 : index
    %c0_19 = arith.constant 0 : index
    %c0_20 = arith.constant 0 : index
    %37 = vector.load %arg3[%c3, %c0_19, %c0_20] : memref<7x256x256xbf16, #tpu.memory_space<vmem>>, vector<1x256x256xbf16>
    %38 = vector.shape_cast %37 : vector<1x256x256xbf16> to vector<256x256xbf16>
    %cst_21 = arith.constant dense<0.000000e+00> : vector<512x256xf32>
    %39 = tpu.matmul %36, %38, %cst_21 {dimension_numbers = #tpu.dot_dimension_numbers<[1], [0], [0], [1], [0, 0, 1, 1], [], []>} : vector<512x256xbf16>, vector<256x256xbf16>, vector<512x256xf32> -> vector<512x256xf32>
    %40 = vector.extract_strided_slice %1 {offsets = [4, 0], sizes = [1, 256], strides = [1, 1]} : vector<8x256xf32> to vector<1x256xf32>
    %41 = vector.broadcast %40 : vector<1x256xf32> to vector<512x256xf32>
    %42 = arith.addf %39, %41 : vector<512x256xf32>
    %cst_22 = arith.constant 0.000000e+00 : f32
    %43 = vector.broadcast %cst_22 : f32 to vector<512x256xf32>
    %44 = arith.maximumf %42, %43 : vector<512x256xf32>
    %45 = arith.truncf %44 : vector<512x256xf32> to vector<512x256xbf16>
    %c4 = arith.constant 4 : index
    %c0_23 = arith.constant 0 : index
    %c0_24 = arith.constant 0 : index
    %46 = vector.load %arg3[%c4, %c0_23, %c0_24] : memref<7x256x256xbf16, #tpu.memory_space<vmem>>, vector<1x256x256xbf16>
    %47 = vector.shape_cast %46 : vector<1x256x256xbf16> to vector<256x256xbf16>
    %cst_25 = arith.constant dense<0.000000e+00> : vector<512x256xf32>
    %48 = tpu.matmul %45, %47, %cst_25 {dimension_numbers = #tpu.dot_dimension_numbers<[1], [0], [0], [1], [0, 0, 1, 1], [], []>} : vector<512x256xbf16>, vector<256x256xbf16>, vector<512x256xf32> -> vector<512x256xf32>
    %49 = vector.extract_strided_slice %1 {offsets = [5, 0], sizes = [1, 256], strides = [1, 1]} : vector<8x256xf32> to vector<1x256xf32>
    %50 = vector.broadcast %49 : vector<1x256xf32> to vector<512x256xf32>
    %51 = arith.addf %48, %50 : vector<512x256xf32>
    %c0_26 = arith.constant 0 : index
    %c0_27 = arith.constant 0 : index
    %52 = vector.load %arg4[%c0_26, %c0_27] : memref<63x256xbf16, #tpu.memory_space<vmem>>, vector<63x256xbf16>
    %cst_28 = arith.constant dense<0.000000e+00> : vector<512x256xf32>
    %53 = tpu.matmul %0, %52, %cst_28 {dimension_numbers = #tpu.dot_dimension_numbers<[1], [0], [0], [1], [0, 0, 1, 1], [], []>} : vector<512x63xbf16>, vector<63x256xbf16>, vector<512x256xf32> -> vector<512x256xf32>
    %54 = arith.addf %51, %53 : vector<512x256xf32>
    %cst_29 = arith.constant 0.000000e+00 : f32
    %55 = vector.broadcast %cst_29 : f32 to vector<512x256xf32>
    %56 = arith.maximumf %54, %55 : vector<512x256xf32>
    %57 = arith.truncf %56 : vector<512x256xf32> to vector<512x256xbf16>
    %c5 = arith.constant 5 : index
    %c0_30 = arith.constant 0 : index
    %c0_31 = arith.constant 0 : index
    %58 = vector.load %arg3[%c5, %c0_30, %c0_31] : memref<7x256x256xbf16, #tpu.memory_space<vmem>>, vector<1x256x256xbf16>
    %59 = vector.shape_cast %58 : vector<1x256x256xbf16> to vector<256x256xbf16>
    %cst_32 = arith.constant dense<0.000000e+00> : vector<512x256xf32>
    %60 = tpu.matmul %57, %59, %cst_32 {dimension_numbers = #tpu.dot_dimension_numbers<[1], [0], [0], [1], [0, 0, 1, 1], [], []>} : vector<512x256xbf16>, vector<256x256xbf16>, vector<512x256xf32> -> vector<512x256xf32>
    %61 = vector.extract_strided_slice %1 {offsets = [6, 0], sizes = [1, 256], strides = [1, 1]} : vector<8x256xf32> to vector<1x256xf32>
    %62 = vector.broadcast %61 : vector<1x256xf32> to vector<512x256xf32>
    %63 = arith.addf %60, %62 : vector<512x256xf32>
    %cst_33 = arith.constant 0.000000e+00 : f32
    %64 = vector.broadcast %cst_33 : f32 to vector<512x256xf32>
    %65 = arith.maximumf %63, %64 : vector<512x256xf32>
    %66 = arith.truncf %65 : vector<512x256xf32> to vector<512x256xbf16>
    %c6 = arith.constant 6 : index
    %c0_34 = arith.constant 0 : index
    %c0_35 = arith.constant 0 : index
    %67 = vector.load %arg3[%c6, %c0_34, %c0_35] : memref<7x256x256xbf16, #tpu.memory_space<vmem>>, vector<1x256x256xbf16>
    %68 = vector.shape_cast %67 : vector<1x256x256xbf16> to vector<256x256xbf16>
    %cst_36 = arith.constant dense<0.000000e+00> : vector<512x256xf32>
    %69 = tpu.matmul %66, %68, %cst_36 {dimension_numbers = #tpu.dot_dimension_numbers<[1], [0], [0], [1], [0, 0, 1, 1], [], []>} : vector<512x256xbf16>, vector<256x256xbf16>, vector<512x256xf32> -> vector<512x256xf32>
    %70 = vector.extract_strided_slice %1 {offsets = [7, 0], sizes = [1, 256], strides = [1, 1]} : vector<8x256xf32> to vector<1x256xf32>
    %71 = vector.broadcast %70 : vector<1x256xf32> to vector<512x256xf32>
    %72 = arith.addf %69, %71 : vector<512x256xf32>
    %cst_37 = arith.constant 0.000000e+00 : f32
    %73 = vector.broadcast %cst_37 : f32 to vector<512x256xf32>
    %74 = arith.maximumf %72, %73 : vector<512x256xf32>
    %75 = arith.truncf %74 : vector<512x256xf32> to vector<512x256xbf16>
    %c0_38 = arith.constant 0 : index
    %c0_39 = arith.constant 0 : index
    %76 = vector.load %arg6[%c0_38, %c0_39] : memref<256x64xbf16, #tpu.memory_space<vmem>>, vector<256x64xbf16>
    %cst_40 = arith.constant dense<0.000000e+00> : vector<512x64xf32>
    %77 = tpu.matmul %75, %76, %cst_40 {dimension_numbers = #tpu.dot_dimension_numbers<[1], [0], [0], [1], [0, 0, 1, 1], [], []>} : vector<512x256xbf16>, vector<256x64xbf16>, vector<512x64xf32> -> vector<512x64xf32>
    %c0_41 = arith.constant 0 : index
    %c0_42 = arith.constant 0 : index
    %78 = vector.load %arg7[%c0_41, %c0_42] : memref<1x64xf32, #tpu.memory_space<vmem>>, vector<1x64xf32>
    %79 = vector.broadcast %78 : vector<1x64xf32> to vector<512x64xf32>
    %80 = arith.addf %77, %79 : vector<512x64xf32>
    %c0_43 = arith.constant 0 : index
    %c0_44 = arith.constant 0 : index
    %81 = vector.load %arg8[%c0_43, %c0_44] : memref<512x64xf32, #tpu.memory_space<vmem>>, vector<512x64xf32>
    tpu.vector_store %arg8[%c0_43, %c0_44], %80 {strides = array<i32>} : memref<512x64xf32, #tpu.memory_space<vmem>>, vector<512x64xf32>,
    return
  }
  func.func @transform_0(%arg0: i32) -> (i32, i32) {
    %c0_i32 = arith.constant 0 : i32
    %c0_i32_0 = arith.constant 0 : i32
    return %arg0, %c0_i32 : i32, i32
  }
  func.func @transform_1(%arg0: i32) -> (i32, i32) {
    %c0_i32 = arith.constant 0 : i32
    %c0_i32_0 = arith.constant 0 : i32
    %c0_i32_1 = arith.constant 0 : i32
    return %c0_i32, %c0_i32_0 : i32, i32
  }
  func.func @transform_2(%arg0: i32) -> (i32, i32, i32) {
    %c0_i32 = arith.constant 0 : i32
    %c0_i32_0 = arith.constant 0 : i32
    %c0_i32_1 = arith.constant 0 : i32
    %c0_i32_2 = arith.constant 0 : i32
    return %c0_i32, %c0_i32_0, %c0_i32_1 : i32, i32, i32
  }
  func.func @transform_3(%arg0: i32) -> (i32, i32) {
    %c0_i32 = arith.constant 0 : i32
    %c0_i32_0 = arith.constant 0 : i32
    %c0_i32_1 = arith.constant 0 : i32
    return %c0_i32, %c0_i32_0 : i32, i32
  }
  func.func @transform_4(%arg0: i32) -> (i32, i32) {
    %c0_i32 = arith.constant 0 : i32
    %c0_i32_0 = arith.constant 0 : i32
    %c0_i32_1 = arith.constant 0 : i32
    return %c0_i32, %c0_i32_0 : i32, i32
  }
  func.func @transform_5(%arg0: i32) -> (i32, i32) {
    %c0_i32 = arith.constant 0 : i32
    %c0_i32_0 = arith.constant 0 : i32
    %c0_i32_1 = arith.constant 0 : i32
    return %c0_i32, %c0_i32_0 : i32, i32
  }
  func.func @transform_6(%arg0: i32) -> (i32, i32) {
    %c0_i32 = arith.constant 0 : i32
    %c0_i32_0 = arith.constant 0 : i32
    %c0_i32_1 = arith.constant 0 : i32
    return %c0_i32, %c0_i32_0 : i32, i32
  }
  func.func @transform_7(%arg0: i32) -> (i32, i32) {
    %c0_i32 = arith.constant 0 : i32
    %c0_i32_0 = arith.constant 0 : i32
    return %arg0, %c0_i32 : i32, i32
  }
}

</mosaic_0001>

<llo_original>
// kernel: _forward_main.1
$region0: #{_forward_main.1}
  #allocation0 [shape = 'u32[]', space=smem, size = 0x4, offset = 0x4, fixed_abs, tag = 'smem constant byte address 0x4 - core index']
  #allocation1 [shape = 'u32[144,128]{1,0:T(1,128)}', space=vmem, size = 0x12000, scoped, tag = 'internal scratch']
  %s0 = inlined_call_operand.vmem [shape: bf16[1024,63], index: 0, kind: input, shape index: {}]
  %s1 = inlined_call_operand.vmem [shape: bf16[63,256], index: 1, kind: input, shape index: {}]
  %s2 = inlined_call_operand.vmem [shape: bf16[7,256,256], index: 2, kind: input, shape index: {}]
  %s3 = inlined_call_operand.vmem [shape: bf16[63,256], index: 3, kind: input, shape index: {}]
  %s4 = inlined_call_operand.vmem [shape: f32[8,256], index: 4, kind: input, shape index: {}]
  %s5 = inlined_call_operand.vmem [shape: bf16[256,64], index: 5, kind: input, shape index: {}]
  %s6 = inlined_call_operand.vmem [shape: f32[1,64], index: 6, kind: input, shape index: {}]
  %s7 = inlined_call_operand.vmem [shape: f32[1024,64], index: 7, kind: output, shape index: {}]
  %s8 = sld [smem:[#allocation0]]
  $region61: #{_forward_main.1} parent=0
    _
  %s10 = ssub.s32 1, %s8
  %s11 = scalar_select 0, %s10, %s8
  loop: start=0, step=1, limit=4
  $region2: #{_forward_main.1} parent=0 // loop_pre_header
    _
  $region3: #{_forward_main.1} parent=0 // loop_header
    %s13 = sphi 0, %s17
    %p14 = scmp.ge.s32.totalorder %s13, 4
    %s23 = sphi 0, %s25
    %s26 = sphi 0, %s23
    %s27 = sphi 0, %s26
    %s43 = sphi 0, %s27
    %s47 = sphi 0, %s47
    %s49 = sphi 0, %s47
    %s50 = sphi 0, %s49
    %s64 = sphi 0, %s50
    %s68 = sphi 0, %s68
    %s70 = sphi 0, %s68
    %s71 = sphi 0, %s70
    %s85 = sphi 0, %s71
    %s89 = sphi 0, %s89
    %s91 = sphi 0, %s89
    %s92 = sphi 0, %s91
    %s106 = sphi 0, %s92
    %s110 = sphi 0, %s110
    %s112 = sphi 0, %s110
    %s113 = sphi 0, %s112
    %s127 = sphi 0, %s113
    %s131 = sphi 0, %s131
    %s133 = sphi 0, %s131
    %s134 = sphi 0, %s133
    %s148 = sphi 0, %s134
    %s152 = sphi 0, %s152
    %s154 = sphi 0, %s152
    %s155 = sphi 0, %s154
    %s169 = sphi 0, %s155
    %s175 = sphi 0, %s177
    %s178 = sphi 0, %s175
    %s179 = sphi 0, %s178
    %s195 = sphi 0, %s179
  $region4: #{_forward_main.1} parent=0 // loop_header_branch
    %16 = sbr.rel (%p14) target = $region8
  $region5: #{_forward_main.1} parent=0 // loop_body
    %s18 = ssub.s32 %s13, 1
    %s19 = ssub.s32 %s13, 2
    %s20 = sadd.s32 %s13, 1
    %s21 = ssub.s32 %s13, %s20
    %p22 = scmp.eq.s32.totalorder %s21, 0
    %s24 = sadd.s32 %s23, 1
    %s25 = scalar_select %p22, %s23, %s24
    %p28 = pneg %p22
    %p29 = scmp.eq.s32.totalorder %s13, 1
    %p30 = por %p28, %p29
    %p31 = scmp.ne.s32.totalorder %s23, %s26
    %p32 = scmp.eq.s32.totalorder %s13, 0
    %p33 = por %p31, %p32
    %p34 = scmp.ne.s32.totalorder %s23, %s26
    %p35 = scmp.eq.s32.totalorder %s18, 1
    %p36 = por %p34, %p35
    %p37 = scmp.ne.s32.totalorder %s26, %s27
    %p38 = scmp.eq.s32.totalorder %s18, 0
    %p39 = por %p37, %p38
    %p40 = scmp.ne.s32.totalorder %s26, %s27
    %p41 = scmp.eq.s32.totalorder %s19, 1
    %p42 = por %p40, %p41
    %p44 = scmp.ne.s32.totalorder %s27, %s43
    %p45 = scmp.eq.s32.totalorder %s19, 0
    %p46 = por %p44, %p45
    %s48 = sadd.s32 %s47, 1
    %p51 = scmp.eq.s32.totalorder %s13, 1
    %p52 = scmp.ne.s32.totalorder %s47, %s49
    %p53 = scmp.eq.s32.totalorder %s13, 0
    %p54 = por %p52, %p53
    %p55 = scmp.ne.s32.totalorder %s47, %s49
    %p56 = scmp.eq.s32.totalorder %s18, 1
    %p57 = por %p55, %p56
    %p58 = scmp.ne.s32.totalorder %s49, %s50
    %p59 = scmp.eq.s32.totalorder %s18, 0
    %p60 = por %p58, %p59
    %p61 = scmp.ne.s32.totalorder %s49, %s50
    %p62 = scmp.eq.s32.totalorder %s19, 1
    %p63 = por %p61, %p62
    %p65 = scmp.ne.s32.totalorder %s50, %s64
    %p66 = scmp.eq.s32.totalorder %s19, 0
    %p67 = por %p65, %p66
    %s69 = sadd.s32 %s68, 1
    %p72 = scmp.eq.s32.totalorder %s13, 1
    %p73 = scmp.ne.s32.totalorder %s68, %s70
    %p74 = scmp.eq.s32.totalorder %s13, 0
    %p75 = por %p73, %p74
    %p76 = scmp.ne.s32.totalorder %s68, %s70
    %p77 = scmp.eq.s32.totalorder %s18, 1
    %p78 = por %p76, %p77
    %p79 = scmp.ne.s32.totalorder %s70, %s71
    %p80 = scmp.eq.s32.totalorder %s18, 0
    %p81 = por %p79, %p80
    %p82 = scmp.ne.s32.totalorder %s70, %s71
    %p83 = scmp.eq.s32.totalorder %s19, 1
    %p84 = por %p82, %p83
    %p86 = scmp.ne.s32.totalorder %s71, %s85
    %p87 = scmp.eq.s32.totalorder %s19, 0
    %p88 = por %p86, %p87
    %s90 = sadd.s32 %s89, 1
    %p93 = scmp.eq.s32.totalorder %s13, 1
    %p94 = scmp.ne.s32.totalorder %s89, %s91
    %p95 = scmp.eq.s32.totalorder %s13, 0
    %p96 = por %p94, %p95
    %p97 = scmp.ne.s32.totalorder %s89, %s91
    %p98 = scmp.eq.s32.totalorder %s18, 1
    %p99 = por %p97, %p98
    %p100 = scmp.ne.s32.totalorder %s91, %s92
    %p101 = scmp.eq.s32.totalorder %s18, 0
    %p102 = por %p100, %p101
    %p103 = scmp.ne.s32.totalorder %s91, %s92
    %p104 = scmp.eq.s32.totalorder %s19, 1
    %p105 = por %p103, %p104
    %p107 = scmp.ne.s32.totalorder %s92, %s106
    %p108 = scmp.eq.s32.totalorder %s19, 0
    %p109 = por %p107, %p108
    %s111 = sadd.s32 %s110, 1
    %p114 = scmp.eq.s32.totalorder %s13, 1
    %p115 = scmp.ne.s32.totalorder %s110, %s112
    %p116 = scmp.eq.s32.totalorder %s13, 0
    %p117 = por %p115, %p116
    %p118 = scmp.ne.s32.totalorder %s110, %s112
    %p119 = scmp.eq.s32.totalorder %s18, 1
    %p120 = por %p118, %p119
    %p121 = scmp.ne.s32.totalorder %s112, %s113
    %p122 = scmp.eq.s32.totalorder %s18, 0
    %p123 = por %p121, %p122
    %p124 = scmp.ne.s32.totalorder %s112, %s113
    %p125 = scmp.eq.s32.totalorder %s19, 1
    %p126 = por %p124, %p125
    %p128 = scmp.ne.s32.totalorder %s113, %s127
    %p129 = scmp.eq.s32.totalorder %s19, 0
    %p130 = por %p128, %p129
    %s132 = sadd.s32 %s131, 1
    %p135 = scmp.eq.s32.totalorder %s13, 1
    %p136 = scmp.ne.s32.totalorder %s131, %s133
    %p137 = scmp.eq.s32.totalorder %s13, 0
    %p138 = por %p136, %p137
    %p139 = scmp.ne.s32.totalorder %s131, %s133
    %p140 = scmp.eq.s32.totalorder %s18, 1
    %p141 = por %p139, %p140
    %p142 = scmp.ne.s32.totalorder %s133, %s134
    %p143 = scmp.eq.s32.totalorder %s18, 0
    %p144 = por %p142, %p143
    %p145 = scmp.ne.s32.totalorder %s133, %s134
    %p146 = scmp.eq.s32.totalorder %s19, 1
    %p147 = por %p145, %p146
    %p149 = scmp.ne.s32.totalorder %s134, %s148
    %p150 = scmp.eq.s32.totalorder %s19, 0
    %p151 = por %p149, %p150
    %s153 = sadd.s32 %s152, 1
    %p156 = scmp.eq.s32.totalorder %s13, 1
    %p157 = scmp.ne.s32.totalorder %s152, %s154
    %p158 = scmp.eq.s32.totalorder %s13, 0
    %p159 = por %p157, %p158
    %p160 = scmp.ne.s32.totalorder %s152, %s154
    %p161 = scmp.eq.s32.totalorder %s18, 1
    %p162 = por %p160, %p161
    %p163 = scmp.ne.s32.totalorder %s154, %s155
    %p164 = scmp.eq.s32.totalorder %s18, 0
    %p165 = por %p163, %p164
    %p166 = scmp.ne.s32.totalorder %s154, %s155
    %p167 = scmp.eq.s32.totalorder %s19, 1
    %p168 = por %p166, %p167
    %p170 = scmp.ne.s32.totalorder %s155, %s169
    %p171 = scmp.eq.s32.totalorder %s19, 0
    %p172 = por %p170, %p171
    %s173 = ssub.s32 %s13, %s20
    %p174 = scmp.eq.s32.totalorder %s173, 0
    %s176 = sadd.s32 %s175, 1
    %s177 = scalar_select %p174, %s175, %s176
    %p180 = pneg %p174
    %p181 = scmp.eq.s32.totalorder %s13, 1
    %p182 = por %p180, %p181
    %p183 = scmp.ne.s32.totalorder %s175, %s178
    %p184 = scmp.eq.s32.totalorder %s13, 0
    %p185 = por %p183, %p184
    %p186 = scmp.ne.s32.totalorder %s175, %s178
    %p187 = scmp.eq.s32.totalorder %s18, 1
    %p188 = por %p186, %p187
    %p189 = scmp.ne.s32.totalorder %s178, %s179
    %p190 = scmp.eq.s32.totalorder %s18, 0
    %p191 = por %p189, %p190
    %p192 = scmp.ne.s32.totalorder %s178, %s179
    %p193 = scmp.eq.s32.totalorder %s19, 1
    %p194 = por %p192, %p193
    %p196 = scmp.ne.s32.totalorder %s179, %s195
    %p197 = scmp.eq.s32.totalorder %s19, 0
    %p198 = por %p196, %p197
    %p199 = scmp.le.s32.totalorder 1, %s13
    %p200 = scmp.lt.s32.totalorder %s13, 3
    %p201 = pnand %p199, %p200
    %p202 = pneg %p201
    // Predicated region
    $region9: #{_forward_main.1} parent=5 // pred_check
      _
    $region10: #{_forward_main.1} parent=5 // pred_check_branch
      %204 = sbr.rel (%p201) target = $region12
    $region11: #{_forward_main.1} parent=5 // pred_region
      %s205 = ssub.s32 %s13, 1
      // Predicated region
      $region13: #{_forward_main.1} parent=11 // pred_check
        %p206 = pneg %p60
      $region14: #{_forward_main.1} parent=11 // pred_check_branch
        %208 = sbr.rel (%p206) target = $region16
      $region15: #{_forward_main.1} parent=11 // pred_region
        _
      $region16: #{_forward_main.1} parent=11 // pred_fallthru
        _
      // Predicated region
      $region17: #{_forward_main.1} parent=11 // pred_check
        %p209 = pneg %p81
      $region18: #{_forward_main.1} parent=11 // pred_check_branch
        %211 = sbr.rel (%p209) target = $region20
      $region19: #{_forward_main.1} parent=11 // pred_region
        _
      $region20: #{_forward_main.1} parent=11 // pred_fallthru
        _
      // Predicated region
      $region21: #{_forward_main.1} parent=11 // pred_check
        %p212 = pneg %p102
      $region22: #{_forward_main.1} parent=11 // pred_check_branch
        %214 = sbr.rel (%p212) target = $region24
      $region23: #{_forward_main.1} parent=11 // pred_region
        _
      $region24: #{_forward_main.1} parent=11 // pred_fallthru
        _
      // Predicated region
      $region25: #{_forward_main.1} parent=11 // pred_check
        %p215 = pneg %p123
      $region26: #{_forward_main.1} parent=11 // pred_check_branch
        %217 = sbr.rel (%p215) target = $region28
      $region27: #{_forward_main.1} parent=11 // pred_region
        _
      $region28: #{_forward_main.1} parent=11 // pred_fallthru
        _
      // Predicated region
      $region29: #{_forward_main.1} parent=11 // pred_check
        %p218 = pneg %p144
      $region30: #{_forward_main.1} parent=11 // pred_check_branch
        %220 = sbr.rel (%p218) target = $region32
      $region31: #{_forward_main.1} parent=11 // pred_region
        _
      $region32: #{_forward_main.1} parent=11 // pred_fallthru
        _
      // Predicated region
      $region33: #{_forward_main.1} parent=11 // pred_check
        %p221 = pneg %p165
      $region34: #{_forward_main.1} parent=11 // pred_check_branch
        %223 = sbr.rel (%p221) target = $region36
      $region35: #{_forward_main.1} parent=11 // pred_region
        _
      $region36: #{_forward_main.1} parent=11 // pred_fallthru
        _
    $region12: #{_forward_main.1} parent=5 // pred_fallthru
      _
    %p224 = scmp.lt.s32.totalorder %s13, 2
    // Predicated region
    $region37: #{_forward_main.1} parent=5 // pred_check
      %p225 = pneg %p224
    $region38: #{_forward_main.1} parent=5 // pred_check_branch
      %227 = sbr.rel (%p225) target = $region40
    $region39: #{_forward_main.1} parent=5 // pred_region
      // Predicated region
      $region41: #{_forward_main.1} parent=39 // pred_check
        %p228 = pneg %p33
      $region42: #{_forward_main.1} parent=39 // pred_check_branch
        %230 = sbr.rel (%p228) target = $region44
      $region43: #{_forward_main.1} parent=39 // pred_region
        %s231 = smul.u32 64, %s13
        %p232 = scmp.lt.s32.totalorder %s231, 127
        %s233 = scalar_select %p232, %s231, 127
        %s234 = smul.addr %s233, 4
        %s235 = scalar_lea.vmem %s0, %s234
        %s236 = smul.u32 64, %s13
      $region44: #{_forward_main.1} parent=39 // pred_fallthru
        _
    $region40: #{_forward_main.1} parent=5 // pred_fallthru
      _
    %p237 = scmp.le.s32.totalorder 1, %s13
    %p238 = scmp.lt.s32.totalorder %s13, 3
    %p239 = pnand %p237, %p238
    %p240 = pneg %p239
    // Predicated region
    $region45: #{_forward_main.1} parent=5 // pred_check
      _
    $region46: #{_forward_main.1} parent=5 // pred_check_branch
      %242 = sbr.rel (%p239) target = $region48
    $region47: #{_forward_main.1} parent=5 // pred_region
      %s243 = ssub.s32 %s13, 1
      %s244 = smul.u32 64, %s18
      %p245 = scmp.lt.s32.totalorder %s244, 127
      %s246 = scalar_select %p245, %s244, 127
      %s247 = smul.addr %s246, 4
      %s248 = scalar_lea.vmem %s0, %s247
      %p249 = pneg %p39
      %p250 = pneg %p36
      %p251 = pneg %p60
      %p252 = pneg %p57
      %p253 = pneg %p81
      %p254 = pneg %p78
      %p255 = pneg %p102
      %p256 = pneg %p99
      %p257 = pneg %p123
      %p258 = pneg %p120
      %p259 = pneg %p144
      %p260 = pneg %p141
      %p261 = pneg %p165
      %p262 = pneg %p162
      %p263 = pneg %p191
      %p264 = pneg %p188
      %s265 = smul.u32 64, %s18
      %p266 = scmp.lt.s32.totalorder %s265, 127
      %s267 = scalar_select %p266, %s265, 127
      %s268 = smul.addr %s267, 8
      %s269 = scalar_lea.vmem %s7, %s268
      %s270 = smul.u32 64, %s18
      %p271 = scmp.lt.s32.totalorder %s270, 127
      %s272 = scalar_select %p271, %s270, 127
      %s273 = smul.addr %s272, 4
      %s274 = scalar_lea.vmem %s0, %s273
      %s275 = smul.u32 64, %s18
      %s276 = smul.u32 64, %s18
      %p277 = scmp.lt.s32.totalorder %s276, 127
      %s278 = scalar_select %p277, %s276, 127
      %s279 = smul.addr %s278, 8
      %s280 = scalar_lea.vmem %s7, %s279
      %s281 = smul.u32 64, %s18
      %v283 = vld [vmem:[%s274] sm:$0xf]
      %v284 = vld [vmem:[%s274 + $0x4] sm:$0xf]
      %v285 = vld [vmem:[%s274 + $0x8] sm:$0xf]
      %v286 = vld [vmem:[%s274 + $0xc] sm:$0xf]
      %v287 = vld [vmem:[%s274 + $0x10] sm:$0xf]
      %v288 = vld [vmem:[%s274 + $0x14] sm:$0xf]
      %v289 = vld [vmem:[%s274 + $0x18] sm:$0xf]
      %v290 = vld [vmem:[%s274 + $0x1c] sm:$0xf]
      %v291 = vld [vmem:[%s274 + $0x20] sm:$0xf]
      %v292 = vld [vmem:[%s274 + $0x24] sm:$0xf]
      %v293 = vld [vmem:[%s274 + $0x28] sm:$0xf]
      %v294 = vld [vmem:[%s274 + $0x2c] sm:$0xf]
      %v295 = vld [vmem:[%s274 + $0x30] sm:$0xf]
      %v296 = vld [vmem:[%s274 + $0x34] sm:$0xf]
      %v297 = vld [vmem:[%s274 + $0x38] sm:$0xf]
      %v298 = vld [vmem:[%s274 + $0x3c] sm:$0xf]
      %v299 = vld [vmem:[%s274 + $0x40] sm:$0xf]
      %v300 = vld [vmem:[%s274 + $0x44] sm:$0xf]
      %v301 = vld [vmem:[%s274 + $0x48] sm:$0xf]
      %v302 = vld [vmem:[%s274 + $0x4c] sm:$0xf]
      %v303 = vld [vmem:[%s274 + $0x50] sm:$0xf]
      %v304 = vld [vmem:[%s274 + $0x54] sm:$0xf]
      %v305 = vld [vmem:[%s274 + $0x58] sm:$0xf]
      %v306 = vld [vmem:[%s274 + $0x5c] sm:$0xf]
      %v307 = vld [vmem:[%s274 + $0x60] sm:$0xf]
      %v308 = vld [vmem:[%s274 + $0x64] sm:$0xf]
      %v309 = vld [vmem:[%s274 + $0x68] sm:$0xf]
      %v310 = vld [vmem:[%s274 + $0x6c] sm:$0xf]
      %v311 = vld [vmem:[%s274 + $0x70] sm:$0xf]
      %v312 = vld [vmem:[%s274 + $0x74] sm:$0xf]
      %v313 = vld [vmem:[%s274 + $0x78] sm:$0xf]
      %v314 = vld [vmem:[%s274 + $0x7c] sm:$0xf]
      %v315 = vld [vmem:[%s274 + $0x80] sm:$0xf]
      %v316 = vld [vmem:[%s274 + $0x84] sm:$0xf]
      %v317 = vld [vmem:[%s274 + $0x88] sm:$0xf]
      %v318 = vld [vmem:[%s274 + $0x8c] sm:$0xf]
      %v319 = vld [vmem:[%s274 + $0x90] sm:$0xf]
      %v320 = vld [vmem:[%s274 + $0x94] sm:$0xf]
      %v321 = vld [vmem:[%s274 + $0x98] sm:$0xf]
      %v322 = vld [vmem:[%s274 + $0x9c] sm:$0xf]
      %v323 = vld [vmem:[%s274 + $0xa0] sm:$0xf]
      %v324 = vld [vmem:[%s274 + $0xa4] sm:$0xf]
      %v325 = vld [vmem:[%s274 + $0xa8] sm:$0xf]
      %v326 = vld [vmem:[%s274 + $0xac] sm:$0xf]
      %v327 = vld [vmem:[%s274 + $0xb0] sm:$0xf]
      %v328 = vld [vmem:[%s274 + $0xb4] sm:$0xf]
      %v329 = vld [vmem:[%s274 + $0xb8] sm:$0xf]
      %v330 = vld [vmem:[%s274 + $0xbc] sm:$0xf]
      %v331 = vld [vmem:[%s274 + $0xc0] sm:$0xf]
      %v332 = vld [vmem:[%s274 + $0xc4] sm:$0xf]
      %v333 = vld [vmem:[%s274 + $0xc8] sm:$0xf]
      %v334 = vld [vmem:[%s274 + $0xcc] sm:$0xf]
      %v335 = vld [vmem:[%s274 + $0xd0] sm:$0xf]
      %v336 = vld [vmem:[%s274 + $0xd4] sm:$0xf]
      %v337 = vld [vmem:[%s274 + $0xd8] sm:$0xf]
      %v338 = vld [vmem:[%s274 + $0xdc] sm:$0xf]
      %v339 = vld [vmem:[%s274 + $0xe0] sm:$0xf]
      %v340 = vld [vmem:[%s274 + $0xe4] sm:$0xf]
      %v341 = vld [vmem:[%s274 + $0xe8] sm:$0xf]
      %v342 = vld [vmem:[%s274 + $0xec] sm:$0xf]
      %v343 = vld [vmem:[%s274 + $0xf0] sm:$0xf]
      %v344 = vld [vmem:[%s274 + $0xf4] sm:$0xf]
      %v345 = vld [vmem:[%s274 + $0xf8] sm:$0xf]
      %v346 = vld [vmem:[%s274 + $0xfc] sm:$0xf]
      %v347 = vld [vmem:[%s4] sm:$0xff]
      %v348 = vld [vmem:[%s4 + $0x8] sm:$0xff]
      %v349 = vld [vmem:[%s1] sm:$0xff]
      %v350 = vld [vmem:[%s1 + $0x8] sm:$0xff]
      %v351 = vld [vmem:[%s1 + $0x10] sm:$0xff]
      %v352 = vld [vmem:[%s1 + $0x18] sm:$0xff]
      %v353 = vld [vmem:[%s1 + $0x20] sm:$0xff]
      %v354 = vld [vmem:[%s1 + $0x28] sm:$0xff]
      %v355 = vld [vmem:[%s1 + $0x30] sm:$0xff]
      %v356 = vld [vmem:[%s1 + $0x38] sm:$0xff]
      %v357 = vlaneseq
      %v358 = vshrl.u32 %v357, 7
      %v359 = vsub.s32 0, %v358
      %v360 = vrot.slane %v347, %v359
      %v361 = vlaneseq
      %v362 = vshrl.u32 %v361, 7
      %v363 = vsub.s32 0, %v362
      %v364 = vrot.slane %v348, %v363
      %v429 = vunpack.c.l.b16 %v283
      %v430 = vunpack.c.l.b16 %v284
      %v431 = vunpack.c.l.b16 %v285
      %v432 = vunpack.c.l.b16 %v286
      %v433 = vunpack.c.l.b16 %v287
      %v434 = vunpack.c.l.b16 %v288
      %v435 = vunpack.c.l.b16 %v289
      %v436 = vunpack.c.l.b16 %v290
      %v437 = vunpack.c.l.b16 %v291
      %v438 = vunpack.c.l.b16 %v292
      %v439 = vunpack.c.l.b16 %v293
      %v440 = vunpack.c.l.b16 %v294
      %v441 = vunpack.c.l.b16 %v295
      %v442 = vunpack.c.l.b16 %v296
      %v443 = vunpack.c.l.b16 %v297
      %v444 = vunpack.c.l.b16 %v298
      %v445 = vunpack.c.l.b16 %v299
      %v446 = vunpack.c.l.b16 %v300
      %v447 = vunpack.c.l.b16 %v301
      %v448 = vunpack.c.l.b16 %v302
      %v449 = vunpack.c.l.b16 %v303
      %v450 = vunpack.c.l.b16 %v304
      %v451 = vunpack.c.l.b16 %v305
      %v452 = vunpack.c.l.b16 %v306
      %v453 = vunpack.c.l.b16 %v307
      %v454 = vunpack.c.l.b16 %v308
      %v455 = vunpack.c.l.b16 %v309
      %v456 = vunpack.c.l.b16 %v310
      %v457 = vunpack.c.l.b16 %v311
      %v458 = vunpack.c.l.b16 %v312
      %v459 = vunpack.c.l.b16 %v313
      %v460 = vunpack.c.l.b16 %v314
      %v461 = vunpack.c.l.b16 %v315
      %v462 = vunpack.c.l.b16 %v316
      %v463 = vunpack.c.l.b16 %v317
      %v464 = vunpack.c.l.b16 %v318
      %v465 = vunpack.c.l.b16 %v319
      %v466 = vunpack.c.l.b16 %v320
      %v467 = vunpack.c.l.b16 %v321
      %v468 = vunpack.c.l.b16 %v322
      %v469 = vunpack.c.l.b16 %v323
      %v470 = vunpack.c.l.b16 %v324
      %v471 = vunpack.c.l.b16 %v325
      %v472 = vunpack.c.l.b16 %v326
      %v473 = vunpack.c.l.b16 %v327
      %v474 = vunpack.c.l.b16 %v328
      %v475 = vunpack.c.l.b16 %v329
      %v476 = vunpack.c.l.b16 %v330
      %v477 = vunpack.c.l.b16 %v331
      %v478 = vunpack.c.l.b16 %v332
      %v479 = vunpack.c.l.b16 %v333
      %v480 = vunpack.c.l.b16 %v334
      %v481 = vunpack.c.l.b16 %v335
      %v482 = vunpack.c.l.b16 %v336
      %v483 = vunpack.c.l.b16 %v337
      %v484 = vunpack.c.l.b16 %v338
      %v485 = vunpack.c.l.b16 %v339
      %v486 = vunpack.c.l.b16 %v340
      %v487 = vunpack.c.l.b16 %v341
      %v488 = vunpack.c.l.b16 %v342
      %v489 = vunpack.c.l.b16 %v343
      %v490 = vunpack.c.l.b16 %v344
      %v491 = vunpack.c.l.b16 %v345
      %v492 = vunpack.c.l.b16 %v346
      %v493 = vpack.c.b16 %v430, %v429
      %v494 = vpack.c.b16 %v432, %v431
      %v495 = vpack.c.b16 %v434, %v433
      %v496 = vpack.c.b16 %v436, %v435
      %v497 = vpack.c.b16 %v438, %v437
      %v498 = vpack.c.b16 %v440, %v439
      %v499 = vpack.c.b16 %v442, %v441
      %v500 = vpack.c.b16 %v444, %v443
      %v501 = vpack.c.b16 %v446, %v445
      %v502 = vpack.c.b16 %v448, %v447
      %v503 = vpack.c.b16 %v450, %v449
      %v504 = vpack.c.b16 %v452, %v451
      %v505 = vpack.c.b16 %v454, %v453
      %v506 = vpack.c.b16 %v456, %v455
      %v507 = vpack.c.b16 %v458, %v457
      %v508 = vpack.c.b16 %v460, %v459
      %v509 = vpack.c.b16 %v462, %v461
      %v510 = vpack.c.b16 %v464, %v463
      %v511 = vpack.c.b16 %v466, %v465
      %v512 = vpack.c.b16 %v468, %v467
      %v513 = vpack.c.b16 %v470, %v469
      %v514 = vpack.c.b16 %v472, %v471
      %v515 = vpack.c.b16 %v474, %v473
      %v516 = vpack.c.b16 %v476, %v475
      %v517 = vpack.c.b16 %v478, %v477
      %v518 = vpack.c.b16 %v480, %v479
      %v519 = vpack.c.b16 %v482, %v481
      %v520 = vpack.c.b16 %v484, %v483
      %v521 = vpack.c.b16 %v486, %v485
      %v522 = vpack.c.b16 %v488, %v487
      %v523 = vpack.c.b16 %v490, %v489
      %v524 = vpack.c.b16 %v492, %v491
      %v533 = vunpack.c.l.b16 %v349
      %v534 = vunpack.c.h.b16 %v349
      %v535 = vunpack.c.l.b16 %v350
      %v536 = vunpack.c.h.b16 %v350
      %v537 = vunpack.c.l.b16 %v351
      %v538 = vunpack.c.h.b16 %v351
      %v539 = vunpack.c.l.b16 %v352
      %v540 = vunpack.c.h.b16 %v352
      %v541 = vunpack.c.l.b16 %v353
      %v542 = vunpack.c.h.b16 %v353
      %v543 = vunpack.c.l.b16 %v354
      %v544 = vunpack.c.h.b16 %v354
      %v545 = vunpack.c.l.b16 %v355
      %v546 = vunpack.c.h.b16 %v355
      %v547 = vunpack.c.l.b16 %v356
      %v548 = vunpack.c.h.b16 %v356
      %v549 = vpack.c.b16 %v535, %v533
      %v550 = vpack.c.b16 %v536, %v534
      %v551 = vpack.c.b16 %v539, %v537
      %v552 = vpack.c.b16 %v540, %v538
      %v553 = vpack.c.b16 %v543, %v541
      %v554 = vpack.c.b16 %v544, %v542
      %v555 = vpack.c.b16 %v547, %v545
      %v556 = vpack.c.b16 %v548, %v546
      %vm563 = vcmask 515072
      %v565 = vsel %vm563, %v493, 0
      %v568 = vsel %vm563, %v494, 0
      %v571 = vsel %vm563, %v495, 0
      %v574 = vsel %vm563, %v496, 0
      %v577 = vsel %vm563, %v497, 0
      %v580 = vsel %vm563, %v498, 0
      %v583 = vsel %vm563, %v499, 0
      %v586 = vsel %vm563, %v500, 0
      %v589 = vsel %vm563, %v501, 0
      %v592 = vsel %vm563, %v502, 0
      %v595 = vsel %vm563, %v503, 0
      %v598 = vsel %vm563, %v504, 0
      %v601 = vsel %vm563, %v505, 0
      %v604 = vsel %vm563, %v506, 0
      %v607 = vsel %vm563, %v507, 0
      %v610 = vsel %vm563, %v508, 0
      %v613 = vsel %vm563, %v509, 0
      %v616 = vsel %vm563, %v510, 0
      %v619 = vsel %vm563, %v511, 0
      %v622 = vsel %vm563, %v512, 0
      %v625 = vsel %vm563, %v513, 0
      %v628 = vsel %vm563, %v514, 0
      %v631 = vsel %vm563, %v515, 0
      %v634 = vsel %vm563, %v516, 0
      %v637 = vsel %vm563, %v517, 0
      %v640 = vsel %vm563, %v518, 0
      %v643 = vsel %vm563, %v519, 0
      %v646 = vsel %vm563, %v520, 0
      %v649 = vsel %vm563, %v521, 0
      %v652 = vsel %vm563, %v522, 0
      %v655 = vsel %vm563, %v523, 0
      %v658 = vsel %vm563, %v524, 0
      %vm660 = vcmask 1046528
      %vm661 = vcmask 1047552
      %v662 = vsel %vm660, 4294967295, 65535
      %v663 = vsel %vm661, %v662, 0
      %v665 = vand.u32 %v555, %v663
      %v668 = vand.u32 %v556, %v663
      %670 = vmatprep.subr.bf16.mxu0 %v550
      %671 = vmatpush1.bf16.msra.mxu0 %v549
      %672 = vmatprep.subr.bf16.mxu0 %v552
      %673 = vmatpush1.bf16.msra.mxu0 %v551
      %674 = vmatprep.subr.bf16.mxu0 %v554
      %675 = vmatpush1.bf16.msra.mxu0 %v553
      %676 = vmatprep.subr.bf16.mxu0 %v668
      %677 = vmatpush1.bf16.msra.mxu0 %v665
      %678 = vmatprep.subr.bf16.mxu0 0
      %679 = vmatpush1.bf16.msra.mxu0 0
      %680 = vmatprep.subr.bf16.mxu0 0
      %681 = vmatpush1.bf16.msra.mxu0 0
      %682 = vmatprep.subr.bf16.mxu0 0
      %683 = vmatpush1.bf16.msra.mxu0 0
      %684 = vmatprep.subr.bf16.mxu0 0
      %685 = vmatpush1.bf16.msra.mxu0 0
      %686 = vmatprep.subr.bf16.mxu0 0
      %687 = vmatpush1.bf16.msra.mxu0 0
      %688 = vmatprep.subr.bf16.mxu0 0
      %689 = vmatpush1.bf16.msra.mxu0 0
      %690 = vmatprep.subr.bf16.mxu0 0
      %691 = vmatpush1.bf16.msra.mxu0 0
      %692 = vmatprep.subr.bf16.mxu0 0
      %693 = vmatpush1.bf16.msra.mxu0 0
      %694 = vmatprep.subr.bf16.mxu0 0
      %695 = vmatpush1.bf16.msra.mxu0 0
      %696 = vmatprep.subr.bf16.mxu0 0
      %697 = vmatpush1.bf16.msra.mxu0 0
      %698 = vmatprep.subr.bf16.mxu0 0
      %699 = vmatpush1.bf16.msra.mxu0 0
      %700 = vmatprep.subr.bf16.mxu0 0
      %701 = vmatpush1.bf16.msra.mxu0 0
      %702 = vmatprep.mubr.bf16.mxu0 0
      %703 = vmatmul.mubr.bf16.gmra.mrb[0].mxu0 %v565
      %v704 = vpop.f32.mrb[0].mxu0
      %v705 = vadd.f32 %v360, %v704
      %v706 = vpop.f32.mrb[0].mxu0
      %v707 = vadd.f32 %v364, %v706
      %v708 = vpop.f32.mrb[0].mxu0
      %v709 = vadd.f32 %v360, %v708
      %v710 = vpop.f32.mrb[0].mxu0
      %v711 = vadd.f32 %v364, %v710
      %712 = vmatprep.mubr.bf16.mxu0 0
      %713 = vmatmul.mubr.bf16.gmra.mrb[0].mxu0 %v568
      %v714 = vpop.f32.mrb[0].mxu0
      %v715 = vadd.f32 %v360, %v714
      %v716 = vpop.f32.mrb[0].mxu0
      %v717 = vadd.f32 %v364, %v716
      %v718 = vpop.f32.mrb[0].mxu0
      %v719 = vadd.f32 %v360, %v718
      %v720 = vpop.f32.mrb[0].mxu0
      %v721 = vadd.f32 %v364, %v720
      %722 = vmatprep.mubr.bf16.mxu0 0
      %723 = vmatmul.mubr.bf16.gmra.mrb[0].mxu0 %v571
      %v724 = vpop.f32.mrb[0].mxu0
      %v725 = vadd.f32 %v360, %v724
      %v726 = vpop.f32.mrb[0].mxu0
      %v727 = vadd.f32 %v364, %v726
      %v728 = vpop.f32.mrb[0].mxu0
      %v729 = vadd.f32 %v360, %v728
      %v730 = vpop.f32.mrb[0].mxu0
      %v731 = vadd.f32 %v364, %v730
      %732 = vmatprep.mubr.bf16.mxu0 0
      %733 = vmatmul.mubr.bf16.gmra.mrb[0].mxu0 %v574
      %v734 = vpop.f32.mrb[0].mxu0
      %v735 = vadd.f32 %v360, %v734
      %v736 = vpop.f32.mrb[0].mxu0
      %v737 = vadd.f32 %v364, %v736
      %v738 = vpop.f32.mrb[0].mxu0
      %v739 = vadd.f32 %v360, %v738
      %v740 = vpop.f32.mrb[0].mxu0
      %v741 = vadd.f32 %v364, %v740
      %742 = vmatprep.mubr.bf16.mxu0 0
      %743 = vmatmul.mubr.bf16.gmra.mrb[0].mxu0 %v577
      %v744 = vpop.f32.mrb[0].mxu0
      %v745 = vadd.f32 %v360, %v744
      %v746 = vpop.f32.mrb[0].mxu0
      %v747 = vadd.f32 %v364, %v746
      %v748 = vpop.f32.mrb[0].mxu0
      %v749 = vadd.f32 %v360, %v748
      %v750 = vpop.f32.mrb[0].mxu0
      %v751 = vadd.f32 %v364, %v750
      %752 = vmatprep.mubr.bf16.mxu0 0
      %753 = vmatmul.mubr.bf16.gmra.mrb[0].mxu0 %v580
      %v754 = vpop.f32.mrb[0].mxu0
      %v755 = vadd.f32 %v360, %v754
      %v756 = vpop.f32.mrb[0].mxu0
      %v757 = vadd.f32 %v364, %v756
      %v758 = vpop.f32.mrb[0].mxu0
      %v759 = vadd.f32 %v360, %v758
      %v760 = vpop.f32.mrb[0].mxu0
      %v761 = vadd.f32 %v364, %v760
      %762 = vmatprep.mubr.bf16.mxu0 0
      %763 = vmatmul.mubr.bf16.gmra.mrb[0].mxu0 %v583
      %v764 = vpop.f32.mrb[0].mxu0
      %v765 = vadd.f32 %v360, %v764
      %v766 = vpop.f32.mrb[0].mxu0
      %v767 = vadd.f32 %v364, %v766
      %v768 = vpop.f32.mrb[0].mxu0
      %v769 = vadd.f32 %v360, %v768
      %v770 = vpop.f32.mrb[0].mxu0
      %v771 = vadd.f32 %v364, %v770
      %772 = vmatprep.mubr.bf16.mxu0 0
      %773 = vmatmul.mubr.bf16.gmra.mrb[0].mxu0 %v586
      %v774 = vpop.f32.mrb[0].mxu0
      %v775 = vadd.f32 %v360, %v774
      %v776 = vpop.f32.mrb[0].mxu0
      %v777 = vadd.f32 %v364, %v776
      %v778 = vpop.f32.mrb[0].mxu0
      %v779 = vadd.f32 %v360, %v778
      %v780 = vpop.f32.mrb[0].mxu0
      %v781 = vadd.f32 %v364, %v780
      %782 = vmatprep.mubr.bf16.mxu0 0
      %783 = vmatmul.mubr.bf16.gmra.mrb[0].mxu0 %v589
      %v784 = vpop.f32.mrb[0].mxu0
      %v785 = vadd.f32 %v360, %v784
      %v786 = vpop.f32.mrb[0].mxu0
      %v787 = vadd.f32 %v364, %v786
      %v788 = vpop.f32.mrb[0].mxu0
      %v789 = vadd.f32 %v360, %v788
      %v790 = vpop.f32.mrb[0].mxu0
      %v791 = vadd.f32 %v364, %v790
      %792 = vmatprep.mubr.bf16.mxu0 0
      %793 = vmatmul.mubr.bf16.gmra.mrb[0].mxu0 %v592
      %v794 = vpop.f32.mrb[0].mxu0
      %v795 = vadd.f32 %v360, %v794
      %v796 = vpop.f32.mrb[0].mxu0
      %v797 = vadd.f32 %v364, %v796
      %v798 = vpop.f32.mrb[0].mxu0
      %v799 = vadd.f32 %v360, %v798
      %v800 = vpop.f32.mrb[0].mxu0
      %v801 = vadd.f32 %v364, %v800
      %802 = vmatprep.mubr.bf16.mxu0 0
      %803 = vmatmul.mubr.bf16.gmra.mrb[0].mxu0 %v595
      %v804 = vpop.f32.mrb[0].mxu0
      %v805 = vadd.f32 %v360, %v804
      %v806 = vpop.f32.mrb[0].mxu0
      %v807 = vadd.f32 %v364, %v806
      %v808 = vpop.f32.mrb[0].mxu0
      %v809 = vadd.f32 %v360, %v808
      %v810 = vpop.f32.mrb[0].mxu0
      %v811 = vadd.f32 %v364, %v810
      %812 = vmatprep.mubr.bf16.mxu0 0
      %813 = vmatmul.mubr.bf16.gmra.mrb[0].mxu0 %v598
      %v814 = vpop.f32.mrb[0].mxu0
      %v815 = vadd.f32 %v360, %v814
      %v816 = vpop.f32.mrb[0].mxu0
      %v817 = vadd.f32 %v364, %v816
      %v818 = vpop.f32.mrb[0].mxu0
      %v819 = vadd.f32 %v360, %v818
      %v820 = vpop.f32.mrb[0].mxu0
      %v821 = vadd.f32 %v364, %v820
      %822 = vmatprep.mubr.bf16.mxu0 0
      %823 = vmatmul.mubr.bf16.gmra.mrb[0].mxu0 %v601
      %v824 = vpop.f32.mrb[0].mxu0
      %v825 = vadd.f32 %v360, %v824
      %v826 = vpop.f32.mrb[0].mxu0
      %v827 = vadd.f32 %v364, %v826
      %v828 = vpop.f32.mrb[0].mxu0
      %v829 = vadd.f32 %v360, %v828
      %v830 = vpop.f32.mrb[0].mxu0
      %v831 = vadd.f32 %v364, %v830
      %832 = vmatprep.mubr.bf16.mxu0 0
      %833 = vmatmul.mubr.bf16.gmra.mrb[0].mxu0 %v604
      %v834 = vpop.f32.mrb[0].mxu0
      %v835 = vadd.f32 %v360, %v834
      %v836 = vpop.f32.mrb[0].mxu0
      %v837 = vadd.f32 %v364, %v836
      %v838 = vpop.f32.mrb[0].mxu0
      %v839 = vadd.f32 %v360, %v838
      %v840 = vpop.f32.mrb[0].mxu0
      %v841 = vadd.f32 %v364, %v840
      %842 = vmatprep.mubr.bf16.mxu0 0
      %843 = vmatmul.mubr.bf16.gmra.mrb[0].mxu0 %v607
      %v844 = vpop.f32.mrb[0].mxu0
      %v845 = vadd.f32 %v360, %v844
      %v846 = vpop.f32.mrb[0].mxu0
      %v847 = vadd.f32 %v364, %v846
      %v848 = vpop.f32.mrb[0].mxu0
      %v849 = vadd.f32 %v360, %v848
      %v850 = vpop.f32.mrb[0].mxu0
      %v851 = vadd.f32 %v364, %v850
      %852 = vmatprep.mubr.bf16.mxu0 0
      %853 = vmatmul.mubr.bf16.gmra.mrb[0].mxu0 %v610
      %v854 = vpop.f32.mrb[0].mxu0
      %v855 = vadd.f32 %v360, %v854
      %v856 = vpop.f32.mrb[0].mxu0
      %v857 = vadd.f32 %v364, %v856
      %v858 = vpop.f32.mrb[0].mxu0
      %v859 = vadd.f32 %v360, %v858
      %v860 = vpop.f32.mrb[0].mxu0
      %v861 = vadd.f32 %v364, %v860
      %862 = vmatprep.mubr.bf16.mxu0 0
      %863 = vmatmul.mubr.bf16.gmra.mrb[0].mxu0 %v613
      %v864 = vpop.f32.mrb[0].mxu0
      %v865 = vadd.f32 %v360, %v864
      %v866 = vpop.f32.mrb[0].mxu0
      %v867 = vadd.f32 %v364, %v866
      %v868 = vpop.f32.mrb[0].mxu0
      %v869 = vadd.f32 %v360, %v868
      %v870 = vpop.f32.mrb[0].mxu0
      %v871 = vadd.f32 %v364, %v870
      %872 = vmatprep.mubr.bf16.mxu0 0
      %873 = vmatmul.mubr.bf16.gmra.mrb[0].mxu0 %v616
      %v874 = vpop.f32.mrb[0].mxu0
      %v875 = vadd.f32 %v360, %v874
      %v876 = vpop.f32.mrb[0].mxu0
      %v877 = vadd.f32 %v364, %v876
      %v878 = vpop.f32.mrb[0].mxu0
      %v879 = vadd.f32 %v360, %v878
      %v880 = vpop.f32.mrb[0].mxu0
      %v881 = vadd.f32 %v364, %v880
      %882 = vmatprep.mubr.bf16.mxu0 0
      %883 = vmatmul.mubr.bf16.gmra.mrb[0].mxu0 %v619
      %v884 = vpop.f32.mrb[0].mxu0
      %v885 = vadd.f32 %v360, %v884
      %v886 = vpop.f32.mrb[0].mxu0
      %v887 = vadd.f32 %v364, %v886
      %v888 = vpop.f32.mrb[0].mxu0
      %v889 = vadd.f32 %v360, %v888
      %v890 = vpop.f32.mrb[0].mxu0
      %v891 = vadd.f32 %v364, %v890
      %892 = vmatprep.mubr.bf16.mxu0 0
      %893 = vmatmul.mubr.bf16.gmra.mrb[0].mxu0 %v622
      %v894 = vpop.f32.mrb[0].mxu0
      %v895 = vadd.f32 %v360, %v894
      %v896 = vpop.f32.mrb[0].mxu0
      %v897 = vadd.f32 %v364, %v896
      %v898 = vpop.f32.mrb[0].mxu0
      %v899 = vadd.f32 %v360, %v898
      %v900 = vpop.f32.mrb[0].mxu0
      %v901 = vadd.f32 %v364, %v900
      %902 = vmatprep.mubr.bf16.mxu0 0
      %903 = vmatmul.mubr.bf16.gmra.mrb[0].mxu0 %v625
      %v904 = vpop.f32.mrb[0].mxu0
      %v905 = vadd.f32 %v360, %v904
      %v906 = vpop.f32.mrb[0].mxu0
      %v907 = vadd.f32 %v364, %v906
      %v908 = vpop.f32.mrb[0].mxu0
      %v909 = vadd.f32 %v360, %v908
      %v910 = vpop.f32.mrb[0].mxu0
      %v911 = vadd.f32 %v364, %v910
      %912 = vmatprep.mubr.bf16.mxu0 0
      %913 = vmatmul.mubr.bf16.gmra.mrb[0].mxu0 %v628
      %v914 = vpop.f32.mrb[0].mxu0
      %v915 = vadd.f32 %v360, %v914
      %v916 = vpop.f32.mrb[0].mxu0
      %v917 = vadd.f32 %v364, %v916
      %v918 = vpop.f32.mrb[0].mxu0
      %v919 = vadd.f32 %v360, %v918
      %v920 = vpop.f32.mrb[0].mxu0
      %v921 = vadd.f32 %v364, %v920
      %922 = vmatprep.mubr.bf16.mxu0 0
      %923 = vmatmul.mubr.bf16.gmra.mrb[0].mxu0 %v631
      %v924 = vpop.f32.mrb[0].mxu0
      %v925 = vadd.f32 %v360, %v924
      %v926 = vpop.f32.mrb[0].mxu0
      %v927 = vadd.f32 %v364, %v926
      %v928 = vpop.f32.mrb[0].mxu0
      %v929 = vadd.f32 %v360, %v928
      %v930 = vpop.f32.mrb[0].mxu0
      %v931 = vadd.f32 %v364, %v930
      %932 = vmatprep.mubr.bf16.mxu0 0
      %933 = vmatmul.mubr.bf16.gmra.mrb[0].mxu0 %v634
      %v934 = vpop.f32.mrb[0].mxu0
      %v935 = vadd.f32 %v360, %v934
      %v936 = vpop.f32.mrb[0].mxu0
      %v937 = vadd.f32 %v364, %v936
      %v938 = vpop.f32.mrb[0].mxu0
      %v939 = vadd.f32 %v360, %v938
      %v940 = vpop.f32.mrb[0].mxu0
      %v941 = vadd.f32 %v364, %v940
      %942 = vmatprep.mubr.bf16.mxu0 0
      %943 = vmatmul.mubr.bf16.gmra.mrb[0].mxu0 %v637
      %v944 = vpop.f32.mrb[0].mxu0
      %v945 = vadd.f32 %v360, %v944
      %v946 = vpop.f32.mrb[0].mxu0
      %v947 = vadd.f32 %v364, %v946
      %v948 = vpop.f32.mrb[0].mxu0
      %v949 = vadd.f32 %v360, %v948
      %v950 = vpop.f32.mrb[0].mxu0
      %v951 = vadd.f32 %v364, %v950
      %952 = vmatprep.mubr.bf16.mxu0 0
      %953 = vmatmul.mubr.bf16.gmra.mrb[0].mxu0 %v640
      %v954 = vpop.f32.mrb[0].mxu0
      %v955 = vadd.f32 %v360, %v954
      %v956 = vpop.f32.mrb[0].mxu0
      %v957 = vadd.f32 %v364, %v956
      %v958 = vpop.f32.mrb[0].mxu0
      %v959 = vadd.f32 %v360, %v958
      %v960 = vpop.f32.mrb[0].mxu0
      %v961 = vadd.f32 %v364, %v960
      %962 = vmatprep.mubr.bf16.mxu0 0
      %963 = vmatmul.mubr.bf16.gmra.mrb[0].mxu0 %v643
      %v964 = vpop.f32.mrb[0].mxu0
      %v965 = vadd.f32 %v360, %v964
      %v966 = vpop.f32.mrb[0].mxu0
      %v967 = vadd.f32 %v364, %v966
      %v968 = vpop.f32.mrb[0].mxu0
      %v969 = vadd.f32 %v360, %v968
      %v970 = vpop.f32.mrb[0].mxu0
      %v971 = vadd.f32 %v364, %v970
      %972 = vmatprep.mubr.bf16.mxu0 0
      %973 = vmatmul.mubr.bf16.gmra.mrb[0].mxu0 %v646
      %v974 = vpop.f32.mrb[0].mxu0
      %v975 = vadd.f32 %v360, %v974
      %v976 = vpop.f32.mrb[0].mxu0
      %v977 = vadd.f32 %v364, %v976
      %v978 = vpop.f32.mrb[0].mxu0
      %v979 = vadd.f32 %v360, %v978
      %v980 = vpop.f32.mrb[0].mxu0
      %v981 = vadd.f32 %v364, %v980
      %982 = vmatprep.mubr.bf16.mxu0 0
      %983 = vmatmul.mubr.bf16.gmra.mrb[0].mxu0 %v649
      %v984 = vpop.f32.mrb[0].mxu0
      %v985 = vadd.f32 %v360, %v984
      %v986 = vpop.f32.mrb[0].mxu0
      %v987 = vadd.f32 %v364, %v986
      %v988 = vpop.f32.mrb[0].mxu0
      %v989 = vadd.f32 %v360, %v988
      %v990 = vpop.f32.mrb[0].mxu0
      %v991 = vadd.f32 %v364, %v990
      %992 = vmatprep.mubr.bf16.mxu0 0
      %993 = vmatmul.mubr.bf16.gmra.mrb[0].mxu0 %v652
      %v994 = vpop.f32.mrb[0].mxu0
      %v995 = vadd.f32 %v360, %v994
      %v996 = vpop.f32.mrb[0].mxu0
      %v997 = vadd.f32 %v364, %v996
      %v998 = vpop.f32.mrb[0].mxu0
      %v999 = vadd.f32 %v360, %v998
      %v1000 = vpop.f32.mrb[0].mxu0
      %v1001 = vadd.f32 %v364, %v1000
      %1002 = vmatprep.mubr.bf16.mxu0 0
      %1003 = vmatmul.mubr.bf16.gmra.mrb[0].mxu0 %v655
      %v1004 = vpop.f32.mrb[0].mxu0
      %v1005 = vadd.f32 %v360, %v1004
      %v1006 = vpop.f32.mrb[0].mxu0
      %v1007 = vadd.f32 %v364, %v1006
      %v1008 = vpop.f32.mrb[0].mxu0
      %v1009 = vadd.f32 %v360, %v1008
      %v1010 = vpop.f32.mrb[0].mxu0
      %v1011 = vadd.f32 %v364, %v1010
      %1012 = vmatprep.mubr.bf16.mxu0 0
      %1013 = vmatmul.mubr.bf16.gmra.mrb[0].mxu0 %v658
      %v1014 = vpop.f32.mrb[0].mxu0
      %v1015 = vadd.f32 %v360, %v1014
      %v1016 = vpop.f32.mrb[0].mxu0
      %v1017 = vadd.f32 %v364, %v1016
      %v1018 = vpop.f32.mrb[0].mxu0
      %v1019 = vadd.f32 %v360, %v1018
      %v1020 = vpop.f32.mrb[0].mxu0
      %v1021 = vadd.f32 %v364, %v1020
      %1022 = vdwg.mxu0
      %v1023 = vmax.f32 %v705, 0.0
      %v1024 = vmax.f32 %v707, 0.0
      %v1025 = vmax.f32 %v709, 0.0
      %v1026 = vmax.f32 %v711, 0.0
      %v1027 = vmax.f32 %v715, 0.0
      %v1028 = vmax.f32 %v717, 0.0
      %v1029 = vmax.f32 %v719, 0.0
      %v1030 = vmax.f32 %v721, 0.0
      %v1031 = vmax.f32 %v725, 0.0
      %v1032 = vmax.f32 %v727, 0.0
      %v1033 = vmax.f32 %v729, 0.0
      %v1034 = vmax.f32 %v731, 0.0
      %v1035 = vmax.f32 %v735, 0.0
      %v1036 = vmax.f32 %v737, 0.0
      %v1037 = vmax.f32 %v739, 0.0
      %v1038 = vmax.f32 %v741, 0.0
      %v1039 = vmax.f32 %v745, 0.0
      %v1040 = vmax.f32 %v747, 0.0
      %v1041 = vmax.f32 %v749, 0.0
      %v1042 = vmax.f32 %v751, 0.0
      %v1043 = vmax.f32 %v755, 0.0
      %v1044 = vmax.f32 %v757, 0.0
      %v1045 = vmax.f32 %v759, 0.0
      %v1046 = vmax.f32 %v761, 0.0
      %v1047 = vmax.f32 %v765, 0.0
      %v1048 = vmax.f32 %v767, 0.0
      %v1049 = vmax.f32 %v769, 0.0
      %v1050 = vmax.f32 %v771, 0.0
      %v1051 = vmax.f32 %v775, 0.0
      %v1052 = vmax.f32 %v777, 0.0
      %v1053 = vmax.f32 %v779, 0.0
      %v1054 = vmax.f32 %v781, 0.0
      %v1055 = vmax.f32 %v785, 0.0
      %v1056 = vmax.f32 %v787, 0.0
      %v1057 = vmax.f32 %v789, 0.0
      %v1058 = vmax.f32 %v791, 0.0
      %v1059 = vmax.f32 %v795, 0.0
      %v1060 = vmax.f32 %v797, 0.0
      %v1061 = vmax.f32 %v799, 0.0
      %v1062 = vmax.f32 %v801, 0.0
      %v1063 = vmax.f32 %v805, 0.0
      %v1064 = vmax.f32 %v807, 0.0
      %v1065 = vmax.f32 %v809, 0.0
      %v1066 = vmax.f32 %v811, 0.0
      %v1067 = vmax.f32 %v815, 0.0
      %v1068 = vmax.f32 %v817, 0.0
      %v1069 = vmax.f32 %v819, 0.0
      %v1070 = vmax.f32 %v821, 0.0
      %v1071 = vmax.f32 %v825, 0.0
      %v1072 = vmax.f32 %v827, 0.0
      %v1073 = vmax.f32 %v829, 0.0
      %v1074 = vmax.f32 %v831, 0.0
      %v1075 = vmax.f32 %v835, 0.0
      %v1076 = vmax.f32 %v837, 0.0
      %v1077 = vmax.f32 %v839, 0.0
      %v1078 = vmax.f32 %v841, 0.0
      %v1079 = vmax.f32 %v845, 0.0
      %v1080 = vmax.f32 %v847, 0.0
      %v1081 = vmax.f32 %v849, 0.0
      %v1082 = vmax.f32 %v851, 0.0
      %v1083 = vmax.f32 %v855, 0.0
      %v1084 = vmax.f32 %v857, 0.0
      %v1085 = vmax.f32 %v859, 0.0
      %v1086 = vmax.f32 %v861, 0.0
      %v1087 = vmax.f32 %v865, 0.0
      %v1088 = vmax.f32 %v867, 0.0
      %v1089 = vmax.f32 %v869, 0.0
      %v1090 = vmax.f32 %v871, 0.0
      %v1091 = vmax.f32 %v875, 0.0
      %v1092 = vmax.f32 %v877, 0.0
      %v1093 = vmax.f32 %v879, 0.0
      %v1094 = vmax.f32 %v881, 0.0
      %v1095 = vmax.f32 %v885, 0.0
      %v1096 = vmax.f32 %v887, 0.0
      %v1097 = vmax.f32 %v889, 0.0
      %v1098 = vmax.f32 %v891, 0.0
      %v1099 = vmax.f32 %v895, 0.0
      %v1100 = vmax.f32 %v897, 0.0
      %v1101 = vmax.f32 %v899, 0.0
      %v1102 = vmax.f32 %v901, 0.0
      %v1103 = vmax.f32 %v905, 0.0
      %v1104 = vmax.f32 %v907, 0.0
      %v1105 = vmax.f32 %v909, 0.0
      %v1106 = vmax.f32 %v911, 0.0
      %v1107 = vmax.f32 %v915, 0.0
      %v1108 = vmax.f32 %v917, 0.0
      %v1109 = vmax.f32 %v919, 0.0
      %v1110 = vmax.f32 %v921, 0.0
      %v1111 = vmax.f32 %v925, 0.0
      %v1112 = vmax.f32 %v927, 0.0
      %v1113 = vmax.f32 %v929, 0.0
      %v1114 = vmax.f32 %v931, 0.0
      %v1115 = vmax.f32 %v935, 0.0
      %v1116 = vmax.f32 %v937, 0.0
      %v1117 = vmax.f32 %v939, 0.0
      %v1118 = vmax.f32 %v941, 0.0
      %v1119 = vmax.f32 %v945, 0.0
      %v1120 = vmax.f32 %v947, 0.0
      %v1121 = vmax.f32 %v949, 0.0
      %v1122 = vmax.f32 %v951, 0.0
      %v1123 = vmax.f32 %v955, 0.0
      %v1124 = vmax.f32 %v957, 0.0
      %v1125 = vmax.f32 %v959, 0.0
      %v1126 = vmax.f32 %v961, 0.0
      %v1127 = vmax.f32 %v965, 0.0
      %v1128 = vmax.f32 %v967, 0.0
      %v1129 = vmax.f32 %v969, 0.0
      %v1130 = vmax.f32 %v971, 0.0
      %v1131 = vmax.f32 %v975, 0.0
      %v1132 = vmax.f32 %v977, 0.0
      %v1133 = vmax.f32 %v979, 0.0
      %v1134 = vmax.f32 %v981, 0.0
      %v1135 = vmax.f32 %v985, 0.0
      %v1136 = vmax.f32 %v987, 0.0
      %v1137 = vmax.f32 %v989, 0.0
      %v1138 = vmax.f32 %v991, 0.0
      %v1139 = vmax.f32 %v995, 0.0
      %v1140 = vmax.f32 %v997, 0.0
      %v1141 = vmax.f32 %v999, 0.0
      %v1142 = vmax.f32 %v1001, 0.0
      %v1143 = vmax.f32 %v1005, 0.0
      %v1144 = vmax.f32 %v1007, 0.0
      %v1145 = vmax.f32 %v1009, 0.0
      %v1146 = vmax.f32 %v1011, 0.0
      %v1147 = vmax.f32 %v1015, 0.0
      %v1148 = vmax.f32 %v1017, 0.0
      %v1149 = vmax.f32 %v1019, 0.0
      %v1150 = vmax.f32 %v1021, 0.0
      %v1151 = vpack.c.bf16 %v1025, %v1023
      %v1152 = vpack.c.bf16 %v1026, %v1024
      %v1153 = vpack.c.bf16 %v1029, %v1027
      %v1154 = vpack.c.bf16 %v1030, %v1028
      %v1155 = vpack.c.bf16 %v1033, %v1031
      %v1156 = vpack.c.bf16 %v1034, %v1032
      %v1157 = vpack.c.bf16 %v1037, %v1035
      %v1158 = vpack.c.bf16 %v1038, %v1036
      %v1159 = vpack.c.bf16 %v1041, %v1039
      %v1160 = vpack.c.bf16 %v1042, %v1040
      %v1161 = vpack.c.bf16 %v1045, %v1043
      %v1162 = vpack.c.bf16 %v1046, %v1044
      %v1163 = vpack.c.bf16 %v1049, %v1047
      %v1164 = vpack.c.bf16 %v1050, %v1048
      %v1165 = vpack.c.bf16 %v1053, %v1051
      %v1166 = vpack.c.bf16 %v1054, %v1052
      %v1167 = vpack.c.bf16 %v1057, %v1055
      %v1168 = vpack.c.bf16 %v1058, %v1056
      %v1169 = vpack.c.bf16 %v1061, %v1059
      %v1170 = vpack.c.bf16 %v1062, %v1060
      %v1171 = vpack.c.bf16 %v1065, %v1063
      %v1172 = vpack.c.bf16 %v1066, %v1064
      %v1173 = vpack.c.bf16 %v1069, %v1067
      %v1174 = vpack.c.bf16 %v1070, %v1068
      %v1175 = vpack.c.bf16 %v1073, %v1071
      %v1176 = vpack.c.bf16 %v1074, %v1072
      %v1177 = vpack.c.bf16 %v1077, %v1075
      %v1178 = vpack.c.bf16 %v1078, %v1076
      %v1179 = vpack.c.bf16 %v1081, %v1079
      %v1180 = vpack.c.bf16 %v1082, %v1080
      %v1181 = vpack.c.bf16 %v1085, %v1083
      %v1182 = vpack.c.bf16 %v1086, %v1084
      %v1183 = vpack.c.bf16 %v1089, %v1087
      %v1184 = vpack.c.bf16 %v1090, %v1088
      %v1185 = vpack.c.bf16 %v1093, %v1091
      %v1186 = vpack.c.bf16 %v1094, %v1092
      %v1187 = vpack.c.bf16 %v1097, %v1095
      %v1188 = vpack.c.bf16 %v1098, %v1096
      %v1189 = vpack.c.bf16 %v1101, %v1099
      %v1190 = vpack.c.bf16 %v1102, %v1100
      %v1191 = vpack.c.bf16 %v1105, %v1103
      %v1192 = vpack.c.bf16 %v1106, %v1104
      %v1193 = vpack.c.bf16 %v1109, %v1107
      %v1194 = vpack.c.bf16 %v1110, %v1108
      %v1195 = vpack.c.bf16 %v1113, %v1111
      %v1196 = vpack.c.bf16 %v1114, %v1112
      %v1197 = vpack.c.bf16 %v1117, %v1115
      %v1198 = vpack.c.bf16 %v1118, %v1116
      %v1199 = vpack.c.bf16 %v1121, %v1119
      %v1200 = vpack.c.bf16 %v1122, %v1120
      %v1201 = vpack.c.bf16 %v1125, %v1123
      %v1202 = vpack.c.bf16 %v1126, %v1124
      %v1203 = vpack.c.bf16 %v1129, %v1127
      %v1204 = vpack.c.bf16 %v1130, %v1128
      %v1205 = vpack.c.bf16 %v1133, %v1131
      %v1206 = vpack.c.bf16 %v1134, %v1132
      %v1207 = vpack.c.bf16 %v1137, %v1135
      %v1208 = vpack.c.bf16 %v1138, %v1136
      %v1209 = vpack.c.bf16 %v1141, %v1139
      %v1210 = vpack.c.bf16 %v1142, %v1140
      %v1211 = vpack.c.bf16 %v1145, %v1143
      %v1212 = vpack.c.bf16 %v1146, %v1144
      %v1213 = vpack.c.bf16 %v1149, %v1147
      %v1214 = vpack.c.bf16 %v1150, %v1148
      %v1215 = vld [vmem:[%s2] sm:$0xff]
      %v1216 = vld [vmem:[%s2 + $0x8] sm:$0xff]
      %v1217 = vld [vmem:[%s2 + $0x10] sm:$0xff]
      %v1218 = vld [vmem:[%s2 + $0x18] sm:$0xff]
      %v1219 = vld [vmem:[%s2 + $0x20] sm:$0xff]
      %v1220 = vld [vmem:[%s2 + $0x28] sm:$0xff]
      %v1221 = vld [vmem:[%s2 + $0x30] sm:$0xff]
      %v1222 = vld [vmem:[%s2 + $0x38] sm:$0xff]
      %v1223 = vld [vmem:[%s2 + $0x40] sm:$0xff]
      %v1224 = vld [vmem:[%s2 + $0x48] sm:$0xff]
      %v1225 = vld [vmem:[%s2 + $0x50] sm:$0xff]
      %v1226 = vld [vmem:[%s2 + $0x58] sm:$0xff]
      %v1227 = vld [vmem:[%s2 + $0x60] sm:$0xff]
      %v1228 = vld [vmem:[%s2 + $0x68] sm:$0xff]
      %v1229 = vld [vmem:[%s2 + $0x70] sm:$0xff]
      %v1230 = vld [vmem:[%s2 + $0x78] sm:$0xff]
      %v1231 = vld [vmem:[%s2 + $0x80] sm:$0xff]
      %v1232 = vld [vmem:[%s2 + $0x88] sm:$0xff]
      %v1233 = vld [vmem:[%s2 + $0x90] sm:$0xff]
      %v1234 = vld [vmem:[%s2 + $0x98] sm:$0xff]
      %v1235 = vld [vmem:[%s2 + $0xa0] sm:$0xff]
      %v1236 = vld [vmem:[%s2 + $0xa8] sm:$0xff]
      %v1237 = vld [vmem:[%s2 + $0xb0] sm:$0xff]
      %v1238 = vld [vmem:[%s2 + $0xb8] sm:$0xff]
      %v1239 = vld [vmem:[%s2 + $0xc0] sm:$0xff]
      %v1240 = vld [vmem:[%s2 + $0xc8] sm:$0xff]
      %v1241 = vld [vmem:[%s2 + $0xd0] sm:$0xff]
      %v1242 = vld [vmem:[%s2 + $0xd8] sm:$0xff]
      %v1243 = vld [vmem:[%s2 + $0xe0] sm:$0xff]
      %v1244 = vld [vmem:[%s2 + $0xe8] sm:$0xff]
      %v1245 = vld [vmem:[%s2 + $0xf0] sm:$0xff]
      %v1246 = vld [vmem:[%s2 + $0xf8] sm:$0xff]
      %v1247 = vlaneseq
      %v1248 = vshrl.u32 %v1247, 7
      %v1249 = vsub.s32 1, %v1248
      %v1250 = vrot.slane %v347, %v1249
      %v1251 = vlaneseq
      %v1252 = vshrl.u32 %v1251, 7
      %v1253 = vsub.s32 1, %v1252
      %v1254 = vrot.slane %v348, %v1253
      %v1287 = vunpack.c.l.b16 %v1215
      %v1288 = vunpack.c.h.b16 %v1215
      %v1289 = vunpack.c.l.b16 %v1216
      %v1290 = vunpack.c.h.b16 %v1216
      %v1291 = vunpack.c.l.b16 %v1217
      %v1292 = vunpack.c.h.b16 %v1217
      %v1293 = vunpack.c.l.b16 %v1218
      %v1294 = vunpack.c.h.b16 %v1218
      %v1295 = vunpack.c.l.b16 %v1219
      %v1296 = vunpack.c.h.b16 %v1219
      %v1297 = vunpack.c.l.b16 %v1220
      %v1298 = vunpack.c.h.b16 %v1220
      %v1299 = vunpack.c.l.b16 %v1221
      %v1300 = vunpack.c.h.b16 %v1221
      %v1301 = vunpack.c.l.b16 %v1222
      %v1302 = vunpack.c.h.b16 %v1222
      %v1303 = vunpack.c.l.b16 %v1223
      %v1304 = vunpack.c.h.b16 %v1223
      %v1305 = vunpack.c.l.b16 %v1224
      %v1306 = vunpack.c.h.b16 %v1224
      %v1307 = vunpack.c.l.b16 %v1225
      %v1308 = vunpack.c.h.b16 %v1225
      %v1309 = vunpack.c.l.b16 %v1226
      %v1310 = vunpack.c.h.b16 %v1226
      %v1311 = vunpack.c.l.b16 %v1227
      %v1312 = vunpack.c.h.b16 %v1227
      %v1313 = vunpack.c.l.b16 %v1228
      %v1314 = vunpack.c.h.b16 %v1228
      %v1315 = vunpack.c.l.b16 %v1229
      %v1316 = vunpack.c.h.b16 %v1229
      %v1317 = vunpack.c.l.b16 %v1230
      %v1318 = vunpack.c.h.b16 %v1230
      %v1319 = vunpack.c.l.b16 %v1231
      %v1320 = vunpack.c.h.b16 %v1231
      %v1321 = vunpack.c.l.b16 %v1232
      %v1322 = vunpack.c.h.b16 %v1232
      %v1323 = vunpack.c.l.b16 %v1233
      %v1324 = vunpack.c.h.b16 %v1233
      %v1325 = vunpack.c.l.b16 %v1234
      %v1326 = vunpack.c.h.b16 %v1234
      %v1327 = vunpack.c.l.b16 %v1235
      %v1328 = vunpack.c.h.b16 %v1235
      %v1329 = vunpack.c.l.b16 %v1236
      %v1330 = vunpack.c.h.b16 %v1236
      %v1331 = vunpack.c.l.b16 %v1237
      %v1332 = vunpack.c.h.b16 %v1237
      %v1333 = vunpack.c.l.b16 %v1238
      %v1334 = vunpack.c.h.b16 %v1238
      %v1335 = vunpack.c.l.b16 %v1239
      %v1336 = vunpack.c.h.b16 %v1239
      %v1337 = vunpack.c.l.b16 %v1240
      %v1338 = vunpack.c.h.b16 %v1240
      %v1339 = vunpack.c.l.b16 %v1241
      %v1340 = vunpack.c.h.b16 %v1241
      %v1341 = vunpack.c.l.b16 %v1242
      %v1342 = vunpack.c.h.b16 %v1242
      %v1343 = vunpack.c.l.b16 %v1243
      %v1344 = vunpack.c.h.b16 %v1243
      %v1345 = vunpack.c.l.b16 %v1244
      %v1346 = vunpack.c.h.b16 %v1244
      %v1347 = vunpack.c.l.b16 %v1245
      %v1348 = vunpack.c.h.b16 %v1245
      %v1349 = vunpack.c.l.b16 %v1246
      %v1350 = vunpack.c.h.b16 %v1246
      %v1351 = vpack.c.b16 %v1289, %v1287
      %v1352 = vpack.c.b16 %v1290, %v1288
      %v1353 = vpack.c.b16 %v1293, %v1291
      %v1354 = vpack.c.b16 %v1294, %v1292
      %v1355 = vpack.c.b16 %v1297, %v1295
      %v1356 = vpack.c.b16 %v1298, %v1296
      %v1357 = vpack.c.b16 %v1301, %v1299
      %v1358 = vpack.c.b16 %v1302, %v1300
      %v1359 = vpack.c.b16 %v1305, %v1303
      %v1360 = vpack.c.b16 %v1306, %v1304
      %v1361 = vpack.c.b16 %v1309, %v1307
      %v1362 = vpack.c.b16 %v1310, %v1308
      %v1363 = vpack.c.b16 %v1313, %v1311
      %v1364 = vpack.c.b16 %v1314, %v1312
      %v1365 = vpack.c.b16 %v1317, %v1315
      %v1366 = vpack.c.b16 %v1318, %v1316
      %v1367 = vpack.c.b16 %v1321, %v1319
      %v1368 = vpack.c.b16 %v1322, %v1320
      %v1369 = vpack.c.b16 %v1325, %v1323
      %v1370 = vpack.c.b16 %v1326, %v1324
      %v1371 = vpack.c.b16 %v1329, %v1327
      %v1372 = vpack.c.b16 %v1330, %v1328
      %v1373 = vpack.c.b16 %v1333, %v1331
      %v1374 = vpack.c.b16 %v1334, %v1332
      %v1375 = vpack.c.b16 %v1337, %v1335
      %v1376 = vpack.c.b16 %v1338, %v1336
      %v1377 = vpack.c.b16 %v1341, %v1339
      %v1378 = vpack.c.b16 %v1342, %v1340
      %v1379 = vpack.c.b16 %v1345, %v1343
      %v1380 = vpack.c.b16 %v1346, %v1344
      %v1381 = vpack.c.b16 %v1349, %v1347
      %v1382 = vpack.c.b16 %v1350, %v1348
      %1415 = vmatprep.subr.bf16.mxu0 %v1352
      %1416 = vmatpush1.bf16.msra.mxu0 %v1351
      %1417 = vmatprep.subr.bf16.mxu0 %v1354
      %1418 = vmatpush1.bf16.msra.mxu0 %v1353
      %1419 = vmatprep.subr.bf16.mxu0 %v1356
      %1420 = vmatpush1.bf16.msra.mxu0 %v1355
      %1421 = vmatprep.subr.bf16.mxu0 %v1358
      %1422 = vmatpush1.bf16.msra.mxu0 %v1357
      %1423 = vmatprep.subr.bf16.mxu0 %v1360
      %1424 = vmatpush1.bf16.msra.mxu0 %v1359
      %1425 = vmatprep.subr.bf16.mxu0 %v1362
      %1426 = vmatpush1.bf16.msra.mxu0 %v1361
      %1427 = vmatprep.subr.bf16.mxu0 %v1364
      %1428 = vmatpush1.bf16.msra.mxu0 %v1363
      %1429 = vmatprep.subr.bf16.mxu0 %v1366
      %1430 = vmatpush1.bf16.msra.mxu0 %v1365
      %1431 = vmatprep.subr.bf16.mxu0 %v1368
      %1432 = vmatpush1.bf16.msra.mxu0 %v1367
      %1433 = vmatprep.subr.bf16.mxu0 %v1370
      %1434 = vmatpush1.bf16.msra.mxu0 %v1369
      %1435 = vmatprep.subr.bf16.mxu0 %v1372
      %1436 = vmatpush1.bf16.msra.mxu0 %v1371
      %1437 = vmatprep.subr.bf16.mxu0 %v1374
      %1438 = vmatpush1.bf16.msra.mxu0 %v1373
      %1439 = vmatprep.subr.bf16.mxu0 %v1376
      %1440 = vmatpush1.bf16.msra.mxu0 %v1375
      %1441 = vmatprep.subr.bf16.mxu0 %v1378
      %1442 = vmatpush1.bf16.msra.mxu0 %v1377
      %1443 = vmatprep.subr.bf16.mxu0 %v1380
      %1444 = vmatpush1.bf16.msra.mxu0 %v1379
      %1445 = vmatprep.subr.bf16.mxu0 %v1382
      %1446 = vmatpush1.bf16.msra.mxu0 %v1381
      %1447 = vmatprep.mubr.bf16.mxu0 %v1152
      %1448 = vmatmul.mubr.bf16.gmra.mrb[0].mxu0 %v1151
      %v1449 = vpop.f32.mrb[0].mxu0
      %v1450 = vadd.f32 %v1250, %v1449
      %v1451 = vpop.f32.mrb[0].mxu0
      %v1452 = vadd.f32 %v1254, %v1451
      %v1453 = vpop.f32.mrb[0].mxu0
      %v1454 = vadd.f32 %v1250, %v1453
      %v1455 = vpop.f32.mrb[0].mxu0
      %v1456 = vadd.f32 %v1254, %v1455
      %1457 = vmatprep.mubr.bf16.mxu0 %v1154
      %1458 = vmatmul.mubr.bf16.gmra.mrb[0].mxu0 %v1153
      %v1459 = vpop.f32.mrb[0].mxu0
      %v1460 = vadd.f32 %v1250, %v1459
      %v1461 = vpop.f32.mrb[0].mxu0
      %v1462 = vadd.f32 %v1254, %v1461
      %v1463 = vpop.f32.mrb[0].mxu0
      %v1464 = vadd.f32 %v1250, %v1463
      %v1465 = vpop.f32.mrb[0].mxu0
      %v1466 = vadd.f32 %v1254, %v1465
      %1467 = vmatprep.mubr.bf16.mxu0 %v1156
      %1468 = vmatmul.mubr.bf16.gmra.mrb[0].mxu0 %v1155
      %v1469 = vpop.f32.mrb[0].mxu0
      %v1470 = vadd.f32 %v1250, %v1469
      %v1471 = vpop.f32.mrb[0].mxu0
      %v1472 = vadd.f32 %v1254, %v1471
      %v1473 = vpop.f32.mrb[0].mxu0
      %v1474 = vadd.f32 %v1250, %v1473
      %v1475 = vpop.f32.mrb[0].mxu0
      %v1476 = vadd.f32 %v1254, %v1475
      %1477 = vmatprep.mubr.bf16.mxu0 %v1158
      %1478 = vmatmul.mubr.bf16.gmra.mrb[0].mxu0 %v1157
      %v1479 = vpop.f32.mrb[0].mxu0
      %v1480 = vadd.f32 %v1250, %v1479
      %v1481 = vpop.f32.mrb[0].mxu0
      %v1482 = vadd.f32 %v1254, %v1481
      %v1483 = vpop.f32.mrb[0].mxu0
      %v1484 = vadd.f32 %v1250, %v1483
      %v1485 = vpop.f32.mrb[0].mxu0
      %v1486 = vadd.f32 %v1254, %v1485
      %1487 = vmatprep.mubr.bf16.mxu0 %v1160
      %1488 = vmatmul.mubr.bf16.gmra.mrb[0].mxu0 %v1159
      %v1489 = vpop.f32.mrb[0].mxu0
      %v1490 = vadd.f32 %v1250, %v1489
      %v1491 = vpop.f32.mrb[0].mxu0
      %v1492 = vadd.f32 %v1254, %v1491
      %v1493 = vpop.f32.mrb[0].mxu0
      %v1494 = vadd.f32 %v1250, %v1493
      %v1495 = vpop.f32.mrb[0].mxu0
      %v1496 = vadd.f32 %v1254, %v1495
      %1497 = vmatprep.mubr.bf16.mxu0 %v1162
      %1498 = vmatmul.mubr.bf16.gmra.mrb[0].mxu0 %v1161
      %v1499 = vpop.f32.mrb[0].mxu0
      %v1500 = vadd.f32 %v1250, %v1499
      %v1501 = vpop.f32.mrb[0].mxu0
      %v1502 = vadd.f32 %v1254, %v1501
      %v1503 = vpop.f32.mrb[0].mxu0
      %v1504 = vadd.f32 %v1250, %v1503
      %v1505 = vpop.f32.mrb[0].mxu0
      %v1506 = vadd.f32 %v1254, %v1505
      %1507 = vmatprep.mubr.bf16.mxu0 %v1164
      %1508 = vmatmul.mubr.bf16.gmra.mrb[0].mxu0 %v1163
      %v1509 = vpop.f32.mrb[0].mxu0
      %v1510 = vadd.f32 %v1250, %v1509
      %v1511 = vpop.f32.mrb[0].mxu0
      %v1512 = vadd.f32 %v1254, %v1511
      %v1513 = vpop.f32.mrb[0].mxu0
      %v1514 = vadd.f32 %v1250, %v1513
      %v1515 = vpop.f32.mrb[0].mxu0
      %v1516 = vadd.f32 %v1254, %v1515
      %1517 = vmatprep.mubr.bf16.mxu0 %v1166
      %1518 = vmatmul.mubr.bf16.gmra.mrb[0].mxu0 %v1165
      %v1519 = vpop.f32.mrb[0].mxu0
      %v1520 = vadd.f32 %v1250, %v1519
      %v1521 = vpop.f32.mrb[0].mxu0
      %v1522 = vadd.f32 %v1254, %v1521
      %v1523 = vpop.f32.mrb[0].mxu0
      %v1524 = vadd.f32 %v1250, %v1523
      %v1525 = vpop.f32.mrb[0].mxu0
      %v1526 = vadd.f32 %v1254, %v1525
      %1527 = vmatprep.mubr.bf16.mxu0 %v1168
      %1528 = vmatmul.mubr.bf16.gmra.mrb[0].mxu0 %v1167
      %v1529 = vpop.f32.mrb[0].mxu0
      %v1530 = vadd.f32 %v1250, %v1529
      %v1531 = vpop.f32.mrb[0].mxu0
      %v1532 = vadd.f32 %v1254, %v1531
      %v1533 = vpop.f32.mrb[0].mxu0
      %v1534 = vadd.f32 %v1250, %v1533
      %v1535 = vpop.f32.mrb[0].mxu0
      %v1536 = vadd.f32 %v1254, %v1535
      %1537 = vmatprep.mubr.bf16.mxu0 %v1170
      %1538 = vmatmul.mubr.bf16.gmra.mrb[0].mxu0 %v1169
      %v1539 = vpop.f32.mrb[0].mxu0
      %v1540 = vadd.f32 %v1250, %v1539
      %v1541 = vpop.f32.mrb[0].mxu0
      %v1542 = vadd.f32 %v1254, %v1541
      %v1543 = vpop.f32.mrb[0].mxu0
      %v1544 = vadd.f32 %v1250, %v1543
      %v1545 = vpop.f32.mrb[0].mxu0
      %v1546 = vadd.f32 %v1254, %v1545
      %1547 = vmatprep.mubr.bf16.mxu0 %v1172
      %1548 = vmatmul.mubr.bf16.gmra.mrb[0].mxu0 %v1171
      %v1549 = vpop.f32.mrb[0].mxu0
      %v1550 = vadd.f32 %v1250, %v1549
      %v1551 = vpop.f32.mrb[0].mxu0
      %v1552 = vadd.f32 %v1254, %v1551
      %v1553 = vpop.f32.mrb[0].mxu0
      %v1554 = vadd.f32 %v1250, %v1553
      %v1555 = vpop.f32.mrb[0].mxu0
      %v1556 = vadd.f32 %v1254, %v1555
      %1557 = vmatprep.mubr.bf16.mxu0 %v1174
      %1558 = vmatmul.mubr.bf16.gmra.mrb[0].mxu0 %v1173
      %v1559 = vpop.f32.mrb[0].mxu0
      %v1560 = vadd.f32 %v1250, %v1559
      %v1561 = vpop.f32.mrb[0].mxu0
      %v1562 = vadd.f32 %v1254, %v1561
      %v1563 = vpop.f32.mrb[0].mxu0
      %v1564 = vadd.f32 %v1250, %v1563
      %v1565 = vpop.f32.mrb[0].mxu0
      %v1566 = vadd.f32 %v1254, %v1565
      %1567 = vmatprep.mubr.bf16.mxu0 %v1176
      %1568 = vmatmul.mubr.bf16.gmra.mrb[0].mxu0 %v1175
      %v1569 = vpop.f32.mrb[0].mxu0
      %v1570 = vadd.f32 %v1250, %v1569
      %v1571 = vpop.f32.mrb[0].mxu0
      %v1572 = vadd.f32 %v1254, %v1571
      %v1573 = vpop.f32.mrb[0].mxu0
      %v1574 = vadd.f32 %v1250, %v1573
      %v1575 = vpop.f32.mrb[0].mxu0
      %v1576 = vadd.f32 %v1254, %v1575
      %1577 = vmatprep.mubr.bf16.mxu0 %v1178
      %1578 = vmatmul.mubr.bf16.gmra.mrb[0].mxu0 %v1177
      %v1579 = vpop.f32.mrb[0].mxu0
      %v1580 = vadd.f32 %v1250, %v1579
      %v1581 = vpop.f32.mrb[0].mxu0
      %v1582 = vadd.f32 %v1254, %v1581
      %v1583 = vpop.f32.mrb[0].mxu0
      %v1584 = vadd.f32 %v1250, %v1583
      %v1585 = vpop.f32.mrb[0].mxu0
      %v1586 = vadd.f32 %v1254, %v1585
      %1587 = vmatprep.mubr.bf16.mxu0 %v1180
      %1588 = vmatmul.mubr.bf16.gmra.mrb[0].mxu0 %v1179
      %v1589 = vpop.f32.mrb[0].mxu0
      %v1590 = vadd.f32 %v1250, %v1589
      %v1591 = vpop.f32.mrb[0].mxu0
      %v1592 = vadd.f32 %v1254, %v1591
      %v1593 = vpop.f32.mrb[0].mxu0
      %v1594 = vadd.f32 %v1250, %v1593
      %v1595 = vpop.f32.mrb[0].mxu0
      %v1596 = vadd.f32 %v1254, %v1595
      %1597 = vmatprep.mubr.bf16.mxu0 %v1182
      %1598 = vmatmul.mubr.bf16.gmra.mrb[0].mxu0 %v1181
      %v1599 = vpop.f32.mrb[0].mxu0
      %v1600 = vadd.f32 %v1250, %v1599
      %v1601 = vpop.f32.mrb[0].mxu0
      %v1602 = vadd.f32 %v1254, %v1601
      %v1603 = vpop.f32.mrb[0].mxu0
      %v1604 = vadd.f32 %v1250, %v1603
      %v1605 = vpop.f32.mrb[0].mxu0
      %v1606 = vadd.f32 %v1254, %v1605
      %1607 = vmatprep.mubr.bf16.mxu0 %v1184
      %1608 = vmatmul.mubr.bf16.gmra.mrb[0].mxu0 %v1183
      %v1609 = vpop.f32.mrb[0].mxu0
      %v1610 = vadd.f32 %v1250, %v1609
      %v1611 = vpop.f32.mrb[0].mxu0
      %v1612 = vadd.f32 %v1254, %v1611
      %v1613 = vpop.f32.mrb[0].mxu0
      %v1614 = vadd.f32 %v1250, %v1613
      %v1615 = vpop.f32.mrb[0].mxu0
      %v1616 = vadd.f32 %v1254, %v1615
      %1617 = vmatprep.mubr.bf16.mxu0 %v1186
      %1618 = vmatmul.mubr.bf16.gmra.mrb[0].mxu0 %v1185
      %v1619 = vpop.f32.mrb[0].mxu0
      %v1620 = vadd.f32 %v1250, %v1619
      %v1621 = vpop.f32.mrb[0].mxu0
      %v1622 = vadd.f32 %v1254, %v1621
      %v1623 = vpop.f32.mrb[0].mxu0
      %v1624 = vadd.f32 %v1250, %v1623
      %v1625 = vpop.f32.mrb[0].mxu0
      %v1626 = vadd.f32 %v1254, %v1625
      %1627 = vmatprep.mubr.bf16.mxu0 %v1188
      %1628 = vmatmul.mubr.bf16.gmra.mrb[0].mxu0 %v1187
      %v1629 = vpop.f32.mrb[0].mxu0
      %v1630 = vadd.f32 %v1250, %v1629
      %v1631 = vpop.f32.mrb[0].mxu0
      %v1632 = vadd.f32 %v1254, %v1631
      %v1633 = vpop.f32.mrb[0].mxu0
      %v1634 = vadd.f32 %v1250, %v1633
      %v1635 = vpop.f32.mrb[0].mxu0
      %v1636 = vadd.f32 %v1254, %v1635
      %1637 = vmatprep.mubr.bf16.mxu0 %v1190
      %1638 = vmatmul.mubr.bf16.gmra.mrb[0].mxu0 %v1189
      %v1639 = vpop.f32.mrb[0].mxu0
      %v1640 = vadd.f32 %v1250, %v1639
      %v1641 = vpop.f32.mrb[0].mxu0
      %v1642 = vadd.f32 %v1254, %v1641
      %v1643 = vpop.f32.mrb[0].mxu0
      %v1644 = vadd.f32 %v1250, %v1643
      %v1645 = vpop.f32.mrb[0].mxu0
      %v1646 = vadd.f32 %v1254, %v1645
      %1647 = vmatprep.mubr.bf16.mxu0 %v1192
      %1648 = vmatmul.mubr.bf16.gmra.mrb[0].mxu0 %v1191
      %v1649 = vpop.f32.mrb[0].mxu0
      %v1650 = vadd.f32 %v1250, %v1649
      %v1651 = vpop.f32.mrb[0].mxu0
      %v1652 = vadd.f32 %v1254, %v1651
      %v1653 = vpop.f32.mrb[0].mxu0
      %v1654 = vadd.f32 %v1250, %v1653
      %v1655 = vpop.f32.mrb[0].mxu0
      %v1656 = vadd.f32 %v1254, %v1655
      %1657 = vmatprep.mubr.bf16.mxu0 %v1194
      %1658 = vmatmul.mubr.bf16.gmra.mrb[0].mxu0 %v1193
      %v1659 = vpop.f32.mrb[0].mxu0
      %v1660 = vadd.f32 %v1250, %v1659
      %v1661 = vpop.f32.mrb[0].mxu0
      %v1662 = vadd.f32 %v1254, %v1661
      %v1663 = vpop.f32.mrb[0].mxu0
      %v1664 = vadd.f32 %v1250, %v1663
      %v1665 = vpop.f32.mrb[0].mxu0
      %v1666 = vadd.f32 %v1254, %v1665
      %1667 = vmatprep.mubr.bf16.mxu0 %v1196
      %1668 = vmatmul.mubr.bf16.gmra.mrb[0].mxu0 %v1195
      %v1669 = vpop.f32.mrb[0].mxu0
      %v1670 = vadd.f32 %v1250, %v1669
      %v1671 = vpop.f32.mrb[0].mxu0
      %v1672 = vadd.f32 %v1254, %v1671
      %v1673 = vpop.f32.mrb[0].mxu0
      %v1674 = vadd.f32 %v1250, %v1673
      %v1675 = vpop.f32.mrb[0].mxu0
      %v1676 = vadd.f32 %v1254, %v1675
      %1677 = vmatprep.mubr.bf16.mxu0 %v1198
      %1678 = vmatmul.mubr.bf16.gmra.mrb[0].mxu0 %v1197
      %v1679 = vpop.f32.mrb[0].mxu0
      %v1680 = vadd.f32 %v1250, %v1679
      %v1681 = vpop.f32.mrb[0].mxu0
      %v1682 = vadd.f32 %v1254, %v1681
      %v1683 = vpop.f32.mrb[0].mxu0
      %v1684 = vadd.f32 %v1250, %v1683
      %v1685 = vpop.f32.mrb[0].mxu0
      %v1686 = vadd.f32 %v1254, %v1685
      %1687 = vmatprep.mubr.bf16.mxu0 %v1200
      %1688 = vmatmul.mubr.bf16.gmra.mrb[0].mxu0 %v1199
      %v1689 = vpop.f32.mrb[0].mxu0
      %v1690 = vadd.f32 %v1250, %v1689
      %v1691 = vpop.f32.mrb[0].mxu0
      %v1692 = vadd.f32 %v1254, %v1691
      %v1693 = vpop.f32.mrb[0].mxu0
      %v1694 = vadd.f32 %v1250, %v1693
      %v1695 = vpop.f32.mrb[0].mxu0
      %v1696 = vadd.f32 %v1254, %v1695
      %1697 = vmatprep.mubr.bf16.mxu0 %v1202
      %1698 = vmatmul.mubr.bf16.gmra.mrb[0].mxu0 %v1201
      %v1699 = vpop.f32.mrb[0].mxu0
      %v1700 = vadd.f32 %v1250, %v1699
      %v1701 = vpop.f32.mrb[0].mxu0
      %v1702 = vadd.f32 %v1254, %v1701
      %v1703 = vpop.f32.mrb[0].mxu0
      %v1704 = vadd.f32 %v1250, %v1703
      %v1705 = vpop.f32.mrb[0].mxu0
      %v1706 = vadd.f32 %v1254, %v1705
      %1707 = vmatprep.mubr.bf16.mxu0 %v1204
      %1708 = vmatmul.mubr.bf16.gmra.mrb[0].mxu0 %v1203
      %v1709 = vpop.f32.mrb[0].mxu0
      %v1710 = vadd.f32 %v1250, %v1709
      %v1711 = vpop.f32.mrb[0].mxu0
      %v1712 = vadd.f32 %v1254, %v1711
      %v1713 = vpop.f32.mrb[0].mxu0
      %v1714 = vadd.f32 %v1250, %v1713
      %v1715 = vpop.f32.mrb[0].mxu0
      %v1716 = vadd.f32 %v1254, %v1715
      %1717 = vmatprep.mubr.bf16.mxu0 %v1206
      %1718 = vmatmul.mubr.bf16.gmra.mrb[0].mxu0 %v1205
      %v1719 = vpop.f32.mrb[0].mxu0
      %v1720 = vadd.f32 %v1250, %v1719
      %v1721 = vpop.f32.mrb[0].mxu0
      %v1722 = vadd.f32 %v1254, %v1721
      %v1723 = vpop.f32.mrb[0].mxu0
      %v1724 = vadd.f32 %v1250, %v1723
      %v1725 = vpop.f32.mrb[0].mxu0
      %v1726 = vadd.f32 %v1254, %v1725
      %1727 = vmatprep.mubr.bf16.mxu0 %v1208
      %1728 = vmatmul.mubr.bf16.gmra.mrb[0].mxu0 %v1207
      %v1729 = vpop.f32.mrb[0].mxu0
      %v1730 = vadd.f32 %v1250, %v1729
      %v1731 = vpop.f32.mrb[0].mxu0
      %v1732 = vadd.f32 %v1254, %v1731
      %v1733 = vpop.f32.mrb[0].mxu0
      %v1734 = vadd.f32 %v1250, %v1733
      %v1735 = vpop.f32.mrb[0].mxu0
      %v1736 = vadd.f32 %v1254, %v1735
      %1737 = vmatprep.mubr.bf16.mxu0 %v1210
      %1738 = vmatmul.mubr.bf16.gmra.mrb[0].mxu0 %v1209
      %v1739 = vpop.f32.mrb[0].mxu0
      %v1740 = vadd.f32 %v1250, %v1739
      %v1741 = vpop.f32.mrb[0].mxu0
      %v1742 = vadd.f32 %v1254, %v1741
      %v1743 = vpop.f32.mrb[0].mxu0
      %v1744 = vadd.f32 %v1250, %v1743
      %v1745 = vpop.f32.mrb[0].mxu0
      %v1746 = vadd.f32 %v1254, %v1745
      %1747 = vmatprep.mubr.bf16.mxu0 %v1212
      %1748 = vmatmul.mubr.bf16.gmra.mrb[0].mxu0 %v1211
      %v1749 = vpop.f32.mrb[0].mxu0
      %v1750 = vadd.f32 %v1250, %v1749
      %v1751 = vpop.f32.mrb[0].mxu0
      %v1752 = vadd.f32 %v1254, %v1751
      %v1753 = vpop.f32.mrb[0].mxu0
      %v1754 = vadd.f32 %v1250, %v1753
      %v1755 = vpop.f32.mrb[0].mxu0
      %v1756 = vadd.f32 %v1254, %v1755
      %1757 = vmatprep.mubr.bf16.mxu0 %v1214
      %1758 = vmatmul.mubr.bf16.gmra.mrb[0].mxu0 %v1213
      %v1759 = vpop.f32.mrb[0].mxu0
      %v1760 = vadd.f32 %v1250, %v1759
      %v1761 = vpop.f32.mrb[0].mxu0
      %v1762 = vadd.f32 %v1254, %v1761
      %v1763 = vpop.f32.mrb[0].mxu0
      %v1764 = vadd.f32 %v1250, %v1763
      %v1765 = vpop.f32.mrb[0].mxu0
      %v1766 = vadd.f32 %v1254, %v1765
      %1767 = vdwg.mxu0
      %v1768 = vmax.f32 %v1450, 0.0
      %v1769 = vmax.f32 %v1452, 0.0
      %v1770 = vmax.f32 %v1454, 0.0
      %v1771 = vmax.f32 %v1456, 0.0
      %v1772 = vmax.f32 %v1460, 0.0
      %v1773 = vmax.f32 %v1462, 0.0
      %v1774 = vmax.f32 %v1464, 0.0
      %v1775 = vmax.f32 %v1466, 0.0
      %v1776 = vmax.f32 %v1470, 0.0
      %v1777 = vmax.f32 %v1472, 0.0
      %v1778 = vmax.f32 %v1474, 0.0
      %v1779 = vmax.f32 %v1476, 0.0
      %v1780 = vmax.f32 %v1480, 0.0
      %v1781 = vmax.f32 %v1482, 0.0
      %v1782 = vmax.f32 %v1484, 0.0
      %v1783 = vmax.f32 %v1486, 0.0
      %v1784 = vmax.f32 %v1490, 0.0
      %v1785 = vmax.f32 %v1492, 0.0
      %v1786 = vmax.f32 %v1494, 0.0
      %v1787 = vmax.f32 %v1496, 0.0
      %v1788 = vmax.f32 %v1500, 0.0
      %v1789 = vmax.f32 %v1502, 0.0
      %v1790 = vmax.f32 %v1504, 0.0
      %v1791 = vmax.f32 %v1506, 0.0
      %v1792 = vmax.f32 %v1510, 0.0
      %v1793 = vmax.f32 %v1512, 0.0
      %v1794 = vmax.f32 %v1514, 0.0
      %v1795 = vmax.f32 %v1516, 0.0
      %v1796 = vmax.f32 %v1520, 0.0
      %v1797 = vmax.f32 %v1522, 0.0
      %v1798 = vmax.f32 %v1524, 0.0
      %v1799 = vmax.f32 %v1526, 0.0
      %v1800 = vmax.f32 %v1530, 0.0
      %v1801 = vmax.f32 %v1532, 0.0
      %v1802 = vmax.f32 %v1534, 0.0
      %v1803 = vmax.f32 %v1536, 0.0
      %v1804 = vmax.f32 %v1540, 0.0
      %v1805 = vmax.f32 %v1542, 0.0
      %v1806 = vmax.f32 %v1544, 0.0
      %v1807 = vmax.f32 %v1546, 0.0
      %v1808 = vmax.f32 %v1550, 0.0
      %v1809 = vmax.f32 %v1552, 0.0
      %v1810 = vmax.f32 %v1554, 0.0
      %v1811 = vmax.f32 %v1556, 0.0
      %v1812 = vmax.f32 %v1560, 0.0
      %v1813 = vmax.f32 %v1562, 0.0
      %v1814 = vmax.f32 %v1564, 0.0
      %v1815 = vmax.f32 %v1566, 0.0
      %v1816 = vmax.f32 %v1570, 0.0
      %v1817 = vmax.f32 %v1572, 0.0
      %v1818 = vmax.f32 %v1574, 0.0
      %v1819 = vmax.f32 %v1576, 0.0
      %v1820 = vmax.f32 %v1580, 0.0
      %v1821 = vmax.f32 %v1582, 0.0
      %v1822 = vmax.f32 %v1584, 0.0
      %v1823 = vmax.f32 %v1586, 0.0
      %v1824 = vmax.f32 %v1590, 0.0
      %v1825 = vmax.f32 %v1592, 0.0
      %v1826 = vmax.f32 %v1594, 0.0
      %v1827 = vmax.f32 %v1596, 0.0
      %v1828 = vmax.f32 %v1600, 0.0
      %v1829 = vmax.f32 %v1602, 0.0
      %v1830 = vmax.f32 %v1604, 0.0
      %v1831 = vmax.f32 %v1606, 0.0
      %v1832 = vmax.f32 %v1610, 0.0
      %v1833 = vmax.f32 %v1612, 0.0
      %v1834 = vmax.f32 %v1614, 0.0
      %v1835 = vmax.f32 %v1616, 0.0
      %v1836 = vmax.f32 %v1620, 0.0
      %v1837 = vmax.f32 %v1622, 0.0
      %v1838 = vmax.f32 %v1624, 0.0
      %v1839 = vmax.f32 %v1626, 0.0
      %v1840 = vmax.f32 %v1630, 0.0
      %v1841 = vmax.f32 %v1632, 0.0
      %v1842 = vmax.f32 %v1634, 0.0
      %v1843 = vmax.f32 %v1636, 0.0
      %v1844 = vmax.f32 %v1640, 0.0
      %v1845 = vmax.f32 %v1642, 0.0
      %v1846 = vmax.f32 %v1644, 0.0
      %v1847 = vmax.f32 %v1646, 0.0
      %v1848 = vmax.f32 %v1650, 0.0
      %v1849 = vmax.f32 %v1652, 0.0
      %v1850 = vmax.f32 %v1654, 0.0
      %v1851 = vmax.f32 %v1656, 0.0
      %v1852 = vmax.f32 %v1660, 0.0
      %v1853 = vmax.f32 %v1662, 0.0
      %v1854 = vmax.f32 %v1664, 0.0
      %v1855 = vmax.f32 %v1666, 0.0
      %v1856 = vmax.f32 %v1670, 0.0
      %v1857 = vmax.f32 %v1672, 0.0
      %v1858 = vmax.f32 %v1674, 0.0
      %v1859 = vmax.f32 %v1676, 0.0
      %v1860 = vmax.f32 %v1680, 0.0
      %v1861 = vmax.f32 %v1682, 0.0
      %v1862 = vmax.f32 %v1684, 0.0
      %v1863 = vmax.f32 %v1686, 0.0
      %v1864 = vmax.f32 %v1690, 0.0
      %v1865 = vmax.f32 %v1692, 0.0
      %v1866 = vmax.f32 %v1694, 0.0
      %v1867 = vmax.f32 %v1696, 0.0
      %v1868 = vmax.f32 %v1700, 0.0
      %v1869 = vmax.f32 %v1702, 0.0
      %v1870 = vmax.f32 %v1704, 0.0
      %v1871 = vmax.f32 %v1706, 0.0
      %v1872 = vmax.f32 %v1710, 0.0
      %v1873 = vmax.f32 %v1712, 0.0
      %v1874 = vmax.f32 %v1714, 0.0
      %v1875 = vmax.f32 %v1716, 0.0
      %v1876 = vmax.f32 %v1720, 0.0
      %v1877 = vmax.f32 %v1722, 0.0
      %v1878 = vmax.f32 %v1724, 0.0
      %v1879 = vmax.f32 %v1726, 0.0
      %v1880 = vmax.f32 %v1730, 0.0
      %v1881 = vmax.f32 %v1732, 0.0
      %v1882 = vmax.f32 %v1734, 0.0
      %v1883 = vmax.f32 %v1736, 0.0
      %v1884 = vmax.f32 %v1740, 0.0
      %v1885 = vmax.f32 %v1742, 0.0
      %v1886 = vmax.f32 %v1744, 0.0
      %v1887 = vmax.f32 %v1746, 0.0
      %v1888 = vmax.f32 %v1750, 0.0
      %v1889 = vmax.f32 %v1752, 0.0
      %v1890 = vmax.f32 %v1754, 0.0
      %v1891 = vmax.f32 %v1756, 0.0
      %v1892 = vmax.f32 %v1760, 0.0
      %v1893 = vmax.f32 %v1762, 0.0
      %v1894 = vmax.f32 %v1764, 0.0
      %v1895 = vmax.f32 %v1766, 0.0
      %v1896 = vpack.c.bf16 %v1770, %v1768
      %v1897 = vpack.c.bf16 %v1771, %v1769
      %v1898 = vpack.c.bf16 %v1774, %v1772
      %v1899 = vpack.c.bf16 %v1775, %v1773
      %v1900 = vpack.c.bf16 %v1778, %v1776
      %v1901 = vpack.c.bf16 %v1779, %v1777
      %v1902 = vpack.c.bf16 %v1782, %v1780
      %v1903 = vpack.c.bf16 %v1783, %v1781
      %v1904 = vpack.c.bf16 %v1786, %v1784
      %v1905 = vpack.c.bf16 %v1787, %v1785
      %v1906 = vpack.c.bf16 %v1790, %v1788
      %v1907 = vpack.c.bf16 %v1791, %v1789
      %v1908 = vpack.c.bf16 %v1794, %v1792
      %v1909 = vpack.c.bf16 %v1795, %v1793
      %v1910 = vpack.c.bf16 %v1798, %v1796
      %v1911 = vpack.c.bf16 %v1799, %v1797
      %v1912 = vpack.c.bf16 %v1802, %v1800
      %v1913 = vpack.c.bf16 %v1803, %v1801
      %v1914 = vpack.c.bf16 %v1806, %v1804
      %v1915 = vpack.c.bf16 %v1807, %v1805
      %v1916 = vpack.c.bf16 %v1810, %v1808
      %v1917 = vpack.c.bf16 %v1811, %v1809
      %v1918 = vpack.c.bf16 %v1814, %v1812
      %v1919 = vpack.c.bf16 %v1815, %v1813
      %v1920 = vpack.c.bf16 %v1818, %v1816
      %v1921 = vpack.c.bf16 %v1819, %v1817
      %v1922 = vpack.c.bf16 %v1822, %v1820
      %v1923 = vpack.c.bf16 %v1823, %v1821
      %v1924 = vpack.c.bf16 %v1826, %v1824
      %v1925 = vpack.c.bf16 %v1827, %v1825
      %v1926 = vpack.c.bf16 %v1830, %v1828
      %v1927 = vpack.c.bf16 %v1831, %v1829
      %v1928 = vpack.c.bf16 %v1834, %v1832
      %v1929 = vpack.c.bf16 %v1835, %v1833
      %v1930 = vpack.c.bf16 %v1838, %v1836
      %v1931 = vpack.c.bf16 %v1839, %v1837
      %v1932 = vpack.c.bf16 %v1842, %v1840
      %v1933 = vpack.c.bf16 %v1843, %v1841
      %v1934 = vpack.c.bf16 %v1846, %v1844
      %v1935 = vpack.c.bf16 %v1847, %v1845
      %v1936 = vpack.c.bf16 %v1850, %v1848
      %v1937 = vpack.c.bf16 %v1851, %v1849
      %v1938 = vpack.c.bf16 %v1854, %v1852
      %v1939 = vpack.c.bf16 %v1855, %v1853
      %v1940 = vpack.c.bf16 %v1858, %v1856
      %v1941 = vpack.c.bf16 %v1859, %v1857
      %v1942 = vpack.c.bf16 %v1862, %v1860
      %v1943 = vpack.c.bf16 %v1863, %v1861
      %v1944 = vpack.c.bf16 %v1866, %v1864
      %v1945 = vpack.c.bf16 %v1867, %v1865
      %v1946 = vpack.c.bf16 %v1870, %v1868
      %v1947 = vpack.c.bf16 %v1871, %v1869
      %v1948 = vpack.c.bf16 %v1874, %v1872
      %v1949 = vpack.c.bf16 %v1875, %v1873
      %v1950 = vpack.c.bf16 %v1878, %v1876
      %v1951 = vpack.c.bf16 %v1879, %v1877
      %v1952 = vpack.c.bf16 %v1882, %v1880
      %v1953 = vpack.c.bf16 %v1883, %v1881
      %v1954 = vpack.c.bf16 %v1886, %v1884
      %v1955 = vpack.c.bf16 %v1887, %v1885
      %v1956 = vpack.c.bf16 %v1890, %v1888
      %v1957 = vpack.c.bf16 %v1891, %v1889
      %v1958 = vpack.c.bf16 %v1894, %v1892
      %v1959 = vpack.c.bf16 %v1895, %v1893
      %s1960 = scalar_lea.vmem %s2, 256
      %v1961 = vld [vmem:[%s1960] sm:$0xff]
      %v1962 = vld [vmem:[%s1960 + $0x8] sm:$0xff]
      %v1963 = vld [vmem:[%s1960 + $0x10] sm:$0xff]
      %v1964 = vld [vmem:[%s1960 + $0x18] sm:$0xff]
      %v1965 = vld [vmem:[%s1960 + $0x20] sm:$0xff]
      %v1966 = vld [vmem:[%s1960 + $0x28] sm:$0xff]
      %v1967 = vld [vmem:[%s1960 + $0x30] sm:$0xff]
      %v1968 = vld [vmem:[%s1960 + $0x38] sm:$0xff]
      %v1969 = vld [vmem:[%s1960 + $0x40] sm:$0xff]
      %v1970 = vld [vmem:[%s1960 + $0x48] sm:$0xff]
      %v1971 = vld [vmem:[%s1960 + $0x50] sm:$0xff]
      %v1972 = vld [vmem:[%s1960 + $0x58] sm:$0xff]
      %v1973 = vld [vmem:[%s1960 + $0x60] sm:$0xff]
      %v1974 = vld [vmem:[%s1960 + $0x68] sm:$0xff]
      %v1975 = vld [vmem:[%s1960 + $0x70] sm:$0xff]
      %v1976 = vld [vmem:[%s1960 + $0x78] sm:$0xff]
      %v1977 = vld [vmem:[%s1960 + $0x80] sm:$0xff]
      %v1978 = vld [vmem:[%s1960 + $0x88] sm:$0xff]
      %v1979 = vld [vmem:[%s1960 + $0x90] sm:$0xff]
      %v1980 = vld [vmem:[%s1960 + $0x98] sm:$0xff]
      %v1981 = vld [vmem:[%s1960 + $0xa0] sm:$0xff]
      %v1982 = vld [vmem:[%s1960 + $0xa8] sm:$0xff]
      %v1983 = vld [vmem:[%s1960 + $0xb0] sm:$0xff]
      %v1984 = vld [vmem:[%s1960 + $0xb8] sm:$0xff]
      %v1985 = vld [vmem:[%s1960 + $0xc0] sm:$0xff]
      %v1986 = vld [vmem:[%s1960 + $0xc8] sm:$0xff]
      %v1987 = vld [vmem:[%s1960 + $0xd0] sm:$0xff]
      %v1988 = vld [vmem:[%s1960 + $0xd8] sm:$0xff]
      %v1989 = vld [vmem:[%s1960 + $0xe0] sm:$0xff]
      %v1990 = vld [vmem:[%s1960 + $0xe8] sm:$0xff]
      %v1991 = vld [vmem:[%s1960 + $0xf0] sm:$0xff]
      %v1992 = vld [vmem:[%s1960 + $0xf8] sm:$0xff]
      %v1993 = vlaneseq
      %v1994 = vshrl.u32 %v1993, 7
      %v1995 = vsub.s32 2, %v1994
      %v1996 = vrot.slane %v347, %v1995
      %v1997 = vlaneseq
      %v1998 = vshrl.u32 %v1997, 7
      %v1999 = vsub.s32 2, %v1998
      %v2000 = vrot.slane %v348, %v1999
      %v2033 = vunpack.c.l.b16 %v1961
      %v2034 = vunpack.c.h.b16 %v1961
      %v2035 = vunpack.c.l.b16 %v1962
      %v2036 = vunpack.c.h.b16 %v1962
      %v2037 = vunpack.c.l.b16 %v1963
      %v2038 = vunpack.c.h.b16 %v1963
      %v2039 = vunpack.c.l.b16 %v1964
      %v2040 = vunpack.c.h.b16 %v1964
      %v2041 = vunpack.c.l.b16 %v1965
      %v2042 = vunpack.c.h.b16 %v1965
      %v2043 = vunpack.c.l.b16 %v1966
      %v2044 = vunpack.c.h.b16 %v1966
      %v2045 = vunpack.c.l.b16 %v1967
      %v2046 = vunpack.c.h.b16 %v1967
      %v2047 = vunpack.c.l.b16 %v1968
      %v2048 = vunpack.c.h.b16 %v1968
      %v2049 = vunpack.c.l.b16 %v1969
      %v2050 = vunpack.c.h.b16 %v1969
      %v2051 = vunpack.c.l.b16 %v1970
      %v2052 = vunpack.c.h.b16 %v1970
      %v2053 = vunpack.c.l.b16 %v1971
      %v2054 = vunpack.c.h.b16 %v1971
      %v2055 = vunpack.c.l.b16 %v1972
      %v2056 = vunpack.c.h.b16 %v1972
      %v2057 = vunpack.c.l.b16 %v1973
      %v2058 = vunpack.c.h.b16 %v1973
      %v2059 = vunpack.c.l.b16 %v1974
      %v2060 = vunpack.c.h.b16 %v1974
      %v2061 = vunpack.c.l.b16 %v1975
      %v2062 = vunpack.c.h.b16 %v1975
      %v2063 = vunpack.c.l.b16 %v1976
      %v2064 = vunpack.c.h.b16 %v1976
      %v2065 = vunpack.c.l.b16 %v1977
      %v2066 = vunpack.c.h.b16 %v1977
      %v2067 = vunpack.c.l.b16 %v1978
      %v2068 = vunpack.c.h.b16 %v1978
      %v2069 = vunpack.c.l.b16 %v1979
      %v2070 = vunpack.c.h.b16 %v1979
      %v2071 = vunpack.c.l.b16 %v1980
      %v2072 = vunpack.c.h.b16 %v1980
      %v2073 = vunpack.c.l.b16 %v1981
      %v2074 = vunpack.c.h.b16 %v1981
      %v2075 = vunpack.c.l.b16 %v1982
      %v2076 = vunpack.c.h.b16 %v1982
      %v2077 = vunpack.c.l.b16 %v1983
      %v2078 = vunpack.c.h.b16 %v1983
      %v2079 = vunpack.c.l.b16 %v1984
      %v2080 = vunpack.c.h.b16 %v1984
      %v2081 = vunpack.c.l.b16 %v1985
      %v2082 = vunpack.c.h.b16 %v1985
      %v2083 = vunpack.c.l.b16 %v1986
      %v2084 = vunpack.c.h.b16 %v1986
      %v2085 = vunpack.c.l.b16 %v1987
      %v2086 = vunpack.c.h.b16 %v1987
      %v2087 = vunpack.c.l.b16 %v1988
      %v2088 = vunpack.c.h.b16 %v1988
      %v2089 = vunpack.c.l.b16 %v1989
      %v2090 = vunpack.c.h.b16 %v1989
      %v2091 = vunpack.c.l.b16 %v1990
      %v2092 = vunpack.c.h.b16 %v1990
      %v2093 = vunpack.c.l.b16 %v1991
      %v2094 = vunpack.c.h.b16 %v1991
      %v2095 = vunpack.c.l.b16 %v1992
      %v2096 = vunpack.c.h.b16 %v1992
      %v2097 = vpack.c.b16 %v2035, %v2033
      %v2098 = vpack.c.b16 %v2036, %v2034
      %v2099 = vpack.c.b16 %v2039, %v2037
      %v2100 = vpack.c.b16 %v2040, %v2038
      %v2101 = vpack.c.b16 %v2043, %v2041
      %v2102 = vpack.c.b16 %v2044, %v2042
      %v2103 = vpack.c.b16 %v2047, %v2045
      %v2104 = vpack.c.b16 %v2048, %v2046
      %v2105 = vpack.c.b16 %v2051, %v2049
      %v2106 = vpack.c.b16 %v2052, %v2050
      %v2107 = vpack.c.b16 %v2055, %v2053
      %v2108 = vpack.c.b16 %v2056, %v2054
      %v2109 = vpack.c.b16 %v2059, %v2057
      %v2110 = vpack.c.b16 %v2060, %v2058
      %v2111 = vpack.c.b16 %v2063, %v2061
      %v2112 = vpack.c.b16 %v2064, %v2062
      %v2113 = vpack.c.b16 %v2067, %v2065
      %v2114 = vpack.c.b16 %v2068, %v2066
      %v2115 = vpack.c.b16 %v2071, %v2069
      %v2116 = vpack.c.b16 %v2072, %v2070
      %v2117 = vpack.c.b16 %v2075, %v2073
      %v2118 = vpack.c.b16 %v2076, %v2074
      %v2119 = vpack.c.b16 %v2079, %v2077
      %v2120 = vpack.c.b16 %v2080, %v2078
      %v2121 = vpack.c.b16 %v2083, %v2081
      %v2122 = vpack.c.b16 %v2084, %v2082
      %v2123 = vpack.c.b16 %v2087, %v2085
      %v2124 = vpack.c.b16 %v2088, %v2086
      %v2125 = vpack.c.b16 %v2091, %v2089
      %v2126 = vpack.c.b16 %v2092, %v2090
      %v2127 = vpack.c.b16 %v2095, %v2093
      %v2128 = vpack.c.b16 %v2096, %v2094
      %2161 = vmatprep.subr.bf16.mxu0 %v2098
      %2162 = vmatpush1.bf16.msra.mxu0 %v2097
      %2163 = vmatprep.subr.bf16.mxu0 %v2100
      %2164 = vmatpush1.bf16.msra.mxu0 %v2099
      %2165 = vmatprep.subr.bf16.mxu0 %v2102
      %2166 = vmatpush1.bf16.msra.mxu0 %v2101
      %2167 = vmatprep.subr.bf16.mxu0 %v2104
      %2168 = vmatpush1.bf16.msra.mxu0 %v2103
      %2169 = vmatprep.subr.bf16.mxu0 %v2106
      %2170 = vmatpush1.bf16.msra.mxu0 %v2105
      %2171 = vmatprep.subr.bf16.mxu0 %v2108
      %2172 = vmatpush1.bf16.msra.mxu0 %v2107
      %2173 = vmatprep.subr.bf16.mxu0 %v2110
      %2174 = vmatpush1.bf16.msra.mxu0 %v2109
      %2175 = vmatprep.subr.bf16.mxu0 %v2112
      %2176 = vmatpush1.bf16.msra.mxu0 %v2111
      %2177 = vmatprep.subr.bf16.mxu0 %v2114
      %2178 = vmatpush1.bf16.msra.mxu0 %v2113
      %2179 = vmatprep.subr.bf16.mxu0 %v2116
      %2180 = vmatpush1.bf16.msra.mxu0 %v2115
      %2181 = vmatprep.subr.bf16.mxu0 %v2118
      %2182 = vmatpush1.bf16.msra.mxu0 %v2117
      %2183 = vmatprep.subr.bf16.mxu0 %v2120
      %2184 = vmatpush1.bf16.msra.mxu0 %v2119
      %2185 = vmatprep.subr.bf16.mxu0 %v2122
      %2186 = vmatpush1.bf16.msra.mxu0 %v2121
      %2187 = vmatprep.subr.bf16.mxu0 %v2124
      %2188 = vmatpush1.bf16.msra.mxu0 %v2123
      %2189 = vmatprep.subr.bf16.mxu0 %v2126
      %2190 = vmatpush1.bf16.msra.mxu0 %v2125
      %2191 = vmatprep.subr.bf16.mxu0 %v2128
      %2192 = vmatpush1.bf16.msra.mxu0 %v2127
      %2193 = vmatprep.mubr.bf16.mxu0 %v1897
      %2194 = vmatmul.mubr.bf16.gmra.mrb[0].mxu0 %v1896
      %v2195 = vpop.f32.mrb[0].mxu0
      %v2196 = vadd.f32 %v1996, %v2195
      %v2197 = vpop.f32.mrb[0].mxu0
      %v2198 = vadd.f32 %v2000, %v2197
      %v2199 = vpop.f32.mrb[0].mxu0
      %v2200 = vadd.f32 %v1996, %v2199
      %v2201 = vpop.f32.mrb[0].mxu0
      %v2202 = vadd.f32 %v2000, %v2201
      %2203 = vmatprep.mubr.bf16.mxu0 %v1899
      %2204 = vmatmul.mubr.bf16.gmra.mrb[0].mxu0 %v1898
      %v2205 = vpop.f32.mrb[0].mxu0
      %v2206 = vadd.f32 %v1996, %v2205
      %v2207 = vpop.f32.mrb[0].mxu0
      %v2208 = vadd.f32 %v2000, %v2207
      %v2209 = vpop.f32.mrb[0].mxu0
      %v2210 = vadd.f32 %v1996, %v2209
      %v2211 = vpop.f32.mrb[0].mxu0
      %v2212 = vadd.f32 %v2000, %v2211
      %2213 = vmatprep.mubr.bf16.mxu0 %v1901
      %2214 = vmatmul.mubr.bf16.gmra.mrb[0].mxu0 %v1900
      %v2215 = vpop.f32.mrb[0].mxu0
      %v2216 = vadd.f32 %v1996, %v2215
      %v2217 = vpop.f32.mrb[0].mxu0
      %v2218 = vadd.f32 %v2000, %v2217
      %v2219 = vpop.f32.mrb[0].mxu0
      %v2220 = vadd.f32 %v1996, %v2219
      %v2221 = vpop.f32.mrb[0].mxu0
      %v2222 = vadd.f32 %v2000, %v2221
      %2223 = vmatprep.mubr.bf16.mxu0 %v1903
      %2224 = vmatmul.mubr.bf16.gmra.mrb[0].mxu0 %v1902
      %v2225 = vpop.f32.mrb[0].mxu0
      %v2226 = vadd.f32 %v1996, %v2225
      %v2227 = vpop.f32.mrb[0].mxu0
      %v2228 = vadd.f32 %v2000, %v2227
      %v2229 = vpop.f32.mrb[0].mxu0
      %v2230 = vadd.f32 %v1996, %v2229
      %v2231 = vpop.f32.mrb[0].mxu0
      %v2232 = vadd.f32 %v2000, %v2231
      %2233 = vmatprep.mubr.bf16.mxu0 %v1905
      %2234 = vmatmul.mubr.bf16.gmra.mrb[0].mxu0 %v1904
      %v2235 = vpop.f32.mrb[0].mxu0
      %v2236 = vadd.f32 %v1996, %v2235
      %v2237 = vpop.f32.mrb[0].mxu0
      %v2238 = vadd.f32 %v2000, %v2237
      %v2239 = vpop.f32.mrb[0].mxu0
      %v2240 = vadd.f32 %v1996, %v2239
      %v2241 = vpop.f32.mrb[0].mxu0
      %v2242 = vadd.f32 %v2000, %v2241
      %2243 = vmatprep.mubr.bf16.mxu0 %v1907
      %2244 = vmatmul.mubr.bf16.gmra.mrb[0].mxu0 %v1906
      %v2245 = vpop.f32.mrb[0].mxu0
      %v2246 = vadd.f32 %v1996, %v2245
      %v2247 = vpop.f32.mrb[0].mxu0
      %v2248 = vadd.f32 %v2000, %v2247
      %v2249 = vpop.f32.mrb[0].mxu0
      %v2250 = vadd.f32 %v1996, %v2249
      %v2251 = vpop.f32.mrb[0].mxu0
      %v2252 = vadd.f32 %v2000, %v2251
      %2253 = vmatprep.mubr.bf16.mxu0 %v1909
      %2254 = vmatmul.mubr.bf16.gmra.mrb[0].mxu0 %v1908
      %v2255 = vpop.f32.mrb[0].mxu0
      %v2256 = vadd.f32 %v1996, %v2255
      %v2257 = vpop.f32.mrb[0].mxu0
      %v2258 = vadd.f32 %v2000, %v2257
      %v2259 = vpop.f32.mrb[0].mxu0
      %v2260 = vadd.f32 %v1996, %v2259
      %v2261 = vpop.f32.mrb[0].mxu0
      %v2262 = vadd.f32 %v2000, %v2261
      %2263 = vmatprep.mubr.bf16.mxu0 %v1911
      %2264 = vmatmul.mubr.bf16.gmra.mrb[0].mxu0 %v1910
      %v2265 = vpop.f32.mrb[0].mxu0
      %v2266 = vadd.f32 %v1996, %v2265
      %v2267 = vpop.f32.mrb[0].mxu0
      %v2268 = vadd.f32 %v2000, %v2267
      %v2269 = vpop.f32.mrb[0].mxu0
      %v2270 = vadd.f32 %v1996, %v2269
      %v2271 = vpop.f32.mrb[0].mxu0
      %v2272 = vadd.f32 %v2000, %v2271
      %2273 = vmatprep.mubr.bf16.mxu0 %v1913
      %2274 = vmatmul.mubr.bf16.gmra.mrb[0].mxu0 %v1912
      %v2275 = vpop.f32.mrb[0].mxu0
      %v2276 = vadd.f32 %v1996, %v2275
      %v2277 = vpop.f32.mrb[0].mxu0
      %v2278 = vadd.f32 %v2000, %v2277
      %v2279 = vpop.f32.mrb[0].mxu0
      %v2280 = vadd.f32 %v1996, %v2279
      %v2281 = vpop.f32.mrb[0].mxu0
      %v2282 = vadd.f32 %v2000, %v2281
      %2283 = vmatprep.mubr.bf16.mxu0 %v1915
      %2284 = vmatmul.mubr.bf16.gmra.mrb[0].mxu0 %v1914
      %v2285 = vpop.f32.mrb[0].mxu0
      %v2286 = vadd.f32 %v1996, %v2285
      %v2287 = vpop.f32.mrb[0].mxu0
      %v2288 = vadd.f32 %v2000, %v2287
      %v2289 = vpop.f32.mrb[0].mxu0
      %v2290 = vadd.f32 %v1996, %v2289
      %v2291 = vpop.f32.mrb[0].mxu0
      %v2292 = vadd.f32 %v2000, %v2291
      %2293 = vmatprep.mubr.bf16.mxu0 %v1917
      %2294 = vmatmul.mubr.bf16.gmra.mrb[0].mxu0 %v1916
      %v2295 = vpop.f32.mrb[0].mxu0
      %v2296 = vadd.f32 %v1996, %v2295
      %v2297 = vpop.f32.mrb[0].mxu0
      %v2298 = vadd.f32 %v2000, %v2297
      %v2299 = vpop.f32.mrb[0].mxu0
      %v2300 = vadd.f32 %v1996, %v2299
      %v2301 = vpop.f32.mrb[0].mxu0
      %v2302 = vadd.f32 %v2000, %v2301
      %2303 = vmatprep.mubr.bf16.mxu0 %v1919
      %2304 = vmatmul.mubr.bf16.gmra.mrb[0].mxu0 %v1918
      %v2305 = vpop.f32.mrb[0].mxu0
      %v2306 = vadd.f32 %v1996, %v2305
      %v2307 = vpop.f32.mrb[0].mxu0
      %v2308 = vadd.f32 %v2000, %v2307
      %v2309 = vpop.f32.mrb[0].mxu0
      %v2310 = vadd.f32 %v1996, %v2309
      %v2311 = vpop.f32.mrb[0].mxu0
      %v2312 = vadd.f32 %v2000, %v2311
      %2313 = vmatprep.mubr.bf16.mxu0 %v1921
      %2314 = vmatmul.mubr.bf16.gmra.mrb[0].mxu0 %v1920
      %v2315 = vpop.f32.mrb[0].mxu0
      %v2316 = vadd.f32 %v1996, %v2315
      %v2317 = vpop.f32.mrb[0].mxu0
      %v2318 = vadd.f32 %v2000, %v2317
      %v2319 = vpop.f32.mrb[0].mxu0
      %v2320 = vadd.f32 %v1996, %v2319
      %v2321 = vpop.f32.mrb[0].mxu0
      %v2322 = vadd.f32 %v2000, %v2321
      %2323 = vmatprep.mubr.bf16.mxu0 %v1923
      %2324 = vmatmul.mubr.bf16.gmra.mrb[0].mxu0 %v1922
      %v2325 = vpop.f32.mrb[0].mxu0
      %v2326 = vadd.f32 %v1996, %v2325
      %v2327 = vpop.f32.mrb[0].mxu0
      %v2328 = vadd.f32 %v2000, %v2327
      %v2329 = vpop.f32.mrb[0].mxu0
      %v2330 = vadd.f32 %v1996, %v2329
      %v2331 = vpop.f32.mrb[0].mxu0
      %v2332 = vadd.f32 %v2000, %v2331
      %2333 = vmatprep.mubr.bf16.mxu0 %v1925
      %2334 = vmatmul.mubr.bf16.gmra.mrb[0].mxu0 %v1924
      %v2335 = vpop.f32.mrb[0].mxu0
      %v2336 = vadd.f32 %v1996, %v2335
      %v2337 = vpop.f32.mrb[0].mxu0
      %v2338 = vadd.f32 %v2000, %v2337
      %v2339 = vpop.f32.mrb[0].mxu0
      %v2340 = vadd.f32 %v1996, %v2339
      %v2341 = vpop.f32.mrb[0].mxu0
      %v2342 = vadd.f32 %v2000, %v2341
      %2343 = vmatprep.mubr.bf16.mxu0 %v1927
      %2344 = vmatmul.mubr.bf16.gmra.mrb[0].mxu0 %v1926
      %v2345 = vpop.f32.mrb[0].mxu0
      %v2346 = vadd.f32 %v1996, %v2345
      %v2347 = vpop.f32.mrb[0].mxu0
      %v2348 = vadd.f32 %v2000, %v2347
      %v2349 = vpop.f32.mrb[0].mxu0
      %v2350 = vadd.f32 %v1996, %v2349
      %v2351 = vpop.f32.mrb[0].mxu0
      %v2352 = vadd.f32 %v2000, %v2351
      %2353 = vmatprep.mubr.bf16.mxu0 %v1929
      %2354 = vmatmul.mubr.bf16.gmra.mrb[0].mxu0 %v1928
      %v2355 = vpop.f32.mrb[0].mxu0
      %v2356 = vadd.f32 %v1996, %v2355
      %v2357 = vpop.f32.mrb[0].mxu0
      %v2358 = vadd.f32 %v2000, %v2357
      %v2359 = vpop.f32.mrb[0].mxu0
      %v2360 = vadd.f32 %v1996, %v2359
      %v2361 = vpop.f32.mrb[0].mxu0
      %v2362 = vadd.f32 %v2000, %v2361
      %2363 = vmatprep.mubr.bf16.mxu0 %v1931
      %2364 = vmatmul.mubr.bf16.gmra.mrb[0].mxu0 %v1930
      %v2365 = vpop.f32.mrb[0].mxu0
      %v2366 = vadd.f32 %v1996, %v2365
      %v2367 = vpop.f32.mrb[0].mxu0
      %v2368 = vadd.f32 %v2000, %v2367
      %v2369 = vpop.f32.mrb[0].mxu0
      %v2370 = vadd.f32 %v1996, %v2369
      %v2371 = vpop.f32.mrb[0].mxu0
      %v2372 = vadd.f32 %v2000, %v2371
      %2373 = vmatprep.mubr.bf16.mxu0 %v1933
      %2374 = vmatmul.mubr.bf16.gmra.mrb[0].mxu0 %v1932
      %v2375 = vpop.f32.mrb[0].mxu0
      %v2376 = vadd.f32 %v1996, %v2375
      %v2377 = vpop.f32.mrb[0].mxu0
      %v2378 = vadd.f32 %v2000, %v2377
      %v2379 = vpop.f32.mrb[0].mxu0
      %v2380 = vadd.f32 %v1996, %v2379
      %v2381 = vpop.f32.mrb[0].mxu0
      %v2382 = vadd.f32 %v2000, %v2381
      %2383 = vmatprep.mubr.bf16.mxu0 %v1935
      %2384 = vmatmul.mubr.bf16.gmra.mrb[0].mxu0 %v1934
      %v2385 = vpop.f32.mrb[0].mxu0
      %v2386 = vadd.f32 %v1996, %v2385
      %v2387 = vpop.f32.mrb[0].mxu0
      %v2388 = vadd.f32 %v2000, %v2387
      %v2389 = vpop.f32.mrb[0].mxu0
      %v2390 = vadd.f32 %v1996, %v2389
      %v2391 = vpop.f32.mrb[0].mxu0
      %v2392 = vadd.f32 %v2000, %v2391
      %2393 = vmatprep.mubr.bf16.mxu0 %v1937
      %2394 = vmatmul.mubr.bf16.gmra.mrb[0].mxu0 %v1936
      %v2395 = vpop.f32.mrb[0].mxu0
      %v2396 = vadd.f32 %v1996, %v2395
      %v2397 = vpop.f32.mrb[0].mxu0
      %v2398 = vadd.f32 %v2000, %v2397
      %v2399 = vpop.f32.mrb[0].mxu0
      %v2400 = vadd.f32 %v1996, %v2399
      %v2401 = vpop.f32.mrb[0].mxu0
      %v2402 = vadd.f32 %v2000, %v2401
      %2403 = vmatprep.mubr.bf16.mxu0 %v1939
      %2404 = vmatmul.mubr.bf16.gmra.mrb[0].mxu0 %v1938
      %v2405 = vpop.f32.mrb[0].mxu0
      %v2406 = vadd.f32 %v1996, %v2405
      %v2407 = vpop.f32.mrb[0].mxu0
      %v2408 = vadd.f32 %v2000, %v2407
      %v2409 = vpop.f32.mrb[0].mxu0
      %v2410 = vadd.f32 %v1996, %v2409
      %v2411 = vpop.f32.mrb[0].mxu0
      %v2412 = vadd.f32 %v2000, %v2411
      %2413 = vmatprep.mubr.bf16.mxu0 %v1941
      %2414 = vmatmul.mubr.bf16.gmra.mrb[0].mxu0 %v1940
      %v2415 = vpop.f32.mrb[0].mxu0
      %v2416 = vadd.f32 %v1996, %v2415
      %v2417 = vpop.f32.mrb[0].mxu0
      %v2418 = vadd.f32 %v2000, %v2417
      %v2419 = vpop.f32.mrb[0].mxu0
      %v2420 = vadd.f32 %v1996, %v2419
      %v2421 = vpop.f32.mrb[0].mxu0
      %v2422 = vadd.f32 %v2000, %v2421
      %2423 = vmatprep.mubr.bf16.mxu0 %v1943
      %2424 = vmatmul.mubr.bf16.gmra.mrb[0].mxu0 %v1942
      %v2425 = vpop.f32.mrb[0].mxu0
      %v2426 = vadd.f32 %v1996, %v2425
      %v2427 = vpop.f32.mrb[0].mxu0
      %v2428 = vadd.f32 %v2000, %v2427
      %v2429 = vpop.f32.mrb[0].mxu0
      %v2430 = vadd.f32 %v1996, %v2429
      %v2431 = vpop.f32.mrb[0].mxu0
      %v2432 = vadd.f32 %v2000, %v2431
      %2433 = vmatprep.mubr.bf16.mxu0 %v1945
      %2434 = vmatmul.mubr.bf16.gmra.mrb[0].mxu0 %v1944
      %v2435 = vpop.f32.mrb[0].mxu0
      %v2436 = vadd.f32 %v1996, %v2435
      %v2437 = vpop.f32.mrb[0].mxu0
      %v2438 = vadd.f32 %v2000, %v2437
      %v2439 = vpop.f32.mrb[0].mxu0
      %v2440 = vadd.f32 %v1996, %v2439
      %v2441 = vpop.f32.mrb[0].mxu0
      %v2442 = vadd.f32 %v2000, %v2441
      %2443 = vmatprep.mubr.bf16.mxu0 %v1947
      %2444 = vmatmul.mubr.bf16.gmra.mrb[0].mxu0 %v1946
      %v2445 = vpop.f32.mrb[0].mxu0
      %v2446 = vadd.f32 %v1996, %v2445
      %v2447 = vpop.f32.mrb[0].mxu0
      %v2448 = vadd.f32 %v2000, %v2447
      %v2449 = vpop.f32.mrb[0].mxu0
      %v2450 = vadd.f32 %v1996, %v2449
      %v2451 = vpop.f32.mrb[0].mxu0
      %v2452 = vadd.f32 %v2000, %v2451
      %2453 = vmatprep.mubr.bf16.mxu0 %v1949
      %2454 = vmatmul.mubr.bf16.gmra.mrb[0].mxu0 %v1948
      %v2455 = vpop.f32.mrb[0].mxu0
      %v2456 = vadd.f32 %v1996, %v2455
      %v2457 = vpop.f32.mrb[0].mxu0
      %v2458 = vadd.f32 %v2000, %v2457
      %v2459 = vpop.f32.mrb[0].mxu0
      %v2460 = vadd.f32 %v1996, %v2459
      %v2461 = vpop.f32.mrb[0].mxu0
      %v2462 = vadd.f32 %v2000, %v2461
      %2463 = vmatprep.mubr.bf16.mxu0 %v1951
      %2464 = vmatmul.mubr.bf16.gmra.mrb[0].mxu0 %v1950
      %v2465 = vpop.f32.mrb[0].mxu0
      %v2466 = vadd.f32 %v1996, %v2465
      %v2467 = vpop.f32.mrb[0].mxu0
      %v2468 = vadd.f32 %v2000, %v2467
      %v2469 = vpop.f32.mrb[0].mxu0
      %v2470 = vadd.f32 %v1996, %v2469
      %v2471 = vpop.f32.mrb[0].mxu0
      %v2472 = vadd.f32 %v2000, %v2471
      %2473 = vmatprep.mubr.bf16.mxu0 %v1953
      %2474 = vmatmul.mubr.bf16.gmra.mrb[0].mxu0 %v1952
      %v2475 = vpop.f32.mrb[0].mxu0
      %v2476 = vadd.f32 %v1996, %v2475
      %v2477 = vpop.f32.mrb[0].mxu0
      %v2478 = vadd.f32 %v2000, %v2477
      %v2479 = vpop.f32.mrb[0].mxu0
      %v2480 = vadd.f32 %v1996, %v2479
      %v2481 = vpop.f32.mrb[0].mxu0
      %v2482 = vadd.f32 %v2000, %v2481
      %2483 = vmatprep.mubr.bf16.mxu0 %v1955
      %2484 = vmatmul.mubr.bf16.gmra.mrb[0].mxu0 %v1954
      %v2485 = vpop.f32.mrb[0].mxu0
      %v2486 = vadd.f32 %v1996, %v2485
      %v2487 = vpop.f32.mrb[0].mxu0
      %v2488 = vadd.f32 %v2000, %v2487
      %v2489 = vpop.f32.mrb[0].mxu0
      %v2490 = vadd.f32 %v1996, %v2489
      %v2491 = vpop.f32.mrb[0].mxu0
      %v2492 = vadd.f32 %v2000, %v2491
      %2493 = vmatprep.mubr.bf16.mxu0 %v1957
      %2494 = vmatmul.mubr.bf16.gmra.mrb[0].mxu0 %v1956
      %v2495 = vpop.f32.mrb[0].mxu0
      %v2496 = vadd.f32 %v1996, %v2495
      %v2497 = vpop.f32.mrb[0].mxu0
      %v2498 = vadd.f32 %v2000, %v2497
      %v2499 = vpop.f32.mrb[0].mxu0
      %v2500 = vadd.f32 %v1996, %v2499
      %v2501 = vpop.f32.mrb[0].mxu0
      %v2502 = vadd.f32 %v2000, %v2501
      %2503 = vmatprep.mubr.bf16.mxu0 %v1959
      %2504 = vmatmul.mubr.bf16.gmra.mrb[0].mxu0 %v1958
      %v2505 = vpop.f32.mrb[0].mxu0
      %v2506 = vadd.f32 %v1996, %v2505
      %v2507 = vpop.f32.mrb[0].mxu0
      %v2508 = vadd.f32 %v2000, %v2507
      %v2509 = vpop.f32.mrb[0].mxu0
      %v2510 = vadd.f32 %v1996, %v2509
      %v2511 = vpop.f32.mrb[0].mxu0
      %v2512 = vadd.f32 %v2000, %v2511
      %2513 = vdwg.mxu0
      %v2514 = vmax.f32 %v2196, 0.0
      %v2515 = vmax.f32 %v2198, 0.0
      %v2516 = vmax.f32 %v2200, 0.0
      %v2517 = vmax.f32 %v2202, 0.0
      %v2518 = vmax.f32 %v2206, 0.0
      %v2519 = vmax.f32 %v2208, 0.0
      %v2520 = vmax.f32 %v2210, 0.0
      %v2521 = vmax.f32 %v2212, 0.0
      %v2522 = vmax.f32 %v2216, 0.0
      %v2523 = vmax.f32 %v2218, 0.0
      %v2524 = vmax.f32 %v2220, 0.0
      %v2525 = vmax.f32 %v2222, 0.0
      %v2526 = vmax.f32 %v2226, 0.0
      %v2527 = vmax.f32 %v2228, 0.0
      %v2528 = vmax.f32 %v2230, 0.0
      %v2529 = vmax.f32 %v2232, 0.0
      %v2530 = vmax.f32 %v2236, 0.0
      %v2531 = vmax.f32 %v2238, 0.0
      %v2532 = vmax.f32 %v2240, 0.0
      %v2533 = vmax.f32 %v2242, 0.0
      %v2534 = vmax.f32 %v2246, 0.0
      %v2535 = vmax.f32 %v2248, 0.0
      %v2536 = vmax.f32 %v2250, 0.0
      %v2537 = vmax.f32 %v2252, 0.0
      %v2538 = vmax.f32 %v2256, 0.0
      %v2539 = vmax.f32 %v2258, 0.0
      %v2540 = vmax.f32 %v2260, 0.0
      %v2541 = vmax.f32 %v2262, 0.0
      %v2542 = vmax.f32 %v2266, 0.0
      %v2543 = vmax.f32 %v2268, 0.0
      %v2544 = vmax.f32 %v2270, 0.0
      %v2545 = vmax.f32 %v2272, 0.0
      %v2546 = vmax.f32 %v2276, 0.0
      %v2547 = vmax.f32 %v2278, 0.0
      %v2548 = vmax.f32 %v2280, 0.0
      %v2549 = vmax.f32 %v2282, 0.0
      %v2550 = vmax.f32 %v2286, 0.0
      %v2551 = vmax.f32 %v2288, 0.0
      %v2552 = vmax.f32 %v2290, 0.0
      %v2553 = vmax.f32 %v2292, 0.0
      %v2554 = vmax.f32 %v2296, 0.0
      %v2555 = vmax.f32 %v2298, 0.0
      %v2556 = vmax.f32 %v2300, 0.0
      %v2557 = vmax.f32 %v2302, 0.0
      %v2558 = vmax.f32 %v2306, 0.0
      %v2559 = vmax.f32 %v2308, 0.0
      %v2560 = vmax.f32 %v2310, 0.0
      %v2561 = vmax.f32 %v2312, 0.0
      %v2562 = vmax.f32 %v2316, 0.0
      %v2563 = vmax.f32 %v2318, 0.0
      %v2564 = vmax.f32 %v2320, 0.0
      %v2565 = vmax.f32 %v2322, 0.0
      %v2566 = vmax.f32 %v2326, 0.0
      %v2567 = vmax.f32 %v2328, 0.0
      %v2568 = vmax.f32 %v2330, 0.0
      %v2569 = vmax.f32 %v2332, 0.0
      %v2570 = vmax.f32 %v2336, 0.0
      %v2571 = vmax.f32 %v2338, 0.0
      %v2572 = vmax.f32 %v2340, 0.0
      %v2573 = vmax.f32 %v2342, 0.0
      %v2574 = vmax.f32 %v2346, 0.0
      %v2575 = vmax.f32 %v2348, 0.0
      %v2576 = vmax.f32 %v2350, 0.0
      %v2577 = vmax.f32 %v2352, 0.0
      %v2578 = vmax.f32 %v2356, 0.0
      %v2579 = vmax.f32 %v2358, 0.0
      %v2580 = vmax.f32 %v2360, 0.0
      %v2581 = vmax.f32 %v2362, 0.0
      %v2582 = vmax.f32 %v2366, 0.0
      %v2583 = vmax.f32 %v2368, 0.0
      %v2584 = vmax.f32 %v2370, 0.0
      %v2585 = vmax.f32 %v2372, 0.0
      %v2586 = vmax.f32 %v2376, 0.0
      %v2587 = vmax.f32 %v2378, 0.0
      %v2588 = vmax.f32 %v2380, 0.0
      %v2589 = vmax.f32 %v2382, 0.0
      %v2590 = vmax.f32 %v2386, 0.0
      %v2591 = vmax.f32 %v2388, 0.0
      %v2592 = vmax.f32 %v2390, 0.0
      %v2593 = vmax.f32 %v2392, 0.0
      %v2594 = vmax.f32 %v2396, 0.0
      %v2595 = vmax.f32 %v2398, 0.0
      %v2596 = vmax.f32 %v2400, 0.0
      %v2597 = vmax.f32 %v2402, 0.0
      %v2598 = vmax.f32 %v2406, 0.0
      %v2599 = vmax.f32 %v2408, 0.0
      %v2600 = vmax.f32 %v2410, 0.0
      %v2601 = vmax.f32 %v2412, 0.0
      %v2602 = vmax.f32 %v2416, 0.0
      %v2603 = vmax.f32 %v2418, 0.0
      %v2604 = vmax.f32 %v2420, 0.0
      %v2605 = vmax.f32 %v2422, 0.0
      %v2606 = vmax.f32 %v2426, 0.0
      %v2607 = vmax.f32 %v2428, 0.0
      %v2608 = vmax.f32 %v2430, 0.0
      %v2609 = vmax.f32 %v2432, 0.0
      %v2610 = vmax.f32 %v2436, 0.0
      %v2611 = vmax.f32 %v2438, 0.0
      %v2612 = vmax.f32 %v2440, 0.0
      %v2613 = vmax.f32 %v2442, 0.0
      %v2614 = vmax.f32 %v2446, 0.0
      %v2615 = vmax.f32 %v2448, 0.0
      %v2616 = vmax.f32 %v2450, 0.0
      %v2617 = vmax.f32 %v2452, 0.0
      %v2618 = vmax.f32 %v2456, 0.0
      %v2619 = vmax.f32 %v2458, 0.0
      %v2620 = vmax.f32 %v2460, 0.0
      %v2621 = vmax.f32 %v2462, 0.0
      %v2622 = vmax.f32 %v2466, 0.0
      %v2623 = vmax.f32 %v2468, 0.0
      %v2624 = vmax.f32 %v2470, 0.0
      %v2625 = vmax.f32 %v2472, 0.0
      %v2626 = vmax.f32 %v2476, 0.0
      %v2627 = vmax.f32 %v2478, 0.0
      %v2628 = vmax.f32 %v2480, 0.0
      %v2629 = vmax.f32 %v2482, 0.0
      %v2630 = vmax.f32 %v2486, 0.0
      %v2631 = vmax.f32 %v2488, 0.0
      %v2632 = vmax.f32 %v2490, 0.0
      %v2633 = vmax.f32 %v2492, 0.0
      %v2634 = vmax.f32 %v2496, 0.0
      %v2635 = vmax.f32 %v2498, 0.0
      %v2636 = vmax.f32 %v2500, 0.0
      %v2637 = vmax.f32 %v2502, 0.0
      %v2638 = vmax.f32 %v2506, 0.0
      %v2639 = vmax.f32 %v2508, 0.0
      %v2640 = vmax.f32 %v2510, 0.0
      %v2641 = vmax.f32 %v2512, 0.0
      %v2642 = vpack.c.bf16 %v2516, %v2514
      %v2643 = vpack.c.bf16 %v2517, %v2515
      %v2644 = vpack.c.bf16 %v2520, %v2518
      %v2645 = vpack.c.bf16 %v2521, %v2519
      %v2646 = vpack.c.bf16 %v2524, %v2522
      %v2647 = vpack.c.bf16 %v2525, %v2523
      %v2648 = vpack.c.bf16 %v2528, %v2526
      %v2649 = vpack.c.bf16 %v2529, %v2527
      %v2650 = vpack.c.bf16 %v2532, %v2530
      %v2651 = vpack.c.bf16 %v2533, %v2531
      %v2652 = vpack.c.bf16 %v2536, %v2534
      %v2653 = vpack.c.bf16 %v2537, %v2535
      %v2654 = vpack.c.bf16 %v2540, %v2538
      %v2655 = vpack.c.bf16 %v2541, %v2539
      %v2656 = vpack.c.bf16 %v2544, %v2542
      %v2657 = vpack.c.bf16 %v2545, %v2543
      %v2658 = vpack.c.bf16 %v2548, %v2546
      %v2659 = vpack.c.bf16 %v2549, %v2547
      %v2660 = vpack.c.bf16 %v2552, %v2550
      %v2661 = vpack.c.bf16 %v2553, %v2551
      %v2662 = vpack.c.bf16 %v2556, %v2554
      %v2663 = vpack.c.bf16 %v2557, %v2555
      %v2664 = vpack.c.bf16 %v2560, %v2558
      %v2665 = vpack.c.bf16 %v2561, %v2559
      %v2666 = vpack.c.bf16 %v2564, %v2562
      %v2667 = vpack.c.bf16 %v2565, %v2563
      %v2668 = vpack.c.bf16 %v2568, %v2566
      %v2669 = vpack.c.bf16 %v2569, %v2567
      %v2670 = vpack.c.bf16 %v2572, %v2570
      %v2671 = vpack.c.bf16 %v2573, %v2571
      %v2672 = vpack.c.bf16 %v2576, %v2574
      %v2673 = vpack.c.bf16 %v2577, %v2575
      %v2674 = vpack.c.bf16 %v2580, %v2578
      %v2675 = vpack.c.bf16 %v2581, %v2579
      %v2676 = vpack.c.bf16 %v2584, %v2582
      %v2677 = vpack.c.bf16 %v2585, %v2583
      %v2678 = vpack.c.bf16 %v2588, %v2586
      %v2679 = vpack.c.bf16 %v2589, %v2587
      %v2680 = vpack.c.bf16 %v2592, %v2590
      %v2681 = vpack.c.bf16 %v2593, %v2591
      %v2682 = vpack.c.bf16 %v2596, %v2594
      %v2683 = vpack.c.bf16 %v2597, %v2595
      %v2684 = vpack.c.bf16 %v2600, %v2598
      %v2685 = vpack.c.bf16 %v2601, %v2599
      %v2686 = vpack.c.bf16 %v2604, %v2602
      %v2687 = vpack.c.bf16 %v2605, %v2603
      %v2688 = vpack.c.bf16 %v2608, %v2606
      %v2689 = vpack.c.bf16 %v2609, %v2607
      %v2690 = vpack.c.bf16 %v2612, %v2610
      %v2691 = vpack.c.bf16 %v2613, %v2611
      %v2692 = vpack.c.bf16 %v2616, %v2614
      %v2693 = vpack.c.bf16 %v2617, %v2615
      %v2694 = vpack.c.bf16 %v2620, %v2618
      %v2695 = vpack.c.bf16 %v2621, %v2619
      %v2696 = vpack.c.bf16 %v2624, %v2622
      %v2697 = vpack.c.bf16 %v2625, %v2623
      %v2698 = vpack.c.bf16 %v2628, %v2626
      %v2699 = vpack.c.bf16 %v2629, %v2627
      %v2700 = vpack.c.bf16 %v2632, %v2630
      %v2701 = vpack.c.bf16 %v2633, %v2631
      %v2702 = vpack.c.bf16 %v2636, %v2634
      %v2703 = vpack.c.bf16 %v2637, %v2635
      %v2704 = vpack.c.bf16 %v2640, %v2638
      %v2705 = vpack.c.bf16 %v2641, %v2639
      %s2706 = scalar_lea.vmem %s2, 512
      %v2707 = vld [vmem:[%s2706] sm:$0xff]
      %v2708 = vld [vmem:[%s2706 + $0x8] sm:$0xff]
      %v2709 = vld [vmem:[%s2706 + $0x10] sm:$0xff]
      %v2710 = vld [vmem:[%s2706 + $0x18] sm:$0xff]
      %v2711 = vld [vmem:[%s2706 + $0x20] sm:$0xff]
      %v2712 = vld [vmem:[%s2706 + $0x28] sm:$0xff]
      %v2713 = vld [vmem:[%s2706 + $0x30] sm:$0xff]
      %v2714 = vld [vmem:[%s2706 + $0x38] sm:$0xff]
      %v2715 = vld [vmem:[%s2706 + $0x40] sm:$0xff]
      %v2716 = vld [vmem:[%s2706 + $0x48] sm:$0xff]
      %v2717 = vld [vmem:[%s2706 + $0x50] sm:$0xff]
      %v2718 = vld [vmem:[%s2706 + $0x58] sm:$0xff]
      %v2719 = vld [vmem:[%s2706 + $0x60] sm:$0xff]
      %v2720 = vld [vmem:[%s2706 + $0x68] sm:$0xff]
      %v2721 = vld [vmem:[%s2706 + $0x70] sm:$0xff]
      %v2722 = vld [vmem:[%s2706 + $0x78] sm:$0xff]
      %v2723 = vld [vmem:[%s2706 + $0x80] sm:$0xff]
      %v2724 = vld [vmem:[%s2706 + $0x88] sm:$0xff]
      %v2725 = vld [vmem:[%s2706 + $0x90] sm:$0xff]
      %v2726 = vld [vmem:[%s2706 + $0x98] sm:$0xff]
      %v2727 = vld [vmem:[%s2706 + $0xa0] sm:$0xff]
      %v2728 = vld [vmem:[%s2706 + $0xa8] sm:$0xff]
      %v2729 = vld [vmem:[%s2706 + $0xb0] sm:$0xff]
      %v2730 = vld [vmem:[%s2706 + $0xb8] sm:$0xff]
      %v2731 = vld [vmem:[%s2706 + $0xc0] sm:$0xff]
      %v2732 = vld [vmem:[%s2706 + $0xc8] sm:$0xff]
      %v2733 = vld [vmem:[%s2706 + $0xd0] sm:$0xff]
      %v2734 = vld [vmem:[%s2706 + $0xd8] sm:$0xff]
      %v2735 = vld [vmem:[%s2706 + $0xe0] sm:$0xff]
      %v2736 = vld [vmem:[%s2706 + $0xe8] sm:$0xff]
      %v2737 = vld [vmem:[%s2706 + $0xf0] sm:$0xff]
      %v2738 = vld [vmem:[%s2706 + $0xf8] sm:$0xff]
      %v2739 = vlaneseq
      %v2740 = vshrl.u32 %v2739, 7
      %v2741 = vsub.s32 3, %v2740
      %v2742 = vrot.slane %v347, %v2741
      %v2743 = vlaneseq
      %v2744 = vshrl.u32 %v2743, 7
      %v2745 = vsub.s32 3, %v2744
      %v2746 = vrot.slane %v348, %v2745
      %v2779 = vunpack.c.l.b16 %v2707
      %v2780 = vunpack.c.h.b16 %v2707
      %v2781 = vunpack.c.l.b16 %v2708
      %v2782 = vunpack.c.h.b16 %v2708
      %v2783 = vunpack.c.l.b16 %v2709
      %v2784 = vunpack.c.h.b16 %v2709
      %v2785 = vunpack.c.l.b16 %v2710
      %v2786 = vunpack.c.h.b16 %v2710
      %v2787 = vunpack.c.l.b16 %v2711
      %v2788 = vunpack.c.h.b16 %v2711
      %v2789 = vunpack.c.l.b16 %v2712
      %v2790 = vunpack.c.h.b16 %v2712
      %v2791 = vunpack.c.l.b16 %v2713
      %v2792 = vunpack.c.h.b16 %v2713
      %v2793 = vunpack.c.l.b16 %v2714
      %v2794 = vunpack.c.h.b16 %v2714
      %v2795 = vunpack.c.l.b16 %v2715
      %v2796 = vunpack.c.h.b16 %v2715
      %v2797 = vunpack.c.l.b16 %v2716
      %v2798 = vunpack.c.h.b16 %v2716
      %v2799 = vunpack.c.l.b16 %v2717
      %v2800 = vunpack.c.h.b16 %v2717
      %v2801 = vunpack.c.l.b16 %v2718
      %v2802 = vunpack.c.h.b16 %v2718
      %v2803 = vunpack.c.l.b16 %v2719
      %v2804 = vunpack.c.h.b16 %v2719
      %v2805 = vunpack.c.l.b16 %v2720
      %v2806 = vunpack.c.h.b16 %v2720
      %v2807 = vunpack.c.l.b16 %v2721
      %v2808 = vunpack.c.h.b16 %v2721
      %v2809 = vunpack.c.l.b16 %v2722
      %v2810 = vunpack.c.h.b16 %v2722
      %v2811 = vunpack.c.l.b16 %v2723
      %v2812 = vunpack.c.h.b16 %v2723
      %v2813 = vunpack.c.l.b16 %v2724
      %v2814 = vunpack.c.h.b16 %v2724
      %v2815 = vunpack.c.l.b16 %v2725
      %v2816 = vunpack.c.h.b16 %v2725
      %v2817 = vunpack.c.l.b16 %v2726
      %v2818 = vunpack.c.h.b16 %v2726
      %v2819 = vunpack.c.l.b16 %v2727
      %v2820 = vunpack.c.h.b16 %v2727
      %v2821 = vunpack.c.l.b16 %v2728
      %v2822 = vunpack.c.h.b16 %v2728
      %v2823 = vunpack.c.l.b16 %v2729
      %v2824 = vunpack.c.h.b16 %v2729
      %v2825 = vunpack.c.l.b16 %v2730
      %v2826 = vunpack.c.h.b16 %v2730
      %v2827 = vunpack.c.l.b16 %v2731
      %v2828 = vunpack.c.h.b16 %v2731
      %v2829 = vunpack.c.l.b16 %v2732
      %v2830 = vunpack.c.h.b16 %v2732
      %v2831 = vunpack.c.l.b16 %v2733
      %v2832 = vunpack.c.h.b16 %v2733
      %v2833 = vunpack.c.l.b16 %v2734
      %v2834 = vunpack.c.h.b16 %v2734
      %v2835 = vunpack.c.l.b16 %v2735
      %v2836 = vunpack.c.h.b16 %v2735
      %v2837 = vunpack.c.l.b16 %v2736
      %v2838 = vunpack.c.h.b16 %v2736
      %v2839 = vunpack.c.l.b16 %v2737
      %v2840 = vunpack.c.h.b16 %v2737
      %v2841 = vunpack.c.l.b16 %v2738
      %v2842 = vunpack.c.h.b16 %v2738
      %v2843 = vpack.c.b16 %v2781, %v2779
      %v2844 = vpack.c.b16 %v2782, %v2780
      %v2845 = vpack.c.b16 %v2785, %v2783
      %v2846 = vpack.c.b16 %v2786, %v2784
      %v2847 = vpack.c.b16 %v2789, %v2787
      %v2848 = vpack.c.b16 %v2790, %v2788
      %v2849 = vpack.c.b16 %v2793, %v2791
      %v2850 = vpack.c.b16 %v2794, %v2792
      %v2851 = vpack.c.b16 %v2797, %v2795
      %v2852 = vpack.c.b16 %v2798, %v2796
      %v2853 = vpack.c.b16 %v2801, %v2799
      %v2854 = vpack.c.b16 %v2802, %v2800
      %v2855 = vpack.c.b16 %v2805, %v2803
      %v2856 = vpack.c.b16 %v2806, %v2804
      %v2857 = vpack.c.b16 %v2809, %v2807
      %v2858 = vpack.c.b16 %v2810, %v2808
      %v2859 = vpack.c.b16 %v2813, %v2811
      %v2860 = vpack.c.b16 %v2814, %v2812
      %v2861 = vpack.c.b16 %v2817, %v2815
      %v2862 = vpack.c.b16 %v2818, %v2816
      %v2863 = vpack.c.b16 %v2821, %v2819
      %v2864 = vpack.c.b16 %v2822, %v2820
      %v2865 = vpack.c.b16 %v2825, %v2823
      %v2866 = vpack.c.b16 %v2826, %v2824
      %v2867 = vpack.c.b16 %v2829, %v2827
      %v2868 = vpack.c.b16 %v2830, %v2828
      %v2869 = vpack.c.b16 %v2833, %v2831
      %v2870 = vpack.c.b16 %v2834, %v2832
      %v2871 = vpack.c.b16 %v2837, %v2835
      %v2872 = vpack.c.b16 %v2838, %v2836
      %v2873 = vpack.c.b16 %v2841, %v2839
      %v2874 = vpack.c.b16 %v2842, %v2840
      %2907 = vmatprep.subr.bf16.mxu0 %v2844
      %2908 = vmatpush1.bf16.msra.mxu0 %v2843
      %2909 = vmatprep.subr.bf16.mxu0 %v2846
      %2910 = vmatpush1.bf16.msra.mxu0 %v2845
      %2911 = vmatprep.subr.bf16.mxu0 %v2848
      %2912 = vmatpush1.bf16.msra.mxu0 %v2847
      %2913 = vmatprep.subr.bf16.mxu0 %v2850
      %2914 = vmatpush1.bf16.msra.mxu0 %v2849
      %2915 = vmatprep.subr.bf16.mxu0 %v2852
      %2916 = vmatpush1.bf16.msra.mxu0 %v2851
      %2917 = vmatprep.subr.bf16.mxu0 %v2854
      %2918 = vmatpush1.bf16.msra.mxu0 %v2853
      %2919 = vmatprep.subr.bf16.mxu0 %v2856
      %2920 = vmatpush1.bf16.msra.mxu0 %v2855
      %2921 = vmatprep.subr.bf16.mxu0 %v2858
      %2922 = vmatpush1.bf16.msra.mxu0 %v2857
      %2923 = vmatprep.subr.bf16.mxu0 %v2860
      %2924 = vmatpush1.bf16.msra.mxu0 %v2859
      %2925 = vmatprep.subr.bf16.mxu0 %v2862
      %2926 = vmatpush1.bf16.msra.mxu0 %v2861
      %2927 = vmatprep.subr.bf16.mxu0 %v2864
      %2928 = vmatpush1.bf16.msra.mxu0 %v2863
      %2929 = vmatprep.subr.bf16.mxu0 %v2866
      %2930 = vmatpush1.bf16.msra.mxu0 %v2865
      %2931 = vmatprep.subr.bf16.mxu0 %v2868
      %2932 = vmatpush1.bf16.msra.mxu0 %v2867
      %2933 = vmatprep.subr.bf16.mxu0 %v2870
      %2934 = vmatpush1.bf16.msra.mxu0 %v2869
      %2935 = vmatprep.subr.bf16.mxu0 %v2872
      %2936 = vmatpush1.bf16.msra.mxu0 %v2871
      %2937 = vmatprep.subr.bf16.mxu0 %v2874
      %2938 = vmatpush1.bf16.msra.mxu0 %v2873
      %2939 = vmatprep.mubr.bf16.mxu0 %v2643
      %2940 = vmatmul.mubr.bf16.gmra.mrb[0].mxu0 %v2642
      %v2941 = vpop.f32.mrb[0].mxu0
      %v2942 = vadd.f32 %v2742, %v2941
      %v2943 = vpop.f32.mrb[0].mxu0
      %v2944 = vadd.f32 %v2746, %v2943
      %v2945 = vpop.f32.mrb[0].mxu0
      %v2946 = vadd.f32 %v2742, %v2945
      %v2947 = vpop.f32.mrb[0].mxu0
      %v2948 = vadd.f32 %v2746, %v2947
      %2949 = vmatprep.mubr.bf16.mxu0 %v2645
      %2950 = vmatmul.mubr.bf16.gmra.mrb[0].mxu0 %v2644
      %v2951 = vpop.f32.mrb[0].mxu0
      %v2952 = vadd.f32 %v2742, %v2951
      %v2953 = vpop.f32.mrb[0].mxu0
      %v2954 = vadd.f32 %v2746, %v2953
      %v2955 = vpop.f32.mrb[0].mxu0
      %v2956 = vadd.f32 %v2742, %v2955
      %v2957 = vpop.f32.mrb[0].mxu0
      %v2958 = vadd.f32 %v2746, %v2957
      %2959 = vmatprep.mubr.bf16.mxu0 %v2647
      %2960 = vmatmul.mubr.bf16.gmra.mrb[0].mxu0 %v2646
      %v2961 = vpop.f32.mrb[0].mxu0
      %v2962 = vadd.f32 %v2742, %v2961
      %v2963 = vpop.f32.mrb[0].mxu0
      %v2964 = vadd.f32 %v2746, %v2963
      %v2965 = vpop.f32.mrb[0].mxu0
      %v2966 = vadd.f32 %v2742, %v2965
      %v2967 = vpop.f32.mrb[0].mxu0
      %v2968 = vadd.f32 %v2746, %v2967
      %2969 = vmatprep.mubr.bf16.mxu0 %v2649
      %2970 = vmatmul.mubr.bf16.gmra.mrb[0].mxu0 %v2648
      %v2971 = vpop.f32.mrb[0].mxu0
      %v2972 = vadd.f32 %v2742, %v2971
      %v2973 = vpop.f32.mrb[0].mxu0
      %v2974 = vadd.f32 %v2746, %v2973
      %v2975 = vpop.f32.mrb[0].mxu0
      %v2976 = vadd.f32 %v2742, %v2975
      %v2977 = vpop.f32.mrb[0].mxu0
      %v2978 = vadd.f32 %v2746, %v2977
      %2979 = vmatprep.mubr.bf16.mxu0 %v2651
      %2980 = vmatmul.mubr.bf16.gmra.mrb[0].mxu0 %v2650
      %v2981 = vpop.f32.mrb[0].mxu0
      %v2982 = vadd.f32 %v2742, %v2981
      %v2983 = vpop.f32.mrb[0].mxu0
      %v2984 = vadd.f32 %v2746, %v2983
      %v2985 = vpop.f32.mrb[0].mxu0
      %v2986 = vadd.f32 %v2742, %v2985
      %v2987 = vpop.f32.mrb[0].mxu0
      %v2988 = vadd.f32 %v2746, %v2987
      %2989 = vmatprep.mubr.bf16.mxu0 %v2653
      %2990 = vmatmul.mubr.bf16.gmra.mrb[0].mxu0 %v2652
      %v2991 = vpop.f32.mrb[0].mxu0
      %v2992 = vadd.f32 %v2742, %v2991
      %v2993 = vpop.f32.mrb[0].mxu0
      %v2994 = vadd.f32 %v2746, %v2993
      %v2995 = vpop.f32.mrb[0].mxu0
      %v2996 = vadd.f32 %v2742, %v2995
      %v2997 = vpop.f32.mrb[0].mxu0
      %v2998 = vadd.f32 %v2746, %v2997
      %2999 = vmatprep.mubr.bf16.mxu0 %v2655
      %3000 = vmatmul.mubr.bf16.gmra.mrb[0].mxu0 %v2654
      %v3001 = vpop.f32.mrb[0].mxu0
      %v3002 = vadd.f32 %v2742, %v3001
      %v3003 = vpop.f32.mrb[0].mxu0
      %v3004 = vadd.f32 %v2746, %v3003
      %v3005 = vpop.f32.mrb[0].mxu0
      %v3006 = vadd.f32 %v2742, %v3005
      %v3007 = vpop.f32.mrb[0].mxu0
      %v3008 = vadd.f32 %v2746, %v3007
      %3009 = vmatprep.mubr.bf16.mxu0 %v2657
      %3010 = vmatmul.mubr.bf16.gmra.mrb[0].mxu0 %v2656
      %v3011 = vpop.f32.mrb[0].mxu0
      %v3012 = vadd.f32 %v2742, %v3011
      %v3013 = vpop.f32.mrb[0].mxu0
      %v3014 = vadd.f32 %v2746, %v3013
      %v3015 = vpop.f32.mrb[0].mxu0
      %v3016 = vadd.f32 %v2742, %v3015
      %v3017 = vpop.f32.mrb[0].mxu0
      %v3018 = vadd.f32 %v2746, %v3017
      %3019 = vmatprep.mubr.bf16.mxu0 %v2659
      %3020 = vmatmul.mubr.bf16.gmra.mrb[0].mxu0 %v2658
      %v3021 = vpop.f32.mrb[0].mxu0
      %v3022 = vadd.f32 %v2742, %v3021
      %v3023 = vpop.f32.mrb[0].mxu0
      %v3024 = vadd.f32 %v2746, %v3023
      %v3025 = vpop.f32.mrb[0].mxu0
      %v3026 = vadd.f32 %v2742, %v3025
      %v3027 = vpop.f32.mrb[0].mxu0
      %v3028 = vadd.f32 %v2746, %v3027
      %3029 = vmatprep.mubr.bf16.mxu0 %v2661
      %3030 = vmatmul.mubr.bf16.gmra.mrb[0].mxu0 %v2660
      %v3031 = vpop.f32.mrb[0].mxu0
      %v3032 = vadd.f32 %v2742, %v3031
      %v3033 = vpop.f32.mrb[0].mxu0
      %v3034 = vadd.f32 %v2746, %v3033
      %v3035 = vpop.f32.mrb[0].mxu0
      %v3036 = vadd.f32 %v2742, %v3035
      %v3037 = vpop.f32.mrb[0].mxu0
      %v3038 = vadd.f32 %v2746, %v3037
      %3039 = vmatprep.mubr.bf16.mxu0 %v2663
      %3040 = vmatmul.mubr.bf16.gmra.mrb[0].mxu0 %v2662
      %v3041 = vpop.f32.mrb[0].mxu0
      %v3042 = vadd.f32 %v2742, %v3041
      %v3043 = vpop.f32.mrb[0].mxu0
      %v3044 = vadd.f32 %v2746, %v3043
      %v3045 = vpop.f32.mrb[0].mxu0
      %v3046 = vadd.f32 %v2742, %v3045
      %v3047 = vpop.f32.mrb[0].mxu0
      %v3048 = vadd.f32 %v2746, %v3047
      %3049 = vmatprep.mubr.bf16.mxu0 %v2665
      %3050 = vmatmul.mubr.bf16.gmra.mrb[0].mxu0 %v2664
      %v3051 = vpop.f32.mrb[0].mxu0
      %v3052 = vadd.f32 %v2742, %v3051
      %v3053 = vpop.f32.mrb[0].mxu0
      %v3054 = vadd.f32 %v2746, %v3053
      %v3055 = vpop.f32.mrb[0].mxu0
      %v3056 = vadd.f32 %v2742, %v3055
      %v3057 = vpop.f32.mrb[0].mxu0
      %v3058 = vadd.f32 %v2746, %v3057
      %3059 = vmatprep.mubr.bf16.mxu0 %v2667
      %3060 = vmatmul.mubr.bf16.gmra.mrb[0].mxu0 %v2666
      %v3061 = vpop.f32.mrb[0].mxu0
      %v3062 = vadd.f32 %v2742, %v3061
      %v3063 = vpop.f32.mrb[0].mxu0
      %v3064 = vadd.f32 %v2746, %v3063
      %v3065 = vpop.f32.mrb[0].mxu0
      %v3066 = vadd.f32 %v2742, %v3065
      %v3067 = vpop.f32.mrb[0].mxu0
      %v3068 = vadd.f32 %v2746, %v3067
      %3069 = vmatprep.mubr.bf16.mxu0 %v2669
      %3070 = vmatmul.mubr.bf16.gmra.mrb[0].mxu0 %v2668
      %v3071 = vpop.f32.mrb[0].mxu0
      %v3072 = vadd.f32 %v2742, %v3071
      %v3073 = vpop.f32.mrb[0].mxu0
      %v3074 = vadd.f32 %v2746, %v3073
      %v3075 = vpop.f32.mrb[0].mxu0
      %v3076 = vadd.f32 %v2742, %v3075
      %v3077 = vpop.f32.mrb[0].mxu0
      %v3078 = vadd.f32 %v2746, %v3077
      %3079 = vmatprep.mubr.bf16.mxu0 %v2671
      %3080 = vmatmul.mubr.bf16.gmra.mrb[0].mxu0 %v2670
      %v3081 = vpop.f32.mrb[0].mxu0
      %v3082 = vadd.f32 %v2742, %v3081
      %v3083 = vpop.f32.mrb[0].mxu0
      %v3084 = vadd.f32 %v2746, %v3083
      %v3085 = vpop.f32.mrb[0].mxu0
      %v3086 = vadd.f32 %v2742, %v3085
      %v3087 = vpop.f32.mrb[0].mxu0
      %v3088 = vadd.f32 %v2746, %v3087
      %3089 = vmatprep.mubr.bf16.mxu0 %v2673
      %3090 = vmatmul.mubr.bf16.gmra.mrb[0].mxu0 %v2672
      %v3091 = vpop.f32.mrb[0].mxu0
      %v3092 = vadd.f32 %v2742, %v3091
      %v3093 = vpop.f32.mrb[0].mxu0
      %v3094 = vadd.f32 %v2746, %v3093
      %v3095 = vpop.f32.mrb[0].mxu0
      %v3096 = vadd.f32 %v2742, %v3095
      %v3097 = vpop.f32.mrb[0].mxu0
      %v3098 = vadd.f32 %v2746, %v3097
      %3099 = vmatprep.mubr.bf16.mxu0 %v2675
      %3100 = vmatmul.mubr.bf16.gmra.mrb[0].mxu0 %v2674
      %v3101 = vpop.f32.mrb[0].mxu0
      %v3102 = vadd.f32 %v2742, %v3101
      %v3103 = vpop.f32.mrb[0].mxu0
      %v3104 = vadd.f32 %v2746, %v3103
      %v3105 = vpop.f32.mrb[0].mxu0
      %v3106 = vadd.f32 %v2742, %v3105
      %v3107 = vpop.f32.mrb[0].mxu0
      %v3108 = vadd.f32 %v2746, %v3107
      %3109 = vmatprep.mubr.bf16.mxu0 %v2677
      %3110 = vmatmul.mubr.bf16.gmra.mrb[0].mxu0 %v2676
      %v3111 = vpop.f32.mrb[0].mxu0
      %v3112 = vadd.f32 %v2742, %v3111
      %v3113 = vpop.f32.mrb[0].mxu0
      %v3114 = vadd.f32 %v2746, %v3113
      %v3115 = vpop.f32.mrb[0].mxu0
      %v3116 = vadd.f32 %v2742, %v3115
      %v3117 = vpop.f32.mrb[0].mxu0
      %v3118 = vadd.f32 %v2746, %v3117
      %3119 = vmatprep.mubr.bf16.mxu0 %v2679
      %3120 = vmatmul.mubr.bf16.gmra.mrb[0].mxu0 %v2678
      %v3121 = vpop.f32.mrb[0].mxu0
      %v3122 = vadd.f32 %v2742, %v3121
      %v3123 = vpop.f32.mrb[0].mxu0
      %v3124 = vadd.f32 %v2746, %v3123
      %v3125 = vpop.f32.mrb[0].mxu0
      %v3126 = vadd.f32 %v2742, %v3125
      %v3127 = vpop.f32.mrb[0].mxu0
      %v3128 = vadd.f32 %v2746, %v3127
      %3129 = vmatprep.mubr.bf16.mxu0 %v2681
      %3130 = vmatmul.mubr.bf16.gmra.mrb[0].mxu0 %v2680
      %v3131 = vpop.f32.mrb[0].mxu0
      %v3132 = vadd.f32 %v2742, %v3131
      %v3133 = vpop.f32.mrb[0].mxu0
      %v3134 = vadd.f32 %v2746, %v3133
      %v3135 = vpop.f32.mrb[0].mxu0
      %v3136 = vadd.f32 %v2742, %v3135
      %v3137 = vpop.f32.mrb[0].mxu0
      %v3138 = vadd.f32 %v2746, %v3137
      %3139 = vmatprep.mubr.bf16.mxu0 %v2683
      %3140 = vmatmul.mubr.bf16.gmra.mrb[0].mxu0 %v2682
      %v3141 = vpop.f32.mrb[0].mxu0
      %v3142 = vadd.f32 %v2742, %v3141
      %v3143 = vpop.f32.mrb[0].mxu0
      %v3144 = vadd.f32 %v2746, %v3143
      %v3145 = vpop.f32.mrb[0].mxu0
      %v3146 = vadd.f32 %v2742, %v3145
      %v3147 = vpop.f32.mrb[0].mxu0
      %v3148 = vadd.f32 %v2746, %v3147
      %3149 = vmatprep.mubr.bf16.mxu0 %v2685
      %3150 = vmatmul.mubr.bf16.gmra.mrb[0].mxu0 %v2684
      %v3151 = vpop.f32.mrb[0].mxu0
      %v3152 = vadd.f32 %v2742, %v3151
      %v3153 = vpop.f32.mrb[0].mxu0
      %v3154 = vadd.f32 %v2746, %v3153
      %v3155 = vpop.f32.mrb[0].mxu0
      %v3156 = vadd.f32 %v2742, %v3155
      %v3157 = vpop.f32.mrb[0].mxu0
      %v3158 = vadd.f32 %v2746, %v3157
      %3159 = vmatprep.mubr.bf16.mxu0 %v2687
      %3160 = vmatmul.mubr.bf16.gmra.mrb[0].mxu0 %v2686
      %v3161 = vpop.f32.mrb[0].mxu0
      %v3162 = vadd.f32 %v2742, %v3161
      %v3163 = vpop.f32.mrb[0].mxu0
      %v3164 = vadd.f32 %v2746, %v3163
      %v3165 = vpop.f32.mrb[0].mxu0
      %v3166 = vadd.f32 %v2742, %v3165
      %v3167 = vpop.f32.mrb[0].mxu0
      %v3168 = vadd.f32 %v2746, %v3167
      %3169 = vmatprep.mubr.bf16.mxu0 %v2689
      %3170 = vmatmul.mubr.bf16.gmra.mrb[0].mxu0 %v2688
      %v3171 = vpop.f32.mrb[0].mxu0
      %v3172 = vadd.f32 %v2742, %v3171
      %v3173 = vpop.f32.mrb[0].mxu0
      %v3174 = vadd.f32 %v2746, %v3173
      %v3175 = vpop.f32.mrb[0].mxu0
      %v3176 = vadd.f32 %v2742, %v3175
      %v3177 = vpop.f32.mrb[0].mxu0
      %v3178 = vadd.f32 %v2746, %v3177
      %3179 = vmatprep.mubr.bf16.mxu0 %v2691
      %3180 = vmatmul.mubr.bf16.gmra.mrb[0].mxu0 %v2690
      %v3181 = vpop.f32.mrb[0].mxu0
      %v3182 = vadd.f32 %v2742, %v3181
      %v3183 = vpop.f32.mrb[0].mxu0
      %v3184 = vadd.f32 %v2746, %v3183
      %v3185 = vpop.f32.mrb[0].mxu0
      %v3186 = vadd.f32 %v2742, %v3185
      %v3187 = vpop.f32.mrb[0].mxu0
      %v3188 = vadd.f32 %v2746, %v3187
      %3189 = vmatprep.mubr.bf16.mxu0 %v2693
      %3190 = vmatmul.mubr.bf16.gmra.mrb[0].mxu0 %v2692
      %v3191 = vpop.f32.mrb[0].mxu0
      %v3192 = vadd.f32 %v2742, %v3191
      %v3193 = vpop.f32.mrb[0].mxu0
      %v3194 = vadd.f32 %v2746, %v3193
      %v3195 = vpop.f32.mrb[0].mxu0
      %v3196 = vadd.f32 %v2742, %v3195
      %v3197 = vpop.f32.mrb[0].mxu0
      %v3198 = vadd.f32 %v2746, %v3197
      %3199 = vmatprep.mubr.bf16.mxu0 %v2695
      %3200 = vmatmul.mubr.bf16.gmra.mrb[0].mxu0 %v2694
      %v3201 = vpop.f32.mrb[0].mxu0
      %v3202 = vadd.f32 %v2742, %v3201
      %v3203 = vpop.f32.mrb[0].mxu0
      %v3204 = vadd.f32 %v2746, %v3203
      %v3205 = vpop.f32.mrb[0].mxu0
      %v3206 = vadd.f32 %v2742, %v3205
      %v3207 = vpop.f32.mrb[0].mxu0
      %v3208 = vadd.f32 %v2746, %v3207
      %3209 = vmatprep.mubr.bf16.mxu0 %v2697
      %3210 = vmatmul.mubr.bf16.gmra.mrb[0].mxu0 %v2696
      %v3211 = vpop.f32.mrb[0].mxu0
      %v3212 = vadd.f32 %v2742, %v3211
      %v3213 = vpop.f32.mrb[0].mxu0
      %v3214 = vadd.f32 %v2746, %v3213
      %v3215 = vpop.f32.mrb[0].mxu0
      %v3216 = vadd.f32 %v2742, %v3215
      %v3217 = vpop.f32.mrb[0].mxu0
      %v3218 = vadd.f32 %v2746, %v3217
      %3219 = vmatprep.mubr.bf16.mxu0 %v2699
      %3220 = vmatmul.mubr.bf16.gmra.mrb[0].mxu0 %v2698
      %v3221 = vpop.f32.mrb[0].mxu0
      %v3222 = vadd.f32 %v2742, %v3221
      %v3223 = vpop.f32.mrb[0].mxu0
      %v3224 = vadd.f32 %v2746, %v3223
      %v3225 = vpop.f32.mrb[0].mxu0
      %v3226 = vadd.f32 %v2742, %v3225
      %v3227 = vpop.f32.mrb[0].mxu0
      %v3228 = vadd.f32 %v2746, %v3227
      %3229 = vmatprep.mubr.bf16.mxu0 %v2701
      %3230 = vmatmul.mubr.bf16.gmra.mrb[0].mxu0 %v2700
      %v3231 = vpop.f32.mrb[0].mxu0
      %v3232 = vadd.f32 %v2742, %v3231
      %v3233 = vpop.f32.mrb[0].mxu0
      %v3234 = vadd.f32 %v2746, %v3233
      %v3235 = vpop.f32.mrb[0].mxu0
      %v3236 = vadd.f32 %v2742, %v3235
      %v3237 = vpop.f32.mrb[0].mxu0
      %v3238 = vadd.f32 %v2746, %v3237
      %3239 = vmatprep.mubr.bf16.mxu0 %v2703
      %3240 = vmatmul.mubr.bf16.gmra.mrb[0].mxu0 %v2702
      %v3241 = vpop.f32.mrb[0].mxu0
      %v3242 = vadd.f32 %v2742, %v3241
      %v3243 = vpop.f32.mrb[0].mxu0
      %v3244 = vadd.f32 %v2746, %v3243
      %v3245 = vpop.f32.mrb[0].mxu0
      %v3246 = vadd.f32 %v2742, %v3245
      %v3247 = vpop.f32.mrb[0].mxu0
      %v3248 = vadd.f32 %v2746, %v3247
      %3249 = vmatprep.mubr.bf16.mxu0 %v2705
      %3250 = vmatmul.mubr.bf16.gmra.mrb[0].mxu0 %v2704
      %v3251 = vpop.f32.mrb[0].mxu0
      %v3252 = vadd.f32 %v2742, %v3251
      %v3253 = vpop.f32.mrb[0].mxu0
      %v3254 = vadd.f32 %v2746, %v3253
      %v3255 = vpop.f32.mrb[0].mxu0
      %v3256 = vadd.f32 %v2742, %v3255
      %v3257 = vpop.f32.mrb[0].mxu0
      %v3258 = vadd.f32 %v2746, %v3257
      %3259 = vdwg.mxu0
      %v3260 = vmax.f32 %v2942, 0.0
      %v3261 = vmax.f32 %v2944, 0.0
      %v3262 = vmax.f32 %v2946, 0.0
      %v3263 = vmax.f32 %v2948, 0.0
      %v3264 = vmax.f32 %v2952, 0.0
      %v3265 = vmax.f32 %v2954, 0.0
      %v3266 = vmax.f32 %v2956, 0.0
      %v3267 = vmax.f32 %v2958, 0.0
      %v3268 = vmax.f32 %v2962, 0.0
      %v3269 = vmax.f32 %v2964, 0.0
      %v3270 = vmax.f32 %v2966, 0.0
      %v3271 = vmax.f32 %v2968, 0.0
      %v3272 = vmax.f32 %v2972, 0.0
      %v3273 = vmax.f32 %v2974, 0.0
      %v3274 = vmax.f32 %v2976, 0.0
      %v3275 = vmax.f32 %v2978, 0.0
      %v3276 = vmax.f32 %v2982, 0.0
      %v3277 = vmax.f32 %v2984, 0.0
      %v3278 = vmax.f32 %v2986, 0.0
      %v3279 = vmax.f32 %v2988, 0.0
      %v3280 = vmax.f32 %v2992, 0.0
      %v3281 = vmax.f32 %v2994, 0.0
      %v3282 = vmax.f32 %v2996, 0.0
      %v3283 = vmax.f32 %v2998, 0.0
      %v3284 = vmax.f32 %v3002, 0.0
      %v3285 = vmax.f32 %v3004, 0.0
      %v3286 = vmax.f32 %v3006, 0.0
      %v3287 = vmax.f32 %v3008, 0.0
      %v3288 = vmax.f32 %v3012, 0.0
      %v3289 = vmax.f32 %v3014, 0.0
      %v3290 = vmax.f32 %v3016, 0.0
      %v3291 = vmax.f32 %v3018, 0.0
      %v3292 = vmax.f32 %v3022, 0.0
      %v3293 = vmax.f32 %v3024, 0.0
      %v3294 = vmax.f32 %v3026, 0.0
      %v3295 = vmax.f32 %v3028, 0.0
      %v3296 = vmax.f32 %v3032, 0.0
      %v3297 = vmax.f32 %v3034, 0.0
      %v3298 = vmax.f32 %v3036, 0.0
      %v3299 = vmax.f32 %v3038, 0.0
      %v3300 = vmax.f32 %v3042, 0.0
      %v3301 = vmax.f32 %v3044, 0.0
      %v3302 = vmax.f32 %v3046, 0.0
      %v3303 = vmax.f32 %v3048, 0.0
      %v3304 = vmax.f32 %v3052, 0.0
      %v3305 = vmax.f32 %v3054, 0.0
      %v3306 = vmax.f32 %v3056, 0.0
      %v3307 = vmax.f32 %v3058, 0.0
      %v3308 = vmax.f32 %v3062, 0.0
      %v3309 = vmax.f32 %v3064, 0.0
      %v3310 = vmax.f32 %v3066, 0.0
      %v3311 = vmax.f32 %v3068, 0.0
      %v3312 = vmax.f32 %v3072, 0.0
      %v3313 = vmax.f32 %v3074, 0.0
      %v3314 = vmax.f32 %v3076, 0.0
      %v3315 = vmax.f32 %v3078, 0.0
      %v3316 = vmax.f32 %v3082, 0.0
      %v3317 = vmax.f32 %v3084, 0.0
      %v3318 = vmax.f32 %v3086, 0.0
      %v3319 = vmax.f32 %v3088, 0.0
      %v3320 = vmax.f32 %v3092, 0.0
      %v3321 = vmax.f32 %v3094, 0.0
      %v3322 = vmax.f32 %v3096, 0.0
      %v3323 = vmax.f32 %v3098, 0.0
      %v3324 = vmax.f32 %v3102, 0.0
      %v3325 = vmax.f32 %v3104, 0.0
      %v3326 = vmax.f32 %v3106, 0.0
      %v3327 = vmax.f32 %v3108, 0.0
      %v3328 = vmax.f32 %v3112, 0.0
      %v3329 = vmax.f32 %v3114, 0.0
      %v3330 = vmax.f32 %v3116, 0.0
      %v3331 = vmax.f32 %v3118, 0.0
      %v3332 = vmax.f32 %v3122, 0.0
      %v3333 = vmax.f32 %v3124, 0.0
      %v3334 = vmax.f32 %v3126, 0.0
      %v3335 = vmax.f32 %v3128, 0.0
      %v3336 = vmax.f32 %v3132, 0.0
      %v3337 = vmax.f32 %v3134, 0.0
      %v3338 = vmax.f32 %v3136, 0.0
      %v3339 = vmax.f32 %v3138, 0.0
      %v3340 = vmax.f32 %v3142, 0.0
      %v3341 = vmax.f32 %v3144, 0.0
      %v3342 = vmax.f32 %v3146, 0.0
      %v3343 = vmax.f32 %v3148, 0.0
      %v3344 = vmax.f32 %v3152, 0.0
      %v3345 = vmax.f32 %v3154, 0.0
      %v3346 = vmax.f32 %v3156, 0.0
      %v3347 = vmax.f32 %v3158, 0.0
      %v3348 = vmax.f32 %v3162, 0.0
      %v3349 = vmax.f32 %v3164, 0.0
      %v3350 = vmax.f32 %v3166, 0.0
      %v3351 = vmax.f32 %v3168, 0.0
      %v3352 = vmax.f32 %v3172, 0.0
      %v3353 = vmax.f32 %v3174, 0.0
      %v3354 = vmax.f32 %v3176, 0.0
      %v3355 = vmax.f32 %v3178, 0.0
      %v3356 = vmax.f32 %v3182, 0.0
      %v3357 = vmax.f32 %v3184, 0.0
      %v3358 = vmax.f32 %v3186, 0.0
      %v3359 = vmax.f32 %v3188, 0.0
      %v3360 = vmax.f32 %v3192, 0.0
      %v3361 = vmax.f32 %v3194, 0.0
      %v3362 = vmax.f32 %v3196, 0.0
      %v3363 = vmax.f32 %v3198, 0.0
      %v3364 = vmax.f32 %v3202, 0.0
      %v3365 = vmax.f32 %v3204, 0.0
      %v3366 = vmax.f32 %v3206, 0.0
      %v3367 = vmax.f32 %v3208, 0.0
      %v3368 = vmax.f32 %v3212, 0.0
      %v3369 = vmax.f32 %v3214, 0.0
      %v3370 = vmax.f32 %v3216, 0.0
      %v3371 = vmax.f32 %v3218, 0.0
      %v3372 = vmax.f32 %v3222, 0.0
      %v3373 = vmax.f32 %v3224, 0.0
      %v3374 = vmax.f32 %v3226, 0.0
      %v3375 = vmax.f32 %v3228, 0.0
      %v3376 = vmax.f32 %v3232, 0.0
      %v3377 = vmax.f32 %v3234, 0.0
      %v3378 = vmax.f32 %v3236, 0.0
      %v3379 = vmax.f32 %v3238, 0.0
      %v3380 = vmax.f32 %v3242, 0.0
      %v3381 = vmax.f32 %v3244, 0.0
      %v3382 = vmax.f32 %v3246, 0.0
      %v3383 = vmax.f32 %v3248, 0.0
      %v3384 = vmax.f32 %v3252, 0.0
      %v3385 = vmax.f32 %v3254, 0.0
      %v3386 = vmax.f32 %v3256, 0.0
      %v3387 = vmax.f32 %v3258, 0.0
      %v3388 = vpack.c.bf16 %v3262, %v3260
      %v3389 = vpack.c.bf16 %v3263, %v3261
      %v3390 = vpack.c.bf16 %v3266, %v3264
      %v3391 = vpack.c.bf16 %v3267, %v3265
      %v3392 = vpack.c.bf16 %v3270, %v3268
      %v3393 = vpack.c.bf16 %v3271, %v3269
      %v3394 = vpack.c.bf16 %v3274, %v3272
      %v3395 = vpack.c.bf16 %v3275, %v3273
      %v3396 = vpack.c.bf16 %v3278, %v3276
      %v3397 = vpack.c.bf16 %v3279, %v3277
      %v3398 = vpack.c.bf16 %v3282, %v3280
      %v3399 = vpack.c.bf16 %v3283, %v3281
      %v3400 = vpack.c.bf16 %v3286, %v3284
      %v3401 = vpack.c.bf16 %v3287, %v3285
      %v3402 = vpack.c.bf16 %v3290, %v3288
      %v3403 = vpack.c.bf16 %v3291, %v3289
      %v3404 = vpack.c.bf16 %v3294, %v3292
      %v3405 = vpack.c.bf16 %v3295, %v3293
      %v3406 = vpack.c.bf16 %v3298, %v3296
      %v3407 = vpack.c.bf16 %v3299, %v3297
      %v3408 = vpack.c.bf16 %v3302, %v3300
      %v3409 = vpack.c.bf16 %v3303, %v3301
      %v3410 = vpack.c.bf16 %v3306, %v3304
      %v3411 = vpack.c.bf16 %v3307, %v3305
      %v3412 = vpack.c.bf16 %v3310, %v3308
      %v3413 = vpack.c.bf16 %v3311, %v3309
      %v3414 = vpack.c.bf16 %v3314, %v3312
      %v3415 = vpack.c.bf16 %v3315, %v3313
      %v3416 = vpack.c.bf16 %v3318, %v3316
      %v3417 = vpack.c.bf16 %v3319, %v3317
      %v3418 = vpack.c.bf16 %v3322, %v3320
      %v3419 = vpack.c.bf16 %v3323, %v3321
      %v3420 = vpack.c.bf16 %v3326, %v3324
      %v3421 = vpack.c.bf16 %v3327, %v3325
      %v3422 = vpack.c.bf16 %v3330, %v3328
      %v3423 = vpack.c.bf16 %v3331, %v3329
      %v3424 = vpack.c.bf16 %v3334, %v3332
      %v3425 = vpack.c.bf16 %v3335, %v3333
      %v3426 = vpack.c.bf16 %v3338, %v3336
      %v3427 = vpack.c.bf16 %v3339, %v3337
      %v3428 = vpack.c.bf16 %v3342, %v3340
      %v3429 = vpack.c.bf16 %v3343, %v3341
      %v3430 = vpack.c.bf16 %v3346, %v3344
      %v3431 = vpack.c.bf16 %v3347, %v3345
      %v3432 = vpack.c.bf16 %v3350, %v3348
      %v3433 = vpack.c.bf16 %v3351, %v3349
      %v3434 = vpack.c.bf16 %v3354, %v3352
      %v3435 = vpack.c.bf16 %v3355, %v3353
      %v3436 = vpack.c.bf16 %v3358, %v3356
      %v3437 = vpack.c.bf16 %v3359, %v3357
      %v3438 = vpack.c.bf16 %v3362, %v3360
      %v3439 = vpack.c.bf16 %v3363, %v3361
      %v3440 = vpack.c.bf16 %v3366, %v3364
      %v3441 = vpack.c.bf16 %v3367, %v3365
      %v3442 = vpack.c.bf16 %v3370, %v3368
      %v3443 = vpack.c.bf16 %v3371, %v3369
      %v3444 = vpack.c.bf16 %v3374, %v3372
      %v3445 = vpack.c.bf16 %v3375, %v3373
      %v3446 = vpack.c.bf16 %v3378, %v3376
      %v3447 = vpack.c.bf16 %v3379, %v3377
      %v3448 = vpack.c.bf16 %v3382, %v3380
      %v3449 = vpack.c.bf16 %v3383, %v3381
      %v3450 = vpack.c.bf16 %v3386, %v3384
      %v3451 = vpack.c.bf16 %v3387, %v3385
      %s3452 = scalar_lea.vmem %s2, 768
      %v3453 = vld [vmem:[%s3452] sm:$0xff]
      %v3454 = vld [vmem:[%s3452 + $0x8] sm:$0xff]
      %v3455 = vld [vmem:[%s3452 + $0x10] sm:$0xff]
      %v3456 = vld [vmem:[%s3452 + $0x18] sm:$0xff]
      %v3457 = vld [vmem:[%s3452 + $0x20] sm:$0xff]
      %v3458 = vld [vmem:[%s3452 + $0x28] sm:$0xff]
      %v3459 = vld [vmem:[%s3452 + $0x30] sm:$0xff]
      %v3460 = vld [vmem:[%s3452 + $0x38] sm:$0xff]
      %v3461 = vld [vmem:[%s3452 + $0x40] sm:$0xff]
      %v3462 = vld [vmem:[%s3452 + $0x48] sm:$0xff]
      %v3463 = vld [vmem:[%s3452 + $0x50] sm:$0xff]
      %v3464 = vld [vmem:[%s3452 + $0x58] sm:$0xff]
      %v3465 = vld [vmem:[%s3452 + $0x60] sm:$0xff]
      %v3466 = vld [vmem:[%s3452 + $0x68] sm:$0xff]
      %v3467 = vld [vmem:[%s3452 + $0x70] sm:$0xff]
      %v3468 = vld [vmem:[%s3452 + $0x78] sm:$0xff]
      %v3469 = vld [vmem:[%s3452 + $0x80] sm:$0xff]
      %v3470 = vld [vmem:[%s3452 + $0x88] sm:$0xff]
      %v3471 = vld [vmem:[%s3452 + $0x90] sm:$0xff]
      %v3472 = vld [vmem:[%s3452 + $0x98] sm:$0xff]
      %v3473 = vld [vmem:[%s3452 + $0xa0] sm:$0xff]
      %v3474 = vld [vmem:[%s3452 + $0xa8] sm:$0xff]
      %v3475 = vld [vmem:[%s3452 + $0xb0] sm:$0xff]
      %v3476 = vld [vmem:[%s3452 + $0xb8] sm:$0xff]
      %v3477 = vld [vmem:[%s3452 + $0xc0] sm:$0xff]
      %v3478 = vld [vmem:[%s3452 + $0xc8] sm:$0xff]
      %v3479 = vld [vmem:[%s3452 + $0xd0] sm:$0xff]
      %v3480 = vld [vmem:[%s3452 + $0xd8] sm:$0xff]
      %v3481 = vld [vmem:[%s3452 + $0xe0] sm:$0xff]
      %v3482 = vld [vmem:[%s3452 + $0xe8] sm:$0xff]
      %v3483 = vld [vmem:[%s3452 + $0xf0] sm:$0xff]
      %v3484 = vld [vmem:[%s3452 + $0xf8] sm:$0xff]
      %v3485 = vlaneseq
      %v3486 = vshrl.u32 %v3485, 7
      %v3487 = vsub.s32 4, %v3486
      %v3488 = vrot.slane %v347, %v3487
      %v3489 = vlaneseq
      %v3490 = vshrl.u32 %v3489, 7
      %v3491 = vsub.s32 4, %v3490
      %v3492 = vrot.slane %v348, %v3491
      %v3525 = vunpack.c.l.b16 %v3453
      %v3526 = vunpack.c.h.b16 %v3453
      %v3527 = vunpack.c.l.b16 %v3454
      %v3528 = vunpack.c.h.b16 %v3454
      %v3529 = vunpack.c.l.b16 %v3455
      %v3530 = vunpack.c.h.b16 %v3455
      %v3531 = vunpack.c.l.b16 %v3456
      %v3532 = vunpack.c.h.b16 %v3456
      %v3533 = vunpack.c.l.b16 %v3457
      %v3534 = vunpack.c.h.b16 %v3457
      %v3535 = vunpack.c.l.b16 %v3458
      %v3536 = vunpack.c.h.b16 %v3458
      %v3537 = vunpack.c.l.b16 %v3459
      %v3538 = vunpack.c.h.b16 %v3459
      %v3539 = vunpack.c.l.b16 %v3460
      %v3540 = vunpack.c.h.b16 %v3460
      %v3541 = vunpack.c.l.b16 %v3461
      %v3542 = vunpack.c.h.b16 %v3461
      %v3543 = vunpack.c.l.b16 %v3462
      %v3544 = vunpack.c.h.b16 %v3462
      %v3545 = vunpack.c.l.b16 %v3463
      %v3546 = vunpack.c.h.b16 %v3463
      %v3547 = vunpack.c.l.b16 %v3464
      %v3548 = vunpack.c.h.b16 %v3464
      %v3549 = vunpack.c.l.b16 %v3465
      %v3550 = vunpack.c.h.b16 %v3465
      %v3551 = vunpack.c.l.b16 %v3466
      %v3552 = vunpack.c.h.b16 %v3466
      %v3553 = vunpack.c.l.b16 %v3467
      %v3554 = vunpack.c.h.b16 %v3467
      %v3555 = vunpack.c.l.b16 %v3468
      %v3556 = vunpack.c.h.b16 %v3468
      %v3557 = vunpack.c.l.b16 %v3469
      %v3558 = vunpack.c.h.b16 %v3469
      %v3559 = vunpack.c.l.b16 %v3470
      %v3560 = vunpack.c.h.b16 %v3470
      %v3561 = vunpack.c.l.b16 %v3471
      %v3562 = vunpack.c.h.b16 %v3471
      %v3563 = vunpack.c.l.b16 %v3472
      %v3564 = vunpack.c.h.b16 %v3472
      %v3565 = vunpack.c.l.b16 %v3473
      %v3566 = vunpack.c.h.b16 %v3473
      %v3567 = vunpack.c.l.b16 %v3474
      %v3568 = vunpack.c.h.b16 %v3474
      %v3569 = vunpack.c.l.b16 %v3475
      %v3570 = vunpack.c.h.b16 %v3475
      %v3571 = vunpack.c.l.b16 %v3476
      %v3572 = vunpack.c.h.b16 %v3476
      %v3573 = vunpack.c.l.b16 %v3477
      %v3574 = vunpack.c.h.b16 %v3477
      %v3575 = vunpack.c.l.b16 %v3478
      %v3576 = vunpack.c.h.b16 %v3478
      %v3577 = vunpack.c.l.b16 %v3479
      %v3578 = vunpack.c.h.b16 %v3479
      %v3579 = vunpack.c.l.b16 %v3480
      %v3580 = vunpack.c.h.b16 %v3480
      %v3581 = vunpack.c.l.b16 %v3481
      %v3582 = vunpack.c.h.b16 %v3481
      %v3583 = vunpack.c.l.b16 %v3482
      %v3584 = vunpack.c.h.b16 %v3482
      %v3585 = vunpack.c.l.b16 %v3483
      %v3586 = vunpack.c.h.b16 %v3483
      %v3587 = vunpack.c.l.b16 %v3484
      %v3588 = vunpack.c.h.b16 %v3484
      %v3589 = vpack.c.b16 %v3527, %v3525
      %v3590 = vpack.c.b16 %v3528, %v3526
      %v3591 = vpack.c.b16 %v3531, %v3529
      %v3592 = vpack.c.b16 %v3532, %v3530
      %v3593 = vpack.c.b16 %v3535, %v3533
      %v3594 = vpack.c.b16 %v3536, %v3534
      %v3595 = vpack.c.b16 %v3539, %v3537
      %v3596 = vpack.c.b16 %v3540, %v3538
      %v3597 = vpack.c.b16 %v3543, %v3541
      %v3598 = vpack.c.b16 %v3544, %v3542
      %v3599 = vpack.c.b16 %v3547, %v3545
      %v3600 = vpack.c.b16 %v3548, %v3546
      %v3601 = vpack.c.b16 %v3551, %v3549
      %v3602 = vpack.c.b16 %v3552, %v3550
      %v3603 = vpack.c.b16 %v3555, %v3553
      %v3604 = vpack.c.b16 %v3556, %v3554
      %v3605 = vpack.c.b16 %v3559, %v3557
      %v3606 = vpack.c.b16 %v3560, %v3558
      %v3607 = vpack.c.b16 %v3563, %v3561
      %v3608 = vpack.c.b16 %v3564, %v3562
      %v3609 = vpack.c.b16 %v3567, %v3565
      %v3610 = vpack.c.b16 %v3568, %v3566
      %v3611 = vpack.c.b16 %v3571, %v3569
      %v3612 = vpack.c.b16 %v3572, %v3570
      %v3613 = vpack.c.b16 %v3575, %v3573
      %v3614 = vpack.c.b16 %v3576, %v3574
      %v3615 = vpack.c.b16 %v3579, %v3577
      %v3616 = vpack.c.b16 %v3580, %v3578
      %v3617 = vpack.c.b16 %v3583, %v3581
      %v3618 = vpack.c.b16 %v3584, %v3582
      %v3619 = vpack.c.b16 %v3587, %v3585
      %v3620 = vpack.c.b16 %v3588, %v3586
      %3653 = vmatprep.subr.bf16.mxu0 %v3590
      %3654 = vmatpush1.bf16.msra.mxu0 %v3589
      %3655 = vmatprep.subr.bf16.mxu0 %v3592
      %3656 = vmatpush1.bf16.msra.mxu0 %v3591
      %3657 = vmatprep.subr.bf16.mxu0 %v3594
      %3658 = vmatpush1.bf16.msra.mxu0 %v3593
      %3659 = vmatprep.subr.bf16.mxu0 %v3596
      %3660 = vmatpush1.bf16.msra.mxu0 %v3595
      %3661 = vmatprep.subr.bf16.mxu0 %v3598
      %3662 = vmatpush1.bf16.msra.mxu0 %v3597
      %3663 = vmatprep.subr.bf16.mxu0 %v3600
      %3664 = vmatpush1.bf16.msra.mxu0 %v3599
      %3665 = vmatprep.subr.bf16.mxu0 %v3602
      %3666 = vmatpush1.bf16.msra.mxu0 %v3601
      %3667 = vmatprep.subr.bf16.mxu0 %v3604
      %3668 = vmatpush1.bf16.msra.mxu0 %v3603
      %3669 = vmatprep.subr.bf16.mxu0 %v3606
      %3670 = vmatpush1.bf16.msra.mxu0 %v3605
      %3671 = vmatprep.subr.bf16.mxu0 %v3608
      %3672 = vmatpush1.bf16.msra.mxu0 %v3607
      %3673 = vmatprep.subr.bf16.mxu0 %v3610
      %3674 = vmatpush1.bf16.msra.mxu0 %v3609
      %3675 = vmatprep.subr.bf16.mxu0 %v3612
      %3676 = vmatpush1.bf16.msra.mxu0 %v3611
      %3677 = vmatprep.subr.bf16.mxu0 %v3614
      %3678 = vmatpush1.bf16.msra.mxu0 %v3613
      %3679 = vmatprep.subr.bf16.mxu0 %v3616
      %3680 = vmatpush1.bf16.msra.mxu0 %v3615
      %3681 = vmatprep.subr.bf16.mxu0 %v3618
      %3682 = vmatpush1.bf16.msra.mxu0 %v3617
      %3683 = vmatprep.subr.bf16.mxu0 %v3620
      %3684 = vmatpush1.bf16.msra.mxu0 %v3619
      %3685 = vmatprep.mubr.bf16.mxu0 %v3389
      %3686 = vmatmul.mubr.bf16.gmra.mrb[0].mxu0 %v3388
      %v3687 = vpop.f32.mrb[0].mxu0
      %v3688 = vadd.f32 %v3488, %v3687
      %v3689 = vpop.f32.mrb[0].mxu0
      %v3690 = vadd.f32 %v3492, %v3689
      %v3691 = vpop.f32.mrb[0].mxu0
      %v3692 = vadd.f32 %v3488, %v3691
      %v3693 = vpop.f32.mrb[0].mxu0
      %v3694 = vadd.f32 %v3492, %v3693
      %3695 = vmatprep.mubr.bf16.mxu0 %v3391
      %3696 = vmatmul.mubr.bf16.gmra.mrb[0].mxu0 %v3390
      %v3697 = vpop.f32.mrb[0].mxu0
      %v3698 = vadd.f32 %v3488, %v3697
      %v3699 = vpop.f32.mrb[0].mxu0
      %v3700 = vadd.f32 %v3492, %v3699
      %v3701 = vpop.f32.mrb[0].mxu0
      %v3702 = vadd.f32 %v3488, %v3701
      %v3703 = vpop.f32.mrb[0].mxu0
      %v3704 = vadd.f32 %v3492, %v3703
      %3705 = vmatprep.mubr.bf16.mxu0 %v3393
      %3706 = vmatmul.mubr.bf16.gmra.mrb[0].mxu0 %v3392
      %v3707 = vpop.f32.mrb[0].mxu0
      %v3708 = vadd.f32 %v3488, %v3707
      %v3709 = vpop.f32.mrb[0].mxu0
      %v3710 = vadd.f32 %v3492, %v3709
      %v3711 = vpop.f32.mrb[0].mxu0
      %v3712 = vadd.f32 %v3488, %v3711
      %v3713 = vpop.f32.mrb[0].mxu0
      %v3714 = vadd.f32 %v3492, %v3713
      %3715 = vmatprep.mubr.bf16.mxu0 %v3395
      %3716 = vmatmul.mubr.bf16.gmra.mrb[0].mxu0 %v3394
      %v3717 = vpop.f32.mrb[0].mxu0
      %v3718 = vadd.f32 %v3488, %v3717
      %v3719 = vpop.f32.mrb[0].mxu0
      %v3720 = vadd.f32 %v3492, %v3719
      %v3721 = vpop.f32.mrb[0].mxu0
      %v3722 = vadd.f32 %v3488, %v3721
      %v3723 = vpop.f32.mrb[0].mxu0
      %v3724 = vadd.f32 %v3492, %v3723
      %3725 = vmatprep.mubr.bf16.mxu0 %v3397
      %3726 = vmatmul.mubr.bf16.gmra.mrb[0].mxu0 %v3396
      %v3727 = vpop.f32.mrb[0].mxu0
      %v3728 = vadd.f32 %v3488, %v3727
      %v3729 = vpop.f32.mrb[0].mxu0
      %v3730 = vadd.f32 %v3492, %v3729
      %v3731 = vpop.f32.mrb[0].mxu0
      %v3732 = vadd.f32 %v3488, %v3731
      %v3733 = vpop.f32.mrb[0].mxu0
      %v3734 = vadd.f32 %v3492, %v3733
      %3735 = vmatprep.mubr.bf16.mxu0 %v3399
      %3736 = vmatmul.mubr.bf16.gmra.mrb[0].mxu0 %v3398
      %v3737 = vpop.f32.mrb[0].mxu0
      %v3738 = vadd.f32 %v3488, %v3737
      %v3739 = vpop.f32.mrb[0].mxu0
      %v3740 = vadd.f32 %v3492, %v3739
      %v3741 = vpop.f32.mrb[0].mxu0
      %v3742 = vadd.f32 %v3488, %v3741
      %v3743 = vpop.f32.mrb[0].mxu0
      %v3744 = vadd.f32 %v3492, %v3743
      %3745 = vmatprep.mubr.bf16.mxu0 %v3401
      %3746 = vmatmul.mubr.bf16.gmra.mrb[0].mxu0 %v3400
      %v3747 = vpop.f32.mrb[0].mxu0
      %v3748 = vadd.f32 %v3488, %v3747
      %v3749 = vpop.f32.mrb[0].mxu0
      %v3750 = vadd.f32 %v3492, %v3749
      %v3751 = vpop.f32.mrb[0].mxu0
      %v3752 = vadd.f32 %v3488, %v3751
      %v3753 = vpop.f32.mrb[0].mxu0
      %v3754 = vadd.f32 %v3492, %v3753
      %3755 = vmatprep.mubr.bf16.mxu0 %v3403
      %3756 = vmatmul.mubr.bf16.gmra.mrb[0].mxu0 %v3402
      %v3757 = vpop.f32.mrb[0].mxu0
      %v3758 = vadd.f32 %v3488, %v3757
      %v3759 = vpop.f32.mrb[0].mxu0
      %v3760 = vadd.f32 %v3492, %v3759
      %v3761 = vpop.f32.mrb[0].mxu0
      %v3762 = vadd.f32 %v3488, %v3761
      %v3763 = vpop.f32.mrb[0].mxu0
      %v3764 = vadd.f32 %v3492, %v3763
      %3765 = vmatprep.mubr.bf16.mxu0 %v3405
      %3766 = vmatmul.mubr.bf16.gmra.mrb[0].mxu0 %v3404
      %v3767 = vpop.f32.mrb[0].mxu0
      %v3768 = vadd.f32 %v3488, %v3767
      %v3769 = vpop.f32.mrb[0].mxu0
      %v3770 = vadd.f32 %v3492, %v3769
      %v3771 = vpop.f32.mrb[0].mxu0
      %v3772 = vadd.f32 %v3488, %v3771
      %v3773 = vpop.f32.mrb[0].mxu0
      %v3774 = vadd.f32 %v3492, %v3773
      %3775 = vmatprep.mubr.bf16.mxu0 %v3407
      %3776 = vmatmul.mubr.bf16.gmra.mrb[0].mxu0 %v3406
      %v3777 = vpop.f32.mrb[0].mxu0
      %v3778 = vadd.f32 %v3488, %v3777
      %v3779 = vpop.f32.mrb[0].mxu0
      %v3780 = vadd.f32 %v3492, %v3779
      %v3781 = vpop.f32.mrb[0].mxu0
      %v3782 = vadd.f32 %v3488, %v3781
      %v3783 = vpop.f32.mrb[0].mxu0
      %v3784 = vadd.f32 %v3492, %v3783
      %3785 = vmatprep.mubr.bf16.mxu0 %v3409
      %3786 = vmatmul.mubr.bf16.gmra.mrb[0].mxu0 %v3408
      %v3787 = vpop.f32.mrb[0].mxu0
      %v3788 = vadd.f32 %v3488, %v3787
      %v3789 = vpop.f32.mrb[0].mxu0
      %v3790 = vadd.f32 %v3492, %v3789
      %v3791 = vpop.f32.mrb[0].mxu0
      %v3792 = vadd.f32 %v3488, %v3791
      %v3793 = vpop.f32.mrb[0].mxu0
      %v3794 = vadd.f32 %v3492, %v3793
      %3795 = vmatprep.mubr.bf16.mxu0 %v3411
      %3796 = vmatmul.mubr.bf16.gmra.mrb[0].mxu0 %v3410
      %v3797 = vpop.f32.mrb[0].mxu0
      %v3798 = vadd.f32 %v3488, %v3797
      %v3799 = vpop.f32.mrb[0].mxu0
      %v3800 = vadd.f32 %v3492, %v3799
      %v3801 = vpop.f32.mrb[0].mxu0
      %v3802 = vadd.f32 %v3488, %v3801
      %v3803 = vpop.f32.mrb[0].mxu0
      %v3804 = vadd.f32 %v3492, %v3803
      %3805 = vmatprep.mubr.bf16.mxu0 %v3413
      %3806 = vmatmul.mubr.bf16.gmra.mrb[0].mxu0 %v3412
      %v3807 = vpop.f32.mrb[0].mxu0
      %v3808 = vadd.f32 %v3488, %v3807
      %v3809 = vpop.f32.mrb[0].mxu0
      %v3810 = vadd.f32 %v3492, %v3809
      %v3811 = vpop.f32.mrb[0].mxu0
      %v3812 = vadd.f32 %v3488, %v3811
      %v3813 = vpop.f32.mrb[0].mxu0
      %v3814 = vadd.f32 %v3492, %v3813
      %3815 = vmatprep.mubr.bf16.mxu0 %v3415
      %3816 = vmatmul.mubr.bf16.gmra.mrb[0].mxu0 %v3414
      %v3817 = vpop.f32.mrb[0].mxu0
      %v3818 = vadd.f32 %v3488, %v3817
      %v3819 = vpop.f32.mrb[0].mxu0
      %v3820 = vadd.f32 %v3492, %v3819
      %v3821 = vpop.f32.mrb[0].mxu0
      %v3822 = vadd.f32 %v3488, %v3821
      %v3823 = vpop.f32.mrb[0].mxu0
      %v3824 = vadd.f32 %v3492, %v3823
      %3825 = vmatprep.mubr.bf16.mxu0 %v3417
      %3826 = vmatmul.mubr.bf16.gmra.mrb[0].mxu0 %v3416
      %v3827 = vpop.f32.mrb[0].mxu0
      %v3828 = vadd.f32 %v3488, %v3827
      %v3829 = vpop.f32.mrb[0].mxu0
      %v3830 = vadd.f32 %v3492, %v3829
      %v3831 = vpop.f32.mrb[0].mxu0
      %v3832 = vadd.f32 %v3488, %v3831
      %v3833 = vpop.f32.mrb[0].mxu0
      %v3834 = vadd.f32 %v3492, %v3833
      %3835 = vmatprep.mubr.bf16.mxu0 %v3419
      %3836 = vmatmul.mubr.bf16.gmra.mrb[0].mxu0 %v3418
      %v3837 = vpop.f32.mrb[0].mxu0
      %v3838 = vadd.f32 %v3488, %v3837
      %v3839 = vpop.f32.mrb[0].mxu0
      %v3840 = vadd.f32 %v3492, %v3839
      %v3841 = vpop.f32.mrb[0].mxu0
      %v3842 = vadd.f32 %v3488, %v3841
      %v3843 = vpop.f32.mrb[0].mxu0
      %v3844 = vadd.f32 %v3492, %v3843
      %3845 = vmatprep.mubr.bf16.mxu0 %v3421
      %3846 = vmatmul.mubr.bf16.gmra.mrb[0].mxu0 %v3420
      %v3847 = vpop.f32.mrb[0].mxu0
      %v3848 = vadd.f32 %v3488, %v3847
      %v3849 = vpop.f32.mrb[0].mxu0
      %v3850 = vadd.f32 %v3492, %v3849
      %v3851 = vpop.f32.mrb[0].mxu0
      %v3852 = vadd.f32 %v3488, %v3851
      %v3853 = vpop.f32.mrb[0].mxu0
      %v3854 = vadd.f32 %v3492, %v3853
      %3855 = vmatprep.mubr.bf16.mxu0 %v3423
      %3856 = vmatmul.mubr.bf16.gmra.mrb[0].mxu0 %v3422
      %v3857 = vpop.f32.mrb[0].mxu0
      %v3858 = vadd.f32 %v3488, %v3857
      %v3859 = vpop.f32.mrb[0].mxu0
      %v3860 = vadd.f32 %v3492, %v3859
      %v3861 = vpop.f32.mrb[0].mxu0
      %v3862 = vadd.f32 %v3488, %v3861
      %v3863 = vpop.f32.mrb[0].mxu0
      %v3864 = vadd.f32 %v3492, %v3863
      %3865 = vmatprep.mubr.bf16.mxu0 %v3425
      %3866 = vmatmul.mubr.bf16.gmra.mrb[0].mxu0 %v3424
      %v3867 = vpop.f32.mrb[0].mxu0
      %v3868 = vadd.f32 %v3488, %v3867
      %v3869 = vpop.f32.mrb[0].mxu0
      %v3870 = vadd.f32 %v3492, %v3869
      %v3871 = vpop.f32.mrb[0].mxu0
      %v3872 = vadd.f32 %v3488, %v3871
      %v3873 = vpop.f32.mrb[0].mxu0
      %v3874 = vadd.f32 %v3492, %v3873
      %3875 = vmatprep.mubr.bf16.mxu0 %v3427
      %3876 = vmatmul.mubr.bf16.gmra.mrb[0].mxu0 %v3426
      %v3877 = vpop.f32.mrb[0].mxu0
      %v3878 = vadd.f32 %v3488, %v3877
      %v3879 = vpop.f32.mrb[0].mxu0
      %v3880 = vadd.f32 %v3492, %v3879
      %v3881 = vpop.f32.mrb[0].mxu0
      %v3882 = vadd.f32 %v3488, %v3881
      %v3883 = vpop.f32.mrb[0].mxu0
      %v3884 = vadd.f32 %v3492, %v3883
      %3885 = vmatprep.mubr.bf16.mxu0 %v3429
      %3886 = vmatmul.mubr.bf16.gmra.mrb[0].mxu0 %v3428
      %v3887 = vpop.f32.mrb[0].mxu0
      %v3888 = vadd.f32 %v3488, %v3887
      %v3889 = vpop.f32.mrb[0].mxu0
      %v3890 = vadd.f32 %v3492, %v3889
      %v3891 = vpop.f32.mrb[0].mxu0
      %v3892 = vadd.f32 %v3488, %v3891
      %v3893 = vpop.f32.mrb[0].mxu0
      %v3894 = vadd.f32 %v3492, %v3893
      %3895 = vmatprep.mubr.bf16.mxu0 %v3431
      %3896 = vmatmul.mubr.bf16.gmra.mrb[0].mxu0 %v3430
      %v3897 = vpop.f32.mrb[0].mxu0
      %v3898 = vadd.f32 %v3488, %v3897
      %v3899 = vpop.f32.mrb[0].mxu0
      %v3900 = vadd.f32 %v3492, %v3899
      %v3901 = vpop.f32.mrb[0].mxu0
      %v3902 = vadd.f32 %v3488, %v3901
      %v3903 = vpop.f32.mrb[0].mxu0
      %v3904 = vadd.f32 %v3492, %v3903
      %3905 = vmatprep.mubr.bf16.mxu0 %v3433
      %3906 = vmatmul.mubr.bf16.gmra.mrb[0].mxu0 %v3432
      %v3907 = vpop.f32.mrb[0].mxu0
      %v3908 = vadd.f32 %v3488, %v3907
      %v3909 = vpop.f32.mrb[0].mxu0
      %v3910 = vadd.f32 %v3492, %v3909
      %v3911 = vpop.f32.mrb[0].mxu0
      %v3912 = vadd.f32 %v3488, %v3911
      %v3913 = vpop.f32.mrb[0].mxu0
      %v3914 = vadd.f32 %v3492, %v3913
      %3915 = vmatprep.mubr.bf16.mxu0 %v3435
      %3916 = vmatmul.mubr.bf16.gmra.mrb[0].mxu0 %v3434
      %v3917 = vpop.f32.mrb[0].mxu0
      %v3918 = vadd.f32 %v3488, %v3917
      %v3919 = vpop.f32.mrb[0].mxu0
      %v3920 = vadd.f32 %v3492, %v3919
      %v3921 = vpop.f32.mrb[0].mxu0
      %v3922 = vadd.f32 %v3488, %v3921
      %v3923 = vpop.f32.mrb[0].mxu0
      %v3924 = vadd.f32 %v3492, %v3923
      %3925 = vmatprep.mubr.bf16.mxu0 %v3437
      %3926 = vmatmul.mubr.bf16.gmra.mrb[0].mxu0 %v3436
      %v3927 = vpop.f32.mrb[0].mxu0
      %v3928 = vadd.f32 %v3488, %v3927
      %v3929 = vpop.f32.mrb[0].mxu0
      %v3930 = vadd.f32 %v3492, %v3929
      %v3931 = vpop.f32.mrb[0].mxu0
      %v3932 = vadd.f32 %v3488, %v3931
      %v3933 = vpop.f32.mrb[0].mxu0
      %v3934 = vadd.f32 %v3492, %v3933
      %3935 = vmatprep.mubr.bf16.mxu0 %v3439
      %3936 = vmatmul.mubr.bf16.gmra.mrb[0].mxu0 %v3438
      %v3937 = vpop.f32.mrb[0].mxu0
      %v3938 = vadd.f32 %v3488, %v3937
      %v3939 = vpop.f32.mrb[0].mxu0
      %v3940 = vadd.f32 %v3492, %v3939
      %v3941 = vpop.f32.mrb[0].mxu0
      %v3942 = vadd.f32 %v3488, %v3941
      %v3943 = vpop.f32.mrb[0].mxu0
      %v3944 = vadd.f32 %v3492, %v3943
      %3945 = vmatprep.mubr.bf16.mxu0 %v3441
      %3946 = vmatmul.mubr.bf16.gmra.mrb[0].mxu0 %v3440
      %v3947 = vpop.f32.mrb[0].mxu0
      %v3948 = vadd.f32 %v3488, %v3947
      %v3949 = vpop.f32.mrb[0].mxu0
      %v3950 = vadd.f32 %v3492, %v3949
      %v3951 = vpop.f32.mrb[0].mxu0
      %v3952 = vadd.f32 %v3488, %v3951
      %v3953 = vpop.f32.mrb[0].mxu0
      %v3954 = vadd.f32 %v3492, %v3953
      %3955 = vmatprep.mubr.bf16.mxu0 %v3443
      %3956 = vmatmul.mubr.bf16.gmra.mrb[0].mxu0 %v3442
      %v3957 = vpop.f32.mrb[0].mxu0
      %v3958 = vadd.f32 %v3488, %v3957
      %v3959 = vpop.f32.mrb[0].mxu0
      %v3960 = vadd.f32 %v3492, %v3959
      %v3961 = vpop.f32.mrb[0].mxu0
      %v3962 = vadd.f32 %v3488, %v3961
      %v3963 = vpop.f32.mrb[0].mxu0
      %v3964 = vadd.f32 %v3492, %v3963
      %3965 = vmatprep.mubr.bf16.mxu0 %v3445
      %3966 = vmatmul.mubr.bf16.gmra.mrb[0].mxu0 %v3444
      %v3967 = vpop.f32.mrb[0].mxu0
      %v3968 = vadd.f32 %v3488, %v3967
      %v3969 = vpop.f32.mrb[0].mxu0
      %v3970 = vadd.f32 %v3492, %v3969
      %v3971 = vpop.f32.mrb[0].mxu0
      %v3972 = vadd.f32 %v3488, %v3971
      %v3973 = vpop.f32.mrb[0].mxu0
      %v3974 = vadd.f32 %v3492, %v3973
      %3975 = vmatprep.mubr.bf16.mxu0 %v3447
      %3976 = vmatmul.mubr.bf16.gmra.mrb[0].mxu0 %v3446
      %v3977 = vpop.f32.mrb[0].mxu0
      %v3978 = vadd.f32 %v3488, %v3977
      %v3979 = vpop.f32.mrb[0].mxu0
      %v3980 = vadd.f32 %v3492, %v3979
      %v3981 = vpop.f32.mrb[0].mxu0
      %v3982 = vadd.f32 %v3488, %v3981
      %v3983 = vpop.f32.mrb[0].mxu0
      %v3984 = vadd.f32 %v3492, %v3983
      %3985 = vmatprep.mubr.bf16.mxu0 %v3449
      %3986 = vmatmul.mubr.bf16.gmra.mrb[0].mxu0 %v3448
      %v3987 = vpop.f32.mrb[0].mxu0
      %v3988 = vadd.f32 %v3488, %v3987
      %v3989 = vpop.f32.mrb[0].mxu0
      %v3990 = vadd.f32 %v3492, %v3989
      %v3991 = vpop.f32.mrb[0].mxu0
      %v3992 = vadd.f32 %v3488, %v3991
      %v3993 = vpop.f32.mrb[0].mxu0
      %v3994 = vadd.f32 %v3492, %v3993
      %3995 = vmatprep.mubr.bf16.mxu0 %v3451
      %3996 = vmatmul.mubr.bf16.gmra.mrb[0].mxu0 %v3450
      %v3997 = vpop.f32.mrb[0].mxu0
      %v3998 = vadd.f32 %v3488, %v3997
      %v3999 = vpop.f32.mrb[0].mxu0
      %v4000 = vadd.f32 %v3492, %v3999
      %v4001 = vpop.f32.mrb[0].mxu0
      %v4002 = vadd.f32 %v3488, %v4001
      %v4003 = vpop.f32.mrb[0].mxu0
      %v4004 = vadd.f32 %v3492, %v4003
      %4005 = vdwg.mxu0
      %v4006 = vmax.f32 %v3688, 0.0
      %v4007 = vmax.f32 %v3690, 0.0
      %v4008 = vmax.f32 %v3692, 0.0
      %v4009 = vmax.f32 %v3694, 0.0
      %v4010 = vmax.f32 %v3698, 0.0
      %v4011 = vmax.f32 %v3700, 0.0
      %v4012 = vmax.f32 %v3702, 0.0
      %v4013 = vmax.f32 %v3704, 0.0
      %v4014 = vmax.f32 %v3708, 0.0
      %v4015 = vmax.f32 %v3710, 0.0
      %v4016 = vmax.f32 %v3712, 0.0
      %v4017 = vmax.f32 %v3714, 0.0
      %v4018 = vmax.f32 %v3718, 0.0
      %v4019 = vmax.f32 %v3720, 0.0
      %v4020 = vmax.f32 %v3722, 0.0
      %v4021 = vmax.f32 %v3724, 0.0
      %v4022 = vmax.f32 %v3728, 0.0
      %v4023 = vmax.f32 %v3730, 0.0
      %v4024 = vmax.f32 %v3732, 0.0
      %v4025 = vmax.f32 %v3734, 0.0
      %v4026 = vmax.f32 %v3738, 0.0
      %v4027 = vmax.f32 %v3740, 0.0
      %v4028 = vmax.f32 %v3742, 0.0
      %v4029 = vmax.f32 %v3744, 0.0
      %v4030 = vmax.f32 %v3748, 0.0
      %v4031 = vmax.f32 %v3750, 0.0
      %v4032 = vmax.f32 %v3752, 0.0
      %v4033 = vmax.f32 %v3754, 0.0
      %v4034 = vmax.f32 %v3758, 0.0
      %v4035 = vmax.f32 %v3760, 0.0
      %v4036 = vmax.f32 %v3762, 0.0
      %v4037 = vmax.f32 %v3764, 0.0
      %v4038 = vmax.f32 %v3768, 0.0
      %v4039 = vmax.f32 %v3770, 0.0
      %v4040 = vmax.f32 %v3772, 0.0
      %v4041 = vmax.f32 %v3774, 0.0
      %v4042 = vmax.f32 %v3778, 0.0
      %v4043 = vmax.f32 %v3780, 0.0
      %v4044 = vmax.f32 %v3782, 0.0
      %v4045 = vmax.f32 %v3784, 0.0
      %v4046 = vmax.f32 %v3788, 0.0
      %v4047 = vmax.f32 %v3790, 0.0
      %v4048 = vmax.f32 %v3792, 0.0
      %v4049 = vmax.f32 %v3794, 0.0
      %v4050 = vmax.f32 %v3798, 0.0
      %v4051 = vmax.f32 %v3800, 0.0
      %v4052 = vmax.f32 %v3802, 0.0
      %v4053 = vmax.f32 %v3804, 0.0
      %v4054 = vmax.f32 %v3808, 0.0
      %v4055 = vmax.f32 %v3810, 0.0
      %v4056 = vmax.f32 %v3812, 0.0
      %v4057 = vmax.f32 %v3814, 0.0
      %v4058 = vmax.f32 %v3818, 0.0
      %v4059 = vmax.f32 %v3820, 0.0
      %v4060 = vmax.f32 %v3822, 0.0
      %v4061 = vmax.f32 %v3824, 0.0
      %v4062 = vmax.f32 %v3828, 0.0
      %v4063 = vmax.f32 %v3830, 0.0
      %v4064 = vmax.f32 %v3832, 0.0
      %v4065 = vmax.f32 %v3834, 0.0
      %v4066 = vmax.f32 %v3838, 0.0
      %v4067 = vmax.f32 %v3840, 0.0
      %v4068 = vmax.f32 %v3842, 0.0
      %v4069 = vmax.f32 %v3844, 0.0
      %v4070 = vmax.f32 %v3848, 0.0
      %v4071 = vmax.f32 %v3850, 0.0
      %v4072 = vmax.f32 %v3852, 0.0
      %v4073 = vmax.f32 %v3854, 0.0
      %v4074 = vmax.f32 %v3858, 0.0
      %v4075 = vmax.f32 %v3860, 0.0
      %v4076 = vmax.f32 %v3862, 0.0
      %v4077 = vmax.f32 %v3864, 0.0
      %v4078 = vmax.f32 %v3868, 0.0
      %v4079 = vmax.f32 %v3870, 0.0
      %v4080 = vmax.f32 %v3872, 0.0
      %v4081 = vmax.f32 %v3874, 0.0
      %v4082 = vmax.f32 %v3878, 0.0
      %v4083 = vmax.f32 %v3880, 0.0
      %v4084 = vmax.f32 %v3882, 0.0
      %v4085 = vmax.f32 %v3884, 0.0
      %v4086 = vmax.f32 %v3888, 0.0
      %v4087 = vmax.f32 %v3890, 0.0
      %v4088 = vmax.f32 %v3892, 0.0
      %v4089 = vmax.f32 %v3894, 0.0
      %v4090 = vmax.f32 %v3898, 0.0
      %v4091 = vmax.f32 %v3900, 0.0
      %v4092 = vmax.f32 %v3902, 0.0
      %v4093 = vmax.f32 %v3904, 0.0
      %v4094 = vmax.f32 %v3908, 0.0
      %v4095 = vmax.f32 %v3910, 0.0
      %v4096 = vmax.f32 %v3912, 0.0
      %v4097 = vmax.f32 %v3914, 0.0
      %v4098 = vmax.f32 %v3918, 0.0
      %v4099 = vmax.f32 %v3920, 0.0
      %v4100 = vmax.f32 %v3922, 0.0
      %v4101 = vmax.f32 %v3924, 0.0
      %v4102 = vmax.f32 %v3928, 0.0
      %v4103 = vmax.f32 %v3930, 0.0
      %v4104 = vmax.f32 %v3932, 0.0
      %v4105 = vmax.f32 %v3934, 0.0
      %v4106 = vmax.f32 %v3938, 0.0
      %v4107 = vmax.f32 %v3940, 0.0
      %v4108 = vmax.f32 %v3942, 0.0
      %v4109 = vmax.f32 %v3944, 0.0
      %v4110 = vmax.f32 %v3948, 0.0
      %v4111 = vmax.f32 %v3950, 0.0
      %v4112 = vmax.f32 %v3952, 0.0
      %v4113 = vmax.f32 %v3954, 0.0
      %v4114 = vmax.f32 %v3958, 0.0
      %v4115 = vmax.f32 %v3960, 0.0
      %v4116 = vmax.f32 %v3962, 0.0
      %v4117 = vmax.f32 %v3964, 0.0
      %v4118 = vmax.f32 %v3968, 0.0
      %v4119 = vmax.f32 %v3970, 0.0
      %v4120 = vmax.f32 %v3972, 0.0
      %v4121 = vmax.f32 %v3974, 0.0
      %v4122 = vmax.f32 %v3978, 0.0
      %v4123 = vmax.f32 %v3980, 0.0
      %v4124 = vmax.f32 %v3982, 0.0
      %v4125 = vmax.f32 %v3984, 0.0
      %v4126 = vmax.f32 %v3988, 0.0
      %v4127 = vmax.f32 %v3990, 0.0
      %v4128 = vmax.f32 %v3992, 0.0
      %v4129 = vmax.f32 %v3994, 0.0
      %v4130 = vmax.f32 %v3998, 0.0
      %v4131 = vmax.f32 %v4000, 0.0
      %v4132 = vmax.f32 %v4002, 0.0
      %v4133 = vmax.f32 %v4004, 0.0
      %v4134 = vpack.c.bf16 %v4008, %v4006
      %v4135 = vpack.c.bf16 %v4009, %v4007
      %v4136 = vpack.c.bf16 %v4012, %v4010
      %v4137 = vpack.c.bf16 %v4013, %v4011
      %v4138 = vpack.c.bf16 %v4016, %v4014
      %v4139 = vpack.c.bf16 %v4017, %v4015
      %v4140 = vpack.c.bf16 %v4020, %v4018
      %v4141 = vpack.c.bf16 %v4021, %v4019
      %v4142 = vpack.c.bf16 %v4024, %v4022
      %v4143 = vpack.c.bf16 %v4025, %v4023
      %v4144 = vpack.c.bf16 %v4028, %v4026
      %v4145 = vpack.c.bf16 %v4029, %v4027
      %v4146 = vpack.c.bf16 %v4032, %v4030
      %v4147 = vpack.c.bf16 %v4033, %v4031
      %v4148 = vpack.c.bf16 %v4036, %v4034
      %v4149 = vpack.c.bf16 %v4037, %v4035
      %v4150 = vpack.c.bf16 %v4040, %v4038
      %v4151 = vpack.c.bf16 %v4041, %v4039
      %v4152 = vpack.c.bf16 %v4044, %v4042
      %v4153 = vpack.c.bf16 %v4045, %v4043
      %v4154 = vpack.c.bf16 %v4048, %v4046
      %v4155 = vpack.c.bf16 %v4049, %v4047
      %v4156 = vpack.c.bf16 %v4052, %v4050
      %v4157 = vpack.c.bf16 %v4053, %v4051
      %v4158 = vpack.c.bf16 %v4056, %v4054
      %v4159 = vpack.c.bf16 %v4057, %v4055
      %v4160 = vpack.c.bf16 %v4060, %v4058
      %v4161 = vpack.c.bf16 %v4061, %v4059
      %v4162 = vpack.c.bf16 %v4064, %v4062
      %v4163 = vpack.c.bf16 %v4065, %v4063
      %v4164 = vpack.c.bf16 %v4068, %v4066
      %v4165 = vpack.c.bf16 %v4069, %v4067
      %v4166 = vpack.c.bf16 %v4072, %v4070
      %v4167 = vpack.c.bf16 %v4073, %v4071
      %v4168 = vpack.c.bf16 %v4076, %v4074
      %v4169 = vpack.c.bf16 %v4077, %v4075
      %v4170 = vpack.c.bf16 %v4080, %v4078
      %v4171 = vpack.c.bf16 %v4081, %v4079
      %v4172 = vpack.c.bf16 %v4084, %v4082
      %v4173 = vpack.c.bf16 %v4085, %v4083
      %v4174 = vpack.c.bf16 %v4088, %v4086
      %v4175 = vpack.c.bf16 %v4089, %v4087
      %v4176 = vpack.c.bf16 %v4092, %v4090
      %v4177 = vpack.c.bf16 %v4093, %v4091
      %v4178 = vpack.c.bf16 %v4096, %v4094
      %v4179 = vpack.c.bf16 %v4097, %v4095
      %v4180 = vpack.c.bf16 %v4100, %v4098
      %v4181 = vpack.c.bf16 %v4101, %v4099
      %v4182 = vpack.c.bf16 %v4104, %v4102
      %v4183 = vpack.c.bf16 %v4105, %v4103
      %v4184 = vpack.c.bf16 %v4108, %v4106
      %v4185 = vpack.c.bf16 %v4109, %v4107
      %v4186 = vpack.c.bf16 %v4112, %v4110
      %v4187 = vpack.c.bf16 %v4113, %v4111
      %v4188 = vpack.c.bf16 %v4116, %v4114
      %v4189 = vpack.c.bf16 %v4117, %v4115
      %v4190 = vpack.c.bf16 %v4120, %v4118
      %v4191 = vpack.c.bf16 %v4121, %v4119
      %v4192 = vpack.c.bf16 %v4124, %v4122
      %v4193 = vpack.c.bf16 %v4125, %v4123
      %v4194 = vpack.c.bf16 %v4128, %v4126
      %v4195 = vpack.c.bf16 %v4129, %v4127
      %v4196 = vpack.c.bf16 %v4132, %v4130
      %v4197 = vpack.c.bf16 %v4133, %v4131
      %s4198 = scalar_lea.vmem %s2, 1024
      %v4199 = vld [vmem:[%s4198] sm:$0xff]
      %v4200 = vld [vmem:[%s4198 + $0x8] sm:$0xff]
      %v4201 = vld [vmem:[%s4198 + $0x10] sm:$0xff]
      %v4202 = vld [vmem:[%s4198 + $0x18] sm:$0xff]
      %v4203 = vld [vmem:[%s4198 + $0x20] sm:$0xff]
      %v4204 = vld [vmem:[%s4198 + $0x28] sm:$0xff]
      %v4205 = vld [vmem:[%s4198 + $0x30] sm:$0xff]
      %v4206 = vld [vmem:[%s4198 + $0x38] sm:$0xff]
      %v4207 = vld [vmem:[%s4198 + $0x40] sm:$0xff]
      %v4208 = vld [vmem:[%s4198 + $0x48] sm:$0xff]
      %v4209 = vld [vmem:[%s4198 + $0x50] sm:$0xff]
      %v4210 = vld [vmem:[%s4198 + $0x58] sm:$0xff]
      %v4211 = vld [vmem:[%s4198 + $0x60] sm:$0xff]
      %v4212 = vld [vmem:[%s4198 + $0x68] sm:$0xff]
      %v4213 = vld [vmem:[%s4198 + $0x70] sm:$0xff]
      %v4214 = vld [vmem:[%s4198 + $0x78] sm:$0xff]
      %v4215 = vld [vmem:[%s4198 + $0x80] sm:$0xff]
      %v4216 = vld [vmem:[%s4198 + $0x88] sm:$0xff]
      %v4217 = vld [vmem:[%s4198 + $0x90] sm:$0xff]
      %v4218 = vld [vmem:[%s4198 + $0x98] sm:$0xff]
      %v4219 = vld [vmem:[%s4198 + $0xa0] sm:$0xff]
      %v4220 = vld [vmem:[%s4198 + $0xa8] sm:$0xff]
      %v4221 = vld [vmem:[%s4198 + $0xb0] sm:$0xff]
      %v4222 = vld [vmem:[%s4198 + $0xb8] sm:$0xff]
      %v4223 = vld [vmem:[%s4198 + $0xc0] sm:$0xff]
      %v4224 = vld [vmem:[%s4198 + $0xc8] sm:$0xff]
      %v4225 = vld [vmem:[%s4198 + $0xd0] sm:$0xff]
      %v4226 = vld [vmem:[%s4198 + $0xd8] sm:$0xff]
      %v4227 = vld [vmem:[%s4198 + $0xe0] sm:$0xff]
      %v4228 = vld [vmem:[%s4198 + $0xe8] sm:$0xff]
      %v4229 = vld [vmem:[%s4198 + $0xf0] sm:$0xff]
      %v4230 = vld [vmem:[%s4198 + $0xf8] sm:$0xff]
      %v4231 = vlaneseq
      %v4232 = vshrl.u32 %v4231, 7
      %v4233 = vsub.s32 5, %v4232
      %v4234 = vrot.slane %v347, %v4233
      %v4235 = vlaneseq
      %v4236 = vshrl.u32 %v4235, 7
      %v4237 = vsub.s32 5, %v4236
      %v4238 = vrot.slane %v348, %v4237
      %v4271 = vunpack.c.l.b16 %v4199
      %v4272 = vunpack.c.h.b16 %v4199
      %v4273 = vunpack.c.l.b16 %v4200
      %v4274 = vunpack.c.h.b16 %v4200
      %v4275 = vunpack.c.l.b16 %v4201
      %v4276 = vunpack.c.h.b16 %v4201
      %v4277 = vunpack.c.l.b16 %v4202
      %v4278 = vunpack.c.h.b16 %v4202
      %v4279 = vunpack.c.l.b16 %v4203
      %v4280 = vunpack.c.h.b16 %v4203
      %v4281 = vunpack.c.l.b16 %v4204
      %v4282 = vunpack.c.h.b16 %v4204
      %v4283 = vunpack.c.l.b16 %v4205
      %v4284 = vunpack.c.h.b16 %v4205
      %v4285 = vunpack.c.l.b16 %v4206
      %v4286 = vunpack.c.h.b16 %v4206
      %v4287 = vunpack.c.l.b16 %v4207
      %v4288 = vunpack.c.h.b16 %v4207
      %v4289 = vunpack.c.l.b16 %v4208
      %v4290 = vunpack.c.h.b16 %v4208
      %v4291 = vunpack.c.l.b16 %v4209
      %v4292 = vunpack.c.h.b16 %v4209
      %v4293 = vunpack.c.l.b16 %v4210
      %v4294 = vunpack.c.h.b16 %v4210
      %v4295 = vunpack.c.l.b16 %v4211
      %v4296 = vunpack.c.h.b16 %v4211
      %v4297 = vunpack.c.l.b16 %v4212
      %v4298 = vunpack.c.h.b16 %v4212
      %v4299 = vunpack.c.l.b16 %v4213
      %v4300 = vunpack.c.h.b16 %v4213
      %v4301 = vunpack.c.l.b16 %v4214
      %v4302 = vunpack.c.h.b16 %v4214
      %v4303 = vunpack.c.l.b16 %v4215
      %v4304 = vunpack.c.h.b16 %v4215
      %v4305 = vunpack.c.l.b16 %v4216
      %v4306 = vunpack.c.h.b16 %v4216
      %v4307 = vunpack.c.l.b16 %v4217
      %v4308 = vunpack.c.h.b16 %v4217
      %v4309 = vunpack.c.l.b16 %v4218
      %v4310 = vunpack.c.h.b16 %v4218
      %v4311 = vunpack.c.l.b16 %v4219
      %v4312 = vunpack.c.h.b16 %v4219
      %v4313 = vunpack.c.l.b16 %v4220
      %v4314 = vunpack.c.h.b16 %v4220
      %v4315 = vunpack.c.l.b16 %v4221
      %v4316 = vunpack.c.h.b16 %v4221
      %v4317 = vunpack.c.l.b16 %v4222
      %v4318 = vunpack.c.h.b16 %v4222
      %v4319 = vunpack.c.l.b16 %v4223
      %v4320 = vunpack.c.h.b16 %v4223
      %v4321 = vunpack.c.l.b16 %v4224
      %v4322 = vunpack.c.h.b16 %v4224
      %v4323 = vunpack.c.l.b16 %v4225
      %v4324 = vunpack.c.h.b16 %v4225
      %v4325 = vunpack.c.l.b16 %v4226
      %v4326 = vunpack.c.h.b16 %v4226
      %v4327 = vunpack.c.l.b16 %v4227
      %v4328 = vunpack.c.h.b16 %v4227
      %v4329 = vunpack.c.l.b16 %v4228
      %v4330 = vunpack.c.h.b16 %v4228
      %v4331 = vunpack.c.l.b16 %v4229
      %v4332 = vunpack.c.h.b16 %v4229
      %v4333 = vunpack.c.l.b16 %v4230
      %v4334 = vunpack.c.h.b16 %v4230
      %v4335 = vpack.c.b16 %v4273, %v4271
      %v4336 = vpack.c.b16 %v4274, %v4272
      %v4337 = vpack.c.b16 %v4277, %v4275
      %v4338 = vpack.c.b16 %v4278, %v4276
      %v4339 = vpack.c.b16 %v4281, %v4279
      %v4340 = vpack.c.b16 %v4282, %v4280
      %v4341 = vpack.c.b16 %v4285, %v4283
      %v4342 = vpack.c.b16 %v4286, %v4284
      %v4343 = vpack.c.b16 %v4289, %v4287
      %v4344 = vpack.c.b16 %v4290, %v4288
      %v4345 = vpack.c.b16 %v4293, %v4291
      %v4346 = vpack.c.b16 %v4294, %v4292
      %v4347 = vpack.c.b16 %v4297, %v4295
      %v4348 = vpack.c.b16 %v4298, %v4296
      %v4349 = vpack.c.b16 %v4301, %v4299
      %v4350 = vpack.c.b16 %v4302, %v4300
      %v4351 = vpack.c.b16 %v4305, %v4303
      %v4352 = vpack.c.b16 %v4306, %v4304
      %v4353 = vpack.c.b16 %v4309, %v4307
      %v4354 = vpack.c.b16 %v4310, %v4308
      %v4355 = vpack.c.b16 %v4313, %v4311
      %v4356 = vpack.c.b16 %v4314, %v4312
      %v4357 = vpack.c.b16 %v4317, %v4315
      %v4358 = vpack.c.b16 %v4318, %v4316
      %v4359 = vpack.c.b16 %v4321, %v4319
      %v4360 = vpack.c.b16 %v4322, %v4320
      %v4361 = vpack.c.b16 %v4325, %v4323
      %v4362 = vpack.c.b16 %v4326, %v4324
      %v4363 = vpack.c.b16 %v4329, %v4327
      %v4364 = vpack.c.b16 %v4330, %v4328
      %v4365 = vpack.c.b16 %v4333, %v4331
      %v4366 = vpack.c.b16 %v4334, %v4332
      %4399 = vmatprep.subr.bf16.mxu0 %v4336
      %4400 = vmatpush1.bf16.msra.mxu0 %v4335
      %4401 = vmatprep.subr.bf16.mxu0 %v4338
      %4402 = vmatpush1.bf16.msra.mxu0 %v4337
      %4403 = vmatprep.subr.bf16.mxu0 %v4340
      %4404 = vmatpush1.bf16.msra.mxu0 %v4339
      %4405 = vmatprep.subr.bf16.mxu0 %v4342
      %4406 = vmatpush1.bf16.msra.mxu0 %v4341
      %4407 = vmatprep.subr.bf16.mxu0 %v4344
      %4408 = vmatpush1.bf16.msra.mxu0 %v4343
      %4409 = vmatprep.subr.bf16.mxu0 %v4346
      %4410 = vmatpush1.bf16.msra.mxu0 %v4345
      %4411 = vmatprep.subr.bf16.mxu0 %v4348
      %4412 = vmatpush1.bf16.msra.mxu0 %v4347
      %4413 = vmatprep.subr.bf16.mxu0 %v4350
      %4414 = vmatpush1.bf16.msra.mxu0 %v4349
      %4415 = vmatprep.subr.bf16.mxu0 %v4352
      %4416 = vmatpush1.bf16.msra.mxu0 %v4351
      %4417 = vmatprep.subr.bf16.mxu0 %v4354
      %4418 = vmatpush1.bf16.msra.mxu0 %v4353
      %4419 = vmatprep.subr.bf16.mxu0 %v4356
      %4420 = vmatpush1.bf16.msra.mxu0 %v4355
      %4421 = vmatprep.subr.bf16.mxu0 %v4358
      %4422 = vmatpush1.bf16.msra.mxu0 %v4357
      %4423 = vmatprep.subr.bf16.mxu0 %v4360
      %4424 = vmatpush1.bf16.msra.mxu0 %v4359
      %4425 = vmatprep.subr.bf16.mxu0 %v4362
      %4426 = vmatpush1.bf16.msra.mxu0 %v4361
      %4427 = vmatprep.subr.bf16.mxu0 %v4364
      %4428 = vmatpush1.bf16.msra.mxu0 %v4363
      %4429 = vmatprep.subr.bf16.mxu0 %v4366
      %4430 = vmatpush1.bf16.msra.mxu0 %v4365
      %4431 = vmatprep.mubr.bf16.mxu0 %v4135
      %4432 = vmatmul.mubr.bf16.gmra.mrb[0].mxu0 %v4134
      %v4433 = vpop.f32.mrb[0].mxu0
      %v4434 = vadd.f32 %v4234, %v4433
      %v4435 = vpop.f32.mrb[0].mxu0
      %v4436 = vadd.f32 %v4238, %v4435
      %v4437 = vpop.f32.mrb[0].mxu0
      %v4438 = vadd.f32 %v4234, %v4437
      %v4439 = vpop.f32.mrb[0].mxu0
      %v4440 = vadd.f32 %v4238, %v4439
      %4441 = vmatprep.mubr.bf16.mxu0 %v4137
      %4442 = vmatmul.mubr.bf16.gmra.mrb[0].mxu0 %v4136
      %v4443 = vpop.f32.mrb[0].mxu0
      %v4444 = vadd.f32 %v4234, %v4443
      %v4445 = vpop.f32.mrb[0].mxu0
      %v4446 = vadd.f32 %v4238, %v4445
      %v4447 = vpop.f32.mrb[0].mxu0
      %v4448 = vadd.f32 %v4234, %v4447
      %v4449 = vpop.f32.mrb[0].mxu0
      %v4450 = vadd.f32 %v4238, %v4449
      %4451 = vmatprep.mubr.bf16.mxu0 %v4139
      %4452 = vmatmul.mubr.bf16.gmra.mrb[0].mxu0 %v4138
      %v4453 = vpop.f32.mrb[0].mxu0
      %v4454 = vadd.f32 %v4234, %v4453
      %v4455 = vpop.f32.mrb[0].mxu0
      %v4456 = vadd.f32 %v4238, %v4455
      %v4457 = vpop.f32.mrb[0].mxu0
      %v4458 = vadd.f32 %v4234, %v4457
      %v4459 = vpop.f32.mrb[0].mxu0
      %v4460 = vadd.f32 %v4238, %v4459
      %4461 = vmatprep.mubr.bf16.mxu0 %v4141
      %4462 = vmatmul.mubr.bf16.gmra.mrb[0].mxu0 %v4140
      %v4463 = vpop.f32.mrb[0].mxu0
      %v4464 = vadd.f32 %v4234, %v4463
      %v4465 = vpop.f32.mrb[0].mxu0
      %v4466 = vadd.f32 %v4238, %v4465
      %v4467 = vpop.f32.mrb[0].mxu0
      %v4468 = vadd.f32 %v4234, %v4467
      %v4469 = vpop.f32.mrb[0].mxu0
      %v4470 = vadd.f32 %v4238, %v4469
      %4471 = vmatprep.mubr.bf16.mxu0 %v4143
      %4472 = vmatmul.mubr.bf16.gmra.mrb[0].mxu0 %v4142
      %v4473 = vpop.f32.mrb[0].mxu0
      %v4474 = vadd.f32 %v4234, %v4473
      %v4475 = vpop.f32.mrb[0].mxu0
      %v4476 = vadd.f32 %v4238, %v4475
      %v4477 = vpop.f32.mrb[0].mxu0
      %v4478 = vadd.f32 %v4234, %v4477
      %v4479 = vpop.f32.mrb[0].mxu0
      %v4480 = vadd.f32 %v4238, %v4479
      %4481 = vmatprep.mubr.bf16.mxu0 %v4145
      %4482 = vmatmul.mubr.bf16.gmra.mrb[0].mxu0 %v4144
      %v4483 = vpop.f32.mrb[0].mxu0
      %v4484 = vadd.f32 %v4234, %v4483
      %v4485 = vpop.f32.mrb[0].mxu0
      %v4486 = vadd.f32 %v4238, %v4485
      %v4487 = vpop.f32.mrb[0].mxu0
      %v4488 = vadd.f32 %v4234, %v4487
      %v4489 = vpop.f32.mrb[0].mxu0
      %v4490 = vadd.f32 %v4238, %v4489
      %4491 = vmatprep.mubr.bf16.mxu0 %v4147
      %4492 = vmatmul.mubr.bf16.gmra.mrb[0].mxu0 %v4146
      %v4493 = vpop.f32.mrb[0].mxu0
      %v4494 = vadd.f32 %v4234, %v4493
      %v4495 = vpop.f32.mrb[0].mxu0
      %v4496 = vadd.f32 %v4238, %v4495
      %v4497 = vpop.f32.mrb[0].mxu0
      %v4498 = vadd.f32 %v4234, %v4497
      %v4499 = vpop.f32.mrb[0].mxu0
      %v4500 = vadd.f32 %v4238, %v4499
      %4501 = vmatprep.mubr.bf16.mxu0 %v4149
      %4502 = vmatmul.mubr.bf16.gmra.mrb[0].mxu0 %v4148
      %v4503 = vpop.f32.mrb[0].mxu0
      %v4504 = vadd.f32 %v4234, %v4503
      %v4505 = vpop.f32.mrb[0].mxu0
      %v4506 = vadd.f32 %v4238, %v4505
      %v4507 = vpop.f32.mrb[0].mxu0
      %v4508 = vadd.f32 %v4234, %v4507
      %v4509 = vpop.f32.mrb[0].mxu0
      %v4510 = vadd.f32 %v4238, %v4509
      %4511 = vmatprep.mubr.bf16.mxu0 %v4151
      %4512 = vmatmul.mubr.bf16.gmra.mrb[0].mxu0 %v4150
      %v4513 = vpop.f32.mrb[0].mxu0
      %v4514 = vadd.f32 %v4234, %v4513
      %v4515 = vpop.f32.mrb[0].mxu0
      %v4516 = vadd.f32 %v4238, %v4515
      %v4517 = vpop.f32.mrb[0].mxu0
      %v4518 = vadd.f32 %v4234, %v4517
      %v4519 = vpop.f32.mrb[0].mxu0
      %v4520 = vadd.f32 %v4238, %v4519
      %4521 = vmatprep.mubr.bf16.mxu0 %v4153
      %4522 = vmatmul.mubr.bf16.gmra.mrb[0].mxu0 %v4152
      %v4523 = vpop.f32.mrb[0].mxu0
      %v4524 = vadd.f32 %v4234, %v4523
      %v4525 = vpop.f32.mrb[0].mxu0
      %v4526 = vadd.f32 %v4238, %v4525
      %v4527 = vpop.f32.mrb[0].mxu0
      %v4528 = vadd.f32 %v4234, %v4527
      %v4529 = vpop.f32.mrb[0].mxu0
      %v4530 = vadd.f32 %v4238, %v4529
      %4531 = vmatprep.mubr.bf16.mxu0 %v4155
      %4532 = vmatmul.mubr.bf16.gmra.mrb[0].mxu0 %v4154
      %v4533 = vpop.f32.mrb[0].mxu0
      %v4534 = vadd.f32 %v4234, %v4533
      %v4535 = vpop.f32.mrb[0].mxu0
      %v4536 = vadd.f32 %v4238, %v4535
      %v4537 = vpop.f32.mrb[0].mxu0
      %v4538 = vadd.f32 %v4234, %v4537
      %v4539 = vpop.f32.mrb[0].mxu0
      %v4540 = vadd.f32 %v4238, %v4539
      %4541 = vmatprep.mubr.bf16.mxu0 %v4157
      %4542 = vmatmul.mubr.bf16.gmra.mrb[0].mxu0 %v4156
      %v4543 = vpop.f32.mrb[0].mxu0
      %v4544 = vadd.f32 %v4234, %v4543
      %v4545 = vpop.f32.mrb[0].mxu0
      %v4546 = vadd.f32 %v4238, %v4545
      %v4547 = vpop.f32.mrb[0].mxu0
      %v4548 = vadd.f32 %v4234, %v4547
      %v4549 = vpop.f32.mrb[0].mxu0
      %v4550 = vadd.f32 %v4238, %v4549
      %4551 = vmatprep.mubr.bf16.mxu0 %v4159
      %4552 = vmatmul.mubr.bf16.gmra.mrb[0].mxu0 %v4158
      %v4553 = vpop.f32.mrb[0].mxu0
      %v4554 = vadd.f32 %v4234, %v4553
      %v4555 = vpop.f32.mrb[0].mxu0
      %v4556 = vadd.f32 %v4238, %v4555
      %v4557 = vpop.f32.mrb[0].mxu0
      %v4558 = vadd.f32 %v4234, %v4557
      %v4559 = vpop.f32.mrb[0].mxu0
      %v4560 = vadd.f32 %v4238, %v4559
      %4561 = vmatprep.mubr.bf16.mxu0 %v4161
      %4562 = vmatmul.mubr.bf16.gmra.mrb[0].mxu0 %v4160
      %v4563 = vpop.f32.mrb[0].mxu0
      %v4564 = vadd.f32 %v4234, %v4563
      %v4565 = vpop.f32.mrb[0].mxu0
      %v4566 = vadd.f32 %v4238, %v4565
      %v4567 = vpop.f32.mrb[0].mxu0
      %v4568 = vadd.f32 %v4234, %v4567
      %v4569 = vpop.f32.mrb[0].mxu0
      %v4570 = vadd.f32 %v4238, %v4569
      %4571 = vmatprep.mubr.bf16.mxu0 %v4163
      %4572 = vmatmul.mubr.bf16.gmra.mrb[0].mxu0 %v4162
      %v4573 = vpop.f32.mrb[0].mxu0
      %v4574 = vadd.f32 %v4234, %v4573
      %v4575 = vpop.f32.mrb[0].mxu0
      %v4576 = vadd.f32 %v4238, %v4575
      %v4577 = vpop.f32.mrb[0].mxu0
      %v4578 = vadd.f32 %v4234, %v4577
      %v4579 = vpop.f32.mrb[0].mxu0
      %v4580 = vadd.f32 %v4238, %v4579
      %4581 = vmatprep.mubr.bf16.mxu0 %v4165
      %4582 = vmatmul.mubr.bf16.gmra.mrb[0].mxu0 %v4164
      %v4583 = vpop.f32.mrb[0].mxu0
      %v4584 = vadd.f32 %v4234, %v4583
      %v4585 = vpop.f32.mrb[0].mxu0
      %v4586 = vadd.f32 %v4238, %v4585
      %v4587 = vpop.f32.mrb[0].mxu0
      %v4588 = vadd.f32 %v4234, %v4587
      %v4589 = vpop.f32.mrb[0].mxu0
      %v4590 = vadd.f32 %v4238, %v4589
      %4591 = vmatprep.mubr.bf16.mxu0 %v4167
      %4592 = vmatmul.mubr.bf16.gmra.mrb[0].mxu0 %v4166
      %v4593 = vpop.f32.mrb[0].mxu0
      %v4594 = vadd.f32 %v4234, %v4593
      %v4595 = vpop.f32.mrb[0].mxu0
      %v4596 = vadd.f32 %v4238, %v4595
      %v4597 = vpop.f32.mrb[0].mxu0
      %v4598 = vadd.f32 %v4234, %v4597
      %v4599 = vpop.f32.mrb[0].mxu0
      %v4600 = vadd.f32 %v4238, %v4599
      %4601 = vmatprep.mubr.bf16.mxu0 %v4169
      %4602 = vmatmul.mubr.bf16.gmra.mrb[0].mxu0 %v4168
      %v4603 = vpop.f32.mrb[0].mxu0
      %v4604 = vadd.f32 %v4234, %v4603
      %v4605 = vpop.f32.mrb[0].mxu0
      %v4606 = vadd.f32 %v4238, %v4605
      %v4607 = vpop.f32.mrb[0].mxu0
      %v4608 = vadd.f32 %v4234, %v4607
      %v4609 = vpop.f32.mrb[0].mxu0
      %v4610 = vadd.f32 %v4238, %v4609
      %4611 = vmatprep.mubr.bf16.mxu0 %v4171
      %4612 = vmatmul.mubr.bf16.gmra.mrb[0].mxu0 %v4170
      %v4613 = vpop.f32.mrb[0].mxu0
      %v4614 = vadd.f32 %v4234, %v4613
      %v4615 = vpop.f32.mrb[0].mxu0
      %v4616 = vadd.f32 %v4238, %v4615
      %v4617 = vpop.f32.mrb[0].mxu0
      %v4618 = vadd.f32 %v4234, %v4617
      %v4619 = vpop.f32.mrb[0].mxu0
      %v4620 = vadd.f32 %v4238, %v4619
      %4621 = vmatprep.mubr.bf16.mxu0 %v4173
      %4622 = vmatmul.mubr.bf16.gmra.mrb[0].mxu0 %v4172
      %v4623 = vpop.f32.mrb[0].mxu0
      %v4624 = vadd.f32 %v4234, %v4623
      %v4625 = vpop.f32.mrb[0].mxu0
      %v4626 = vadd.f32 %v4238, %v4625
      %v4627 = vpop.f32.mrb[0].mxu0
      %v4628 = vadd.f32 %v4234, %v4627
      %v4629 = vpop.f32.mrb[0].mxu0
      %v4630 = vadd.f32 %v4238, %v4629
      %4631 = vmatprep.mubr.bf16.mxu0 %v4175
      %4632 = vmatmul.mubr.bf16.gmra.mrb[0].mxu0 %v4174
      %v4633 = vpop.f32.mrb[0].mxu0
      %v4634 = vadd.f32 %v4234, %v4633
      %v4635 = vpop.f32.mrb[0].mxu0
      %v4636 = vadd.f32 %v4238, %v4635
      %v4637 = vpop.f32.mrb[0].mxu0
      %v4638 = vadd.f32 %v4234, %v4637
      %v4639 = vpop.f32.mrb[0].mxu0
      %v4640 = vadd.f32 %v4238, %v4639
      %4641 = vmatprep.mubr.bf16.mxu0 %v4177
      %4642 = vmatmul.mubr.bf16.gmra.mrb[0].mxu0 %v4176
      %v4643 = vpop.f32.mrb[0].mxu0
      %v4644 = vadd.f32 %v4234, %v4643
      %v4645 = vpop.f32.mrb[0].mxu0
      %v4646 = vadd.f32 %v4238, %v4645
      %v4647 = vpop.f32.mrb[0].mxu0
      %v4648 = vadd.f32 %v4234, %v4647
      %v4649 = vpop.f32.mrb[0].mxu0
      %v4650 = vadd.f32 %v4238, %v4649
      %4651 = vmatprep.mubr.bf16.mxu0 %v4179
      %4652 = vmatmul.mubr.bf16.gmra.mrb[0].mxu0 %v4178
      %v4653 = vpop.f32.mrb[0].mxu0
      %v4654 = vadd.f32 %v4234, %v4653
      %v4655 = vpop.f32.mrb[0].mxu0
      %v4656 = vadd.f32 %v4238, %v4655
      %v4657 = vpop.f32.mrb[0].mxu0
      %v4658 = vadd.f32 %v4234, %v4657
      %v4659 = vpop.f32.mrb[0].mxu0
      %v4660 = vadd.f32 %v4238, %v4659
      %4661 = vmatprep.mubr.bf16.mxu0 %v4181
      %4662 = vmatmul.mubr.bf16.gmra.mrb[0].mxu0 %v4180
      %v4663 = vpop.f32.mrb[0].mxu0
      %v4664 = vadd.f32 %v4234, %v4663
      %v4665 = vpop.f32.mrb[0].mxu0
      %v4666 = vadd.f32 %v4238, %v4665
      %v4667 = vpop.f32.mrb[0].mxu0
      %v4668 = vadd.f32 %v4234, %v4667
      %v4669 = vpop.f32.mrb[0].mxu0
      %v4670 = vadd.f32 %v4238, %v4669
      %4671 = vmatprep.mubr.bf16.mxu0 %v4183
      %4672 = vmatmul.mubr.bf16.gmra.mrb[0].mxu0 %v4182
      %v4673 = vpop.f32.mrb[0].mxu0
      %v4674 = vadd.f32 %v4234, %v4673
      %v4675 = vpop.f32.mrb[0].mxu0
      %v4676 = vadd.f32 %v4238, %v4675
      %v4677 = vpop.f32.mrb[0].mxu0
      %v4678 = vadd.f32 %v4234, %v4677
      %v4679 = vpop.f32.mrb[0].mxu0
      %v4680 = vadd.f32 %v4238, %v4679
      %4681 = vmatprep.mubr.bf16.mxu0 %v4185
      %4682 = vmatmul.mubr.bf16.gmra.mrb[0].mxu0 %v4184
      %v4683 = vpop.f32.mrb[0].mxu0
      %v4684 = vadd.f32 %v4234, %v4683
      %v4685 = vpop.f32.mrb[0].mxu0
      %v4686 = vadd.f32 %v4238, %v4685
      %v4687 = vpop.f32.mrb[0].mxu0
      %v4688 = vadd.f32 %v4234, %v4687
      %v4689 = vpop.f32.mrb[0].mxu0
      %v4690 = vadd.f32 %v4238, %v4689
      %4691 = vmatprep.mubr.bf16.mxu0 %v4187
      %4692 = vmatmul.mubr.bf16.gmra.mrb[0].mxu0 %v4186
      %v4693 = vpop.f32.mrb[0].mxu0
      %v4694 = vadd.f32 %v4234, %v4693
      %v4695 = vpop.f32.mrb[0].mxu0
      %v4696 = vadd.f32 %v4238, %v4695
      %v4697 = vpop.f32.mrb[0].mxu0
      %v4698 = vadd.f32 %v4234, %v4697
      %v4699 = vpop.f32.mrb[0].mxu0
      %v4700 = vadd.f32 %v4238, %v4699
      %4701 = vmatprep.mubr.bf16.mxu0 %v4189
      %4702 = vmatmul.mubr.bf16.gmra.mrb[0].mxu0 %v4188
      %v4703 = vpop.f32.mrb[0].mxu0
      %v4704 = vadd.f32 %v4234, %v4703
      %v4705 = vpop.f32.mrb[0].mxu0
      %v4706 = vadd.f32 %v4238, %v4705
      %v4707 = vpop.f32.mrb[0].mxu0
      %v4708 = vadd.f32 %v4234, %v4707
      %v4709 = vpop.f32.mrb[0].mxu0
      %v4710 = vadd.f32 %v4238, %v4709
      %4711 = vmatprep.mubr.bf16.mxu0 %v4191
      %4712 = vmatmul.mubr.bf16.gmra.mrb[0].mxu0 %v4190
      %v4713 = vpop.f32.mrb[0].mxu0
      %v4714 = vadd.f32 %v4234, %v4713
      %v4715 = vpop.f32.mrb[0].mxu0
      %v4716 = vadd.f32 %v4238, %v4715
      %v4717 = vpop.f32.mrb[0].mxu0
      %v4718 = vadd.f32 %v4234, %v4717
      %v4719 = vpop.f32.mrb[0].mxu0
      %v4720 = vadd.f32 %v4238, %v4719
      %4721 = vmatprep.mubr.bf16.mxu0 %v4193
      %4722 = vmatmul.mubr.bf16.gmra.mrb[0].mxu0 %v4192
      %v4723 = vpop.f32.mrb[0].mxu0
      %v4724 = vadd.f32 %v4234, %v4723
      %v4725 = vpop.f32.mrb[0].mxu0
      %v4726 = vadd.f32 %v4238, %v4725
      %v4727 = vpop.f32.mrb[0].mxu0
      %v4728 = vadd.f32 %v4234, %v4727
      %v4729 = vpop.f32.mrb[0].mxu0
      %v4730 = vadd.f32 %v4238, %v4729
      %4731 = vmatprep.mubr.bf16.mxu0 %v4195
      %4732 = vmatmul.mubr.bf16.gmra.mrb[0].mxu0 %v4194
      %v4733 = vpop.f32.mrb[0].mxu0
      %v4734 = vadd.f32 %v4234, %v4733
      %v4735 = vpop.f32.mrb[0].mxu0
      %v4736 = vadd.f32 %v4238, %v4735
      %v4737 = vpop.f32.mrb[0].mxu0
      %v4738 = vadd.f32 %v4234, %v4737
      %v4739 = vpop.f32.mrb[0].mxu0
      %v4740 = vadd.f32 %v4238, %v4739
      %4741 = vmatprep.mubr.bf16.mxu0 %v4197
      %4742 = vmatmul.mubr.bf16.gmra.mrb[0].mxu0 %v4196
      %v4743 = vpop.f32.mrb[0].mxu0
      %v4744 = vadd.f32 %v4234, %v4743
      %v4745 = vpop.f32.mrb[0].mxu0
      %v4746 = vadd.f32 %v4238, %v4745
      %v4747 = vpop.f32.mrb[0].mxu0
      %v4748 = vadd.f32 %v4234, %v4747
      %v4749 = vpop.f32.mrb[0].mxu0
      %v4750 = vadd.f32 %v4238, %v4749
      %4751 = vdwg.mxu0
      %v4752 = vld [vmem:[%s3] sm:$0xff]
      %v4753 = vld [vmem:[%s3 + $0x8] sm:$0xff]
      %v4754 = vld [vmem:[%s3 + $0x10] sm:$0xff]
      %v4755 = vld [vmem:[%s3 + $0x18] sm:$0xff]
      %v4756 = vld [vmem:[%s3 + $0x20] sm:$0xff]
      %v4757 = vld [vmem:[%s3 + $0x28] sm:$0xff]
      %v4758 = vld [vmem:[%s3 + $0x30] sm:$0xff]
      %v4759 = vld [vmem:[%s3 + $0x38] sm:$0xff]
      %v4768 = vunpack.c.l.b16 %v4752
      %v4769 = vunpack.c.h.b16 %v4752
      %v4770 = vunpack.c.l.b16 %v4753
      %v4771 = vunpack.c.h.b16 %v4753
      %v4772 = vunpack.c.l.b16 %v4754
      %v4773 = vunpack.c.h.b16 %v4754
      %v4774 = vunpack.c.l.b16 %v4755
      %v4775 = vunpack.c.h.b16 %v4755
      %v4776 = vunpack.c.l.b16 %v4756
      %v4777 = vunpack.c.h.b16 %v4756
      %v4778 = vunpack.c.l.b16 %v4757
      %v4779 = vunpack.c.h.b16 %v4757
      %v4780 = vunpack.c.l.b16 %v4758
      %v4781 = vunpack.c.h.b16 %v4758
      %v4782 = vunpack.c.l.b16 %v4759
      %v4783 = vunpack.c.h.b16 %v4759
      %v4784 = vpack.c.b16 %v4770, %v4768
      %v4785 = vpack.c.b16 %v4771, %v4769
      %v4786 = vpack.c.b16 %v4774, %v4772
      %v4787 = vpack.c.b16 %v4775, %v4773
      %v4788 = vpack.c.b16 %v4778, %v4776
      %v4789 = vpack.c.b16 %v4779, %v4777
      %v4790 = vpack.c.b16 %v4782, %v4780
      %v4791 = vpack.c.b16 %v4783, %v4781
      %v4799 = vand.u32 %v4790, %v663
      %v4802 = vand.u32 %v4791, %v663
      %4804 = vmatprep.subr.bf16.mxu0 %v4785
      %4805 = vmatpush1.bf16.msra.mxu0 %v4784
      %4806 = vmatprep.subr.bf16.mxu0 %v4787
      %4807 = vmatpush1.bf16.msra.mxu0 %v4786
      %4808 = vmatprep.subr.bf16.mxu0 %v4789
      %4809 = vmatpush1.bf16.msra.mxu0 %v4788
      %4810 = vmatprep.subr.bf16.mxu0 %v4802
      %4811 = vmatpush1.bf16.msra.mxu0 %v4799
      %4812 = vmatprep.subr.bf16.mxu0 0
      %4813 = vmatpush1.bf16.msra.mxu0 0
      %4814 = vmatprep.subr.bf16.mxu0 0
      %4815 = vmatpush1.bf16.msra.mxu0 0
      %4816 = vmatprep.subr.bf16.mxu0 0
      %4817 = vmatpush1.bf16.msra.mxu0 0
      %4818 = vmatprep.subr.bf16.mxu0 0
      %4819 = vmatpush1.bf16.msra.mxu0 0
      %4820 = vmatprep.subr.bf16.mxu0 0
      %4821 = vmatpush1.bf16.msra.mxu0 0
      %4822 = vmatprep.subr.bf16.mxu0 0
      %4823 = vmatpush1.bf16.msra.mxu0 0
      %4824 = vmatprep.subr.bf16.mxu0 0
      %4825 = vmatpush1.bf16.msra.mxu0 0
      %4826 = vmatprep.subr.bf16.mxu0 0
      %4827 = vmatpush1.bf16.msra.mxu0 0
      %4828 = vmatprep.subr.bf16.mxu0 0
      %4829 = vmatpush1.bf16.msra.mxu0 0
      %4830 = vmatprep.subr.bf16.mxu0 0
      %4831 = vmatpush1.bf16.msra.mxu0 0
      %4832 = vmatprep.subr.bf16.mxu0 0
      %4833 = vmatpush1.bf16.msra.mxu0 0
      %4834 = vmatprep.subr.bf16.mxu0 0
      %4835 = vmatpush1.bf16.msra.mxu0 0
      %4836 = vmatprep.mubr.bf16.mxu0 0
      %4837 = vmatmul.mubr.bf16.gmra.mrb[0].mxu0 %v565
      %v4838 = vpop.f32.mrb[0].mxu0
      %v4839 = vadd.f32 0.0, %v4838
      %v4840 = vpop.f32.mrb[0].mxu0
      %v4841 = vadd.f32 0.0, %v4840
      %v4842 = vpop.f32.mrb[0].mxu0
      %v4843 = vadd.f32 0.0, %v4842
      %v4844 = vpop.f32.mrb[0].mxu0
      %v4845 = vadd.f32 0.0, %v4844
      %4846 = vmatprep.mubr.bf16.mxu0 0
      %4847 = vmatmul.mubr.bf16.gmra.mrb[0].mxu0 %v568
      %v4848 = vpop.f32.mrb[0].mxu0
      %v4849 = vadd.f32 0.0, %v4848
      %v4850 = vpop.f32.mrb[0].mxu0
      %v4851 = vadd.f32 0.0, %v4850
      %v4852 = vpop.f32.mrb[0].mxu0
      %v4853 = vadd.f32 0.0, %v4852
      %v4854 = vpop.f32.mrb[0].mxu0
      %v4855 = vadd.f32 0.0, %v4854
      %4856 = vmatprep.mubr.bf16.mxu0 0
      %4857 = vmatmul.mubr.bf16.gmra.mrb[0].mxu0 %v571
      %v4858 = vpop.f32.mrb[0].mxu0
      %v4859 = vadd.f32 0.0, %v4858
      %v4860 = vpop.f32.mrb[0].mxu0
      %v4861 = vadd.f32 0.0, %v4860
      %v4862 = vpop.f32.mrb[0].mxu0
      %v4863 = vadd.f32 0.0, %v4862
      %v4864 = vpop.f32.mrb[0].mxu0
      %v4865 = vadd.f32 0.0, %v4864
      %4866 = vmatprep.mubr.bf16.mxu0 0
      %4867 = vmatmul.mubr.bf16.gmra.mrb[0].mxu0 %v574
      %v4868 = vpop.f32.mrb[0].mxu0
      %v4869 = vadd.f32 0.0, %v4868
      %v4870 = vpop.f32.mrb[0].mxu0
      %v4871 = vadd.f32 0.0, %v4870
      %v4872 = vpop.f32.mrb[0].mxu0
      %v4873 = vadd.f32 0.0, %v4872
      %v4874 = vpop.f32.mrb[0].mxu0
      %v4875 = vadd.f32 0.0, %v4874
      %4876 = vmatprep.mubr.bf16.mxu0 0
      %4877 = vmatmul.mubr.bf16.gmra.mrb[0].mxu0 %v577
      %v4878 = vpop.f32.mrb[0].mxu0
      %v4879 = vadd.f32 0.0, %v4878
      %v4880 = vpop.f32.mrb[0].mxu0
      %v4881 = vadd.f32 0.0, %v4880
      %v4882 = vpop.f32.mrb[0].mxu0
      %v4883 = vadd.f32 0.0, %v4882
      %v4884 = vpop.f32.mrb[0].mxu0
      %v4885 = vadd.f32 0.0, %v4884
      %4886 = vmatprep.mubr.bf16.mxu0 0
      %4887 = vmatmul.mubr.bf16.gmra.mrb[0].mxu0 %v580
      %v4888 = vpop.f32.mrb[0].mxu0
      %v4889 = vadd.f32 0.0, %v4888
      %v4890 = vpop.f32.mrb[0].mxu0
      %v4891 = vadd.f32 0.0, %v4890
      %v4892 = vpop.f32.mrb[0].mxu0
      %v4893 = vadd.f32 0.0, %v4892
      %v4894 = vpop.f32.mrb[0].mxu0
      %v4895 = vadd.f32 0.0, %v4894
      %4896 = vmatprep.mubr.bf16.mxu0 0
      %4897 = vmatmul.mubr.bf16.gmra.mrb[0].mxu0 %v583
      %v4898 = vpop.f32.mrb[0].mxu0
      %v4899 = vadd.f32 0.0, %v4898
      %v4900 = vpop.f32.mrb[0].mxu0
      %v4901 = vadd.f32 0.0, %v4900
      %v4902 = vpop.f32.mrb[0].mxu0
      %v4903 = vadd.f32 0.0, %v4902
      %v4904 = vpop.f32.mrb[0].mxu0
      %v4905 = vadd.f32 0.0, %v4904
      %4906 = vmatprep.mubr.bf16.mxu0 0
      %4907 = vmatmul.mubr.bf16.gmra.mrb[0].mxu0 %v586
      %v4908 = vpop.f32.mrb[0].mxu0
      %v4909 = vadd.f32 0.0, %v4908
      %v4910 = vpop.f32.mrb[0].mxu0
      %v4911 = vadd.f32 0.0, %v4910
      %v4912 = vpop.f32.mrb[0].mxu0
      %v4913 = vadd.f32 0.0, %v4912
      %v4914 = vpop.f32.mrb[0].mxu0
      %v4915 = vadd.f32 0.0, %v4914
      %4916 = vmatprep.mubr.bf16.mxu0 0
      %4917 = vmatmul.mubr.bf16.gmra.mrb[0].mxu0 %v589
      %v4918 = vpop.f32.mrb[0].mxu0
      %v4919 = vadd.f32 0.0, %v4918
      %v4920 = vpop.f32.mrb[0].mxu0
      %v4921 = vadd.f32 0.0, %v4920
      %v4922 = vpop.f32.mrb[0].mxu0
      %v4923 = vadd.f32 0.0, %v4922
      %v4924 = vpop.f32.mrb[0].mxu0
      %v4925 = vadd.f32 0.0, %v4924
      %4926 = vmatprep.mubr.bf16.mxu0 0
      %4927 = vmatmul.mubr.bf16.gmra.mrb[0].mxu0 %v592
      %v4928 = vpop.f32.mrb[0].mxu0
      %v4929 = vadd.f32 0.0, %v4928
      %v4930 = vpop.f32.mrb[0].mxu0
      %v4931 = vadd.f32 0.0, %v4930
      %v4932 = vpop.f32.mrb[0].mxu0
      %v4933 = vadd.f32 0.0, %v4932
      %v4934 = vpop.f32.mrb[0].mxu0
      %v4935 = vadd.f32 0.0, %v4934
      %4936 = vmatprep.mubr.bf16.mxu0 0
      %4937 = vmatmul.mubr.bf16.gmra.mrb[0].mxu0 %v595
      %v4938 = vpop.f32.mrb[0].mxu0
      %v4939 = vadd.f32 0.0, %v4938
      %v4940 = vpop.f32.mrb[0].mxu0
      %v4941 = vadd.f32 0.0, %v4940
      %v4942 = vpop.f32.mrb[0].mxu0
      %v4943 = vadd.f32 0.0, %v4942
      %v4944 = vpop.f32.mrb[0].mxu0
      %v4945 = vadd.f32 0.0, %v4944
      %4946 = vmatprep.mubr.bf16.mxu0 0
      %4947 = vmatmul.mubr.bf16.gmra.mrb[0].mxu0 %v598
      %v4948 = vpop.f32.mrb[0].mxu0
      %v4949 = vadd.f32 0.0, %v4948
      %v4950 = vpop.f32.mrb[0].mxu0
      %v4951 = vadd.f32 0.0, %v4950
      %v4952 = vpop.f32.mrb[0].mxu0
      %v4953 = vadd.f32 0.0, %v4952
      %v4954 = vpop.f32.mrb[0].mxu0
      %v4955 = vadd.f32 0.0, %v4954
      %4956 = vmatprep.mubr.bf16.mxu0 0
      %4957 = vmatmul.mubr.bf16.gmra.mrb[0].mxu0 %v601
      %v4958 = vpop.f32.mrb[0].mxu0
      %v4959 = vadd.f32 0.0, %v4958
      %v4960 = vpop.f32.mrb[0].mxu0
      %v4961 = vadd.f32 0.0, %v4960
      %v4962 = vpop.f32.mrb[0].mxu0
      %v4963 = vadd.f32 0.0, %v4962
      %v4964 = vpop.f32.mrb[0].mxu0
      %v4965 = vadd.f32 0.0, %v4964
      %4966 = vmatprep.mubr.bf16.mxu0 0
      %4967 = vmatmul.mubr.bf16.gmra.mrb[0].mxu0 %v604
      %v4968 = vpop.f32.mrb[0].mxu0
      %v4969 = vadd.f32 0.0, %v4968
      %v4970 = vpop.f32.mrb[0].mxu0
      %v4971 = vadd.f32 0.0, %v4970
      %v4972 = vpop.f32.mrb[0].mxu0
      %v4973 = vadd.f32 0.0, %v4972
      %v4974 = vpop.f32.mrb[0].mxu0
      %v4975 = vadd.f32 0.0, %v4974
      %4976 = vmatprep.mubr.bf16.mxu0 0
      %4977 = vmatmul.mubr.bf16.gmra.mrb[0].mxu0 %v607
      %v4978 = vpop.f32.mrb[0].mxu0
      %v4979 = vadd.f32 0.0, %v4978
      %v4980 = vpop.f32.mrb[0].mxu0
      %v4981 = vadd.f32 0.0, %v4980
      %v4982 = vpop.f32.mrb[0].mxu0
      %v4983 = vadd.f32 0.0, %v4982
      %v4984 = vpop.f32.mrb[0].mxu0
      %v4985 = vadd.f32 0.0, %v4984
      %4986 = vmatprep.mubr.bf16.mxu0 0
      %4987 = vmatmul.mubr.bf16.gmra.mrb[0].mxu0 %v610
      %v4988 = vpop.f32.mrb[0].mxu0
      %v4989 = vadd.f32 0.0, %v4988
      %v4990 = vpop.f32.mrb[0].mxu0
      %v4991 = vadd.f32 0.0, %v4990
      %v4992 = vpop.f32.mrb[0].mxu0
      %v4993 = vadd.f32 0.0, %v4992
      %v4994 = vpop.f32.mrb[0].mxu0
      %v4995 = vadd.f32 0.0, %v4994
      %4996 = vmatprep.mubr.bf16.mxu0 0
      %4997 = vmatmul.mubr.bf16.gmra.mrb[0].mxu0 %v613
      %v4998 = vpop.f32.mrb[0].mxu0
      %v4999 = vadd.f32 0.0, %v4998
      %v5000 = vpop.f32.mrb[0].mxu0
      %v5001 = vadd.f32 0.0, %v5000
      %v5002 = vpop.f32.mrb[0].mxu0
      %v5003 = vadd.f32 0.0, %v5002
      %v5004 = vpop.f32.mrb[0].mxu0
      %v5005 = vadd.f32 0.0, %v5004
      %5006 = vmatprep.mubr.bf16.mxu0 0
      %5007 = vmatmul.mubr.bf16.gmra.mrb[0].mxu0 %v616
      %v5008 = vpop.f32.mrb[0].mxu0
      %v5009 = vadd.f32 0.0, %v5008
      %v5010 = vpop.f32.mrb[0].mxu0
      %v5011 = vadd.f32 0.0, %v5010
      %v5012 = vpop.f32.mrb[0].mxu0
      %v5013 = vadd.f32 0.0, %v5012
      %v5014 = vpop.f32.mrb[0].mxu0
      %v5015 = vadd.f32 0.0, %v5014
      %5016 = vmatprep.mubr.bf16.mxu0 0
      %5017 = vmatmul.mubr.bf16.gmra.mrb[0].mxu0 %v619
      %v5018 = vpop.f32.mrb[0].mxu0
      %v5019 = vadd.f32 0.0, %v5018
      %v5020 = vpop.f32.mrb[0].mxu0
      %v5021 = vadd.f32 0.0, %v5020
      %v5022 = vpop.f32.mrb[0].mxu0
      %v5023 = vadd.f32 0.0, %v5022
      %v5024 = vpop.f32.mrb[0].mxu0
      %v5025 = vadd.f32 0.0, %v5024
      %5026 = vmatprep.mubr.bf16.mxu0 0
      %5027 = vmatmul.mubr.bf16.gmra.mrb[0].mxu0 %v622
      %v5028 = vpop.f32.mrb[0].mxu0
      %v5029 = vadd.f32 0.0, %v5028
      %v5030 = vpop.f32.mrb[0].mxu0
      %v5031 = vadd.f32 0.0, %v5030
      %v5032 = vpop.f32.mrb[0].mxu0
      %v5033 = vadd.f32 0.0, %v5032
      %v5034 = vpop.f32.mrb[0].mxu0
      %v5035 = vadd.f32 0.0, %v5034
      %5036 = vmatprep.mubr.bf16.mxu0 0
      %5037 = vmatmul.mubr.bf16.gmra.mrb[0].mxu0 %v625
      %v5038 = vpop.f32.mrb[0].mxu0
      %v5039 = vadd.f32 0.0, %v5038
      %v5040 = vpop.f32.mrb[0].mxu0
      %v5041 = vadd.f32 0.0, %v5040
      %v5042 = vpop.f32.mrb[0].mxu0
      %v5043 = vadd.f32 0.0, %v5042
      %v5044 = vpop.f32.mrb[0].mxu0
      %v5045 = vadd.f32 0.0, %v5044
      %5046 = vmatprep.mubr.bf16.mxu0 0
      %5047 = vmatmul.mubr.bf16.gmra.mrb[0].mxu0 %v628
      %v5048 = vpop.f32.mrb[0].mxu0
      %v5049 = vadd.f32 0.0, %v5048
      %v5050 = vpop.f32.mrb[0].mxu0
      %v5051 = vadd.f32 0.0, %v5050
      %v5052 = vpop.f32.mrb[0].mxu0
      %v5053 = vadd.f32 0.0, %v5052
      %v5054 = vpop.f32.mrb[0].mxu0
      %v5055 = vadd.f32 0.0, %v5054
      %5056 = vmatprep.mubr.bf16.mxu0 0
      %5057 = vmatmul.mubr.bf16.gmra.mrb[0].mxu0 %v631
      %v5058 = vpop.f32.mrb[0].mxu0
      %v5059 = vadd.f32 0.0, %v5058
      %v5060 = vpop.f32.mrb[0].mxu0
      %v5061 = vadd.f32 0.0, %v5060
      %v5062 = vpop.f32.mrb[0].mxu0
      %v5063 = vadd.f32 0.0, %v5062
      %v5064 = vpop.f32.mrb[0].mxu0
      %v5065 = vadd.f32 0.0, %v5064
      %5066 = vmatprep.mubr.bf16.mxu0 0
      %5067 = vmatmul.mubr.bf16.gmra.mrb[0].mxu0 %v634
      %v5068 = vpop.f32.mrb[0].mxu0
      %v5069 = vadd.f32 0.0, %v5068
      %v5070 = vpop.f32.mrb[0].mxu0
      %v5071 = vadd.f32 0.0, %v5070
      %v5072 = vpop.f32.mrb[0].mxu0
      %v5073 = vadd.f32 0.0, %v5072
      %v5074 = vpop.f32.mrb[0].mxu0
      %v5075 = vadd.f32 0.0, %v5074
      %5076 = vmatprep.mubr.bf16.mxu0 0
      %5077 = vmatmul.mubr.bf16.gmra.mrb[0].mxu0 %v637
      %v5078 = vpop.f32.mrb[0].mxu0
      %v5079 = vadd.f32 0.0, %v5078
      %v5080 = vpop.f32.mrb[0].mxu0
      %v5081 = vadd.f32 0.0, %v5080
      %v5082 = vpop.f32.mrb[0].mxu0
      %v5083 = vadd.f32 0.0, %v5082
      %v5084 = vpop.f32.mrb[0].mxu0
      %v5085 = vadd.f32 0.0, %v5084
      %5086 = vmatprep.mubr.bf16.mxu0 0
      %5087 = vmatmul.mubr.bf16.gmra.mrb[0].mxu0 %v640
      %v5088 = vpop.f32.mrb[0].mxu0
      %v5089 = vadd.f32 0.0, %v5088
      %v5090 = vpop.f32.mrb[0].mxu0
      %v5091 = vadd.f32 0.0, %v5090
      %v5092 = vpop.f32.mrb[0].mxu0
      %v5093 = vadd.f32 0.0, %v5092
      %v5094 = vpop.f32.mrb[0].mxu0
      %v5095 = vadd.f32 0.0, %v5094
      %5096 = vmatprep.mubr.bf16.mxu0 0
      %5097 = vmatmul.mubr.bf16.gmra.mrb[0].mxu0 %v643
      %v5098 = vpop.f32.mrb[0].mxu0
      %v5099 = vadd.f32 0.0, %v5098
      %v5100 = vpop.f32.mrb[0].mxu0
      %v5101 = vadd.f32 0.0, %v5100
      %v5102 = vpop.f32.mrb[0].mxu0
      %v5103 = vadd.f32 0.0, %v5102
      %v5104 = vpop.f32.mrb[0].mxu0
      %v5105 = vadd.f32 0.0, %v5104
      %5106 = vmatprep.mubr.bf16.mxu0 0
      %5107 = vmatmul.mubr.bf16.gmra.mrb[0].mxu0 %v646
      %v5108 = vpop.f32.mrb[0].mxu0
      %v5109 = vadd.f32 0.0, %v5108
      %v5110 = vpop.f32.mrb[0].mxu0
      %v5111 = vadd.f32 0.0, %v5110
      %v5112 = vpop.f32.mrb[0].mxu0
      %v5113 = vadd.f32 0.0, %v5112
      %v5114 = vpop.f32.mrb[0].mxu0
      %v5115 = vadd.f32 0.0, %v5114
      %5116 = vmatprep.mubr.bf16.mxu0 0
      %5117 = vmatmul.mubr.bf16.gmra.mrb[0].mxu0 %v649
      %v5118 = vpop.f32.mrb[0].mxu0
      %v5119 = vadd.f32 0.0, %v5118
      %v5120 = vpop.f32.mrb[0].mxu0
      %v5121 = vadd.f32 0.0, %v5120
      %v5122 = vpop.f32.mrb[0].mxu0
      %v5123 = vadd.f32 0.0, %v5122
      %v5124 = vpop.f32.mrb[0].mxu0
      %v5125 = vadd.f32 0.0, %v5124
      %5126 = vmatprep.mubr.bf16.mxu0 0
      %5127 = vmatmul.mubr.bf16.gmra.mrb[0].mxu0 %v652
      %v5128 = vpop.f32.mrb[0].mxu0
      %v5129 = vadd.f32 0.0, %v5128
      %v5130 = vpop.f32.mrb[0].mxu0
      %v5131 = vadd.f32 0.0, %v5130
      %v5132 = vpop.f32.mrb[0].mxu0
      %v5133 = vadd.f32 0.0, %v5132
      %v5134 = vpop.f32.mrb[0].mxu0
      %v5135 = vadd.f32 0.0, %v5134
      %5136 = vmatprep.mubr.bf16.mxu0 0
      %5137 = vmatmul.mubr.bf16.gmra.mrb[0].mxu0 %v655
      %v5138 = vpop.f32.mrb[0].mxu0
      %v5139 = vadd.f32 0.0, %v5138
      %v5140 = vpop.f32.mrb[0].mxu0
      %v5141 = vadd.f32 0.0, %v5140
      %v5142 = vpop.f32.mrb[0].mxu0
      %v5143 = vadd.f32 0.0, %v5142
      %v5144 = vpop.f32.mrb[0].mxu0
      %v5145 = vadd.f32 0.0, %v5144
      %5146 = vmatprep.mubr.bf16.mxu0 0
      %5147 = vmatmul.mubr.bf16.gmra.mrb[0].mxu0 %v658
      %v5148 = vpop.f32.mrb[0].mxu0
      %v5149 = vadd.f32 0.0, %v5148
      %v5150 = vpop.f32.mrb[0].mxu0
      %v5151 = vadd.f32 0.0, %v5150
      %v5152 = vpop.f32.mrb[0].mxu0
      %v5153 = vadd.f32 0.0, %v5152
      %v5154 = vpop.f32.mrb[0].mxu0
      %v5155 = vadd.f32 0.0, %v5154
      %5156 = vdwg.mxu0
      %v5157 = vadd.f32 %v4434, %v4839
      %v5158 = vadd.f32 %v4436, %v4841
      %v5159 = vadd.f32 %v4438, %v4843
      %v5160 = vadd.f32 %v4440, %v4845
      %v5161 = vadd.f32 %v4444, %v4849
      %v5162 = vadd.f32 %v4446, %v4851
      %v5163 = vadd.f32 %v4448, %v4853
      %v5164 = vadd.f32 %v4450, %v4855
      %v5165 = vadd.f32 %v4454, %v4859
      %v5166 = vadd.f32 %v4456, %v4861
      %v5167 = vadd.f32 %v4458, %v4863
      %v5168 = vadd.f32 %v4460, %v4865
      %v5169 = vadd.f32 %v4464, %v4869
      %v5170 = vadd.f32 %v4466, %v4871
      %v5171 = vadd.f32 %v4468, %v4873
      %v5172 = vadd.f32 %v4470, %v4875
      %v5173 = vadd.f32 %v4474, %v4879
      %v5174 = vadd.f32 %v4476, %v4881
      %v5175 = vadd.f32 %v4478, %v4883
      %v5176 = vadd.f32 %v4480, %v4885
      %v5177 = vadd.f32 %v4484, %v4889
      %v5178 = vadd.f32 %v4486, %v4891
      %v5179 = vadd.f32 %v4488, %v4893
      %v5180 = vadd.f32 %v4490, %v4895
      %v5181 = vadd.f32 %v4494, %v4899
      %v5182 = vadd.f32 %v4496, %v4901
      %v5183 = vadd.f32 %v4498, %v4903
      %v5184 = vadd.f32 %v4500, %v4905
      %v5185 = vadd.f32 %v4504, %v4909
      %v5186 = vadd.f32 %v4506, %v4911
      %v5187 = vadd.f32 %v4508, %v4913
      %v5188 = vadd.f32 %v4510, %v4915
      %v5189 = vadd.f32 %v4514, %v4919
      %v5190 = vadd.f32 %v4516, %v4921
      %v5191 = vadd.f32 %v4518, %v4923
      %v5192 = vadd.f32 %v4520, %v4925
      %v5193 = vadd.f32 %v4524, %v4929
      %v5194 = vadd.f32 %v4526, %v4931
      %v5195 = vadd.f32 %v4528, %v4933
      %v5196 = vadd.f32 %v4530, %v4935
      %v5197 = vadd.f32 %v4534, %v4939
      %v5198 = vadd.f32 %v4536, %v4941
      %v5199 = vadd.f32 %v4538, %v4943
      %v5200 = vadd.f32 %v4540, %v4945
      %v5201 = vadd.f32 %v4544, %v4949
      %v5202 = vadd.f32 %v4546, %v4951
      %v5203 = vadd.f32 %v4548, %v4953
      %v5204 = vadd.f32 %v4550, %v4955
      %v5205 = vadd.f32 %v4554, %v4959
      %v5206 = vadd.f32 %v4556, %v4961
      %v5207 = vadd.f32 %v4558, %v4963
      %v5208 = vadd.f32 %v4560, %v4965
      %v5209 = vadd.f32 %v4564, %v4969
      %v5210 = vadd.f32 %v4566, %v4971
      %v5211 = vadd.f32 %v4568, %v4973
      %v5212 = vadd.f32 %v4570, %v4975
      %v5213 = vadd.f32 %v4574, %v4979
      %v5214 = vadd.f32 %v4576, %v4981
      %v5215 = vadd.f32 %v4578, %v4983
      %v5216 = vadd.f32 %v4580, %v4985
      %v5217 = vadd.f32 %v4584, %v4989
      %v5218 = vadd.f32 %v4586, %v4991
      %v5219 = vadd.f32 %v4588, %v4993
      %v5220 = vadd.f32 %v4590, %v4995
      %v5221 = vadd.f32 %v4594, %v4999
      %v5222 = vadd.f32 %v4596, %v5001
      %v5223 = vadd.f32 %v4598, %v5003
      %v5224 = vadd.f32 %v4600, %v5005
      %v5225 = vadd.f32 %v4604, %v5009
      %v5226 = vadd.f32 %v4606, %v5011
      %v5227 = vadd.f32 %v4608, %v5013
      %v5228 = vadd.f32 %v4610, %v5015
      %v5229 = vadd.f32 %v4614, %v5019
      %v5230 = vadd.f32 %v4616, %v5021
      %v5231 = vadd.f32 %v4618, %v5023
      %v5232 = vadd.f32 %v4620, %v5025
      %v5233 = vadd.f32 %v4624, %v5029
      %v5234 = vadd.f32 %v4626, %v5031
      %v5235 = vadd.f32 %v4628, %v5033
      %v5236 = vadd.f32 %v4630, %v5035
      %v5237 = vadd.f32 %v4634, %v5039
      %v5238 = vadd.f32 %v4636, %v5041
      %v5239 = vadd.f32 %v4638, %v5043
      %v5240 = vadd.f32 %v4640, %v5045
      %v5241 = vadd.f32 %v4644, %v5049
      %v5242 = vadd.f32 %v4646, %v5051
      %v5243 = vadd.f32 %v4648, %v5053
      %v5244 = vadd.f32 %v4650, %v5055
      %v5245 = vadd.f32 %v4654, %v5059
      %v5246 = vadd.f32 %v4656, %v5061
      %v5247 = vadd.f32 %v4658, %v5063
      %v5248 = vadd.f32 %v4660, %v5065
      %v5249 = vadd.f32 %v4664, %v5069
      %v5250 = vadd.f32 %v4666, %v5071
      %v5251 = vadd.f32 %v4668, %v5073
      %v5252 = vadd.f32 %v4670, %v5075
      %v5253 = vadd.f32 %v4674, %v5079
      %v5254 = vadd.f32 %v4676, %v5081
      %v5255 = vadd.f32 %v4678, %v5083
      %v5256 = vadd.f32 %v4680, %v5085
      %v5257 = vadd.f32 %v4684, %v5089
      %v5258 = vadd.f32 %v4686, %v5091
      %v5259 = vadd.f32 %v4688, %v5093
      %v5260 = vadd.f32 %v4690, %v5095
      %v5261 = vadd.f32 %v4694, %v5099
      %v5262 = vadd.f32 %v4696, %v5101
      %v5263 = vadd.f32 %v4698, %v5103
      %v5264 = vadd.f32 %v4700, %v5105
      %v5265 = vadd.f32 %v4704, %v5109
      %v5266 = vadd.f32 %v4706, %v5111
      %v5267 = vadd.f32 %v4708, %v5113
      %v5268 = vadd.f32 %v4710, %v5115
      %v5269 = vadd.f32 %v4714, %v5119
      %v5270 = vadd.f32 %v4716, %v5121
      %v5271 = vadd.f32 %v4718, %v5123
      %v5272 = vadd.f32 %v4720, %v5125
      %v5273 = vadd.f32 %v4724, %v5129
      %v5274 = vadd.f32 %v4726, %v5131
      %v5275 = vadd.f32 %v4728, %v5133
      %v5276 = vadd.f32 %v4730, %v5135
      %v5277 = vadd.f32 %v4734, %v5139
      %v5278 = vadd.f32 %v4736, %v5141
      %v5279 = vadd.f32 %v4738, %v5143
      %v5280 = vadd.f32 %v4740, %v5145
      %v5281 = vadd.f32 %v4744, %v5149
      %v5282 = vadd.f32 %v4746, %v5151
      %v5283 = vadd.f32 %v4748, %v5153
      %v5284 = vadd.f32 %v4750, %v5155
      %v5285 = vmax.f32 %v5157, 0.0
      %v5286 = vmax.f32 %v5158, 0.0
      %v5287 = vmax.f32 %v5159, 0.0
      %v5288 = vmax.f32 %v5160, 0.0
      %v5289 = vmax.f32 %v5161, 0.0
      %v5290 = vmax.f32 %v5162, 0.0
      %v5291 = vmax.f32 %v5163, 0.0
      %v5292 = vmax.f32 %v5164, 0.0
      %v5293 = vmax.f32 %v5165, 0.0
      %v5294 = vmax.f32 %v5166, 0.0
      %v5295 = vmax.f32 %v5167, 0.0
      %v5296 = vmax.f32 %v5168, 0.0
      %v5297 = vmax.f32 %v5169, 0.0
      %v5298 = vmax.f32 %v5170, 0.0
      %v5299 = vmax.f32 %v5171, 0.0
      %v5300 = vmax.f32 %v5172, 0.0
      %v5301 = vmax.f32 %v5173, 0.0
      %v5302 = vmax.f32 %v5174, 0.0
      %v5303 = vmax.f32 %v5175, 0.0
      %v5304 = vmax.f32 %v5176, 0.0
      %v5305 = vmax.f32 %v5177, 0.0
      %v5306 = vmax.f32 %v5178, 0.0
      %v5307 = vmax.f32 %v5179, 0.0
      %v5308 = vmax.f32 %v5180, 0.0
      %v5309 = vmax.f32 %v5181, 0.0
      %v5310 = vmax.f32 %v5182, 0.0
      %v5311 = vmax.f32 %v5183, 0.0
      %v5312 = vmax.f32 %v5184, 0.0
      %v5313 = vmax.f32 %v5185, 0.0
      %v5314 = vmax.f32 %v5186, 0.0
      %v5315 = vmax.f32 %v5187, 0.0
      %v5316 = vmax.f32 %v5188, 0.0
      %v5317 = vmax.f32 %v5189, 0.0
      %v5318 = vmax.f32 %v5190, 0.0
      %v5319 = vmax.f32 %v5191, 0.0
      %v5320 = vmax.f32 %v5192, 0.0
      %v5321 = vmax.f32 %v5193, 0.0
      %v5322 = vmax.f32 %v5194, 0.0
      %v5323 = vmax.f32 %v5195, 0.0
      %v5324 = vmax.f32 %v5196, 0.0
      %v5325 = vmax.f32 %v5197, 0.0
      %v5326 = vmax.f32 %v5198, 0.0
      %v5327 = vmax.f32 %v5199, 0.0
      %v5328 = vmax.f32 %v5200, 0.0
      %v5329 = vmax.f32 %v5201, 0.0
      %v5330 = vmax.f32 %v5202, 0.0
      %v5331 = vmax.f32 %v5203, 0.0
      %v5332 = vmax.f32 %v5204, 0.0
      %v5333 = vmax.f32 %v5205, 0.0
      %v5334 = vmax.f32 %v5206, 0.0
      %v5335 = vmax.f32 %v5207, 0.0
      %v5336 = vmax.f32 %v5208, 0.0
      %v5337 = vmax.f32 %v5209, 0.0
      %v5338 = vmax.f32 %v5210, 0.0
      %v5339 = vmax.f32 %v5211, 0.0
      %v5340 = vmax.f32 %v5212, 0.0
      %v5341 = vmax.f32 %v5213, 0.0
      %v5342 = vmax.f32 %v5214, 0.0
      %v5343 = vmax.f32 %v5215, 0.0
      %v5344 = vmax.f32 %v5216, 0.0
      %v5345 = vmax.f32 %v5217, 0.0
      %v5346 = vmax.f32 %v5218, 0.0
      %v5347 = vmax.f32 %v5219, 0.0
      %v5348 = vmax.f32 %v5220, 0.0
      %v5349 = vmax.f32 %v5221, 0.0
      %v5350 = vmax.f32 %v5222, 0.0
      %v5351 = vmax.f32 %v5223, 0.0
      %v5352 = vmax.f32 %v5224, 0.0
      %v5353 = vmax.f32 %v5225, 0.0
      %v5354 = vmax.f32 %v5226, 0.0
      %v5355 = vmax.f32 %v5227, 0.0
      %v5356 = vmax.f32 %v5228, 0.0
      %v5357 = vmax.f32 %v5229, 0.0
      %v5358 = vmax.f32 %v5230, 0.0
      %v5359 = vmax.f32 %v5231, 0.0
      %v5360 = vmax.f32 %v5232, 0.0
      %v5361 = vmax.f32 %v5233, 0.0
      %v5362 = vmax.f32 %v5234, 0.0
      %v5363 = vmax.f32 %v5235, 0.0
      %v5364 = vmax.f32 %v5236, 0.0
      %v5365 = vmax.f32 %v5237, 0.0
      %v5366 = vmax.f32 %v5238, 0.0
      %v5367 = vmax.f32 %v5239, 0.0
      %v5368 = vmax.f32 %v5240, 0.0
      %v5369 = vmax.f32 %v5241, 0.0
      %v5370 = vmax.f32 %v5242, 0.0
      %v5371 = vmax.f32 %v5243, 0.0
      %v5372 = vmax.f32 %v5244, 0.0
      %v5373 = vmax.f32 %v5245, 0.0
      %v5374 = vmax.f32 %v5246, 0.0
      %v5375 = vmax.f32 %v5247, 0.0
      %v5376 = vmax.f32 %v5248, 0.0
      %v5377 = vmax.f32 %v5249, 0.0
      %v5378 = vmax.f32 %v5250, 0.0
      %v5379 = vmax.f32 %v5251, 0.0
      %v5380 = vmax.f32 %v5252, 0.0
      %v5381 = vmax.f32 %v5253, 0.0
      %v5382 = vmax.f32 %v5254, 0.0
      %v5383 = vmax.f32 %v5255, 0.0
      %v5384 = vmax.f32 %v5256, 0.0
      %v5385 = vmax.f32 %v5257, 0.0
      %v5386 = vmax.f32 %v5258, 0.0
      %v5387 = vmax.f32 %v5259, 0.0
      %v5388 = vmax.f32 %v5260, 0.0
      %v5389 = vmax.f32 %v5261, 0.0
      %v5390 = vmax.f32 %v5262, 0.0
      %v5391 = vmax.f32 %v5263, 0.0
      %v5392 = vmax.f32 %v5264, 0.0
      %v5393 = vmax.f32 %v5265, 0.0
      %v5394 = vmax.f32 %v5266, 0.0
      %v5395 = vmax.f32 %v5267, 0.0
      %v5396 = vmax.f32 %v5268, 0.0
      %v5397 = vmax.f32 %v5269, 0.0
      %v5398 = vmax.f32 %v5270, 0.0
      %v5399 = vmax.f32 %v5271, 0.0
      %v5400 = vmax.f32 %v5272, 0.0
      %v5401 = vmax.f32 %v5273, 0.0
      %v5402 = vmax.f32 %v5274, 0.0
      %v5403 = vmax.f32 %v5275, 0.0
      %v5404 = vmax.f32 %v5276, 0.0
      %v5405 = vmax.f32 %v5277, 0.0
      %v5406 = vmax.f32 %v5278, 0.0
      %v5407 = vmax.f32 %v5279, 0.0
      %v5408 = vmax.f32 %v5280, 0.0
      %v5409 = vmax.f32 %v5281, 0.0
      %v5410 = vmax.f32 %v5282, 0.0
      %v5411 = vmax.f32 %v5283, 0.0
      %v5412 = vmax.f32 %v5284, 0.0
      %v5413 = vpack.c.bf16 %v5287, %v5285
      %v5414 = vpack.c.bf16 %v5288, %v5286
      %v5415 = vpack.c.bf16 %v5291, %v5289
      %v5416 = vpack.c.bf16 %v5292, %v5290
      %v5417 = vpack.c.bf16 %v5295, %v5293
      %v5418 = vpack.c.bf16 %v5296, %v5294
      %v5419 = vpack.c.bf16 %v5299, %v5297
      %v5420 = vpack.c.bf16 %v5300, %v5298
      %v5421 = vpack.c.bf16 %v5303, %v5301
      %v5422 = vpack.c.bf16 %v5304, %v5302
      %v5423 = vpack.c.bf16 %v5307, %v5305
      %v5424 = vpack.c.bf16 %v5308, %v5306
      %v5425 = vpack.c.bf16 %v5311, %v5309
      %v5426 = vpack.c.bf16 %v5312, %v5310
      %v5427 = vpack.c.bf16 %v5315, %v5313
      %v5428 = vpack.c.bf16 %v5316, %v5314
      %v5429 = vpack.c.bf16 %v5319, %v5317
      %v5430 = vpack.c.bf16 %v5320, %v5318
      %v5431 = vpack.c.bf16 %v5323, %v5321
      %v5432 = vpack.c.bf16 %v5324, %v5322
      %v5433 = vpack.c.bf16 %v5327, %v5325
      %v5434 = vpack.c.bf16 %v5328, %v5326
      %v5435 = vpack.c.bf16 %v5331, %v5329
      %v5436 = vpack.c.bf16 %v5332, %v5330
      %v5437 = vpack.c.bf16 %v5335, %v5333
      %v5438 = vpack.c.bf16 %v5336, %v5334
      %v5439 = vpack.c.bf16 %v5339, %v5337
      %v5440 = vpack.c.bf16 %v5340, %v5338
      %v5441 = vpack.c.bf16 %v5343, %v5341
      %v5442 = vpack.c.bf16 %v5344, %v5342
      %v5443 = vpack.c.bf16 %v5347, %v5345
      %v5444 = vpack.c.bf16 %v5348, %v5346
      %v5445 = vpack.c.bf16 %v5351, %v5349
      %v5446 = vpack.c.bf16 %v5352, %v5350
      %v5447 = vpack.c.bf16 %v5355, %v5353
      %v5448 = vpack.c.bf16 %v5356, %v5354
      %v5449 = vpack.c.bf16 %v5359, %v5357
      %v5450 = vpack.c.bf16 %v5360, %v5358
      %v5451 = vpack.c.bf16 %v5363, %v5361
      %v5452 = vpack.c.bf16 %v5364, %v5362
      %v5453 = vpack.c.bf16 %v5367, %v5365
      %v5454 = vpack.c.bf16 %v5368, %v5366
      %v5455 = vpack.c.bf16 %v5371, %v5369
      %v5456 = vpack.c.bf16 %v5372, %v5370
      %v5457 = vpack.c.bf16 %v5375, %v5373
      %v5458 = vpack.c.bf16 %v5376, %v5374
      %v5459 = vpack.c.bf16 %v5379, %v5377
      %v5460 = vpack.c.bf16 %v5380, %v5378
      %v5461 = vpack.c.bf16 %v5383, %v5381
      %v5462 = vpack.c.bf16 %v5384, %v5382
      %v5463 = vpack.c.bf16 %v5387, %v5385
      %v5464 = vpack.c.bf16 %v5388, %v5386
      %v5465 = vpack.c.bf16 %v5391, %v5389
      %v5466 = vpack.c.bf16 %v5392, %v5390
      %v5467 = vpack.c.bf16 %v5395, %v5393
      %v5468 = vpack.c.bf16 %v5396, %v5394
      %v5469 = vpack.c.bf16 %v5399, %v5397
      %v5470 = vpack.c.bf16 %v5400, %v5398
      %v5471 = vpack.c.bf16 %v5403, %v5401
      %v5472 = vpack.c.bf16 %v5404, %v5402
      %v5473 = vpack.c.bf16 %v5407, %v5405
      %v5474 = vpack.c.bf16 %v5408, %v5406
      %v5475 = vpack.c.bf16 %v5411, %v5409
      %v5476 = vpack.c.bf16 %v5412, %v5410
      %s5477 = scalar_lea.vmem %s2, 1280
      %v5478 = vld [vmem:[%s5477] sm:$0xff]
      %v5479 = vld [vmem:[%s5477 + $0x8] sm:$0xff]
      %v5480 = vld [vmem:[%s5477 + $0x10] sm:$0xff]
      %v5481 = vld [vmem:[%s5477 + $0x18] sm:$0xff]
      %v5482 = vld [vmem:[%s5477 + $0x20] sm:$0xff]
      %v5483 = vld [vmem:[%s5477 + $0x28] sm:$0xff]
      %v5484 = vld [vmem:[%s5477 + $0x30] sm:$0xff]
      %v5485 = vld [vmem:[%s5477 + $0x38] sm:$0xff]
      %v5486 = vld [vmem:[%s5477 + $0x40] sm:$0xff]
      %v5487 = vld [vmem:[%s5477 + $0x48] sm:$0xff]
      %v5488 = vld [vmem:[%s5477 + $0x50] sm:$0xff]
      %v5489 = vld [vmem:[%s5477 + $0x58] sm:$0xff]
      %v5490 = vld [vmem:[%s5477 + $0x60] sm:$0xff]
      %v5491 = vld [vmem:[%s5477 + $0x68] sm:$0xff]
      %v5492 = vld [vmem:[%s5477 + $0x70] sm:$0xff]
      %v5493 = vld [vmem:[%s5477 + $0x78] sm:$0xff]
      %v5494 = vld [vmem:[%s5477 + $0x80] sm:$0xff]
      %v5495 = vld [vmem:[%s5477 + $0x88] sm:$0xff]
      %v5496 = vld [vmem:[%s5477 + $0x90] sm:$0xff]
      %v5497 = vld [vmem:[%s5477 + $0x98] sm:$0xff]
      %v5498 = vld [vmem:[%s5477 + $0xa0] sm:$0xff]
      %v5499 = vld [vmem:[%s5477 + $0xa8] sm:$0xff]
      %v5500 = vld [vmem:[%s5477 + $0xb0] sm:$0xff]
      %v5501 = vld [vmem:[%s5477 + $0xb8] sm:$0xff]
      %v5502 = vld [vmem:[%s5477 + $0xc0] sm:$0xff]
      %v5503 = vld [vmem:[%s5477 + $0xc8] sm:$0xff]
      %v5504 = vld [vmem:[%s5477 + $0xd0] sm:$0xff]
      %v5505 = vld [vmem:[%s5477 + $0xd8] sm:$0xff]
      %v5506 = vld [vmem:[%s5477 + $0xe0] sm:$0xff]
      %v5507 = vld [vmem:[%s5477 + $0xe8] sm:$0xff]
      %v5508 = vld [vmem:[%s5477 + $0xf0] sm:$0xff]
      %v5509 = vld [vmem:[%s5477 + $0xf8] sm:$0xff]
      %v5510 = vlaneseq
      %v5511 = vshrl.u32 %v5510, 7
      %v5512 = vsub.s32 6, %v5511
      %v5513 = vrot.slane %v347, %v5512
      %v5514 = vlaneseq
      %v5515 = vshrl.u32 %v5514, 7
      %v5516 = vsub.s32 6, %v5515
      %v5517 = vrot.slane %v348, %v5516
      %v5550 = vunpack.c.l.b16 %v5478
      %v5551 = vunpack.c.h.b16 %v5478
      %v5552 = vunpack.c.l.b16 %v5479
      %v5553 = vunpack.c.h.b16 %v5479
      %v5554 = vunpack.c.l.b16 %v5480
      %v5555 = vunpack.c.h.b16 %v5480
      %v5556 = vunpack.c.l.b16 %v5481
      %v5557 = vunpack.c.h.b16 %v5481
      %v5558 = vunpack.c.l.b16 %v5482
      %v5559 = vunpack.c.h.b16 %v5482
      %v5560 = vunpack.c.l.b16 %v5483
      %v5561 = vunpack.c.h.b16 %v5483
      %v5562 = vunpack.c.l.b16 %v5484
      %v5563 = vunpack.c.h.b16 %v5484
      %v5564 = vunpack.c.l.b16 %v5485
      %v5565 = vunpack.c.h.b16 %v5485
      %v5566 = vunpack.c.l.b16 %v5486
      %v5567 = vunpack.c.h.b16 %v5486
      %v5568 = vunpack.c.l.b16 %v5487
      %v5569 = vunpack.c.h.b16 %v5487
      %v5570 = vunpack.c.l.b16 %v5488
      %v5571 = vunpack.c.h.b16 %v5488
      %v5572 = vunpack.c.l.b16 %v5489
      %v5573 = vunpack.c.h.b16 %v5489
      %v5574 = vunpack.c.l.b16 %v5490
      %v5575 = vunpack.c.h.b16 %v5490
      %v5576 = vunpack.c.l.b16 %v5491
      %v5577 = vunpack.c.h.b16 %v5491
      %v5578 = vunpack.c.l.b16 %v5492
      %v5579 = vunpack.c.h.b16 %v5492
      %v5580 = vunpack.c.l.b16 %v5493
      %v5581 = vunpack.c.h.b16 %v5493
      %v5582 = vunpack.c.l.b16 %v5494
      %v5583 = vunpack.c.h.b16 %v5494
      %v5584 = vunpack.c.l.b16 %v5495
      %v5585 = vunpack.c.h.b16 %v5495
      %v5586 = vunpack.c.l.b16 %v5496
      %v5587 = vunpack.c.h.b16 %v5496
      %v5588 = vunpack.c.l.b16 %v5497
      %v5589 = vunpack.c.h.b16 %v5497
      %v5590 = vunpack.c.l.b16 %v5498
      %v5591 = vunpack.c.h.b16 %v5498
      %v5592 = vunpack.c.l.b16 %v5499
      %v5593 = vunpack.c.h.b16 %v5499
      %v5594 = vunpack.c.l.b16 %v5500
      %v5595 = vunpack.c.h.b16 %v5500
      %v5596 = vunpack.c.l.b16 %v5501
      %v5597 = vunpack.c.h.b16 %v5501
      %v5598 = vunpack.c.l.b16 %v5502
      %v5599 = vunpack.c.h.b16 %v5502
      %v5600 = vunpack.c.l.b16 %v5503
      %v5601 = vunpack.c.h.b16 %v5503
      %v5602 = vunpack.c.l.b16 %v5504
      %v5603 = vunpack.c.h.b16 %v5504
      %v5604 = vunpack.c.l.b16 %v5505
      %v5605 = vunpack.c.h.b16 %v5505
      %v5606 = vunpack.c.l.b16 %v5506
      %v5607 = vunpack.c.h.b16 %v5506
      %v5608 = vunpack.c.l.b16 %v5507
      %v5609 = vunpack.c.h.b16 %v5507
      %v5610 = vunpack.c.l.b16 %v5508
      %v5611 = vunpack.c.h.b16 %v5508
      %v5612 = vunpack.c.l.b16 %v5509
      %v5613 = vunpack.c.h.b16 %v5509
      %v5614 = vpack.c.b16 %v5552, %v5550
      %v5615 = vpack.c.b16 %v5553, %v5551
      %v5616 = vpack.c.b16 %v5556, %v5554
      %v5617 = vpack.c.b16 %v5557, %v5555
      %v5618 = vpack.c.b16 %v5560, %v5558
      %v5619 = vpack.c.b16 %v5561, %v5559
      %v5620 = vpack.c.b16 %v5564, %v5562
      %v5621 = vpack.c.b16 %v5565, %v5563
      %v5622 = vpack.c.b16 %v5568, %v5566
      %v5623 = vpack.c.b16 %v5569, %v5567
      %v5624 = vpack.c.b16 %v5572, %v5570
      %v5625 = vpack.c.b16 %v5573, %v5571
      %v5626 = vpack.c.b16 %v5576, %v5574
      %v5627 = vpack.c.b16 %v5577, %v5575
      %v5628 = vpack.c.b16 %v5580, %v5578
      %v5629 = vpack.c.b16 %v5581, %v5579
      %v5630 = vpack.c.b16 %v5584, %v5582
      %v5631 = vpack.c.b16 %v5585, %v5583
      %v5632 = vpack.c.b16 %v5588, %v5586
      %v5633 = vpack.c.b16 %v5589, %v5587
      %v5634 = vpack.c.b16 %v5592, %v5590
      %v5635 = vpack.c.b16 %v5593, %v5591
      %v5636 = vpack.c.b16 %v5596, %v5594
      %v5637 = vpack.c.b16 %v5597, %v5595
      %v5638 = vpack.c.b16 %v5600, %v5598
      %v5639 = vpack.c.b16 %v5601, %v5599
      %v5640 = vpack.c.b16 %v5604, %v5602
      %v5641 = vpack.c.b16 %v5605, %v5603
      %v5642 = vpack.c.b16 %v5608, %v5606
      %v5643 = vpack.c.b16 %v5609, %v5607
      %v5644 = vpack.c.b16 %v5612, %v5610
      %v5645 = vpack.c.b16 %v5613, %v5611
      %5678 = vmatprep.subr.bf16.mxu0 %v5615
      %5679 = vmatpush1.bf16.msra.mxu0 %v5614
      %5680 = vmatprep.subr.bf16.mxu0 %v5617
      %5681 = vmatpush1.bf16.msra.mxu0 %v5616
      %5682 = vmatprep.subr.bf16.mxu0 %v5619
      %5683 = vmatpush1.bf16.msra.mxu0 %v5618
      %5684 = vmatprep.subr.bf16.mxu0 %v5621
      %5685 = vmatpush1.bf16.msra.mxu0 %v5620
      %5686 = vmatprep.subr.bf16.mxu0 %v5623
      %5687 = vmatpush1.bf16.msra.mxu0 %v5622
      %5688 = vmatprep.subr.bf16.mxu0 %v5625
      %5689 = vmatpush1.bf16.msra.mxu0 %v5624
      %5690 = vmatprep.subr.bf16.mxu0 %v5627
      %5691 = vmatpush1.bf16.msra.mxu0 %v5626
      %5692 = vmatprep.subr.bf16.mxu0 %v5629
      %5693 = vmatpush1.bf16.msra.mxu0 %v5628
      %5694 = vmatprep.subr.bf16.mxu0 %v5631
      %5695 = vmatpush1.bf16.msra.mxu0 %v5630
      %5696 = vmatprep.subr.bf16.mxu0 %v5633
      %5697 = vmatpush1.bf16.msra.mxu0 %v5632
      %5698 = vmatprep.subr.bf16.mxu0 %v5635
      %5699 = vmatpush1.bf16.msra.mxu0 %v5634
      %5700 = vmatprep.subr.bf16.mxu0 %v5637
      %5701 = vmatpush1.bf16.msra.mxu0 %v5636
      %5702 = vmatprep.subr.bf16.mxu0 %v5639
      %5703 = vmatpush1.bf16.msra.mxu0 %v5638
      %5704 = vmatprep.subr.bf16.mxu0 %v5641
      %5705 = vmatpush1.bf16.msra.mxu0 %v5640
      %5706 = vmatprep.subr.bf16.mxu0 %v5643
      %5707 = vmatpush1.bf16.msra.mxu0 %v5642
      %5708 = vmatprep.subr.bf16.mxu0 %v5645
      %5709 = vmatpush1.bf16.msra.mxu0 %v5644
      %5710 = vmatprep.mubr.bf16.mxu0 %v5414
      %5711 = vmatmul.mubr.bf16.gmra.mrb[0].mxu0 %v5413
      %v5712 = vpop.f32.mrb[0].mxu0
      %v5713 = vadd.f32 %v5513, %v5712
      %v5714 = vpop.f32.mrb[0].mxu0
      %v5715 = vadd.f32 %v5517, %v5714
      %v5716 = vpop.f32.mrb[0].mxu0
      %v5717 = vadd.f32 %v5513, %v5716
      %v5718 = vpop.f32.mrb[0].mxu0
      %v5719 = vadd.f32 %v5517, %v5718
      %5720 = vmatprep.mubr.bf16.mxu0 %v5416
      %5721 = vmatmul.mubr.bf16.gmra.mrb[0].mxu0 %v5415
      %v5722 = vpop.f32.mrb[0].mxu0
      %v5723 = vadd.f32 %v5513, %v5722
      %v5724 = vpop.f32.mrb[0].mxu0
      %v5725 = vadd.f32 %v5517, %v5724
      %v5726 = vpop.f32.mrb[0].mxu0
      %v5727 = vadd.f32 %v5513, %v5726
      %v5728 = vpop.f32.mrb[0].mxu0
      %v5729 = vadd.f32 %v5517, %v5728
      %5730 = vmatprep.mubr.bf16.mxu0 %v5418
      %5731 = vmatmul.mubr.bf16.gmra.mrb[0].mxu0 %v5417
      %v5732 = vpop.f32.mrb[0].mxu0
      %v5733 = vadd.f32 %v5513, %v5732
      %v5734 = vpop.f32.mrb[0].mxu0
      %v5735 = vadd.f32 %v5517, %v5734
      %v5736 = vpop.f32.mrb[0].mxu0
      %v5737 = vadd.f32 %v5513, %v5736
      %v5738 = vpop.f32.mrb[0].mxu0
      %v5739 = vadd.f32 %v5517, %v5738
      %5740 = vmatprep.mubr.bf16.mxu0 %v5420
      %5741 = vmatmul.mubr.bf16.gmra.mrb[0].mxu0 %v5419
      %v5742 = vpop.f32.mrb[0].mxu0
      %v5743 = vadd.f32 %v5513, %v5742
      %v5744 = vpop.f32.mrb[0].mxu0
      %v5745 = vadd.f32 %v5517, %v5744
      %v5746 = vpop.f32.mrb[0].mxu0
      %v5747 = vadd.f32 %v5513, %v5746
      %v5748 = vpop.f32.mrb[0].mxu0
      %v5749 = vadd.f32 %v5517, %v5748
      %5750 = vmatprep.mubr.bf16.mxu0 %v5422
      %5751 = vmatmul.mubr.bf16.gmra.mrb[0].mxu0 %v5421
      %v5752 = vpop.f32.mrb[0].mxu0
      %v5753 = vadd.f32 %v5513, %v5752
      %v5754 = vpop.f32.mrb[0].mxu0
      %v5755 = vadd.f32 %v5517, %v5754
      %v5756 = vpop.f32.mrb[0].mxu0
      %v5757 = vadd.f32 %v5513, %v5756
      %v5758 = vpop.f32.mrb[0].mxu0
      %v5759 = vadd.f32 %v5517, %v5758
      %5760 = vmatprep.mubr.bf16.mxu0 %v5424
      %5761 = vmatmul.mubr.bf16.gmra.mrb[0].mxu0 %v5423
      %v5762 = vpop.f32.mrb[0].mxu0
      %v5763 = vadd.f32 %v5513, %v5762
      %v5764 = vpop.f32.mrb[0].mxu0
      %v5765 = vadd.f32 %v5517, %v5764
      %v5766 = vpop.f32.mrb[0].mxu0
      %v5767 = vadd.f32 %v5513, %v5766
      %v5768 = vpop.f32.mrb[0].mxu0
      %v5769 = vadd.f32 %v5517, %v5768
      %5770 = vmatprep.mubr.bf16.mxu0 %v5426
      %5771 = vmatmul.mubr.bf16.gmra.mrb[0].mxu0 %v5425
      %v5772 = vpop.f32.mrb[0].mxu0
      %v5773 = vadd.f32 %v5513, %v5772
      %v5774 = vpop.f32.mrb[0].mxu0
      %v5775 = vadd.f32 %v5517, %v5774
      %v5776 = vpop.f32.mrb[0].mxu0
      %v5777 = vadd.f32 %v5513, %v5776
      %v5778 = vpop.f32.mrb[0].mxu0
      %v5779 = vadd.f32 %v5517, %v5778
      %5780 = vmatprep.mubr.bf16.mxu0 %v5428
      %5781 = vmatmul.mubr.bf16.gmra.mrb[0].mxu0 %v5427
      %v5782 = vpop.f32.mrb[0].mxu0
      %v5783 = vadd.f32 %v5513, %v5782
      %v5784 = vpop.f32.mrb[0].mxu0
      %v5785 = vadd.f32 %v5517, %v5784
      %v5786 = vpop.f32.mrb[0].mxu0
      %v5787 = vadd.f32 %v5513, %v5786
      %v5788 = vpop.f32.mrb[0].mxu0
      %v5789 = vadd.f32 %v5517, %v5788
      %5790 = vmatprep.mubr.bf16.mxu0 %v5430
      %5791 = vmatmul.mubr.bf16.gmra.mrb[0].mxu0 %v5429
      %v5792 = vpop.f32.mrb[0].mxu0
      %v5793 = vadd.f32 %v5513, %v5792
      %v5794 = vpop.f32.mrb[0].mxu0
      %v5795 = vadd.f32 %v5517, %v5794
      %v5796 = vpop.f32.mrb[0].mxu0
      %v5797 = vadd.f32 %v5513, %v5796
      %v5798 = vpop.f32.mrb[0].mxu0
      %v5799 = vadd.f32 %v5517, %v5798
      %5800 = vmatprep.mubr.bf16.mxu0 %v5432
      %5801 = vmatmul.mubr.bf16.gmra.mrb[0].mxu0 %v5431
      %v5802 = vpop.f32.mrb[0].mxu0
      %v5803 = vadd.f32 %v5513, %v5802
      %v5804 = vpop.f32.mrb[0].mxu0
      %v5805 = vadd.f32 %v5517, %v5804
      %v5806 = vpop.f32.mrb[0].mxu0
      %v5807 = vadd.f32 %v5513, %v5806
      %v5808 = vpop.f32.mrb[0].mxu0
      %v5809 = vadd.f32 %v5517, %v5808
      %5810 = vmatprep.mubr.bf16.mxu0 %v5434
      %5811 = vmatmul.mubr.bf16.gmra.mrb[0].mxu0 %v5433
      %v5812 = vpop.f32.mrb[0].mxu0
      %v5813 = vadd.f32 %v5513, %v5812
      %v5814 = vpop.f32.mrb[0].mxu0
      %v5815 = vadd.f32 %v5517, %v5814
      %v5816 = vpop.f32.mrb[0].mxu0
      %v5817 = vadd.f32 %v5513, %v5816
      %v5818 = vpop.f32.mrb[0].mxu0
      %v5819 = vadd.f32 %v5517, %v5818
      %5820 = vmatprep.mubr.bf16.mxu0 %v5436
      %5821 = vmatmul.mubr.bf16.gmra.mrb[0].mxu0 %v5435
      %v5822 = vpop.f32.mrb[0].mxu0
      %v5823 = vadd.f32 %v5513, %v5822
      %v5824 = vpop.f32.mrb[0].mxu0
      %v5825 = vadd.f32 %v5517, %v5824
      %v5826 = vpop.f32.mrb[0].mxu0
      %v5827 = vadd.f32 %v5513, %v5826
      %v5828 = vpop.f32.mrb[0].mxu0
      %v5829 = vadd.f32 %v5517, %v5828
      %5830 = vmatprep.mubr.bf16.mxu0 %v5438
      %5831 = vmatmul.mubr.bf16.gmra.mrb[0].mxu0 %v5437
      %v5832 = vpop.f32.mrb[0].mxu0
      %v5833 = vadd.f32 %v5513, %v5832
      %v5834 = vpop.f32.mrb[0].mxu0
      %v5835 = vadd.f32 %v5517, %v5834
      %v5836 = vpop.f32.mrb[0].mxu0
      %v5837 = vadd.f32 %v5513, %v5836
      %v5838 = vpop.f32.mrb[0].mxu0
      %v5839 = vadd.f32 %v5517, %v5838
      %5840 = vmatprep.mubr.bf16.mxu0 %v5440
      %5841 = vmatmul.mubr.bf16.gmra.mrb[0].mxu0 %v5439
      %v5842 = vpop.f32.mrb[0].mxu0
      %v5843 = vadd.f32 %v5513, %v5842
      %v5844 = vpop.f32.mrb[0].mxu0
      %v5845 = vadd.f32 %v5517, %v5844
      %v5846 = vpop.f32.mrb[0].mxu0
      %v5847 = vadd.f32 %v5513, %v5846
      %v5848 = vpop.f32.mrb[0].mxu0
      %v5849 = vadd.f32 %v5517, %v5848
      %5850 = vmatprep.mubr.bf16.mxu0 %v5442
      %5851 = vmatmul.mubr.bf16.gmra.mrb[0].mxu0 %v5441
      %v5852 = vpop.f32.mrb[0].mxu0
      %v5853 = vadd.f32 %v5513, %v5852
      %v5854 = vpop.f32.mrb[0].mxu0
      %v5855 = vadd.f32 %v5517, %v5854
      %v5856 = vpop.f32.mrb[0].mxu0
      %v5857 = vadd.f32 %v5513, %v5856
      %v5858 = vpop.f32.mrb[0].mxu0
      %v5859 = vadd.f32 %v5517, %v5858
      %5860 = vmatprep.mubr.bf16.mxu0 %v5444
      %5861 = vmatmul.mubr.bf16.gmra.mrb[0].mxu0 %v5443
      %v5862 = vpop.f32.mrb[0].mxu0
      %v5863 = vadd.f32 %v5513, %v5862
      %v5864 = vpop.f32.mrb[0].mxu0
      %v5865 = vadd.f32 %v5517, %v5864
      %v5866 = vpop.f32.mrb[0].mxu0
      %v5867 = vadd.f32 %v5513, %v5866
      %v5868 = vpop.f32.mrb[0].mxu0
      %v5869 = vadd.f32 %v5517, %v5868
      %5870 = vmatprep.mubr.bf16.mxu0 %v5446
      %5871 = vmatmul.mubr.bf16.gmra.mrb[0].mxu0 %v5445
      %v5872 = vpop.f32.mrb[0].mxu0
      %v5873 = vadd.f32 %v5513, %v5872
      %v5874 = vpop.f32.mrb[0].mxu0
      %v5875 = vadd.f32 %v5517, %v5874
      %v5876 = vpop.f32.mrb[0].mxu0
      %v5877 = vadd.f32 %v5513, %v5876
      %v5878 = vpop.f32.mrb[0].mxu0
      %v5879 = vadd.f32 %v5517, %v5878
      %5880 = vmatprep.mubr.bf16.mxu0 %v5448
      %5881 = vmatmul.mubr.bf16.gmra.mrb[0].mxu0 %v5447
      %v5882 = vpop.f32.mrb[0].mxu0
      %v5883 = vadd.f32 %v5513, %v5882
      %v5884 = vpop.f32.mrb[0].mxu0
      %v5885 = vadd.f32 %v5517, %v5884
      %v5886 = vpop.f32.mrb[0].mxu0
      %v5887 = vadd.f32 %v5513, %v5886
      %v5888 = vpop.f32.mrb[0].mxu0
      %v5889 = vadd.f32 %v5517, %v5888
      %5890 = vmatprep.mubr.bf16.mxu0 %v5450
      %5891 = vmatmul.mubr.bf16.gmra.mrb[0].mxu0 %v5449
      %v5892 = vpop.f32.mrb[0].mxu0
      %v5893 = vadd.f32 %v5513, %v5892
      %v5894 = vpop.f32.mrb[0].mxu0
      %v5895 = vadd.f32 %v5517, %v5894
      %v5896 = vpop.f32.mrb[0].mxu0
      %v5897 = vadd.f32 %v5513, %v5896
      %v5898 = vpop.f32.mrb[0].mxu0
      %v5899 = vadd.f32 %v5517, %v5898
      %5900 = vmatprep.mubr.bf16.mxu0 %v5452
      %5901 = vmatmul.mubr.bf16.gmra.mrb[0].mxu0 %v5451
      %v5902 = vpop.f32.mrb[0].mxu0
      %v5903 = vadd.f32 %v5513, %v5902
      %v5904 = vpop.f32.mrb[0].mxu0
      %v5905 = vadd.f32 %v5517, %v5904
      %v5906 = vpop.f32.mrb[0].mxu0
      %v5907 = vadd.f32 %v5513, %v5906
      %v5908 = vpop.f32.mrb[0].mxu0
      %v5909 = vadd.f32 %v5517, %v5908
      %5910 = vmatprep.mubr.bf16.mxu0 %v5454
      %5911 = vmatmul.mubr.bf16.gmra.mrb[0].mxu0 %v5453
      %v5912 = vpop.f32.mrb[0].mxu0
      %v5913 = vadd.f32 %v5513, %v5912
      %v5914 = vpop.f32.mrb[0].mxu0
      %v5915 = vadd.f32 %v5517, %v5914
      %v5916 = vpop.f32.mrb[0].mxu0
      %v5917 = vadd.f32 %v5513, %v5916
      %v5918 = vpop.f32.mrb[0].mxu0
      %v5919 = vadd.f32 %v5517, %v5918
      %5920 = vmatprep.mubr.bf16.mxu0 %v5456
      %5921 = vmatmul.mubr.bf16.gmra.mrb[0].mxu0 %v5455
      %v5922 = vpop.f32.mrb[0].mxu0
      %v5923 = vadd.f32 %v5513, %v5922
      %v5924 = vpop.f32.mrb[0].mxu0
      %v5925 = vadd.f32 %v5517, %v5924
      %v5926 = vpop.f32.mrb[0].mxu0
      %v5927 = vadd.f32 %v5513, %v5926
      %v5928 = vpop.f32.mrb[0].mxu0
      %v5929 = vadd.f32 %v5517, %v5928
      %5930 = vmatprep.mubr.bf16.mxu0 %v5458
      %5931 = vmatmul.mubr.bf16.gmra.mrb[0].mxu0 %v5457
      %v5932 = vpop.f32.mrb[0].mxu0
      %v5933 = vadd.f32 %v5513, %v5932
      %v5934 = vpop.f32.mrb[0].mxu0
      %v5935 = vadd.f32 %v5517, %v5934
      %v5936 = vpop.f32.mrb[0].mxu0
      %v5937 = vadd.f32 %v5513, %v5936
      %v5938 = vpop.f32.mrb[0].mxu0
      %v5939 = vadd.f32 %v5517, %v5938
      %5940 = vmatprep.mubr.bf16.mxu0 %v5460
      %5941 = vmatmul.mubr.bf16.gmra.mrb[0].mxu0 %v5459
      %v5942 = vpop.f32.mrb[0].mxu0
      %v5943 = vadd.f32 %v5513, %v5942
      %v5944 = vpop.f32.mrb[0].mxu0
      %v5945 = vadd.f32 %v5517, %v5944
      %v5946 = vpop.f32.mrb[0].mxu0
      %v5947 = vadd.f32 %v5513, %v5946
      %v5948 = vpop.f32.mrb[0].mxu0
      %v5949 = vadd.f32 %v5517, %v5948
      %5950 = vmatprep.mubr.bf16.mxu0 %v5462
      %5951 = vmatmul.mubr.bf16.gmra.mrb[0].mxu0 %v5461
      %v5952 = vpop.f32.mrb[0].mxu0
      %v5953 = vadd.f32 %v5513, %v5952
      %v5954 = vpop.f32.mrb[0].mxu0
      %v5955 = vadd.f32 %v5517, %v5954
      %v5956 = vpop.f32.mrb[0].mxu0
      %v5957 = vadd.f32 %v5513, %v5956
      %v5958 = vpop.f32.mrb[0].mxu0
      %v5959 = vadd.f32 %v5517, %v5958
      %5960 = vmatprep.mubr.bf16.mxu0 %v5464
      %5961 = vmatmul.mubr.bf16.gmra.mrb[0].mxu0 %v5463
      %v5962 = vpop.f32.mrb[0].mxu0
      %v5963 = vadd.f32 %v5513, %v5962
      %v5964 = vpop.f32.mrb[0].mxu0
      %v5965 = vadd.f32 %v5517, %v5964
      %v5966 = vpop.f32.mrb[0].mxu0
      %v5967 = vadd.f32 %v5513, %v5966
      %v5968 = vpop.f32.mrb[0].mxu0
      %v5969 = vadd.f32 %v5517, %v5968
      %5970 = vmatprep.mubr.bf16.mxu0 %v5466
      %5971 = vmatmul.mubr.bf16.gmra.mrb[0].mxu0 %v5465
      %v5972 = vpop.f32.mrb[0].mxu0
      %v5973 = vadd.f32 %v5513, %v5972
      %v5974 = vpop.f32.mrb[0].mxu0
      %v5975 = vadd.f32 %v5517, %v5974
      %v5976 = vpop.f32.mrb[0].mxu0
      %v5977 = vadd.f32 %v5513, %v5976
      %v5978 = vpop.f32.mrb[0].mxu0
      %v5979 = vadd.f32 %v5517, %v5978
      %5980 = vmatprep.mubr.bf16.mxu0 %v5468
      %5981 = vmatmul.mubr.bf16.gmra.mrb[0].mxu0 %v5467
      %v5982 = vpop.f32.mrb[0].mxu0
      %v5983 = vadd.f32 %v5513, %v5982
      %v5984 = vpop.f32.mrb[0].mxu0
      %v5985 = vadd.f32 %v5517, %v5984
      %v5986 = vpop.f32.mrb[0].mxu0
      %v5987 = vadd.f32 %v5513, %v5986
      %v5988 = vpop.f32.mrb[0].mxu0
      %v5989 = vadd.f32 %v5517, %v5988
      %5990 = vmatprep.mubr.bf16.mxu0 %v5470
      %5991 = vmatmul.mubr.bf16.gmra.mrb[0].mxu0 %v5469
      %v5992 = vpop.f32.mrb[0].mxu0
      %v5993 = vadd.f32 %v5513, %v5992
      %v5994 = vpop.f32.mrb[0].mxu0
      %v5995 = vadd.f32 %v5517, %v5994
      %v5996 = vpop.f32.mrb[0].mxu0
      %v5997 = vadd.f32 %v5513, %v5996
      %v5998 = vpop.f32.mrb[0].mxu0
      %v5999 = vadd.f32 %v5517, %v5998
      %6000 = vmatprep.mubr.bf16.mxu0 %v5472
      %6001 = vmatmul.mubr.bf16.gmra.mrb[0].mxu0 %v5471
      %v6002 = vpop.f32.mrb[0].mxu0
      %v6003 = vadd.f32 %v5513, %v6002
      %v6004 = vpop.f32.mrb[0].mxu0
      %v6005 = vadd.f32 %v5517, %v6004
      %v6006 = vpop.f32.mrb[0].mxu0
      %v6007 = vadd.f32 %v5513, %v6006
      %v6008 = vpop.f32.mrb[0].mxu0
      %v6009 = vadd.f32 %v5517, %v6008
      %6010 = vmatprep.mubr.bf16.mxu0 %v5474
      %6011 = vmatmul.mubr.bf16.gmra.mrb[0].mxu0 %v5473
      %v6012 = vpop.f32.mrb[0].mxu0
      %v6013 = vadd.f32 %v5513, %v6012
      %v6014 = vpop.f32.mrb[0].mxu0
      %v6015 = vadd.f32 %v5517, %v6014
      %v6016 = vpop.f32.mrb[0].mxu0
      %v6017 = vadd.f32 %v5513, %v6016
      %v6018 = vpop.f32.mrb[0].mxu0
      %v6019 = vadd.f32 %v5517, %v6018
      %6020 = vmatprep.mubr.bf16.mxu0 %v5476
      %6021 = vmatmul.mubr.bf16.gmra.mrb[0].mxu0 %v5475
      %v6022 = vpop.f32.mrb[0].mxu0
      %v6023 = vadd.f32 %v5513, %v6022
      %v6024 = vpop.f32.mrb[0].mxu0
      %v6025 = vadd.f32 %v5517, %v6024
      %v6026 = vpop.f32.mrb[0].mxu0
      %v6027 = vadd.f32 %v5513, %v6026
      %v6028 = vpop.f32.mrb[0].mxu0
      %v6029 = vadd.f32 %v5517, %v6028
      %6030 = vdwg.mxu0
      %v6031 = vmax.f32 %v5713, 0.0
      %v6032 = vmax.f32 %v5715, 0.0
      %v6033 = vmax.f32 %v5717, 0.0
      %v6034 = vmax.f32 %v5719, 0.0
      %v6035 = vmax.f32 %v5723, 0.0
      %v6036 = vmax.f32 %v5725, 0.0
      %v6037 = vmax.f32 %v5727, 0.0
      %v6038 = vmax.f32 %v5729, 0.0
      %v6039 = vmax.f32 %v5733, 0.0
      %v6040 = vmax.f32 %v5735, 0.0
      %v6041 = vmax.f32 %v5737, 0.0
      %v6042 = vmax.f32 %v5739, 0.0
      %v6043 = vmax.f32 %v5743, 0.0
      %v6044 = vmax.f32 %v5745, 0.0
      %v6045 = vmax.f32 %v5747, 0.0
      %v6046 = vmax.f32 %v5749, 0.0
      %v6047 = vmax.f32 %v5753, 0.0
      %v6048 = vmax.f32 %v5755, 0.0
      %v6049 = vmax.f32 %v5757, 0.0
      %v6050 = vmax.f32 %v5759, 0.0
      %v6051 = vmax.f32 %v5763, 0.0
      %v6052 = vmax.f32 %v5765, 0.0
      %v6053 = vmax.f32 %v5767, 0.0
      %v6054 = vmax.f32 %v5769, 0.0
      %v6055 = vmax.f32 %v5773, 0.0
      %v6056 = vmax.f32 %v5775, 0.0
      %v6057 = vmax.f32 %v5777, 0.0
      %v6058 = vmax.f32 %v5779, 0.0
      %v6059 = vmax.f32 %v5783, 0.0
      %v6060 = vmax.f32 %v5785, 0.0
      %v6061 = vmax.f32 %v5787, 0.0
      %v6062 = vmax.f32 %v5789, 0.0
      %v6063 = vmax.f32 %v5793, 0.0
      %v6064 = vmax.f32 %v5795, 0.0
      %v6065 = vmax.f32 %v5797, 0.0
      %v6066 = vmax.f32 %v5799, 0.0
      %v6067 = vmax.f32 %v5803, 0.0
      %v6068 = vmax.f32 %v5805, 0.0
      %v6069 = vmax.f32 %v5807, 0.0
      %v6070 = vmax.f32 %v5809, 0.0
      %v6071 = vmax.f32 %v5813, 0.0
      %v6072 = vmax.f32 %v5815, 0.0
      %v6073 = vmax.f32 %v5817, 0.0
      %v6074 = vmax.f32 %v5819, 0.0
      %v6075 = vmax.f32 %v5823, 0.0
      %v6076 = vmax.f32 %v5825, 0.0
      %v6077 = vmax.f32 %v5827, 0.0
      %v6078 = vmax.f32 %v5829, 0.0
      %v6079 = vmax.f32 %v5833, 0.0
      %v6080 = vmax.f32 %v5835, 0.0
      %v6081 = vmax.f32 %v5837, 0.0
      %v6082 = vmax.f32 %v5839, 0.0
      %v6083 = vmax.f32 %v5843, 0.0
      %v6084 = vmax.f32 %v5845, 0.0
      %v6085 = vmax.f32 %v5847, 0.0
      %v6086 = vmax.f32 %v5849, 0.0
      %v6087 = vmax.f32 %v5853, 0.0
      %v6088 = vmax.f32 %v5855, 0.0
      %v6089 = vmax.f32 %v5857, 0.0
      %v6090 = vmax.f32 %v5859, 0.0
      %v6091 = vmax.f32 %v5863, 0.0
      %v6092 = vmax.f32 %v5865, 0.0
      %v6093 = vmax.f32 %v5867, 0.0
      %v6094 = vmax.f32 %v5869, 0.0
      %v6095 = vmax.f32 %v5873, 0.0
      %v6096 = vmax.f32 %v5875, 0.0
      %v6097 = vmax.f32 %v5877, 0.0
      %v6098 = vmax.f32 %v5879, 0.0
      %v6099 = vmax.f32 %v5883, 0.0
      %v6100 = vmax.f32 %v5885, 0.0
      %v6101 = vmax.f32 %v5887, 0.0
      %v6102 = vmax.f32 %v5889, 0.0
      %v6103 = vmax.f32 %v5893, 0.0
      %v6104 = vmax.f32 %v5895, 0.0
      %v6105 = vmax.f32 %v5897, 0.0
      %v6106 = vmax.f32 %v5899, 0.0
      %v6107 = vmax.f32 %v5903, 0.0
      %v6108 = vmax.f32 %v5905, 0.0
      %v6109 = vmax.f32 %v5907, 0.0
      %v6110 = vmax.f32 %v5909, 0.0
      %v6111 = vmax.f32 %v5913, 0.0
      %v6112 = vmax.f32 %v5915, 0.0
      %v6113 = vmax.f32 %v5917, 0.0
      %v6114 = vmax.f32 %v5919, 0.0
      %v6115 = vmax.f32 %v5923, 0.0
      %v6116 = vmax.f32 %v5925, 0.0
      %v6117 = vmax.f32 %v5927, 0.0
      %v6118 = vmax.f32 %v5929, 0.0
      %v6119 = vmax.f32 %v5933, 0.0
      %v6120 = vmax.f32 %v5935, 0.0
      %v6121 = vmax.f32 %v5937, 0.0
      %v6122 = vmax.f32 %v5939, 0.0
      %v6123 = vmax.f32 %v5943, 0.0
      %v6124 = vmax.f32 %v5945, 0.0
      %v6125 = vmax.f32 %v5947, 0.0
      %v6126 = vmax.f32 %v5949, 0.0
      %v6127 = vmax.f32 %v5953, 0.0
      %v6128 = vmax.f32 %v5955, 0.0
      %v6129 = vmax.f32 %v5957, 0.0
      %v6130 = vmax.f32 %v5959, 0.0
      %v6131 = vmax.f32 %v5963, 0.0
      %v6132 = vmax.f32 %v5965, 0.0
      %v6133 = vmax.f32 %v5967, 0.0
      %v6134 = vmax.f32 %v5969, 0.0
      %v6135 = vmax.f32 %v5973, 0.0
      %v6136 = vmax.f32 %v5975, 0.0
      %v6137 = vmax.f32 %v5977, 0.0
      %v6138 = vmax.f32 %v5979, 0.0
      %v6139 = vmax.f32 %v5983, 0.0
      %v6140 = vmax.f32 %v5985, 0.0
      %v6141 = vmax.f32 %v5987, 0.0
      %v6142 = vmax.f32 %v5989, 0.0
      %v6143 = vmax.f32 %v5993, 0.0
      %v6144 = vmax.f32 %v5995, 0.0
      %v6145 = vmax.f32 %v5997, 0.0
      %v6146 = vmax.f32 %v5999, 0.0
      %v6147 = vmax.f32 %v6003, 0.0
      %v6148 = vmax.f32 %v6005, 0.0
      %v6149 = vmax.f32 %v6007, 0.0
      %v6150 = vmax.f32 %v6009, 0.0
      %v6151 = vmax.f32 %v6013, 0.0
      %v6152 = vmax.f32 %v6015, 0.0
      %v6153 = vmax.f32 %v6017, 0.0
      %v6154 = vmax.f32 %v6019, 0.0
      %v6155 = vmax.f32 %v6023, 0.0
      %v6156 = vmax.f32 %v6025, 0.0
      %v6157 = vmax.f32 %v6027, 0.0
      %v6158 = vmax.f32 %v6029, 0.0
      %v6159 = vpack.c.bf16 %v6033, %v6031
      %v6160 = vpack.c.bf16 %v6034, %v6032
      %v6161 = vpack.c.bf16 %v6037, %v6035
      %v6162 = vpack.c.bf16 %v6038, %v6036
      %v6163 = vpack.c.bf16 %v6041, %v6039
      %v6164 = vpack.c.bf16 %v6042, %v6040
      %v6165 = vpack.c.bf16 %v6045, %v6043
      %v6166 = vpack.c.bf16 %v6046, %v6044
      %v6167 = vpack.c.bf16 %v6049, %v6047
      %v6168 = vpack.c.bf16 %v6050, %v6048
      %v6169 = vpack.c.bf16 %v6053, %v6051
      %v6170 = vpack.c.bf16 %v6054, %v6052
      %v6171 = vpack.c.bf16 %v6057, %v6055
      %v6172 = vpack.c.bf16 %v6058, %v6056
      %v6173 = vpack.c.bf16 %v6061, %v6059
      %v6174 = vpack.c.bf16 %v6062, %v6060
      %v6175 = vpack.c.bf16 %v6065, %v6063
      %v6176 = vpack.c.bf16 %v6066, %v6064
      %v6177 = vpack.c.bf16 %v6069, %v6067
      %v6178 = vpack.c.bf16 %v6070, %v6068
      %v6179 = vpack.c.bf16 %v6073, %v6071
      %v6180 = vpack.c.bf16 %v6074, %v6072
      %v6181 = vpack.c.bf16 %v6077, %v6075
      %v6182 = vpack.c.bf16 %v6078, %v6076
      %v6183 = vpack.c.bf16 %v6081, %v6079
      %v6184 = vpack.c.bf16 %v6082, %v6080
      %v6185 = vpack.c.bf16 %v6085, %v6083
      %v6186 = vpack.c.bf16 %v6086, %v6084
      %v6187 = vpack.c.bf16 %v6089, %v6087
      %v6188 = vpack.c.bf16 %v6090, %v6088
      %v6189 = vpack.c.bf16 %v6093, %v6091
      %v6190 = vpack.c.bf16 %v6094, %v6092
      %v6191 = vpack.c.bf16 %v6097, %v6095
      %v6192 = vpack.c.bf16 %v6098, %v6096
      %v6193 = vpack.c.bf16 %v6101, %v6099
      %v6194 = vpack.c.bf16 %v6102, %v6100
      %v6195 = vpack.c.bf16 %v6105, %v6103
      %v6196 = vpack.c.bf16 %v6106, %v6104
      %v6197 = vpack.c.bf16 %v6109, %v6107
      %v6198 = vpack.c.bf16 %v6110, %v6108
      %v6199 = vpack.c.bf16 %v6113, %v6111
      %v6200 = vpack.c.bf16 %v6114, %v6112
      %v6201 = vpack.c.bf16 %v6117, %v6115
      %v6202 = vpack.c.bf16 %v6118, %v6116
      %v6203 = vpack.c.bf16 %v6121, %v6119
      %v6204 = vpack.c.bf16 %v6122, %v6120
      %v6205 = vpack.c.bf16 %v6125, %v6123
      %v6206 = vpack.c.bf16 %v6126, %v6124
      %v6207 = vpack.c.bf16 %v6129, %v6127
      %v6208 = vpack.c.bf16 %v6130, %v6128
      %v6209 = vpack.c.bf16 %v6133, %v6131
      %v6210 = vpack.c.bf16 %v6134, %v6132
      %v6211 = vpack.c.bf16 %v6137, %v6135
      %v6212 = vpack.c.bf16 %v6138, %v6136
      %v6213 = vpack.c.bf16 %v6141, %v6139
      %v6214 = vpack.c.bf16 %v6142, %v6140
      %v6215 = vpack.c.bf16 %v6145, %v6143
      %v6216 = vpack.c.bf16 %v6146, %v6144
      %v6217 = vpack.c.bf16 %v6149, %v6147
      %v6218 = vpack.c.bf16 %v6150, %v6148
      %v6219 = vpack.c.bf16 %v6153, %v6151
      %v6220 = vpack.c.bf16 %v6154, %v6152
      %v6221 = vpack.c.bf16 %v6157, %v6155
      %v6222 = vpack.c.bf16 %v6158, %v6156
      %s6223 = scalar_lea.vmem %s2, 1536
      %v6224 = vld [vmem:[%s6223] sm:$0xff]
      %v6225 = vld [vmem:[%s6223 + $0x8] sm:$0xff]
      %v6226 = vld [vmem:[%s6223 + $0x10] sm:$0xff]
      %v6227 = vld [vmem:[%s6223 + $0x18] sm:$0xff]
      %v6228 = vld [vmem:[%s6223 + $0x20] sm:$0xff]
      %v6229 = vld [vmem:[%s6223 + $0x28] sm:$0xff]
      %v6230 = vld [vmem:[%s6223 + $0x30] sm:$0xff]
      %v6231 = vld [vmem:[%s6223 + $0x38] sm:$0xff]
      %v6232 = vld [vmem:[%s6223 + $0x40] sm:$0xff]
      %v6233 = vld [vmem:[%s6223 + $0x48] sm:$0xff]
      %v6234 = vld [vmem:[%s6223 + $0x50] sm:$0xff]
      %v6235 = vld [vmem:[%s6223 + $0x58] sm:$0xff]
      %v6236 = vld [vmem:[%s6223 + $0x60] sm:$0xff]
      %v6237 = vld [vmem:[%s6223 + $0x68] sm:$0xff]
      %v6238 = vld [vmem:[%s6223 + $0x70] sm:$0xff]
      %v6239 = vld [vmem:[%s6223 + $0x78] sm:$0xff]
      %v6240 = vld [vmem:[%s6223 + $0x80] sm:$0xff]
      %v6241 = vld [vmem:[%s6223 + $0x88] sm:$0xff]
      %v6242 = vld [vmem:[%s6223 + $0x90] sm:$0xff]
      %v6243 = vld [vmem:[%s6223 + $0x98] sm:$0xff]
      %v6244 = vld [vmem:[%s6223 + $0xa0] sm:$0xff]
      %v6245 = vld [vmem:[%s6223 + $0xa8] sm:$0xff]
      %v6246 = vld [vmem:[%s6223 + $0xb0] sm:$0xff]
      %v6247 = vld [vmem:[%s6223 + $0xb8] sm:$0xff]
      %v6248 = vld [vmem:[%s6223 + $0xc0] sm:$0xff]
      %v6249 = vld [vmem:[%s6223 + $0xc8] sm:$0xff]
      %v6250 = vld [vmem:[%s6223 + $0xd0] sm:$0xff]
      %v6251 = vld [vmem:[%s6223 + $0xd8] sm:$0xff]
      %v6252 = vld [vmem:[%s6223 + $0xe0] sm:$0xff]
      %v6253 = vld [vmem:[%s6223 + $0xe8] sm:$0xff]
      %v6254 = vld [vmem:[%s6223 + $0xf0] sm:$0xff]
      %v6255 = vld [vmem:[%s6223 + $0xf8] sm:$0xff]
      %v6256 = vlaneseq
      %v6257 = vshrl.u32 %v6256, 7
      %v6258 = vsub.s32 7, %v6257
      %v6259 = vrot.slane %v347, %v6258
      %v6260 = vlaneseq
      %v6261 = vshrl.u32 %v6260, 7
      %v6262 = vsub.s32 7, %v6261
      %v6263 = vrot.slane %v348, %v6262
      %v6296 = vunpack.c.l.b16 %v6224
      %v6297 = vunpack.c.h.b16 %v6224
      %v6298 = vunpack.c.l.b16 %v6225
      %v6299 = vunpack.c.h.b16 %v6225
      %v6300 = vunpack.c.l.b16 %v6226
      %v6301 = vunpack.c.h.b16 %v6226
      %v6302 = vunpack.c.l.b16 %v6227
      %v6303 = vunpack.c.h.b16 %v6227
      %v6304 = vunpack.c.l.b16 %v6228
      %v6305 = vunpack.c.h.b16 %v6228
      %v6306 = vunpack.c.l.b16 %v6229
      %v6307 = vunpack.c.h.b16 %v6229
      %v6308 = vunpack.c.l.b16 %v6230
      %v6309 = vunpack.c.h.b16 %v6230
      %v6310 = vunpack.c.l.b16 %v6231
      %v6311 = vunpack.c.h.b16 %v6231
      %v6312 = vunpack.c.l.b16 %v6232
      %v6313 = vunpack.c.h.b16 %v6232
      %v6314 = vunpack.c.l.b16 %v6233
      %v6315 = vunpack.c.h.b16 %v6233
      %v6316 = vunpack.c.l.b16 %v6234
      %v6317 = vunpack.c.h.b16 %v6234
      %v6318 = vunpack.c.l.b16 %v6235
      %v6319 = vunpack.c.h.b16 %v6235
      %v6320 = vunpack.c.l.b16 %v6236
      %v6321 = vunpack.c.h.b16 %v6236
      %v6322 = vunpack.c.l.b16 %v6237
      %v6323 = vunpack.c.h.b16 %v6237
      %v6324 = vunpack.c.l.b16 %v6238
      %v6325 = vunpack.c.h.b16 %v6238
      %v6326 = vunpack.c.l.b16 %v6239
      %v6327 = vunpack.c.h.b16 %v6239
      %v6328 = vunpack.c.l.b16 %v6240
      %v6329 = vunpack.c.h.b16 %v6240
      %v6330 = vunpack.c.l.b16 %v6241
      %v6331 = vunpack.c.h.b16 %v6241
      %v6332 = vunpack.c.l.b16 %v6242
      %v6333 = vunpack.c.h.b16 %v6242
      %v6334 = vunpack.c.l.b16 %v6243
      %v6335 = vunpack.c.h.b16 %v6243
      %v6336 = vunpack.c.l.b16 %v6244
      %v6337 = vunpack.c.h.b16 %v6244
      %v6338 = vunpack.c.l.b16 %v6245
      %v6339 = vunpack.c.h.b16 %v6245
      %v6340 = vunpack.c.l.b16 %v6246
      %v6341 = vunpack.c.h.b16 %v6246
      %v6342 = vunpack.c.l.b16 %v6247
      %v6343 = vunpack.c.h.b16 %v6247
      %v6344 = vunpack.c.l.b16 %v6248
      %v6345 = vunpack.c.h.b16 %v6248
      %v6346 = vunpack.c.l.b16 %v6249
      %v6347 = vunpack.c.h.b16 %v6249
      %v6348 = vunpack.c.l.b16 %v6250
      %v6349 = vunpack.c.h.b16 %v6250
      %v6350 = vunpack.c.l.b16 %v6251
      %v6351 = vunpack.c.h.b16 %v6251
      %v6352 = vunpack.c.l.b16 %v6252
      %v6353 = vunpack.c.h.b16 %v6252
      %v6354 = vunpack.c.l.b16 %v6253
      %v6355 = vunpack.c.h.b16 %v6253
      %v6356 = vunpack.c.l.b16 %v6254
      %v6357 = vunpack.c.h.b16 %v6254
      %v6358 = vunpack.c.l.b16 %v6255
      %v6359 = vunpack.c.h.b16 %v6255
      %v6360 = vpack.c.b16 %v6298, %v6296
      %v6361 = vpack.c.b16 %v6299, %v6297
      %v6362 = vpack.c.b16 %v6302, %v6300
      %v6363 = vpack.c.b16 %v6303, %v6301
      %v6364 = vpack.c.b16 %v6306, %v6304
      %v6365 = vpack.c.b16 %v6307, %v6305
      %v6366 = vpack.c.b16 %v6310, %v6308
      %v6367 = vpack.c.b16 %v6311, %v6309
      %v6368 = vpack.c.b16 %v6314, %v6312
      %v6369 = vpack.c.b16 %v6315, %v6313
      %v6370 = vpack.c.b16 %v6318, %v6316
      %v6371 = vpack.c.b16 %v6319, %v6317
      %v6372 = vpack.c.b16 %v6322, %v6320
      %v6373 = vpack.c.b16 %v6323, %v6321
      %v6374 = vpack.c.b16 %v6326, %v6324
      %v6375 = vpack.c.b16 %v6327, %v6325
      %v6376 = vpack.c.b16 %v6330, %v6328
      %v6377 = vpack.c.b16 %v6331, %v6329
      %v6378 = vpack.c.b16 %v6334, %v6332
      %v6379 = vpack.c.b16 %v6335, %v6333
      %v6380 = vpack.c.b16 %v6338, %v6336
      %v6381 = vpack.c.b16 %v6339, %v6337
      %v6382 = vpack.c.b16 %v6342, %v6340
      %v6383 = vpack.c.b16 %v6343, %v6341
      %v6384 = vpack.c.b16 %v6346, %v6344
      %v6385 = vpack.c.b16 %v6347, %v6345
      %v6386 = vpack.c.b16 %v6350, %v6348
      %v6387 = vpack.c.b16 %v6351, %v6349
      %v6388 = vpack.c.b16 %v6354, %v6352
      %v6389 = vpack.c.b16 %v6355, %v6353
      %v6390 = vpack.c.b16 %v6358, %v6356
      %v6391 = vpack.c.b16 %v6359, %v6357
      %6424 = vmatprep.subr.bf16.mxu0 %v6361
      %6425 = vmatpush1.bf16.msra.mxu0 %v6360
      %6426 = vmatprep.subr.bf16.mxu0 %v6363
      %6427 = vmatpush1.bf16.msra.mxu0 %v6362
      %6428 = vmatprep.subr.bf16.mxu0 %v6365
      %6429 = vmatpush1.bf16.msra.mxu0 %v6364
      %6430 = vmatprep.subr.bf16.mxu0 %v6367
      %6431 = vmatpush1.bf16.msra.mxu0 %v6366
      %6432 = vmatprep.subr.bf16.mxu0 %v6369
      %6433 = vmatpush1.bf16.msra.mxu0 %v6368
      %6434 = vmatprep.subr.bf16.mxu0 %v6371
      %6435 = vmatpush1.bf16.msra.mxu0 %v6370
      %6436 = vmatprep.subr.bf16.mxu0 %v6373
      %6437 = vmatpush1.bf16.msra.mxu0 %v6372
      %6438 = vmatprep.subr.bf16.mxu0 %v6375
      %6439 = vmatpush1.bf16.msra.mxu0 %v6374
      %6440 = vmatprep.subr.bf16.mxu0 %v6377
      %6441 = vmatpush1.bf16.msra.mxu0 %v6376
      %6442 = vmatprep.subr.bf16.mxu0 %v6379
      %6443 = vmatpush1.bf16.msra.mxu0 %v6378
      %6444 = vmatprep.subr.bf16.mxu0 %v6381
      %6445 = vmatpush1.bf16.msra.mxu0 %v6380
      %6446 = vmatprep.subr.bf16.mxu0 %v6383
      %6447 = vmatpush1.bf16.msra.mxu0 %v6382
      %6448 = vmatprep.subr.bf16.mxu0 %v6385
      %6449 = vmatpush1.bf16.msra.mxu0 %v6384
      %6450 = vmatprep.subr.bf16.mxu0 %v6387
      %6451 = vmatpush1.bf16.msra.mxu0 %v6386
      %6452 = vmatprep.subr.bf16.mxu0 %v6389
      %6453 = vmatpush1.bf16.msra.mxu0 %v6388
      %6454 = vmatprep.subr.bf16.mxu0 %v6391
      %6455 = vmatpush1.bf16.msra.mxu0 %v6390
      %6456 = vmatprep.mubr.bf16.mxu0 %v6160
      %6457 = vmatmul.mubr.bf16.gmra.mrb[0].mxu0 %v6159
      %v6458 = vpop.f32.mrb[0].mxu0
      %v6459 = vadd.f32 %v6259, %v6458
      %v6460 = vpop.f32.mrb[0].mxu0
      %v6461 = vadd.f32 %v6263, %v6460
      %v6462 = vpop.f32.mrb[0].mxu0
      %v6463 = vadd.f32 %v6259, %v6462
      %v6464 = vpop.f32.mrb[0].mxu0
      %v6465 = vadd.f32 %v6263, %v6464
      %6466 = vmatprep.mubr.bf16.mxu0 %v6162
      %6467 = vmatmul.mubr.bf16.gmra.mrb[0].mxu0 %v6161
      %v6468 = vpop.f32.mrb[0].mxu0
      %v6469 = vadd.f32 %v6259, %v6468
      %v6470 = vpop.f32.mrb[0].mxu0
      %v6471 = vadd.f32 %v6263, %v6470
      %v6472 = vpop.f32.mrb[0].mxu0
      %v6473 = vadd.f32 %v6259, %v6472
      %v6474 = vpop.f32.mrb[0].mxu0
      %v6475 = vadd.f32 %v6263, %v6474
      %6476 = vmatprep.mubr.bf16.mxu0 %v6164
      %6477 = vmatmul.mubr.bf16.gmra.mrb[0].mxu0 %v6163
      %v6478 = vpop.f32.mrb[0].mxu0
      %v6479 = vadd.f32 %v6259, %v6478
      %v6480 = vpop.f32.mrb[0].mxu0
      %v6481 = vadd.f32 %v6263, %v6480
      %v6482 = vpop.f32.mrb[0].mxu0
      %v6483 = vadd.f32 %v6259, %v6482
      %v6484 = vpop.f32.mrb[0].mxu0
      %v6485 = vadd.f32 %v6263, %v6484
      %6486 = vmatprep.mubr.bf16.mxu0 %v6166
      %6487 = vmatmul.mubr.bf16.gmra.mrb[0].mxu0 %v6165
      %v6488 = vpop.f32.mrb[0].mxu0
      %v6489 = vadd.f32 %v6259, %v6488
      %v6490 = vpop.f32.mrb[0].mxu0
      %v6491 = vadd.f32 %v6263, %v6490
      %v6492 = vpop.f32.mrb[0].mxu0
      %v6493 = vadd.f32 %v6259, %v6492
      %v6494 = vpop.f32.mrb[0].mxu0
      %v6495 = vadd.f32 %v6263, %v6494
      %6496 = vmatprep.mubr.bf16.mxu0 %v6168
      %6497 = vmatmul.mubr.bf16.gmra.mrb[0].mxu0 %v6167
      %v6498 = vpop.f32.mrb[0].mxu0
      %v6499 = vadd.f32 %v6259, %v6498
      %v6500 = vpop.f32.mrb[0].mxu0
      %v6501 = vadd.f32 %v6263, %v6500
      %v6502 = vpop.f32.mrb[0].mxu0
      %v6503 = vadd.f32 %v6259, %v6502
      %v6504 = vpop.f32.mrb[0].mxu0
      %v6505 = vadd.f32 %v6263, %v6504
      %6506 = vmatprep.mubr.bf16.mxu0 %v6170
      %6507 = vmatmul.mubr.bf16.gmra.mrb[0].mxu0 %v6169
      %v6508 = vpop.f32.mrb[0].mxu0
      %v6509 = vadd.f32 %v6259, %v6508
      %v6510 = vpop.f32.mrb[0].mxu0
      %v6511 = vadd.f32 %v6263, %v6510
      %v6512 = vpop.f32.mrb[0].mxu0
      %v6513 = vadd.f32 %v6259, %v6512
      %v6514 = vpop.f32.mrb[0].mxu0
      %v6515 = vadd.f32 %v6263, %v6514
      %6516 = vmatprep.mubr.bf16.mxu0 %v6172
      %6517 = vmatmul.mubr.bf16.gmra.mrb[0].mxu0 %v6171
      %v6518 = vpop.f32.mrb[0].mxu0
      %v6519 = vadd.f32 %v6259, %v6518
      %v6520 = vpop.f32.mrb[0].mxu0
      %v6521 = vadd.f32 %v6263, %v6520
      %v6522 = vpop.f32.mrb[0].mxu0
      %v6523 = vadd.f32 %v6259, %v6522
      %v6524 = vpop.f32.mrb[0].mxu0
      %v6525 = vadd.f32 %v6263, %v6524
      %6526 = vmatprep.mubr.bf16.mxu0 %v6174
      %6527 = vmatmul.mubr.bf16.gmra.mrb[0].mxu0 %v6173
      %v6528 = vpop.f32.mrb[0].mxu0
      %v6529 = vadd.f32 %v6259, %v6528
      %v6530 = vpop.f32.mrb[0].mxu0
      %v6531 = vadd.f32 %v6263, %v6530
      %v6532 = vpop.f32.mrb[0].mxu0
      %v6533 = vadd.f32 %v6259, %v6532
      %v6534 = vpop.f32.mrb[0].mxu0
      %v6535 = vadd.f32 %v6263, %v6534
      %6536 = vmatprep.mubr.bf16.mxu0 %v6176
      %6537 = vmatmul.mubr.bf16.gmra.mrb[0].mxu0 %v6175
      %v6538 = vpop.f32.mrb[0].mxu0
      %v6539 = vadd.f32 %v6259, %v6538
      %v6540 = vpop.f32.mrb[0].mxu0
      %v6541 = vadd.f32 %v6263, %v6540
      %v6542 = vpop.f32.mrb[0].mxu0
      %v6543 = vadd.f32 %v6259, %v6542
      %v6544 = vpop.f32.mrb[0].mxu0
      %v6545 = vadd.f32 %v6263, %v6544
      %6546 = vmatprep.mubr.bf16.mxu0 %v6178
      %6547 = vmatmul.mubr.bf16.gmra.mrb[0].mxu0 %v6177
      %v6548 = vpop.f32.mrb[0].mxu0
      %v6549 = vadd.f32 %v6259, %v6548
      %v6550 = vpop.f32.mrb[0].mxu0
      %v6551 = vadd.f32 %v6263, %v6550
      %v6552 = vpop.f32.mrb[0].mxu0
      %v6553 = vadd.f32 %v6259, %v6552
      %v6554 = vpop.f32.mrb[0].mxu0
      %v6555 = vadd.f32 %v6263, %v6554
      %6556 = vmatprep.mubr.bf16.mxu0 %v6180
      %6557 = vmatmul.mubr.bf16.gmra.mrb[0].mxu0 %v6179
      %v6558 = vpop.f32.mrb[0].mxu0
      %v6559 = vadd.f32 %v6259, %v6558
      %v6560 = vpop.f32.mrb[0].mxu0
      %v6561 = vadd.f32 %v6263, %v6560
      %v6562 = vpop.f32.mrb[0].mxu0
      %v6563 = vadd.f32 %v6259, %v6562
      %v6564 = vpop.f32.mrb[0].mxu0
      %v6565 = vadd.f32 %v6263, %v6564
      %6566 = vmatprep.mubr.bf16.mxu0 %v6182
      %6567 = vmatmul.mubr.bf16.gmra.mrb[0].mxu0 %v6181
      %v6568 = vpop.f32.mrb[0].mxu0
      %v6569 = vadd.f32 %v6259, %v6568
      %v6570 = vpop.f32.mrb[0].mxu0
      %v6571 = vadd.f32 %v6263, %v6570
      %v6572 = vpop.f32.mrb[0].mxu0
      %v6573 = vadd.f32 %v6259, %v6572
      %v6574 = vpop.f32.mrb[0].mxu0
      %v6575 = vadd.f32 %v6263, %v6574
      %6576 = vmatprep.mubr.bf16.mxu0 %v6184
      %6577 = vmatmul.mubr.bf16.gmra.mrb[0].mxu0 %v6183
      %v6578 = vpop.f32.mrb[0].mxu0
      %v6579 = vadd.f32 %v6259, %v6578
      %v6580 = vpop.f32.mrb[0].mxu0
      %v6581 = vadd.f32 %v6263, %v6580
      %v6582 = vpop.f32.mrb[0].mxu0
      %v6583 = vadd.f32 %v6259, %v6582
      %v6584 = vpop.f32.mrb[0].mxu0
      %v6585 = vadd.f32 %v6263, %v6584
      %6586 = vmatprep.mubr.bf16.mxu0 %v6186
      %6587 = vmatmul.mubr.bf16.gmra.mrb[0].mxu0 %v6185
      %v6588 = vpop.f32.mrb[0].mxu0
      %v6589 = vadd.f32 %v6259, %v6588
      %v6590 = vpop.f32.mrb[0].mxu0
      %v6591 = vadd.f32 %v6263, %v6590
      %v6592 = vpop.f32.mrb[0].mxu0
      %v6593 = vadd.f32 %v6259, %v6592
      %v6594 = vpop.f32.mrb[0].mxu0
      %v6595 = vadd.f32 %v6263, %v6594
      %6596 = vmatprep.mubr.bf16.mxu0 %v6188
      %6597 = vmatmul.mubr.bf16.gmra.mrb[0].mxu0 %v6187
      %v6598 = vpop.f32.mrb[0].mxu0
      %v6599 = vadd.f32 %v6259, %v6598
      %v6600 = vpop.f32.mrb[0].mxu0
      %v6601 = vadd.f32 %v6263, %v6600
      %v6602 = vpop.f32.mrb[0].mxu0
      %v6603 = vadd.f32 %v6259, %v6602
      %v6604 = vpop.f32.mrb[0].mxu0
      %v6605 = vadd.f32 %v6263, %v6604
      %6606 = vmatprep.mubr.bf16.mxu0 %v6190
      %6607 = vmatmul.mubr.bf16.gmra.mrb[0].mxu0 %v6189
      %v6608 = vpop.f32.mrb[0].mxu0
      %v6609 = vadd.f32 %v6259, %v6608
      %v6610 = vpop.f32.mrb[0].mxu0
      %v6611 = vadd.f32 %v6263, %v6610
      %v6612 = vpop.f32.mrb[0].mxu0
      %v6613 = vadd.f32 %v6259, %v6612
      %v6614 = vpop.f32.mrb[0].mxu0
      %v6615 = vadd.f32 %v6263, %v6614
      %6616 = vmatprep.mubr.bf16.mxu0 %v6192
      %6617 = vmatmul.mubr.bf16.gmra.mrb[0].mxu0 %v6191
      %v6618 = vpop.f32.mrb[0].mxu0
      %v6619 = vadd.f32 %v6259, %v6618
      %v6620 = vpop.f32.mrb[0].mxu0
      %v6621 = vadd.f32 %v6263, %v6620
      %v6622 = vpop.f32.mrb[0].mxu0
      %v6623 = vadd.f32 %v6259, %v6622
      %v6624 = vpop.f32.mrb[0].mxu0
      %v6625 = vadd.f32 %v6263, %v6624
      %6626 = vmatprep.mubr.bf16.mxu0 %v6194
      %6627 = vmatmul.mubr.bf16.gmra.mrb[0].mxu0 %v6193
      %v6628 = vpop.f32.mrb[0].mxu0
      %v6629 = vadd.f32 %v6259, %v6628
      %v6630 = vpop.f32.mrb[0].mxu0
      %v6631 = vadd.f32 %v6263, %v6630
      %v6632 = vpop.f32.mrb[0].mxu0
      %v6633 = vadd.f32 %v6259, %v6632
      %v6634 = vpop.f32.mrb[0].mxu0
      %v6635 = vadd.f32 %v6263, %v6634
      %6636 = vmatprep.mubr.bf16.mxu0 %v6196
      %6637 = vmatmul.mubr.bf16.gmra.mrb[0].mxu0 %v6195
      %v6638 = vpop.f32.mrb[0].mxu0
      %v6639 = vadd.f32 %v6259, %v6638
      %v6640 = vpop.f32.mrb[0].mxu0
      %v6641 = vadd.f32 %v6263, %v6640
      %v6642 = vpop.f32.mrb[0].mxu0
      %v6643 = vadd.f32 %v6259, %v6642
      %v6644 = vpop.f32.mrb[0].mxu0
      %v6645 = vadd.f32 %v6263, %v6644
      %6646 = vmatprep.mubr.bf16.mxu0 %v6198
      %6647 = vmatmul.mubr.bf16.gmra.mrb[0].mxu0 %v6197
      %v6648 = vpop.f32.mrb[0].mxu0
      %v6649 = vadd.f32 %v6259, %v6648
      %v6650 = vpop.f32.mrb[0].mxu0
      %v6651 = vadd.f32 %v6263, %v6650
      %v6652 = vpop.f32.mrb[0].mxu0
      %v6653 = vadd.f32 %v6259, %v6652
      %v6654 = vpop.f32.mrb[0].mxu0
      %v6655 = vadd.f32 %v6263, %v6654
      %6656 = vmatprep.mubr.bf16.mxu0 %v6200
      %6657 = vmatmul.mubr.bf16.gmra.mrb[0].mxu0 %v6199
      %v6658 = vpop.f32.mrb[0].mxu0
      %v6659 = vadd.f32 %v6259, %v6658
      %v6660 = vpop.f32.mrb[0].mxu0
      %v6661 = vadd.f32 %v6263, %v6660
      %v6662 = vpop.f32.mrb[0].mxu0
      %v6663 = vadd.f32 %v6259, %v6662
      %v6664 = vpop.f32.mrb[0].mxu0
      %v6665 = vadd.f32 %v6263, %v6664
      %6666 = vmatprep.mubr.bf16.mxu0 %v6202
      %6667 = vmatmul.mubr.bf16.gmra.mrb[0].mxu0 %v6201
      %v6668 = vpop.f32.mrb[0].mxu0
      %v6669 = vadd.f32 %v6259, %v6668
      %v6670 = vpop.f32.mrb[0].mxu0
      %v6671 = vadd.f32 %v6263, %v6670
      %v6672 = vpop.f32.mrb[0].mxu0
      %v6673 = vadd.f32 %v6259, %v6672
      %v6674 = vpop.f32.mrb[0].mxu0
      %v6675 = vadd.f32 %v6263, %v6674
      %6676 = vmatprep.mubr.bf16.mxu0 %v6204
      %6677 = vmatmul.mubr.bf16.gmra.mrb[0].mxu0 %v6203
      %v6678 = vpop.f32.mrb[0].mxu0
      %v6679 = vadd.f32 %v6259, %v6678
      %v6680 = vpop.f32.mrb[0].mxu0
      %v6681 = vadd.f32 %v6263, %v6680
      %v6682 = vpop.f32.mrb[0].mxu0
      %v6683 = vadd.f32 %v6259, %v6682
      %v6684 = vpop.f32.mrb[0].mxu0
      %v6685 = vadd.f32 %v6263, %v6684
      %6686 = vmatprep.mubr.bf16.mxu0 %v6206
      %6687 = vmatmul.mubr.bf16.gmra.mrb[0].mxu0 %v6205
      %v6688 = vpop.f32.mrb[0].mxu0
      %v6689 = vadd.f32 %v6259, %v6688
      %v6690 = vpop.f32.mrb[0].mxu0
      %v6691 = vadd.f32 %v6263, %v6690
      %v6692 = vpop.f32.mrb[0].mxu0
      %v6693 = vadd.f32 %v6259, %v6692
      %v6694 = vpop.f32.mrb[0].mxu0
      %v6695 = vadd.f32 %v6263, %v6694
      %6696 = vmatprep.mubr.bf16.mxu0 %v6208
      %6697 = vmatmul.mubr.bf16.gmra.mrb[0].mxu0 %v6207
      %v6698 = vpop.f32.mrb[0].mxu0
      %v6699 = vadd.f32 %v6259, %v6698
      %v6700 = vpop.f32.mrb[0].mxu0
      %v6701 = vadd.f32 %v6263, %v6700
      %v6702 = vpop.f32.mrb[0].mxu0
      %v6703 = vadd.f32 %v6259, %v6702
      %v6704 = vpop.f32.mrb[0].mxu0
      %v6705 = vadd.f32 %v6263, %v6704
      %6706 = vmatprep.mubr.bf16.mxu0 %v6210
      %6707 = vmatmul.mubr.bf16.gmra.mrb[0].mxu0 %v6209
      %v6708 = vpop.f32.mrb[0].mxu0
      %v6709 = vadd.f32 %v6259, %v6708
      %v6710 = vpop.f32.mrb[0].mxu0
      %v6711 = vadd.f32 %v6263, %v6710
      %v6712 = vpop.f32.mrb[0].mxu0
      %v6713 = vadd.f32 %v6259, %v6712
      %v6714 = vpop.f32.mrb[0].mxu0
      %v6715 = vadd.f32 %v6263, %v6714
      %6716 = vmatprep.mubr.bf16.mxu0 %v6212
      %6717 = vmatmul.mubr.bf16.gmra.mrb[0].mxu0 %v6211
      %v6718 = vpop.f32.mrb[0].mxu0
      %v6719 = vadd.f32 %v6259, %v6718
      %v6720 = vpop.f32.mrb[0].mxu0
      %v6721 = vadd.f32 %v6263, %v6720
      %v6722 = vpop.f32.mrb[0].mxu0
      %v6723 = vadd.f32 %v6259, %v6722
      %v6724 = vpop.f32.mrb[0].mxu0
      %v6725 = vadd.f32 %v6263, %v6724
      %6726 = vmatprep.mubr.bf16.mxu0 %v6214
      %6727 = vmatmul.mubr.bf16.gmra.mrb[0].mxu0 %v6213
      %v6728 = vpop.f32.mrb[0].mxu0
      %v6729 = vadd.f32 %v6259, %v6728
      %v6730 = vpop.f32.mrb[0].mxu0
      %v6731 = vadd.f32 %v6263, %v6730
      %v6732 = vpop.f32.mrb[0].mxu0
      %v6733 = vadd.f32 %v6259, %v6732
      %v6734 = vpop.f32.mrb[0].mxu0
      %v6735 = vadd.f32 %v6263, %v6734
      %6736 = vmatprep.mubr.bf16.mxu0 %v6216
      %6737 = vmatmul.mubr.bf16.gmra.mrb[0].mxu0 %v6215
      %v6738 = vpop.f32.mrb[0].mxu0
      %v6739 = vadd.f32 %v6259, %v6738
      %v6740 = vpop.f32.mrb[0].mxu0
      %v6741 = vadd.f32 %v6263, %v6740
      %v6742 = vpop.f32.mrb[0].mxu0
      %v6743 = vadd.f32 %v6259, %v6742
      %v6744 = vpop.f32.mrb[0].mxu0
      %v6745 = vadd.f32 %v6263, %v6744
      %6746 = vmatprep.mubr.bf16.mxu0 %v6218
      %6747 = vmatmul.mubr.bf16.gmra.mrb[0].mxu0 %v6217
      %v6748 = vpop.f32.mrb[0].mxu0
      %v6749 = vadd.f32 %v6259, %v6748
      %v6750 = vpop.f32.mrb[0].mxu0
      %v6751 = vadd.f32 %v6263, %v6750
      %v6752 = vpop.f32.mrb[0].mxu0
      %v6753 = vadd.f32 %v6259, %v6752
      %v6754 = vpop.f32.mrb[0].mxu0
      %v6755 = vadd.f32 %v6263, %v6754
      %6756 = vmatprep.mubr.bf16.mxu0 %v6220
      %6757 = vmatmul.mubr.bf16.gmra.mrb[0].mxu0 %v6219
      %v6758 = vpop.f32.mrb[0].mxu0
      %v6759 = vadd.f32 %v6259, %v6758
      %v6760 = vpop.f32.mrb[0].mxu0
      %v6761 = vadd.f32 %v6263, %v6760
      %v6762 = vpop.f32.mrb[0].mxu0
      %v6763 = vadd.f32 %v6259, %v6762
      %v6764 = vpop.f32.mrb[0].mxu0
      %v6765 = vadd.f32 %v6263, %v6764
      %6766 = vmatprep.mubr.bf16.mxu0 %v6222
      %6767 = vmatmul.mubr.bf16.gmra.mrb[0].mxu0 %v6221
      %v6768 = vpop.f32.mrb[0].mxu0
      %v6769 = vadd.f32 %v6259, %v6768
      %v6770 = vpop.f32.mrb[0].mxu0
      %v6771 = vadd.f32 %v6263, %v6770
      %v6772 = vpop.f32.mrb[0].mxu0
      %v6773 = vadd.f32 %v6259, %v6772
      %v6774 = vpop.f32.mrb[0].mxu0
      %v6775 = vadd.f32 %v6263, %v6774
      %6776 = vdwg.mxu0
      %v6777 = vmax.f32 %v6459, 0.0
      %v6778 = vmax.f32 %v6461, 0.0
      %v6779 = vmax.f32 %v6463, 0.0
      %v6780 = vmax.f32 %v6465, 0.0
      %v6781 = vmax.f32 %v6469, 0.0
      %v6782 = vmax.f32 %v6471, 0.0
      %v6783 = vmax.f32 %v6473, 0.0
      %v6784 = vmax.f32 %v6475, 0.0
      %v6785 = vmax.f32 %v6479, 0.0
      %v6786 = vmax.f32 %v6481, 0.0
      %v6787 = vmax.f32 %v6483, 0.0
      %v6788 = vmax.f32 %v6485, 0.0
      %v6789 = vmax.f32 %v6489, 0.0
      %v6790 = vmax.f32 %v6491, 0.0
      %v6791 = vmax.f32 %v6493, 0.0
      %v6792 = vmax.f32 %v6495, 0.0
      %v6793 = vmax.f32 %v6499, 0.0
      %v6794 = vmax.f32 %v6501, 0.0
      %v6795 = vmax.f32 %v6503, 0.0
      %v6796 = vmax.f32 %v6505, 0.0
      %v6797 = vmax.f32 %v6509, 0.0
      %v6798 = vmax.f32 %v6511, 0.0
      %v6799 = vmax.f32 %v6513, 0.0
      %v6800 = vmax.f32 %v6515, 0.0
      %v6801 = vmax.f32 %v6519, 0.0
      %v6802 = vmax.f32 %v6521, 0.0
      %v6803 = vmax.f32 %v6523, 0.0
      %v6804 = vmax.f32 %v6525, 0.0
      %v6805 = vmax.f32 %v6529, 0.0
      %v6806 = vmax.f32 %v6531, 0.0
      %v6807 = vmax.f32 %v6533, 0.0
      %v6808 = vmax.f32 %v6535, 0.0
      %v6809 = vmax.f32 %v6539, 0.0
      %v6810 = vmax.f32 %v6541, 0.0
      %v6811 = vmax.f32 %v6543, 0.0
      %v6812 = vmax.f32 %v6545, 0.0
      %v6813 = vmax.f32 %v6549, 0.0
      %v6814 = vmax.f32 %v6551, 0.0
      %v6815 = vmax.f32 %v6553, 0.0
      %v6816 = vmax.f32 %v6555, 0.0
      %v6817 = vmax.f32 %v6559, 0.0
      %v6818 = vmax.f32 %v6561, 0.0
      %v6819 = vmax.f32 %v6563, 0.0
      %v6820 = vmax.f32 %v6565, 0.0
      %v6821 = vmax.f32 %v6569, 0.0
      %v6822 = vmax.f32 %v6571, 0.0
      %v6823 = vmax.f32 %v6573, 0.0
      %v6824 = vmax.f32 %v6575, 0.0
      %v6825 = vmax.f32 %v6579, 0.0
      %v6826 = vmax.f32 %v6581, 0.0
      %v6827 = vmax.f32 %v6583, 0.0
      %v6828 = vmax.f32 %v6585, 0.0
      %v6829 = vmax.f32 %v6589, 0.0
      %v6830 = vmax.f32 %v6591, 0.0
      %v6831 = vmax.f32 %v6593, 0.0
      %v6832 = vmax.f32 %v6595, 0.0
      %v6833 = vmax.f32 %v6599, 0.0
      %v6834 = vmax.f32 %v6601, 0.0
      %v6835 = vmax.f32 %v6603, 0.0
      %v6836 = vmax.f32 %v6605, 0.0
      %v6837 = vmax.f32 %v6609, 0.0
      %v6838 = vmax.f32 %v6611, 0.0
      %v6839 = vmax.f32 %v6613, 0.0
      %v6840 = vmax.f32 %v6615, 0.0
      %v6841 = vmax.f32 %v6619, 0.0
      %v6842 = vmax.f32 %v6621, 0.0
      %v6843 = vmax.f32 %v6623, 0.0
      %v6844 = vmax.f32 %v6625, 0.0
      %v6845 = vmax.f32 %v6629, 0.0
      %v6846 = vmax.f32 %v6631, 0.0
      %v6847 = vmax.f32 %v6633, 0.0
      %v6848 = vmax.f32 %v6635, 0.0
      %v6849 = vmax.f32 %v6639, 0.0
      %v6850 = vmax.f32 %v6641, 0.0
      %v6851 = vmax.f32 %v6643, 0.0
      %v6852 = vmax.f32 %v6645, 0.0
      %v6853 = vmax.f32 %v6649, 0.0
      %v6854 = vmax.f32 %v6651, 0.0
      %v6855 = vmax.f32 %v6653, 0.0
      %v6856 = vmax.f32 %v6655, 0.0
      %v6857 = vmax.f32 %v6659, 0.0
      %v6858 = vmax.f32 %v6661, 0.0
      %v6859 = vmax.f32 %v6663, 0.0
      %v6860 = vmax.f32 %v6665, 0.0
      %v6861 = vmax.f32 %v6669, 0.0
      %v6862 = vmax.f32 %v6671, 0.0
      %v6863 = vmax.f32 %v6673, 0.0
      %v6864 = vmax.f32 %v6675, 0.0
      %v6865 = vmax.f32 %v6679, 0.0
      %v6866 = vmax.f32 %v6681, 0.0
      %v6867 = vmax.f32 %v6683, 0.0
      %v6868 = vmax.f32 %v6685, 0.0
      %v6869 = vmax.f32 %v6689, 0.0
      %v6870 = vmax.f32 %v6691, 0.0
      %v6871 = vmax.f32 %v6693, 0.0
      %v6872 = vmax.f32 %v6695, 0.0
      %v6873 = vmax.f32 %v6699, 0.0
      %v6874 = vmax.f32 %v6701, 0.0
      %v6875 = vmax.f32 %v6703, 0.0
      %v6876 = vmax.f32 %v6705, 0.0
      %v6877 = vmax.f32 %v6709, 0.0
      %v6878 = vmax.f32 %v6711, 0.0
      %v6879 = vmax.f32 %v6713, 0.0
      %v6880 = vmax.f32 %v6715, 0.0
      %v6881 = vmax.f32 %v6719, 0.0
      %v6882 = vmax.f32 %v6721, 0.0
      %v6883 = vmax.f32 %v6723, 0.0
      %v6884 = vmax.f32 %v6725, 0.0
      %v6885 = vmax.f32 %v6729, 0.0
      %v6886 = vmax.f32 %v6731, 0.0
      %v6887 = vmax.f32 %v6733, 0.0
      %v6888 = vmax.f32 %v6735, 0.0
      %v6889 = vmax.f32 %v6739, 0.0
      %v6890 = vmax.f32 %v6741, 0.0
      %v6891 = vmax.f32 %v6743, 0.0
      %v6892 = vmax.f32 %v6745, 0.0
      %v6893 = vmax.f32 %v6749, 0.0
      %v6894 = vmax.f32 %v6751, 0.0
      %v6895 = vmax.f32 %v6753, 0.0
      %v6896 = vmax.f32 %v6755, 0.0
      %v6897 = vmax.f32 %v6759, 0.0
      %v6898 = vmax.f32 %v6761, 0.0
      %v6899 = vmax.f32 %v6763, 0.0
      %v6900 = vmax.f32 %v6765, 0.0
      %v6901 = vmax.f32 %v6769, 0.0
      %v6902 = vmax.f32 %v6771, 0.0
      %v6903 = vmax.f32 %v6773, 0.0
      %v6904 = vmax.f32 %v6775, 0.0
      %v6905 = vpack.c.bf16 %v6779, %v6777
      %v6906 = vpack.c.bf16 %v6780, %v6778
      %v6907 = vpack.c.bf16 %v6783, %v6781
      %v6908 = vpack.c.bf16 %v6784, %v6782
      %v6909 = vpack.c.bf16 %v6787, %v6785
      %v6910 = vpack.c.bf16 %v6788, %v6786
      %v6911 = vpack.c.bf16 %v6791, %v6789
      %v6912 = vpack.c.bf16 %v6792, %v6790
      %v6913 = vpack.c.bf16 %v6795, %v6793
      %v6914 = vpack.c.bf16 %v6796, %v6794
      %v6915 = vpack.c.bf16 %v6799, %v6797
      %v6916 = vpack.c.bf16 %v6800, %v6798
      %v6917 = vpack.c.bf16 %v6803, %v6801
      %v6918 = vpack.c.bf16 %v6804, %v6802
      %v6919 = vpack.c.bf16 %v6807, %v6805
      %v6920 = vpack.c.bf16 %v6808, %v6806
      %v6921 = vpack.c.bf16 %v6811, %v6809
      %v6922 = vpack.c.bf16 %v6812, %v6810
      %v6923 = vpack.c.bf16 %v6815, %v6813
      %v6924 = vpack.c.bf16 %v6816, %v6814
      %v6925 = vpack.c.bf16 %v6819, %v6817
      %v6926 = vpack.c.bf16 %v6820, %v6818
      %v6927 = vpack.c.bf16 %v6823, %v6821
      %v6928 = vpack.c.bf16 %v6824, %v6822
      %v6929 = vpack.c.bf16 %v6827, %v6825
      %v6930 = vpack.c.bf16 %v6828, %v6826
      %v6931 = vpack.c.bf16 %v6831, %v6829
      %v6932 = vpack.c.bf16 %v6832, %v6830
      %v6933 = vpack.c.bf16 %v6835, %v6833
      %v6934 = vpack.c.bf16 %v6836, %v6834
      %v6935 = vpack.c.bf16 %v6839, %v6837
      %v6936 = vpack.c.bf16 %v6840, %v6838
      %v6937 = vpack.c.bf16 %v6843, %v6841
      %v6938 = vpack.c.bf16 %v6844, %v6842
      %v6939 = vpack.c.bf16 %v6847, %v6845
      %v6940 = vpack.c.bf16 %v6848, %v6846
      %v6941 = vpack.c.bf16 %v6851, %v6849
      %v6942 = vpack.c.bf16 %v6852, %v6850
      %v6943 = vpack.c.bf16 %v6855, %v6853
      %v6944 = vpack.c.bf16 %v6856, %v6854
      %v6945 = vpack.c.bf16 %v6859, %v6857
      %v6946 = vpack.c.bf16 %v6860, %v6858
      %v6947 = vpack.c.bf16 %v6863, %v6861
      %v6948 = vpack.c.bf16 %v6864, %v6862
      %v6949 = vpack.c.bf16 %v6867, %v6865
      %v6950 = vpack.c.bf16 %v6868, %v6866
      %v6951 = vpack.c.bf16 %v6871, %v6869
      %v6952 = vpack.c.bf16 %v6872, %v6870
      %v6953 = vpack.c.bf16 %v6875, %v6873
      %v6954 = vpack.c.bf16 %v6876, %v6874
      %v6955 = vpack.c.bf16 %v6879, %v6877
      %v6956 = vpack.c.bf16 %v6880, %v6878
      %v6957 = vpack.c.bf16 %v6883, %v6881
      %v6958 = vpack.c.bf16 %v6884, %v6882
      %v6959 = vpack.c.bf16 %v6887, %v6885
      %v6960 = vpack.c.bf16 %v6888, %v6886
      %v6961 = vpack.c.bf16 %v6891, %v6889
      %v6962 = vpack.c.bf16 %v6892, %v6890
      %v6963 = vpack.c.bf16 %v6895, %v6893
      %v6964 = vpack.c.bf16 %v6896, %v6894
      %v6965 = vpack.c.bf16 %v6899, %v6897
      %v6966 = vpack.c.bf16 %v6900, %v6898
      %v6967 = vpack.c.bf16 %v6903, %v6901
      %v6968 = vpack.c.bf16 %v6904, %v6902
      %v6969 = vld [vmem:[%s5] sm:$0xf]
      %v6970 = vld [vmem:[%s5 + $0x4] sm:$0xf]
      %v6971 = vld [vmem:[%s5 + $0x8] sm:$0xf]
      %v6972 = vld [vmem:[%s5 + $0xc] sm:$0xf]
      %v6973 = vld [vmem:[%s5 + $0x10] sm:$0xf]
      %v6974 = vld [vmem:[%s5 + $0x14] sm:$0xf]
      %v6975 = vld [vmem:[%s5 + $0x18] sm:$0xf]
      %v6976 = vld [vmem:[%s5 + $0x1c] sm:$0xf]
      %v6977 = vld [vmem:[%s5 + $0x20] sm:$0xf]
      %v6978 = vld [vmem:[%s5 + $0x24] sm:$0xf]
      %v6979 = vld [vmem:[%s5 + $0x28] sm:$0xf]
      %v6980 = vld [vmem:[%s5 + $0x2c] sm:$0xf]
      %v6981 = vld [vmem:[%s5 + $0x30] sm:$0xf]
      %v6982 = vld [vmem:[%s5 + $0x34] sm:$0xf]
      %v6983 = vld [vmem:[%s5 + $0x38] sm:$0xf]
      %v6984 = vld [vmem:[%s5 + $0x3c] sm:$0xf]
      %v6985 = vld [vmem:[%s5 + $0x40] sm:$0xf]
      %v6986 = vld [vmem:[%s5 + $0x44] sm:$0xf]
      %v6987 = vld [vmem:[%s5 + $0x48] sm:$0xf]
      %v6988 = vld [vmem:[%s5 + $0x4c] sm:$0xf]
      %v6989 = vld [vmem:[%s5 + $0x50] sm:$0xf]
      %v6990 = vld [vmem:[%s5 + $0x54] sm:$0xf]
      %v6991 = vld [vmem:[%s5 + $0x58] sm:$0xf]
      %v6992 = vld [vmem:[%s5 + $0x5c] sm:$0xf]
      %v6993 = vld [vmem:[%s5 + $0x60] sm:$0xf]
      %v6994 = vld [vmem:[%s5 + $0x64] sm:$0xf]
      %v6995 = vld [vmem:[%s5 + $0x68] sm:$0xf]
      %v6996 = vld [vmem:[%s5 + $0x6c] sm:$0xf]
      %v6997 = vld [vmem:[%s5 + $0x70] sm:$0xf]
      %v6998 = vld [vmem:[%s5 + $0x74] sm:$0xf]
      %v6999 = vld [vmem:[%s5 + $0x78] sm:$0xf]
      %v7000 = vld [vmem:[%s5 + $0x7c] sm:$0xf]
      %v7001 = vld [vmem:[%s6] sm:$0x1]
      %v7003 = vlaneseq
      %v7004 = vshrl.u32 %v7003, 7
      %v7005 = vsub.s32 0, %v7004
      %v7006 = vrot.slane %v7001, %v7005
      %v7040 = vunpack.c.l.b16 %v6969
      %v7041 = vunpack.c.l.b16 %v6970
      %v7042 = vunpack.c.l.b16 %v6971
      %v7043 = vunpack.c.l.b16 %v6972
      %v7044 = vunpack.c.l.b16 %v6973
      %v7045 = vunpack.c.l.b16 %v6974
      %v7046 = vunpack.c.l.b16 %v6975
      %v7047 = vunpack.c.l.b16 %v6976
      %v7048 = vunpack.c.l.b16 %v6977
      %v7049 = vunpack.c.l.b16 %v6978
      %v7050 = vunpack.c.l.b16 %v6979
      %v7051 = vunpack.c.l.b16 %v6980
      %v7052 = vunpack.c.l.b16 %v6981
      %v7053 = vunpack.c.l.b16 %v6982
      %v7054 = vunpack.c.l.b16 %v6983
      %v7055 = vunpack.c.l.b16 %v6984
      %v7056 = vunpack.c.l.b16 %v6985
      %v7057 = vunpack.c.l.b16 %v6986
      %v7058 = vunpack.c.l.b16 %v6987
      %v7059 = vunpack.c.l.b16 %v6988
      %v7060 = vunpack.c.l.b16 %v6989
      %v7061 = vunpack.c.l.b16 %v6990
      %v7062 = vunpack.c.l.b16 %v6991
      %v7063 = vunpack.c.l.b16 %v6992
      %v7064 = vunpack.c.l.b16 %v6993
      %v7065 = vunpack.c.l.b16 %v6994
      %v7066 = vunpack.c.l.b16 %v6995
      %v7067 = vunpack.c.l.b16 %v6996
      %v7068 = vunpack.c.l.b16 %v6997
      %v7069 = vunpack.c.l.b16 %v6998
      %v7070 = vunpack.c.l.b16 %v6999
      %v7071 = vunpack.c.l.b16 %v7000
      %v7072 = vpack.c.b16 %v7041, %v7040
      %v7073 = vpack.c.b16 %v7043, %v7042
      %v7074 = vpack.c.b16 %v7045, %v7044
      %v7075 = vpack.c.b16 %v7047, %v7046
      %v7076 = vpack.c.b16 %v7049, %v7048
      %v7077 = vpack.c.b16 %v7051, %v7050
      %v7078 = vpack.c.b16 %v7053, %v7052
      %v7079 = vpack.c.b16 %v7055, %v7054
      %v7080 = vpack.c.b16 %v7057, %v7056
      %v7081 = vpack.c.b16 %v7059, %v7058
      %v7082 = vpack.c.b16 %v7061, %v7060
      %v7083 = vpack.c.b16 %v7063, %v7062
      %v7084 = vpack.c.b16 %v7065, %v7064
      %v7085 = vpack.c.b16 %v7067, %v7066
      %v7086 = vpack.c.b16 %v7069, %v7068
      %v7087 = vpack.c.b16 %v7071, %v7070
      %7104 = vmatprep.subr.bf16.mxu0 0
      %7105 = vmatpush1.bf16.msra.mxu0 %v7072
      %7106 = vmatprep.subr.bf16.mxu0 0
      %7107 = vmatpush1.bf16.msra.mxu0 %v7073
      %7108 = vmatprep.subr.bf16.mxu0 0
      %7109 = vmatpush1.bf16.msra.mxu0 %v7074
      %7110 = vmatprep.subr.bf16.mxu0 0
      %7111 = vmatpush1.bf16.msra.mxu0 %v7075
      %7112 = vmatprep.subr.bf16.mxu0 0
      %7113 = vmatpush1.bf16.msra.mxu0 %v7076
      %7114 = vmatprep.subr.bf16.mxu0 0
      %7115 = vmatpush1.bf16.msra.mxu0 %v7077
      %7116 = vmatprep.subr.bf16.mxu0 0
      %7117 = vmatpush1.bf16.msra.mxu0 %v7078
      %7118 = vmatprep.subr.bf16.mxu0 0
      %7119 = vmatpush1.bf16.msra.mxu0 %v7079
      %7120 = vmatprep.subr.bf16.mxu0 0
      %7121 = vmatpush1.bf16.msra.mxu0 %v7080
      %7122 = vmatprep.subr.bf16.mxu0 0
      %7123 = vmatpush1.bf16.msra.mxu0 %v7081
      %7124 = vmatprep.subr.bf16.mxu0 0
      %7125 = vmatpush1.bf16.msra.mxu0 %v7082
      %7126 = vmatprep.subr.bf16.mxu0 0
      %7127 = vmatpush1.bf16.msra.mxu0 %v7083
      %7128 = vmatprep.subr.bf16.mxu0 0
      %7129 = vmatpush1.bf16.msra.mxu0 %v7084
      %7130 = vmatprep.subr.bf16.mxu0 0
      %7131 = vmatpush1.bf16.msra.mxu0 %v7085
      %7132 = vmatprep.subr.bf16.mxu0 0
      %7133 = vmatpush1.bf16.msra.mxu0 %v7086
      %7134 = vmatprep.subr.bf16.mxu0 0
      %7135 = vmatpush1.bf16.msra.mxu0 %v7087
      %7136 = vmatprep.mubr.bf16.mxu0 %v6906
      %7137 = vmatmul.mubr.bf16.gmra.mrb[0].mxu0 %v6905
      %v7138 = vpop.f32.mrb[0].mxu0
      %v7139 = vadd.f32 %v7006, %v7138
      %v7140 = vpop.f32.mrb[0].mxu0
      %v7141 = vpop.f32.mrb[0].mxu0
      %v7142 = vadd.f32 %v7006, %v7141
      %v7143 = vpop.f32.mrb[0].mxu0
      %7144 = vmatprep.mubr.bf16.mxu0 %v6908
      %7145 = vmatmul.mubr.bf16.gmra.mrb[0].mxu0 %v6907
      %v7146 = vpop.f32.mrb[0].mxu0
      %v7147 = vadd.f32 %v7006, %v7146
      %v7148 = vpop.f32.mrb[0].mxu0
      %v7149 = vpop.f32.mrb[0].mxu0
      %v7150 = vadd.f32 %v7006, %v7149
      %v7151 = vpop.f32.mrb[0].mxu0
      %7152 = vmatprep.mubr.bf16.mxu0 %v6910
      %7153 = vmatmul.mubr.bf16.gmra.mrb[0].mxu0 %v6909
      %v7154 = vpop.f32.mrb[0].mxu0
      %v7155 = vadd.f32 %v7006, %v7154
      %v7156 = vpop.f32.mrb[0].mxu0
      %v7157 = vpop.f32.mrb[0].mxu0
      %v7158 = vadd.f32 %v7006, %v7157
      %v7159 = vpop.f32.mrb[0].mxu0
      %7160 = vmatprep.mubr.bf16.mxu0 %v6912
      %7161 = vmatmul.mubr.bf16.gmra.mrb[0].mxu0 %v6911
      %v7162 = vpop.f32.mrb[0].mxu0
      %v7163 = vadd.f32 %v7006, %v7162
      %v7164 = vpop.f32.mrb[0].mxu0
      %v7165 = vpop.f32.mrb[0].mxu0
      %v7166 = vadd.f32 %v7006, %v7165
      %v7167 = vpop.f32.mrb[0].mxu0
      %7168 = vmatprep.mubr.bf16.mxu0 %v6914
      %7169 = vmatmul.mubr.bf16.gmra.mrb[0].mxu0 %v6913
      %v7170 = vpop.f32.mrb[0].mxu0
      %v7171 = vadd.f32 %v7006, %v7170
      %v7172 = vpop.f32.mrb[0].mxu0
      %v7173 = vpop.f32.mrb[0].mxu0
      %v7174 = vadd.f32 %v7006, %v7173
      %v7175 = vpop.f32.mrb[0].mxu0
      %7176 = vmatprep.mubr.bf16.mxu0 %v6916
      %7177 = vmatmul.mubr.bf16.gmra.mrb[0].mxu0 %v6915
      %v7178 = vpop.f32.mrb[0].mxu0
      %v7179 = vadd.f32 %v7006, %v7178
      %v7180 = vpop.f32.mrb[0].mxu0
      %v7181 = vpop.f32.mrb[0].mxu0
      %v7182 = vadd.f32 %v7006, %v7181
      %v7183 = vpop.f32.mrb[0].mxu0
      %7184 = vmatprep.mubr.bf16.mxu0 %v6918
      %7185 = vmatmul.mubr.bf16.gmra.mrb[0].mxu0 %v6917
      %v7186 = vpop.f32.mrb[0].mxu0
      %v7187 = vadd.f32 %v7006, %v7186
      %v7188 = vpop.f32.mrb[0].mxu0
      %v7189 = vpop.f32.mrb[0].mxu0
      %v7190 = vadd.f32 %v7006, %v7189
      %v7191 = vpop.f32.mrb[0].mxu0
      %7192 = vmatprep.mubr.bf16.mxu0 %v6920
      %7193 = vmatmul.mubr.bf16.gmra.mrb[0].mxu0 %v6919
      %v7194 = vpop.f32.mrb[0].mxu0
      %v7195 = vadd.f32 %v7006, %v7194
      %v7196 = vpop.f32.mrb[0].mxu0
      %v7197 = vpop.f32.mrb[0].mxu0
      %v7198 = vadd.f32 %v7006, %v7197
      %v7199 = vpop.f32.mrb[0].mxu0
      %7200 = vmatprep.mubr.bf16.mxu0 %v6922
      %7201 = vmatmul.mubr.bf16.gmra.mrb[0].mxu0 %v6921
      %v7202 = vpop.f32.mrb[0].mxu0
      %v7203 = vadd.f32 %v7006, %v7202
      %v7204 = vpop.f32.mrb[0].mxu0
      %v7205 = vpop.f32.mrb[0].mxu0
      %v7206 = vadd.f32 %v7006, %v7205
      %v7207 = vpop.f32.mrb[0].mxu0
      %7208 = vmatprep.mubr.bf16.mxu0 %v6924
      %7209 = vmatmul.mubr.bf16.gmra.mrb[0].mxu0 %v6923
      %v7210 = vpop.f32.mrb[0].mxu0
      %v7211 = vadd.f32 %v7006, %v7210
      %v7212 = vpop.f32.mrb[0].mxu0
      %v7213 = vpop.f32.mrb[0].mxu0
      %v7214 = vadd.f32 %v7006, %v7213
      %v7215 = vpop.f32.mrb[0].mxu0
      %7216 = vmatprep.mubr.bf16.mxu0 %v6926
      %7217 = vmatmul.mubr.bf16.gmra.mrb[0].mxu0 %v6925
      %v7218 = vpop.f32.mrb[0].mxu0
      %v7219 = vadd.f32 %v7006, %v7218
      %v7220 = vpop.f32.mrb[0].mxu0
      %v7221 = vpop.f32.mrb[0].mxu0
      %v7222 = vadd.f32 %v7006, %v7221
      %v7223 = vpop.f32.mrb[0].mxu0
      %7224 = vmatprep.mubr.bf16.mxu0 %v6928
      %7225 = vmatmul.mubr.bf16.gmra.mrb[0].mxu0 %v6927
      %v7226 = vpop.f32.mrb[0].mxu0
      %v7227 = vadd.f32 %v7006, %v7226
      %v7228 = vpop.f32.mrb[0].mxu0
      %v7229 = vpop.f32.mrb[0].mxu0
      %v7230 = vadd.f32 %v7006, %v7229
      %v7231 = vpop.f32.mrb[0].mxu0
      %7232 = vmatprep.mubr.bf16.mxu0 %v6930
      %7233 = vmatmul.mubr.bf16.gmra.mrb[0].mxu0 %v6929
      %v7234 = vpop.f32.mrb[0].mxu0
      %v7235 = vadd.f32 %v7006, %v7234
      %v7236 = vpop.f32.mrb[0].mxu0
      %v7237 = vpop.f32.mrb[0].mxu0
      %v7238 = vadd.f32 %v7006, %v7237
      %v7239 = vpop.f32.mrb[0].mxu0
      %7240 = vmatprep.mubr.bf16.mxu0 %v6932
      %7241 = vmatmul.mubr.bf16.gmra.mrb[0].mxu0 %v6931
      %v7242 = vpop.f32.mrb[0].mxu0
      %v7243 = vadd.f32 %v7006, %v7242
      %v7244 = vpop.f32.mrb[0].mxu0
      %v7245 = vpop.f32.mrb[0].mxu0
      %v7246 = vadd.f32 %v7006, %v7245
      %v7247 = vpop.f32.mrb[0].mxu0
      %7248 = vmatprep.mubr.bf16.mxu0 %v6934
      %7249 = vmatmul.mubr.bf16.gmra.mrb[0].mxu0 %v6933
      %v7250 = vpop.f32.mrb[0].mxu0
      %v7251 = vadd.f32 %v7006, %v7250
      %v7252 = vpop.f32.mrb[0].mxu0
      %v7253 = vpop.f32.mrb[0].mxu0
      %v7254 = vadd.f32 %v7006, %v7253
      %v7255 = vpop.f32.mrb[0].mxu0
      %7256 = vmatprep.mubr.bf16.mxu0 %v6936
      %7257 = vmatmul.mubr.bf16.gmra.mrb[0].mxu0 %v6935
      %v7258 = vpop.f32.mrb[0].mxu0
      %v7259 = vadd.f32 %v7006, %v7258
      %v7260 = vpop.f32.mrb[0].mxu0
      %v7261 = vpop.f32.mrb[0].mxu0
      %v7262 = vadd.f32 %v7006, %v7261
      %v7263 = vpop.f32.mrb[0].mxu0
      %7264 = vmatprep.mubr.bf16.mxu0 %v6938
      %7265 = vmatmul.mubr.bf16.gmra.mrb[0].mxu0 %v6937
      %v7266 = vpop.f32.mrb[0].mxu0
      %v7267 = vadd.f32 %v7006, %v7266
      %v7268 = vpop.f32.mrb[0].mxu0
      %v7269 = vpop.f32.mrb[0].mxu0
      %v7270 = vadd.f32 %v7006, %v7269
      %v7271 = vpop.f32.mrb[0].mxu0
      %7272 = vmatprep.mubr.bf16.mxu0 %v6940
      %7273 = vmatmul.mubr.bf16.gmra.mrb[0].mxu0 %v6939
      %v7274 = vpop.f32.mrb[0].mxu0
      %v7275 = vadd.f32 %v7006, %v7274
      %v7276 = vpop.f32.mrb[0].mxu0
      %v7277 = vpop.f32.mrb[0].mxu0
      %v7278 = vadd.f32 %v7006, %v7277
      %v7279 = vpop.f32.mrb[0].mxu0
      %7280 = vmatprep.mubr.bf16.mxu0 %v6942
      %7281 = vmatmul.mubr.bf16.gmra.mrb[0].mxu0 %v6941
      %v7282 = vpop.f32.mrb[0].mxu0
      %v7283 = vadd.f32 %v7006, %v7282
      %v7284 = vpop.f32.mrb[0].mxu0
      %v7285 = vpop.f32.mrb[0].mxu0
      %v7286 = vadd.f32 %v7006, %v7285
      %v7287 = vpop.f32.mrb[0].mxu0
      %7288 = vmatprep.mubr.bf16.mxu0 %v6944
      %7289 = vmatmul.mubr.bf16.gmra.mrb[0].mxu0 %v6943
      %v7290 = vpop.f32.mrb[0].mxu0
      %v7291 = vadd.f32 %v7006, %v7290
      %v7292 = vpop.f32.mrb[0].mxu0
      %v7293 = vpop.f32.mrb[0].mxu0
      %v7294 = vadd.f32 %v7006, %v7293
      %v7295 = vpop.f32.mrb[0].mxu0
      %7296 = vmatprep.mubr.bf16.mxu0 %v6946
      %7297 = vmatmul.mubr.bf16.gmra.mrb[0].mxu0 %v6945
      %v7298 = vpop.f32.mrb[0].mxu0
      %v7299 = vadd.f32 %v7006, %v7298
      %v7300 = vpop.f32.mrb[0].mxu0
      %v7301 = vpop.f32.mrb[0].mxu0
      %v7302 = vadd.f32 %v7006, %v7301
      %v7303 = vpop.f32.mrb[0].mxu0
      %7304 = vmatprep.mubr.bf16.mxu0 %v6948
      %7305 = vmatmul.mubr.bf16.gmra.mrb[0].mxu0 %v6947
      %v7306 = vpop.f32.mrb[0].mxu0
      %v7307 = vadd.f32 %v7006, %v7306
      %v7308 = vpop.f32.mrb[0].mxu0
      %v7309 = vpop.f32.mrb[0].mxu0
      %v7310 = vadd.f32 %v7006, %v7309
      %v7311 = vpop.f32.mrb[0].mxu0
      %7312 = vmatprep.mubr.bf16.mxu0 %v6950
      %7313 = vmatmul.mubr.bf16.gmra.mrb[0].mxu0 %v6949
      %v7314 = vpop.f32.mrb[0].mxu0
      %v7315 = vadd.f32 %v7006, %v7314
      %v7316 = vpop.f32.mrb[0].mxu0
      %v7317 = vpop.f32.mrb[0].mxu0
      %v7318 = vadd.f32 %v7006, %v7317
      %v7319 = vpop.f32.mrb[0].mxu0
      %7320 = vmatprep.mubr.bf16.mxu0 %v6952
      %7321 = vmatmul.mubr.bf16.gmra.mrb[0].mxu0 %v6951
      %v7322 = vpop.f32.mrb[0].mxu0
      %v7323 = vadd.f32 %v7006, %v7322
      %v7324 = vpop.f32.mrb[0].mxu0
      %v7325 = vpop.f32.mrb[0].mxu0
      %v7326 = vadd.f32 %v7006, %v7325
      %v7327 = vpop.f32.mrb[0].mxu0
      %7328 = vmatprep.mubr.bf16.mxu0 %v6954
      %7329 = vmatmul.mubr.bf16.gmra.mrb[0].mxu0 %v6953
      %v7330 = vpop.f32.mrb[0].mxu0
      %v7331 = vadd.f32 %v7006, %v7330
      %v7332 = vpop.f32.mrb[0].mxu0
      %v7333 = vpop.f32.mrb[0].mxu0
      %v7334 = vadd.f32 %v7006, %v7333
      %v7335 = vpop.f32.mrb[0].mxu0
      %7336 = vmatprep.mubr.bf16.mxu0 %v6956
      %7337 = vmatmul.mubr.bf16.gmra.mrb[0].mxu0 %v6955
      %v7338 = vpop.f32.mrb[0].mxu0
      %v7339 = vadd.f32 %v7006, %v7338
      %v7340 = vpop.f32.mrb[0].mxu0
      %v7341 = vpop.f32.mrb[0].mxu0
      %v7342 = vadd.f32 %v7006, %v7341
      %v7343 = vpop.f32.mrb[0].mxu0
      %7344 = vmatprep.mubr.bf16.mxu0 %v6958
      %7345 = vmatmul.mubr.bf16.gmra.mrb[0].mxu0 %v6957
      %v7346 = vpop.f32.mrb[0].mxu0
      %v7347 = vadd.f32 %v7006, %v7346
      %v7348 = vpop.f32.mrb[0].mxu0
      %v7349 = vpop.f32.mrb[0].mxu0
      %v7350 = vadd.f32 %v7006, %v7349
      %v7351 = vpop.f32.mrb[0].mxu0
      %7352 = vmatprep.mubr.bf16.mxu0 %v6960
      %7353 = vmatmul.mubr.bf16.gmra.mrb[0].mxu0 %v6959
      %v7354 = vpop.f32.mrb[0].mxu0
      %v7355 = vadd.f32 %v7006, %v7354
      %v7356 = vpop.f32.mrb[0].mxu0
      %v7357 = vpop.f32.mrb[0].mxu0
      %v7358 = vadd.f32 %v7006, %v7357
      %v7359 = vpop.f32.mrb[0].mxu0
      %7360 = vmatprep.mubr.bf16.mxu0 %v6962
      %7361 = vmatmul.mubr.bf16.gmra.mrb[0].mxu0 %v6961
      %v7362 = vpop.f32.mrb[0].mxu0
      %v7363 = vadd.f32 %v7006, %v7362
      %v7364 = vpop.f32.mrb[0].mxu0
      %v7365 = vpop.f32.mrb[0].mxu0
      %v7366 = vadd.f32 %v7006, %v7365
      %v7367 = vpop.f32.mrb[0].mxu0
      %7368 = vmatprep.mubr.bf16.mxu0 %v6964
      %7369 = vmatmul.mubr.bf16.gmra.mrb[0].mxu0 %v6963
      %v7370 = vpop.f32.mrb[0].mxu0
      %v7371 = vadd.f32 %v7006, %v7370
      %v7372 = vpop.f32.mrb[0].mxu0
      %v7373 = vpop.f32.mrb[0].mxu0
      %v7374 = vadd.f32 %v7006, %v7373
      %v7375 = vpop.f32.mrb[0].mxu0
      %7376 = vmatprep.mubr.bf16.mxu0 %v6966
      %7377 = vmatmul.mubr.bf16.gmra.mrb[0].mxu0 %v6965
      %v7378 = vpop.f32.mrb[0].mxu0
      %v7379 = vadd.f32 %v7006, %v7378
      %v7380 = vpop.f32.mrb[0].mxu0
      %v7381 = vpop.f32.mrb[0].mxu0
      %v7382 = vadd.f32 %v7006, %v7381
      %v7383 = vpop.f32.mrb[0].mxu0
      %7384 = vmatprep.mubr.bf16.mxu0 %v6968
      %7385 = vmatmul.mubr.bf16.gmra.mrb[0].mxu0 %v6967
      %v7386 = vpop.f32.mrb[0].mxu0
      %v7387 = vadd.f32 %v7006, %v7386
      %v7388 = vpop.f32.mrb[0].mxu0
      %v7389 = vpop.f32.mrb[0].mxu0
      %v7390 = vadd.f32 %v7006, %v7389
      %v7391 = vpop.f32.mrb[0].mxu0
      %7392 = vdwg.mxu0
      %vm7393 = vcmask 523264
      %7394 = vst.msk [vmem:[%s280] sm:$0xff] %vm7393, %v7139
      %7395 = vst.msk [vmem:[%s280 + $0x8] sm:$0xff] %vm7393, %v7142
      %7396 = vst.msk [vmem:[%s280 + $0x10] sm:$0xff] %vm7393, %v7147
      %7397 = vst.msk [vmem:[%s280 + $0x18] sm:$0xff] %vm7393, %v7150
      %7398 = vst.msk [vmem:[%s280 + $0x20] sm:$0xff] %vm7393, %v7155
      %7399 = vst.msk [vmem:[%s280 + $0x28] sm:$0xff] %vm7393, %v7158
      %7400 = vst.msk [vmem:[%s280 + $0x30] sm:$0xff] %vm7393, %v7163
      %7401 = vst.msk [vmem:[%s280 + $0x38] sm:$0xff] %vm7393, %v7166
      %7402 = vst.msk [vmem:[%s280 + $0x40] sm:$0xff] %vm7393, %v7171
      %7403 = vst.msk [vmem:[%s280 + $0x48] sm:$0xff] %vm7393, %v7174
      %7404 = vst.msk [vmem:[%s280 + $0x50] sm:$0xff] %vm7393, %v7179
      %7405 = vst.msk [vmem:[%s280 + $0x58] sm:$0xff] %vm7393, %v7182
      %7406 = vst.msk [vmem:[%s280 + $0x60] sm:$0xff] %vm7393, %v7187
      %7407 = vst.msk [vmem:[%s280 + $0x68] sm:$0xff] %vm7393, %v7190
      %7408 = vst.msk [vmem:[%s280 + $0x70] sm:$0xff] %vm7393, %v7195
      %7409 = vst.msk [vmem:[%s280 + $0x78] sm:$0xff] %vm7393, %v7198
      %7410 = vst.msk [vmem:[%s280 + $0x80] sm:$0xff] %vm7393, %v7203
      %7411 = vst.msk [vmem:[%s280 + $0x88] sm:$0xff] %vm7393, %v7206
      %7412 = vst.msk [vmem:[%s280 + $0x90] sm:$0xff] %vm7393, %v7211
      %7413 = vst.msk [vmem:[%s280 + $0x98] sm:$0xff] %vm7393, %v7214
      %7414 = vst.msk [vmem:[%s280 + $0xa0] sm:$0xff] %vm7393, %v7219
      %7415 = vst.msk [vmem:[%s280 + $0xa8] sm:$0xff] %vm7393, %v7222
      %7416 = vst.msk [vmem:[%s280 + $0xb0] sm:$0xff] %vm7393, %v7227
      %7417 = vst.msk [vmem:[%s280 + $0xb8] sm:$0xff] %vm7393, %v7230
      %7418 = vst.msk [vmem:[%s280 + $0xc0] sm:$0xff] %vm7393, %v7235
      %7419 = vst.msk [vmem:[%s280 + $0xc8] sm:$0xff] %vm7393, %v7238
      %7420 = vst.msk [vmem:[%s280 + $0xd0] sm:$0xff] %vm7393, %v7243
      %7421 = vst.msk [vmem:[%s280 + $0xd8] sm:$0xff] %vm7393, %v7246
      %7422 = vst.msk [vmem:[%s280 + $0xe0] sm:$0xff] %vm7393, %v7251
      %7423 = vst.msk [vmem:[%s280 + $0xe8] sm:$0xff] %vm7393, %v7254
      %7424 = vst.msk [vmem:[%s280 + $0xf0] sm:$0xff] %vm7393, %v7259
      %7425 = vst.msk [vmem:[%s280 + $0xf8] sm:$0xff] %vm7393, %v7262
      %7426 = vst.msk [vmem:[%s280 + $0x100] sm:$0xff] %vm7393, %v7267
      %7427 = vst.msk [vmem:[%s280 + $0x108] sm:$0xff] %vm7393, %v7270
      %7428 = vst.msk [vmem:[%s280 + $0x110] sm:$0xff] %vm7393, %v7275
      %7429 = vst.msk [vmem:[%s280 + $0x118] sm:$0xff] %vm7393, %v7278
      %7430 = vst.msk [vmem:[%s280 + $0x120] sm:$0xff] %vm7393, %v7283
      %7431 = vst.msk [vmem:[%s280 + $0x128] sm:$0xff] %vm7393, %v7286
      %7432 = vst.msk [vmem:[%s280 + $0x130] sm:$0xff] %vm7393, %v7291
      %7433 = vst.msk [vmem:[%s280 + $0x138] sm:$0xff] %vm7393, %v7294
      %7434 = vst.msk [vmem:[%s280 + $0x140] sm:$0xff] %vm7393, %v7299
      %7435 = vst.msk [vmem:[%s280 + $0x148] sm:$0xff] %vm7393, %v7302
      %7436 = vst.msk [vmem:[%s280 + $0x150] sm:$0xff] %vm7393, %v7307
      %7437 = vst.msk [vmem:[%s280 + $0x158] sm:$0xff] %vm7393, %v7310
      %7438 = vst.msk [vmem:[%s280 + $0x160] sm:$0xff] %vm7393, %v7315
      %7439 = vst.msk [vmem:[%s280 + $0x168] sm:$0xff] %vm7393, %v7318
      %7440 = vst.msk [vmem:[%s280 + $0x170] sm:$0xff] %vm7393, %v7323
      %7441 = vst.msk [vmem:[%s280 + $0x178] sm:$0xff] %vm7393, %v7326
      %7442 = vst.msk [vmem:[%s280 + $0x180] sm:$0xff] %vm7393, %v7331
      %7443 = vst.msk [vmem:[%s280 + $0x188] sm:$0xff] %vm7393, %v7334
      %7444 = vst.msk [vmem:[%s280 + $0x190] sm:$0xff] %vm7393, %v7339
      %7445 = vst.msk [vmem:[%s280 + $0x198] sm:$0xff] %vm7393, %v7342
      %7446 = vst.msk [vmem:[%s280 + $0x1a0] sm:$0xff] %vm7393, %v7347
      %7447 = vst.msk [vmem:[%s280 + $0x1a8] sm:$0xff] %vm7393, %v7350
      %7448 = vst.msk [vmem:[%s280 + $0x1b0] sm:$0xff] %vm7393, %v7355
      %7449 = vst.msk [vmem:[%s280 + $0x1b8] sm:$0xff] %vm7393, %v7358
      %7450 = vst.msk [vmem:[%s280 + $0x1c0] sm:$0xff] %vm7393, %v7363
      %7451 = vst.msk [vmem:[%s280 + $0x1c8] sm:$0xff] %vm7393, %v7366
      %7452 = vst.msk [vmem:[%s280 + $0x1d0] sm:$0xff] %vm7393, %v7371
      %7453 = vst.msk [vmem:[%s280 + $0x1d8] sm:$0xff] %vm7393, %v7374
      %7454 = vst.msk [vmem:[%s280 + $0x1e0] sm:$0xff] %vm7393, %v7379
      %7455 = vst.msk [vmem:[%s280 + $0x1e8] sm:$0xff] %vm7393, %v7382
      %7456 = vst.msk [vmem:[%s280 + $0x1f0] sm:$0xff] %vm7393, %v7387
      %7457 = vst.msk [vmem:[%s280 + $0x1f8] sm:$0xff] %vm7393, %v7390
      %s7458 = smul.u32 64, %s18
      %p7459 = scmp.lt.s32.totalorder %s7458, 127
      %s7460 = scalar_select %p7459, %s7458, 127
      %s7461 = smul.addr %s7460, 8
      %s7462 = scalar_lea.vmem %s7, %s7461
      // Predicated region
      $region49: #{_forward_main.1} parent=47 // pred_check
        %p7463 = pneg %p188
      $region50: #{_forward_main.1} parent=47 // pred_check_branch
        %7465 = sbr.rel (%p7463) target = $region52
      $region51: #{_forward_main.1} parent=47 // pred_region
        %s7466 = smul.u32 64, %s18
      $region52: #{_forward_main.1} parent=47 // pred_fallthru
        _
    $region48: #{_forward_main.1} parent=5 // pred_fallthru
      _
    %p7467 = scmp.le.s32.totalorder 2, %s13
    // Predicated region
    $region53: #{_forward_main.1} parent=5 // pred_check
      %p7468 = pneg %p7467
    $region54: #{_forward_main.1} parent=5 // pred_check_branch
      %7470 = sbr.rel (%p7468) target = $region56
    $region55: #{_forward_main.1} parent=5 // pred_region
      %s7471 = ssub.s32 %s13, 2
      // Predicated region
      $region57: #{_forward_main.1} parent=55 // pred_check
        %p7472 = pneg %p194
      $region58: #{_forward_main.1} parent=55 // pred_check_branch
        %7474 = sbr.rel (%p7472) target = $region60
      $region59: #{_forward_main.1} parent=55 // pred_region
        %s7475 = smul.u32 64, %s19
        %p7476 = scmp.lt.s32.totalorder %s7475, 127
        %s7477 = scalar_select %p7476, %s7475, 127
        %s7478 = smul.addr %s7477, 8
        %s7479 = scalar_lea.vmem %s7, %s7478
      $region60: #{_forward_main.1} parent=55 // pred_fallthru
        _
    $region56: #{_forward_main.1} parent=5 // pred_fallthru
      _
  $region6: #{_forward_main.1} parent=0 // loop_footer
    %s17 = sadd.s32 1, %s13
  $region7: #{_forward_main.1} parent=0 // loop_footer_branch
    %12 = sbr.rel target = $region3
  $region8: #{_forward_main.1} parent=0 // loop_exit
    _

</llo_original>
